<compile_context>
chip_gen: v5e
topology: v5e:2x2
jax: 0.10.0
libtpu: 0.0.40
codegen_flags: <defaults>
</compile_context>

<pallas_src>
import functools

import jax
import jax.numpy as jnp
from jax import lax
from jax.experimental import pallas as pl
from jax.experimental.pallas import tpu as pltpu

LANES = 128   # in-VMEM channel padding (lane width); padded channels never hit HBM


# ------------------------------ in-kernel helpers ------------------------------

def _maxpool3d_k3s2p1(y, axes=(1, 2, 3)):
    """Exact MaxPool3d(kernel=3, stride=2, padding=1) on a (..., D, H, W, C) value.

    Window bounds are clamped to the valid range, identical to PyTorch's -inf padding.
    Channels stay in the lane dimension (VPU max only)."""
    def pool_axis(t, axis):
        n = t.shape[axis]
        n_out = (n - 1) // 2 + 1
        parts = []
        for o in range(n_out):
            lo = max(2 * o - 1, 0)
            hi = min(2 * o + 2, n)
            sl = lax.slice_in_dim(t, lo, hi, axis=axis)
            parts.append(jnp.max(sl, axis=axis, keepdims=True))
        return parts[0] if n_out == 1 else jnp.concatenate(parts, axis=axis)

    for ax in axes:
        y = pool_axis(y, ax)
    return y


def _zero_pad1(t, axes):
    """Zero-pad by one element on both sides of each axis (concat-based, Mosaic-friendly)."""
    for ax in axes:
        shp = list(t.shape)
        shp[ax] = 1
        z = jnp.zeros(shp, t.dtype)
        t = jnp.concatenate([z, t, z], axis=ax)
    return t


def _take2(t, axis, k):
    """Pick indices {k, k+2} along `axis` (the two stride-2 output taps of a padded axis)."""
    return jnp.concatenate([lax.slice_in_dim(t, k, k + 1, axis=axis),
                            lax.slice_in_dim(t, k + 2, k + 3, axis=axis)], axis=axis)


# --------------------------------- fused kernel --------------------------------

def _gcn_fused_kernel(slab_ref, adj_ref,
                      c1w_ref, c1b_ref, c2w_ref, c2b_ref,
                      g1w_ref, g1b_ref, g2w_ref, g2b_ref, g3w_ref, g3b_ref,
                      f1w_ref, f1b_ref, f2w_ref, f2b_ref,
                      o_ref,
                      *, n_per_graph, dhw, pool_windows, nodes_per_window):
    nv = n_per_graph
    d, h, w = dhw

    # ---- stage 1: Conv3d(1->16, k3, s1, p1) + ReLU (one GEMM over this graph's nv images) ----
    y1 = jnp.dot(slab_ref[0], c1w_ref[...], preferred_element_type=jnp.float32)  # (nv*d*h*w, 128)
    y1 = jnp.maximum(y1 + c1b_ref[...], 0.0)

    # ---- MaxPool3d(3, s2, p1), entirely in VMEM ----
    p1 = _maxpool3d_k3s2p1(y1.reshape(nv, d, h, w, LANES))        # (nv, d/2, h/2, w/2, 128)
    assert p1.shape[1:4] == (4, 4, 4), "fused stage-2 path assumes a 4^3 pooled volume"

    # ---- stage 2: Conv3d(16->32, k3, s2, p1) + ReLU + MaxPool3d(3,2,1) (== global max on 2^3)
    padded = _zero_pad1(p1, (1, 2, 3))                            # (nv, 6, 6, 6, 128)
    taps = []
    for kd in range(3):
        td = _take2(padded, 1, kd)                                # (nv, 2, 6, 6, 128)
        for kh in range(3):
            th = _take2(td, 2, kh)                                # (nv, 2, 2, 6, 128)
            for kw in range(3):
                taps.append(_take2(th, 3, kw))                    # (nv, 2, 2, 2, 128)
    slab2 = jnp.concatenate(taps, axis=-1)                        # (nv, 2, 2, 2, 27*128)
    slab2 = slab2.reshape(nv * 8, 27 * LANES)                     # rows = (img, od, oh, ow)
    y2 = jnp.dot(slab2.astype(jnp.bfloat16), c2w_ref[...],
                 preferred_element_type=jnp.float32)              # (nv*8, 128)
    y2 = jnp.maximum(y2 + c2b_ref[...], 0.0)
    nodes = jnp.max(y2.reshape(nv, 8, LANES), axis=1)             # (nv, 128); cols >= 32 are 0

    # ---- GCN normalization D^-1/2 (A + I) D^-1/2 on this graph's (nv, nv) adjacency ----
    # edge_index from adj.to_sparse() carries no weights, so PyG's gcn_norm sees unit edge
    # weights and unit self-loops: binarize + force the diagonal to 1 is exact here.
    adj = adj_ref[0]
    a = jnp.where(adj != 0, 1.0, 0.0)
    row = lax.broadcasted_iota(jnp.int32, (nv, nv), 0)
    col = lax.broadcasted_iota(jnp.int32, (nv, nv), 1)
    a = jnp.where(row == col, 1.0, a)
    deg_r = jnp.sum(a, axis=1, keepdims=True)
    deg_c = jnp.sum(a, axis=0, keepdims=True)
    inv_r = jnp.where(deg_r > 0, lax.rsqrt(deg_r), 0.0)
    inv_c = jnp.where(deg_c > 0, lax.rsqrt(deg_c), 0.0)
    a_norm = (inv_r * a * inv_c).astype(jnp.float32)

    def gcn_layer(xin, w_ref, b_ref, relu):
        xw = jnp.dot(xin.astype(jnp.bfloat16), w_ref[...],
                     preferred_element_type=jnp.float32)          # (nv, F)
        out = jnp.dot(a_norm, xw, preferred_element_type=jnp.float32) + b_ref[...]
        return jnp.maximum(out, 0.0) if relu else out

    g = gcn_layer(nodes, g1w_ref, g1b_ref, True)
    g = gcn_layer(g, g2w_ref, g2b_ref, True)
    g = gcn_layer(g, g3w_ref, g3b_ref, False)                     # (nv, hidden // 4)

    # ---- MaxPool1d(64): node-major/feature-minor flattening => each window = whole nodes ----
    lane_max = jnp.max(g, axis=1, keepdims=True)                  # (nv, 1)
    win = lane_max.reshape(pool_windows, nodes_per_window)
    pooled = jnp.max(win, axis=1, keepdims=True).reshape(1, pool_windows)

    # ---- fc1 + ReLU + fc2 + softmax ----
    hid = jnp.dot(pooled, f1w_ref[...], preferred_element_type=jnp.float32) + f1b_ref[...]
    hid = jnp.maximum(hid, 0.0)
    logits = jnp.dot(hid, f2w_ref[...], preferred_element_type=jnp.float32) + f2b_ref[...]
    m = jnp.max(logits, axis=-1, keepdims=True)
    e = jnp.exp(logits - m)
    probs = e / jnp.sum(e, axis=-1, keepdims=True)
    o_ref[...] = probs.reshape(o_ref.shape).astype(o_ref.dtype)


# --------------------------- host-side layout helpers --------------------------

def _pad_last(a, n):
    p = n - a.shape[-1]
    return a if p <= 0 else jnp.pad(a, [(0, 0)] * (a.ndim - 1) + [(0, p)])


def _prep_conv_weight(w, cin_pad, cout_pad):
    """torch (O, C, 3, 3, 3) -> (27*cin_pad, cout_pad) bf16, rows ordered (kd, kh, kw, c)."""
    o, c = w.shape[0], w.shape[1]
    wt = jnp.transpose(w, (2, 3, 4, 1, 0))                              # (3, 3, 3, C, O)
    wt = jnp.pad(wt, ((0, 0), (0, 0), (0, 0), (0, cin_pad - c), (0, cout_pad - o)))
    return wt.reshape(27 * cin_pad, cout_pad).astype(jnp.bfloat16)


def _prep_bias(b, n):
    return _pad_last(b, n).reshape(1, n).astype(jnp.float32)


def _im2col_k3s1p1_c1(x):
    """x: (N, D, H, W), single channel -> (N, D*H*W, 27); columns ordered (kd, kh, kw)."""
    n, d, h, w = x.shape
    xp = jnp.pad(x, ((0, 0), (1, 1), (1, 1), (1, 1)))
    taps = [xp[:, kd:kd + d, kh:kh + h, kw:kw + w]
            for kd in range(3) for kh in range(3) for kw in range(3)]
    return jnp.stack(taps, axis=-1).reshape(n, d * h * w, 27)


# ---------------------------------- forward ------------------------------------

def gcn_forward(params, x, adj, batch_size):
    b, nv, d, h, w = x.shape
    assert b == batch_size and adj.shape == (batch_size, nv, nv)
    bn = b * nv

    pd, ph, pw = (d - 1) // 2 + 1, (h - 1) // 2 + 1, (w - 1) // 2 + 1
    assert (pd, ph, pw) == (4, 4, 4), "fused kernel assumes 8^3 input sub-volumes"

    # stage-1 im2col: transpose-free, tap-major columns, bf16 (single tiny XLA fusion).
    # TODO(synk): build these 27 taps in-kernel from the padded volume to drop this last
    #             (~220 KB) intermediate HBM pass.
    slab1 = _im2col_k3s1p1_c1(x.reshape(bn, d, h, w)).astype(jnp.bfloat16)
    slab1 = slab1.reshape(batch_size, nv * d * h * w, 27)

    c1w = _prep_conv_weight(params["conv3d_w"], 1, LANES)        # (27, 128) bf16
    c1b = _prep_bias(params["conv3d_b"], LANES)                  # (1, 128) f32
    c2w = _prep_conv_weight(params["conv3d2_w"], LANES, LANES)   # (27*128, 128) bf16
    c2b = _prep_bias(params["conv3d2_b"], LANES)

    feat = params["g1_w"].shape[0]
    g1w = jnp.pad(params["g1_w"], ((0, LANES - feat), (0, 0))).astype(jnp.bfloat16)
    g2w = params["g2_w"].astype(jnp.bfloat16)
    g3w = params["g3_w"].astype(jnp.bfloat16)
    g1b = params["g1_b"].reshape(1, -1).astype(jnp.float32)
    g2b = params["g2_b"].reshape(1, -1).astype(jnp.float32)
    g3b = params["g3_b"].reshape(1, -1).astype(jnp.float32)
    f1w = params["fc1_w"].astype(jnp.float32)
    f1b = params["fc1_b"].reshape(1, -1).astype(jnp.float32)
    f2w = params["fc2_w"].astype(jnp.float32)
    f2b = params["fc2_b"].reshape(1, -1).astype(jnp.float32)

    f3 = g3w.shape[1]
    assert 64 % f3 == 0 and (nv * f3) % 64 == 0, "MaxPool1d(64) must cover whole nodes"
    nodes_per_window = 64 // f3
    pool_windows = (nv * f3) // 64
    num_classes = f2w.shape[1]

    args = (slab1, adj.astype(jnp.float32),
            c1w, c1b, c2w, c2b,
            g1w, g1b, g2w, g2b, g3w, g3b,
            f1w, f1b, f2w, f2b)

    def per_graph_spec(shape):
        nd = len(shape)
        return pl.BlockSpec((1,) + tuple(shape[1:]), lambda i: (i,) + (0,) * (nd - 1))

    def full_spec(shape):
        nd = len(shape)
        return pl.BlockSpec(tuple(shape), lambda i: (0,) * nd)

    in_specs = ([per_graph_spec(slab1.shape), per_graph_spec(adj.shape)]
                + [full_spec(a.shape) for a in args[2:]])

    kernel = functools.partial(
        _gcn_fused_kernel, n_per_graph=nv, dhw=(d, h, w),
        pool_windows=pool_windows, nodes_per_window=nodes_per_window)

    out = pl.pallas_call(
        kernel,
        out_shape=jax.ShapeDtypeStruct((batch_size, 1, num_classes), jnp.float32),
        grid=(batch_size,),
        in_specs=in_specs,
        out_specs=pl.BlockSpec((1, 1, num_classes), lambda i: (i, 0, 0)),
        compiler_params=pltpu.CompilerParams(dimension_semantics=("parallel",)),
    )(*args)
    return out.reshape(batch_size, num_classes)


# ----------------------------------- main ---------------------------------------

if __name__ == "__main__":
    B, Nv, S = 2, 4, 8                 # batch, sub-volumes (graph nodes) per sample, spatial size
    hidden = 128                       # hidden_channels
    # spatial: 8 -conv-> 8 -pool-> 4 -conv(s2)-> 2 -pool-> 1  =>  32 * 1^3 features per node
    num_node_features = 32
    linear_channels = (Nv * (hidden // 4)) // 64   # = 2
    num_classes = 3

    key = jax.random.PRNGKey(0)
    ks = jax.random.split(key, 16)

    def rnd(k, shape, scale=0.1):
        return scale * jax.random.normal(k, shape, dtype=jnp.float32)

    params = {
        "conv3d_w":  rnd(ks[0], (16, 1, 3, 3, 3)),
        "conv3d_b":  rnd(ks[1], (16,)),
        "conv3d2_w": rnd(ks[2], (32, 16, 3, 3, 3)),
        "conv3d2_b": rnd(ks[3], (32,)),
        "g1_w": rnd(ks[4], (num_node_features, hidden)),
        "g1_b": rnd(ks[5], (hidden,)),
        "g2_w": rnd(ks[6], (hidden, hidden // 2)),
        "g2_b": rnd(ks[7], (hidden // 2,)),
        "g3_w": rnd(ks[8], (hidden // 2, hidden // 4)),
        "g3_b": rnd(ks[9], (hidden // 4,)),
        "fc1_w": rnd(ks[10], (linear_channels, linear_channels * 2)),
        "fc1_b": rnd(ks[11], (linear_channels * 2,)),
        "fc2_w": rnd(ks[12], (linear_channels * 2, num_classes)),
        "fc2_b": rnd(ks[13], (num_classes,)),
    }

    x = jax.random.normal(ks[14], (B, Nv, S, S, S), dtype=jnp.float32)
    a = (jax.random.uniform(ks[15], (B, Nv, Nv)) < 0.5).astype(jnp.float32)
    adj = jnp.maximum(a, jnp.transpose(a, (0, 2, 1)))   # symmetric binary adjacency per graph

    forward = jax.jit(gcn_forward, static_argnums=(3,))
    out = jax.block_until_ready(forward(params, x, adj, B))
    assert out.shape == (B, num_classes)
    assert bool(jnp.all(jnp.isfinite(out)))
    assert bool(jnp.allclose(out.sum(-1), 1.0, atol=1e-5))   # softmax rows sum to 1
    print("KERNEL_OK")
</pallas_src>

<mosaic_0001>
module attributes {stable_mosaic.version = 11 : i64} {
  func.func @_gcn_fused_kernel(%arg0: i32, %arg1: memref<1x2048x27xbf16, #tpu.memory_space<vmem>>, %arg2: memref<1x4x4xf32, #tpu.memory_space<vmem>>, %arg3: memref<27x128xbf16, #tpu.memory_space<vmem>>, %arg4: memref<1x128xf32, #tpu.memory_space<vmem>>, %arg5: memref<3456x128xbf16, #tpu.memory_space<vmem>>, %arg6: memref<1x128xf32, #tpu.memory_space<vmem>>, %arg7: memref<128x128xbf16, #tpu.memory_space<vmem>>, %arg8: memref<1x128xf32, #tpu.memory_space<vmem>>, %arg9: memref<128x64xbf16, #tpu.memory_space<vmem>>, %arg10: memref<1x64xf32, #tpu.memory_space<vmem>>, %arg11: memref<64x32xbf16, #tpu.memory_space<vmem>>, %arg12: memref<1x32xf32, #tpu.memory_space<vmem>>, %arg13: memref<2x4xf32, #tpu.memory_space<vmem>>, %arg14: memref<1x4xf32, #tpu.memory_space<vmem>>, %arg15: memref<4x3xf32, #tpu.memory_space<vmem>>, %arg16: memref<1x3xf32, #tpu.memory_space<vmem>>, %arg17: memref<1x1x3xf32, #tpu.memory_space<vmem>>) attributes {dimension_semantics = [#tpu.dimension_semantics<parallel>], iteration_bounds = array<i64: 2>, scalar_prefetch = 0 : i64, scratch_operands = 0 : i64, tpu.core_type = #tpu.core_type<tc>, window_params = [{transform_indices = @transform_0, window_bounds = array<i64: 1, 2048, 27>}, {transform_indices = @transform_1, window_bounds = array<i64: 1, 4, 4>}, {pipeline_mode = #tpu.pipeline_mode<synchronous>, transform_indices = @transform_2, window_bounds = array<i64: 27, 128>}, {pipeline_mode = #tpu.pipeline_mode<synchronous>, transform_indices = @transform_3, window_bounds = array<i64: 1, 128>}, {pipeline_mode = #tpu.pipeline_mode<synchronous>, transform_indices = @transform_4, window_bounds = array<i64: 3456, 128>}, {pipeline_mode = #tpu.pipeline_mode<synchronous>, transform_indices = @transform_5, window_bounds = array<i64: 1, 128>}, {pipeline_mode = #tpu.pipeline_mode<synchronous>, transform_indices = @transform_6, window_bounds = array<i64: 128, 128>}, {pipeline_mode = #tpu.pipeline_mode<synchronous>, transform_indices = @transform_7, window_bounds = array<i64: 1, 128>}, {pipeline_mode = #tpu.pipeline_mode<synchronous>, transform_indices = @transform_8, window_bounds = array<i64: 128, 64>}, {pipeline_mode = #tpu.pipeline_mode<synchronous>, transform_indices = @transform_9, window_bounds = array<i64: 1, 64>}, {pipeline_mode = #tpu.pipeline_mode<synchronous>, transform_indices = @transform_10, window_bounds = array<i64: 64, 32>}, {pipeline_mode = #tpu.pipeline_mode<synchronous>, transform_indices = @transform_11, window_bounds = array<i64: 1, 32>}, {pipeline_mode = #tpu.pipeline_mode<synchronous>, transform_indices = @transform_12, window_bounds = array<i64: 2, 4>}, {pipeline_mode = #tpu.pipeline_mode<synchronous>, transform_indices = @transform_13, window_bounds = array<i64: 1, 4>}, {pipeline_mode = #tpu.pipeline_mode<synchronous>, transform_indices = @transform_14, window_bounds = array<i64: 4, 3>}, {pipeline_mode = #tpu.pipeline_mode<synchronous>, transform_indices = @transform_15, window_bounds = array<i64: 1, 3>}, {transform_indices = @transform_16, window_bounds = array<i64: 1, 1, 3>}]} {
    %c0 = arith.constant 0 : index
    %c0_0 = arith.constant 0 : index
    %c0_1 = arith.constant 0 : index
    %0 = vector.load %arg1[%c0, %c0_0, %c0_1] : memref<1x2048x27xbf16, #tpu.memory_space<vmem>>, vector<1x2048x27xbf16>
    %1 = vector.shape_cast %0 : vector<1x2048x27xbf16> to vector<2048x27xbf16>
    %c0_2 = arith.constant 0 : index
    %c0_3 = arith.constant 0 : index
    %2 = vector.load %arg3[%c0_2, %c0_3] : memref<27x128xbf16, #tpu.memory_space<vmem>>, vector<27x128xbf16>
    %cst = arith.constant dense<0.000000e+00> : vector<2048x128xf32>
    %3 = tpu.matmul %1, %2, %cst {dimension_numbers = #tpu.dot_dimension_numbers<[1], [0], [0], [1], [0, 0, 1, 1], [], []>} : vector<2048x27xbf16>, vector<27x128xbf16>, vector<2048x128xf32> -> vector<2048x128xf32>
    %c0_4 = arith.constant 0 : index
    %c0_5 = arith.constant 0 : index
    %4 = vector.load %arg4[%c0_4, %c0_5] : memref<1x128xf32, #tpu.memory_space<vmem>>, vector<1x128xf32>
    %5 = vector.broadcast %4 : vector<1x128xf32> to vector<2048x128xf32>
    %6 = arith.addf %3, %5 : vector<2048x128xf32>
    %cst_6 = arith.constant 0.000000e+00 : f32
    %7 = vector.broadcast %cst_6 : f32 to vector<2048x128xf32>
    %8 = arith.maximumf %6, %7 : vector<2048x128xf32>
    %9 = vector.shape_cast %8 : vector<2048x128xf32> to vector<4x8x8x8x128xf32>
    %10 = vector.extract_strided_slice %9 {offsets = [0, 0, 0, 0, 0], sizes = [4, 2, 8, 8, 128], strides = [1, 1, 1, 1, 1]} : vector<4x8x8x8x128xf32> to vector<4x2x8x8x128xf32>
    %cst_7 = arith.constant dense<0xFF800000> : vector<4x8x8x128xf32>
    %11 = vector.multi_reduction <maximumf>, %10, %cst_7 [1] : vector<4x2x8x8x128xf32> to vector<4x8x8x128xf32>
    %12 = vector.shape_cast %11 : vector<4x8x8x128xf32> to vector<4x1x8x8x128xf32>
    %13 = vector.extract_strided_slice %9 {offsets = [0, 1, 0, 0, 0], sizes = [4, 3, 8, 8, 128], strides = [1, 1, 1, 1, 1]} : vector<4x8x8x8x128xf32> to vector<4x3x8x8x128xf32>
    %cst_8 = arith.constant dense<0xFF800000> : vector<4x8x8x128xf32>
    %14 = vector.multi_reduction <maximumf>, %13, %cst_8 [1] : vector<4x3x8x8x128xf32> to vector<4x8x8x128xf32>
    %15 = vector.shape_cast %14 : vector<4x8x8x128xf32> to vector<4x1x8x8x128xf32>
    %16 = vector.extract_strided_slice %9 {offsets = [0, 3, 0, 0, 0], sizes = [4, 3, 8, 8, 128], strides = [1, 1, 1, 1, 1]} : vector<4x8x8x8x128xf32> to vector<4x3x8x8x128xf32>
    %cst_9 = arith.constant dense<0xFF800000> : vector<4x8x8x128xf32>
    %17 = vector.multi_reduction <maximumf>, %16, %cst_9 [1] : vector<4x3x8x8x128xf32> to vector<4x8x8x128xf32>
    %18 = vector.shape_cast %17 : vector<4x8x8x128xf32> to vector<4x1x8x8x128xf32>
    %19 = vector.extract_strided_slice %9 {offsets = [0, 5, 0, 0, 0], sizes = [4, 3, 8, 8, 128], strides = [1, 1, 1, 1, 1]} : vector<4x8x8x8x128xf32> to vector<4x3x8x8x128xf32>
    %cst_10 = arith.constant dense<0xFF800000> : vector<4x8x8x128xf32>
    %20 = vector.multi_reduction <maximumf>, %19, %cst_10 [1] : vector<4x3x8x8x128xf32> to vector<4x8x8x128xf32>
    %21 = vector.shape_cast %20 : vector<4x8x8x128xf32> to vector<4x1x8x8x128xf32>
    %22 = tpu.concatenate %12, %15, %18, %21 in 1 : vector<4x1x8x8x128xf32>, vector<4x1x8x8x128xf32>, vector<4x1x8x8x128xf32>, vector<4x1x8x8x128xf32> -> vector<4x4x8x8x128xf32>
    %23 = vector.extract_strided_slice %22 {offsets = [0, 0, 0, 0, 0], sizes = [4, 4, 2, 8, 128], strides = [1, 1, 1, 1, 1]} : vector<4x4x8x8x128xf32> to vector<4x4x2x8x128xf32>
    %cst_11 = arith.constant dense<0xFF800000> : vector<4x4x8x128xf32>
    %24 = vector.multi_reduction <maximumf>, %23, %cst_11 [2] : vector<4x4x2x8x128xf32> to vector<4x4x8x128xf32>
    %25 = vector.shape_cast %24 : vector<4x4x8x128xf32> to vector<4x4x1x8x128xf32>
    %26 = vector.extract_strided_slice %22 {offsets = [0, 0, 1, 0, 0], sizes = [4, 4, 3, 8, 128], strides = [1, 1, 1, 1, 1]} : vector<4x4x8x8x128xf32> to vector<4x4x3x8x128xf32>
    %cst_12 = arith.constant dense<0xFF800000> : vector<4x4x8x128xf32>
    %27 = vector.multi_reduction <maximumf>, %26, %cst_12 [2] : vector<4x4x3x8x128xf32> to vector<4x4x8x128xf32>
    %28 = vector.shape_cast %27 : vector<4x4x8x128xf32> to vector<4x4x1x8x128xf32>
    %29 = vector.extract_strided_slice %22 {offsets = [0, 0, 3, 0, 0], sizes = [4, 4, 3, 8, 128], strides = [1, 1, 1, 1, 1]} : vector<4x4x8x8x128xf32> to vector<4x4x3x8x128xf32>
    %cst_13 = arith.constant dense<0xFF800000> : vector<4x4x8x128xf32>
    %30 = vector.multi_reduction <maximumf>, %29, %cst_13 [2] : vector<4x4x3x8x128xf32> to vector<4x4x8x128xf32>
    %31 = vector.shape_cast %30 : vector<4x4x8x128xf32> to vector<4x4x1x8x128xf32>
    %32 = vector.extract_strided_slice %22 {offsets = [0, 0, 5, 0, 0], sizes = [4, 4, 3, 8, 128], strides = [1, 1, 1, 1, 1]} : vector<4x4x8x8x128xf32> to vector<4x4x3x8x128xf32>
    %cst_14 = arith.constant dense<0xFF800000> : vector<4x4x8x128xf32>
    %33 = vector.multi_reduction <maximumf>, %32, %cst_14 [2] : vector<4x4x3x8x128xf32> to vector<4x4x8x128xf32>
    %34 = vector.shape_cast %33 : vector<4x4x8x128xf32> to vector<4x4x1x8x128xf32>
    %35 = tpu.concatenate %25, %28, %31, %34 in 2 : vector<4x4x1x8x128xf32>, vector<4x4x1x8x128xf32>, vector<4x4x1x8x128xf32>, vector<4x4x1x8x128xf32> -> vector<4x4x4x8x128xf32>
    %36 = vector.extract_strided_slice %35 {offsets = [0, 0, 0, 0, 0], sizes = [4, 4, 4, 2, 128], strides = [1, 1, 1, 1, 1]} : vector<4x4x4x8x128xf32> to vector<4x4x4x2x128xf32>
    %cst_15 = arith.constant dense<0xFF800000> : vector<4x4x4x128xf32>
    %37 = vector.multi_reduction <maximumf>, %36, %cst_15 [3] : vector<4x4x4x2x128xf32> to vector<4x4x4x128xf32>
    %38 = vector.shape_cast %37 : vector<4x4x4x128xf32> to vector<4x4x4x1x128xf32>
    %39 = vector.extract_strided_slice %35 {offsets = [0, 0, 0, 1, 0], sizes = [4, 4, 4, 3, 128], strides = [1, 1, 1, 1, 1]} : vector<4x4x4x8x128xf32> to vector<4x4x4x3x128xf32>
    %cst_16 = arith.constant dense<0xFF800000> : vector<4x4x4x128xf32>
    %40 = vector.multi_reduction <maximumf>, %39, %cst_16 [3] : vector<4x4x4x3x128xf32> to vector<4x4x4x128xf32>
    %41 = vector.shape_cast %40 : vector<4x4x4x128xf32> to vector<4x4x4x1x128xf32>
    %42 = vector.extract_strided_slice %35 {offsets = [0, 0, 0, 3, 0], sizes = [4, 4, 4, 3, 128], strides = [1, 1, 1, 1, 1]} : vector<4x4x4x8x128xf32> to vector<4x4x4x3x128xf32>
    %cst_17 = arith.constant dense<0xFF800000> : vector<4x4x4x128xf32>
    %43 = vector.multi_reduction <maximumf>, %42, %cst_17 [3] : vector<4x4x4x3x128xf32> to vector<4x4x4x128xf32>
    %44 = vector.shape_cast %43 : vector<4x4x4x128xf32> to vector<4x4x4x1x128xf32>
    %45 = vector.extract_strided_slice %35 {offsets = [0, 0, 0, 5, 0], sizes = [4, 4, 4, 3, 128], strides = [1, 1, 1, 1, 1]} : vector<4x4x4x8x128xf32> to vector<4x4x4x3x128xf32>
    %cst_18 = arith.constant dense<0xFF800000> : vector<4x4x4x128xf32>
    %46 = vector.multi_reduction <maximumf>, %45, %cst_18 [3] : vector<4x4x4x3x128xf32> to vector<4x4x4x128xf32>
    %47 = vector.shape_cast %46 : vector<4x4x4x128xf32> to vector<4x4x4x1x128xf32>
    %48 = tpu.concatenate %38, %41, %44, %47 in 3 : vector<4x4x4x1x128xf32>, vector<4x4x4x1x128xf32>, vector<4x4x4x1x128xf32>, vector<4x4x4x1x128xf32> -> vector<4x4x4x4x128xf32>
    %cst_19 = arith.constant 0.000000e+00 : f32
    %49 = vector.broadcast %cst_19 : f32 to vector<4x1x4x4x128xf32>
    %50 = tpu.concatenate %49, %48, %49 in 1 : vector<4x1x4x4x128xf32>, vector<4x4x4x4x128xf32>, vector<4x1x4x4x128xf32> -> vector<4x6x4x4x128xf32>
    %cst_20 = arith.constant 0.000000e+00 : f32
    %51 = vector.broadcast %cst_20 : f32 to vector<4x6x1x4x128xf32>
    %52 = tpu.concatenate %51, %50, %51 in 2 : vector<4x6x1x4x128xf32>, vector<4x6x4x4x128xf32>, vector<4x6x1x4x128xf32> -> vector<4x6x6x4x128xf32>
    %cst_21 = arith.constant 0.000000e+00 : f32
    %53 = vector.broadcast %cst_21 : f32 to vector<4x6x6x1x128xf32>
    %54 = tpu.concatenate %53, %52, %53 in 3 : vector<4x6x6x1x128xf32>, vector<4x6x6x4x128xf32>, vector<4x6x6x1x128xf32> -> vector<4x6x6x6x128xf32>
    %55 = vector.extract_strided_slice %54 {offsets = [0, 0, 0, 0, 0], sizes = [4, 1, 6, 6, 128], strides = [1, 1, 1, 1, 1]} : vector<4x6x6x6x128xf32> to vector<4x1x6x6x128xf32>
    %56 = vector.extract_strided_slice %54 {offsets = [0, 2, 0, 0, 0], sizes = [4, 1, 6, 6, 128], strides = [1, 1, 1, 1, 1]} : vector<4x6x6x6x128xf32> to vector<4x1x6x6x128xf32>
    %57 = tpu.concatenate %55, %56 in 1 : vector<4x1x6x6x128xf32>, vector<4x1x6x6x128xf32> -> vector<4x2x6x6x128xf32>
    %58 = vector.extract_strided_slice %57 {offsets = [0, 0, 0, 0, 0], sizes = [4, 2, 1, 6, 128], strides = [1, 1, 1, 1, 1]} : vector<4x2x6x6x128xf32> to vector<4x2x1x6x128xf32>
    %59 = vector.extract_strided_slice %57 {offsets = [0, 0, 2, 0, 0], sizes = [4, 2, 1, 6, 128], strides = [1, 1, 1, 1, 1]} : vector<4x2x6x6x128xf32> to vector<4x2x1x6x128xf32>
    %60 = tpu.concatenate %58, %59 in 2 : vector<4x2x1x6x128xf32>, vector<4x2x1x6x128xf32> -> vector<4x2x2x6x128xf32>
    %61 = vector.extract_strided_slice %60 {offsets = [0, 0, 0, 0, 0], sizes = [4, 2, 2, 1, 128], strides = [1, 1, 1, 1, 1]} : vector<4x2x2x6x128xf32> to vector<4x2x2x1x128xf32>
    %62 = vector.extract_strided_slice %60 {offsets = [0, 0, 0, 2, 0], sizes = [4, 2, 2, 1, 128], strides = [1, 1, 1, 1, 1]} : vector<4x2x2x6x128xf32> to vector<4x2x2x1x128xf32>
    %63 = tpu.concatenate %61, %62 in 3 : vector<4x2x2x1x128xf32>, vector<4x2x2x1x128xf32> -> vector<4x2x2x2x128xf32>
    %64 = vector.extract_strided_slice %60 {offsets = [0, 0, 0, 1, 0], sizes = [4, 2, 2, 1, 128], strides = [1, 1, 1, 1, 1]} : vector<4x2x2x6x128xf32> to vector<4x2x2x1x128xf32>
    %65 = vector.extract_strided_slice %60 {offsets = [0, 0, 0, 3, 0], sizes = [4, 2, 2, 1, 128], strides = [1, 1, 1, 1, 1]} : vector<4x2x2x6x128xf32> to vector<4x2x2x1x128xf32>
    %66 = tpu.concatenate %64, %65 in 3 : vector<4x2x2x1x128xf32>, vector<4x2x2x1x128xf32> -> vector<4x2x2x2x128xf32>
    %67 = vector.extract_strided_slice %60 {offsets = [0, 0, 0, 2, 0], sizes = [4, 2, 2, 1, 128], strides = [1, 1, 1, 1, 1]} : vector<4x2x2x6x128xf32> to vector<4x2x2x1x128xf32>
    %68 = vector.extract_strided_slice %60 {offsets = [0, 0, 0, 4, 0], sizes = [4, 2, 2, 1, 128], strides = [1, 1, 1, 1, 1]} : vector<4x2x2x6x128xf32> to vector<4x2x2x1x128xf32>
    %69 = tpu.concatenate %67, %68 in 3 : vector<4x2x2x1x128xf32>, vector<4x2x2x1x128xf32> -> vector<4x2x2x2x128xf32>
    %70 = vector.extract_strided_slice %57 {offsets = [0, 0, 1, 0, 0], sizes = [4, 2, 1, 6, 128], strides = [1, 1, 1, 1, 1]} : vector<4x2x6x6x128xf32> to vector<4x2x1x6x128xf32>
    %71 = vector.extract_strided_slice %57 {offsets = [0, 0, 3, 0, 0], sizes = [4, 2, 1, 6, 128], strides = [1, 1, 1, 1, 1]} : vector<4x2x6x6x128xf32> to vector<4x2x1x6x128xf32>
    %72 = tpu.concatenate %70, %71 in 2 : vector<4x2x1x6x128xf32>, vector<4x2x1x6x128xf32> -> vector<4x2x2x6x128xf32>
    %73 = vector.extract_strided_slice %72 {offsets = [0, 0, 0, 0, 0], sizes = [4, 2, 2, 1, 128], strides = [1, 1, 1, 1, 1]} : vector<4x2x2x6x128xf32> to vector<4x2x2x1x128xf32>
    %74 = vector.extract_strided_slice %72 {offsets = [0, 0, 0, 2, 0], sizes = [4, 2, 2, 1, 128], strides = [1, 1, 1, 1, 1]} : vector<4x2x2x6x128xf32> to vector<4x2x2x1x128xf32>
    %75 = tpu.concatenate %73, %74 in 3 : vector<4x2x2x1x128xf32>, vector<4x2x2x1x128xf32> -> vector<4x2x2x2x128xf32>
    %76 = vector.extract_strided_slice %72 {offsets = [0, 0, 0, 1, 0], sizes = [4, 2, 2, 1, 128], strides = [1, 1, 1, 1, 1]} : vector<4x2x2x6x128xf32> to vector<4x2x2x1x128xf32>
    %77 = vector.extract_strided_slice %72 {offsets = [0, 0, 0, 3, 0], sizes = [4, 2, 2, 1, 128], strides = [1, 1, 1, 1, 1]} : vector<4x2x2x6x128xf32> to vector<4x2x2x1x128xf32>
    %78 = tpu.concatenate %76, %77 in 3 : vector<4x2x2x1x128xf32>, vector<4x2x2x1x128xf32> -> vector<4x2x2x2x128xf32>
    %79 = vector.extract_strided_slice %72 {offsets = [0, 0, 0, 2, 0], sizes = [4, 2, 2, 1, 128], strides = [1, 1, 1, 1, 1]} : vector<4x2x2x6x128xf32> to vector<4x2x2x1x128xf32>
    %80 = vector.extract_strided_slice %72 {offsets = [0, 0, 0, 4, 0], sizes = [4, 2, 2, 1, 128], strides = [1, 1, 1, 1, 1]} : vector<4x2x2x6x128xf32> to vector<4x2x2x1x128xf32>
    %81 = tpu.concatenate %79, %80 in 3 : vector<4x2x2x1x128xf32>, vector<4x2x2x1x128xf32> -> vector<4x2x2x2x128xf32>
    %82 = vector.extract_strided_slice %57 {offsets = [0, 0, 2, 0, 0], sizes = [4, 2, 1, 6, 128], strides = [1, 1, 1, 1, 1]} : vector<4x2x6x6x128xf32> to vector<4x2x1x6x128xf32>
    %83 = vector.extract_strided_slice %57 {offsets = [0, 0, 4, 0, 0], sizes = [4, 2, 1, 6, 128], strides = [1, 1, 1, 1, 1]} : vector<4x2x6x6x128xf32> to vector<4x2x1x6x128xf32>
    %84 = tpu.concatenate %82, %83 in 2 : vector<4x2x1x6x128xf32>, vector<4x2x1x6x128xf32> -> vector<4x2x2x6x128xf32>
    %85 = vector.extract_strided_slice %84 {offsets = [0, 0, 0, 0, 0], sizes = [4, 2, 2, 1, 128], strides = [1, 1, 1, 1, 1]} : vector<4x2x2x6x128xf32> to vector<4x2x2x1x128xf32>
    %86 = vector.extract_strided_slice %84 {offsets = [0, 0, 0, 2, 0], sizes = [4, 2, 2, 1, 128], strides = [1, 1, 1, 1, 1]} : vector<4x2x2x6x128xf32> to vector<4x2x2x1x128xf32>
    %87 = tpu.concatenate %85, %86 in 3 : vector<4x2x2x1x128xf32>, vector<4x2x2x1x128xf32> -> vector<4x2x2x2x128xf32>
    %88 = vector.extract_strided_slice %84 {offsets = [0, 0, 0, 1, 0], sizes = [4, 2, 2, 1, 128], strides = [1, 1, 1, 1, 1]} : vector<4x2x2x6x128xf32> to vector<4x2x2x1x128xf32>
    %89 = vector.extract_strided_slice %84 {offsets = [0, 0, 0, 3, 0], sizes = [4, 2, 2, 1, 128], strides = [1, 1, 1, 1, 1]} : vector<4x2x2x6x128xf32> to vector<4x2x2x1x128xf32>
    %90 = tpu.concatenate %88, %89 in 3 : vector<4x2x2x1x128xf32>, vector<4x2x2x1x128xf32> -> vector<4x2x2x2x128xf32>
    %91 = vector.extract_strided_slice %84 {offsets = [0, 0, 0, 2, 0], sizes = [4, 2, 2, 1, 128], strides = [1, 1, 1, 1, 1]} : vector<4x2x2x6x128xf32> to vector<4x2x2x1x128xf32>
    %92 = vector.extract_strided_slice %84 {offsets = [0, 0, 0, 4, 0], sizes = [4, 2, 2, 1, 128], strides = [1, 1, 1, 1, 1]} : vector<4x2x2x6x128xf32> to vector<4x2x2x1x128xf32>
    %93 = tpu.concatenate %91, %92 in 3 : vector<4x2x2x1x128xf32>, vector<4x2x2x1x128xf32> -> vector<4x2x2x2x128xf32>
    %94 = vector.extract_strided_slice %54 {offsets = [0, 1, 0, 0, 0], sizes = [4, 1, 6, 6, 128], strides = [1, 1, 1, 1, 1]} : vector<4x6x6x6x128xf32> to vector<4x1x6x6x128xf32>
    %95 = vector.extract_strided_slice %54 {offsets = [0, 3, 0, 0, 0], sizes = [4, 1, 6, 6, 128], strides = [1, 1, 1, 1, 1]} : vector<4x6x6x6x128xf32> to vector<4x1x6x6x128xf32>
    %96 = tpu.concatenate %94, %95 in 1 : vector<4x1x6x6x128xf32>, vector<4x1x6x6x128xf32> -> vector<4x2x6x6x128xf32>
    %97 = vector.extract_strided_slice %96 {offsets = [0, 0, 0, 0, 0], sizes = [4, 2, 1, 6, 128], strides = [1, 1, 1, 1, 1]} : vector<4x2x6x6x128xf32> to vector<4x2x1x6x128xf32>
    %98 = vector.extract_strided_slice %96 {offsets = [0, 0, 2, 0, 0], sizes = [4, 2, 1, 6, 128], strides = [1, 1, 1, 1, 1]} : vector<4x2x6x6x128xf32> to vector<4x2x1x6x128xf32>
    %99 = tpu.concatenate %97, %98 in 2 : vector<4x2x1x6x128xf32>, vector<4x2x1x6x128xf32> -> vector<4x2x2x6x128xf32>
    %100 = vector.extract_strided_slice %99 {offsets = [0, 0, 0, 0, 0], sizes = [4, 2, 2, 1, 128], strides = [1, 1, 1, 1, 1]} : vector<4x2x2x6x128xf32> to vector<4x2x2x1x128xf32>
    %101 = vector.extract_strided_slice %99 {offsets = [0, 0, 0, 2, 0], sizes = [4, 2, 2, 1, 128], strides = [1, 1, 1, 1, 1]} : vector<4x2x2x6x128xf32> to vector<4x2x2x1x128xf32>
    %102 = tpu.concatenate %100, %101 in 3 : vector<4x2x2x1x128xf32>, vector<4x2x2x1x128xf32> -> vector<4x2x2x2x128xf32>
    %103 = vector.extract_strided_slice %99 {offsets = [0, 0, 0, 1, 0], sizes = [4, 2, 2, 1, 128], strides = [1, 1, 1, 1, 1]} : vector<4x2x2x6x128xf32> to vector<4x2x2x1x128xf32>
    %104 = vector.extract_strided_slice %99 {offsets = [0, 0, 0, 3, 0], sizes = [4, 2, 2, 1, 128], strides = [1, 1, 1, 1, 1]} : vector<4x2x2x6x128xf32> to vector<4x2x2x1x128xf32>
    %105 = tpu.concatenate %103, %104 in 3 : vector<4x2x2x1x128xf32>, vector<4x2x2x1x128xf32> -> vector<4x2x2x2x128xf32>
    %106 = vector.extract_strided_slice %99 {offsets = [0, 0, 0, 2, 0], sizes = [4, 2, 2, 1, 128], strides = [1, 1, 1, 1, 1]} : vector<4x2x2x6x128xf32> to vector<4x2x2x1x128xf32>
    %107 = vector.extract_strided_slice %99 {offsets = [0, 0, 0, 4, 0], sizes = [4, 2, 2, 1, 128], strides = [1, 1, 1, 1, 1]} : vector<4x2x2x6x128xf32> to vector<4x2x2x1x128xf32>
    %108 = tpu.concatenate %106, %107 in 3 : vector<4x2x2x1x128xf32>, vector<4x2x2x1x128xf32> -> vector<4x2x2x2x128xf32>
    %109 = vector.extract_strided_slice %96 {offsets = [0, 0, 1, 0, 0], sizes = [4, 2, 1, 6, 128], strides = [1, 1, 1, 1, 1]} : vector<4x2x6x6x128xf32> to vector<4x2x1x6x128xf32>
    %110 = vector.extract_strided_slice %96 {offsets = [0, 0, 3, 0, 0], sizes = [4, 2, 1, 6, 128], strides = [1, 1, 1, 1, 1]} : vector<4x2x6x6x128xf32> to vector<4x2x1x6x128xf32>
    %111 = tpu.concatenate %109, %110 in 2 : vector<4x2x1x6x128xf32>, vector<4x2x1x6x128xf32> -> vector<4x2x2x6x128xf32>
    %112 = vector.extract_strided_slice %111 {offsets = [0, 0, 0, 0, 0], sizes = [4, 2, 2, 1, 128], strides = [1, 1, 1, 1, 1]} : vector<4x2x2x6x128xf32> to vector<4x2x2x1x128xf32>
    %113 = vector.extract_strided_slice %111 {offsets = [0, 0, 0, 2, 0], sizes = [4, 2, 2, 1, 128], strides = [1, 1, 1, 1, 1]} : vector<4x2x2x6x128xf32> to vector<4x2x2x1x128xf32>
    %114 = tpu.concatenate %112, %113 in 3 : vector<4x2x2x1x128xf32>, vector<4x2x2x1x128xf32> -> vector<4x2x2x2x128xf32>
    %115 = vector.extract_strided_slice %111 {offsets = [0, 0, 0, 1, 0], sizes = [4, 2, 2, 1, 128], strides = [1, 1, 1, 1, 1]} : vector<4x2x2x6x128xf32> to vector<4x2x2x1x128xf32>
    %116 = vector.extract_strided_slice %111 {offsets = [0, 0, 0, 3, 0], sizes = [4, 2, 2, 1, 128], strides = [1, 1, 1, 1, 1]} : vector<4x2x2x6x128xf32> to vector<4x2x2x1x128xf32>
    %117 = tpu.concatenate %115, %116 in 3 : vector<4x2x2x1x128xf32>, vector<4x2x2x1x128xf32> -> vector<4x2x2x2x128xf32>
    %118 = vector.extract_strided_slice %111 {offsets = [0, 0, 0, 2, 0], sizes = [4, 2, 2, 1, 128], strides = [1, 1, 1, 1, 1]} : vector<4x2x2x6x128xf32> to vector<4x2x2x1x128xf32>
    %119 = vector.extract_strided_slice %111 {offsets = [0, 0, 0, 4, 0], sizes = [4, 2, 2, 1, 128], strides = [1, 1, 1, 1, 1]} : vector<4x2x2x6x128xf32> to vector<4x2x2x1x128xf32>
    %120 = tpu.concatenate %118, %119 in 3 : vector<4x2x2x1x128xf32>, vector<4x2x2x1x128xf32> -> vector<4x2x2x2x128xf32>
    %121 = vector.extract_strided_slice %96 {offsets = [0, 0, 2, 0, 0], sizes = [4, 2, 1, 6, 128], strides = [1, 1, 1, 1, 1]} : vector<4x2x6x6x128xf32> to vector<4x2x1x6x128xf32>
    %122 = vector.extract_strided_slice %96 {offsets = [0, 0, 4, 0, 0], sizes = [4, 2, 1, 6, 128], strides = [1, 1, 1, 1, 1]} : vector<4x2x6x6x128xf32> to vector<4x2x1x6x128xf32>
    %123 = tpu.concatenate %121, %122 in 2 : vector<4x2x1x6x128xf32>, vector<4x2x1x6x128xf32> -> vector<4x2x2x6x128xf32>
    %124 = vector.extract_strided_slice %123 {offsets = [0, 0, 0, 0, 0], sizes = [4, 2, 2, 1, 128], strides = [1, 1, 1, 1, 1]} : vector<4x2x2x6x128xf32> to vector<4x2x2x1x128xf32>
    %125 = vector.extract_strided_slice %123 {offsets = [0, 0, 0, 2, 0], sizes = [4, 2, 2, 1, 128], strides = [1, 1, 1, 1, 1]} : vector<4x2x2x6x128xf32> to vector<4x2x2x1x128xf32>
    %126 = tpu.concatenate %124, %125 in 3 : vector<4x2x2x1x128xf32>, vector<4x2x2x1x128xf32> -> vector<4x2x2x2x128xf32>
    %127 = vector.extract_strided_slice %123 {offsets = [0, 0, 0, 1, 0], sizes = [4, 2, 2, 1, 128], strides = [1, 1, 1, 1, 1]} : vector<4x2x2x6x128xf32> to vector<4x2x2x1x128xf32>
    %128 = vector.extract_strided_slice %123 {offsets = [0, 0, 0, 3, 0], sizes = [4, 2, 2, 1, 128], strides = [1, 1, 1, 1, 1]} : vector<4x2x2x6x128xf32> to vector<4x2x2x1x128xf32>
    %129 = tpu.concatenate %127, %128 in 3 : vector<4x2x2x1x128xf32>, vector<4x2x2x1x128xf32> -> vector<4x2x2x2x128xf32>
    %130 = vector.extract_strided_slice %123 {offsets = [0, 0, 0, 2, 0], sizes = [4, 2, 2, 1, 128], strides = [1, 1, 1, 1, 1]} : vector<4x2x2x6x128xf32> to vector<4x2x2x1x128xf32>
    %131 = vector.extract_strided_slice %123 {offsets = [0, 0, 0, 4, 0], sizes = [4, 2, 2, 1, 128], strides = [1, 1, 1, 1, 1]} : vector<4x2x2x6x128xf32> to vector<4x2x2x1x128xf32>
    %132 = tpu.concatenate %130, %131 in 3 : vector<4x2x2x1x128xf32>, vector<4x2x2x1x128xf32> -> vector<4x2x2x2x128xf32>
    %133 = vector.extract_strided_slice %54 {offsets = [0, 2, 0, 0, 0], sizes = [4, 1, 6, 6, 128], strides = [1, 1, 1, 1, 1]} : vector<4x6x6x6x128xf32> to vector<4x1x6x6x128xf32>
    %134 = vector.extract_strided_slice %54 {offsets = [0, 4, 0, 0, 0], sizes = [4, 1, 6, 6, 128], strides = [1, 1, 1, 1, 1]} : vector<4x6x6x6x128xf32> to vector<4x1x6x6x128xf32>
    %135 = tpu.concatenate %133, %134 in 1 : vector<4x1x6x6x128xf32>, vector<4x1x6x6x128xf32> -> vector<4x2x6x6x128xf32>
    %136 = vector.extract_strided_slice %135 {offsets = [0, 0, 0, 0, 0], sizes = [4, 2, 1, 6, 128], strides = [1, 1, 1, 1, 1]} : vector<4x2x6x6x128xf32> to vector<4x2x1x6x128xf32>
    %137 = vector.extract_strided_slice %135 {offsets = [0, 0, 2, 0, 0], sizes = [4, 2, 1, 6, 128], strides = [1, 1, 1, 1, 1]} : vector<4x2x6x6x128xf32> to vector<4x2x1x6x128xf32>
    %138 = tpu.concatenate %136, %137 in 2 : vector<4x2x1x6x128xf32>, vector<4x2x1x6x128xf32> -> vector<4x2x2x6x128xf32>
    %139 = vector.extract_strided_slice %138 {offsets = [0, 0, 0, 0, 0], sizes = [4, 2, 2, 1, 128], strides = [1, 1, 1, 1, 1]} : vector<4x2x2x6x128xf32> to vector<4x2x2x1x128xf32>
    %140 = vector.extract_strided_slice %138 {offsets = [0, 0, 0, 2, 0], sizes = [4, 2, 2, 1, 128], strides = [1, 1, 1, 1, 1]} : vector<4x2x2x6x128xf32> to vector<4x2x2x1x128xf32>
    %141 = tpu.concatenate %139, %140 in 3 : vector<4x2x2x1x128xf32>, vector<4x2x2x1x128xf32> -> vector<4x2x2x2x128xf32>
    %142 = vector.extract_strided_slice %138 {offsets = [0, 0, 0, 1, 0], sizes = [4, 2, 2, 1, 128], strides = [1, 1, 1, 1, 1]} : vector<4x2x2x6x128xf32> to vector<4x2x2x1x128xf32>
    %143 = vector.extract_strided_slice %138 {offsets = [0, 0, 0, 3, 0], sizes = [4, 2, 2, 1, 128], strides = [1, 1, 1, 1, 1]} : vector<4x2x2x6x128xf32> to vector<4x2x2x1x128xf32>
    %144 = tpu.concatenate %142, %143 in 3 : vector<4x2x2x1x128xf32>, vector<4x2x2x1x128xf32> -> vector<4x2x2x2x128xf32>
    %145 = vector.extract_strided_slice %138 {offsets = [0, 0, 0, 2, 0], sizes = [4, 2, 2, 1, 128], strides = [1, 1, 1, 1, 1]} : vector<4x2x2x6x128xf32> to vector<4x2x2x1x128xf32>
    %146 = vector.extract_strided_slice %138 {offsets = [0, 0, 0, 4, 0], sizes = [4, 2, 2, 1, 128], strides = [1, 1, 1, 1, 1]} : vector<4x2x2x6x128xf32> to vector<4x2x2x1x128xf32>
    %147 = tpu.concatenate %145, %146 in 3 : vector<4x2x2x1x128xf32>, vector<4x2x2x1x128xf32> -> vector<4x2x2x2x128xf32>
    %148 = vector.extract_strided_slice %135 {offsets = [0, 0, 1, 0, 0], sizes = [4, 2, 1, 6, 128], strides = [1, 1, 1, 1, 1]} : vector<4x2x6x6x128xf32> to vector<4x2x1x6x128xf32>
    %149 = vector.extract_strided_slice %135 {offsets = [0, 0, 3, 0, 0], sizes = [4, 2, 1, 6, 128], strides = [1, 1, 1, 1, 1]} : vector<4x2x6x6x128xf32> to vector<4x2x1x6x128xf32>
    %150 = tpu.concatenate %148, %149 in 2 : vector<4x2x1x6x128xf32>, vector<4x2x1x6x128xf32> -> vector<4x2x2x6x128xf32>
    %151 = vector.extract_strided_slice %150 {offsets = [0, 0, 0, 0, 0], sizes = [4, 2, 2, 1, 128], strides = [1, 1, 1, 1, 1]} : vector<4x2x2x6x128xf32> to vector<4x2x2x1x128xf32>
    %152 = vector.extract_strided_slice %150 {offsets = [0, 0, 0, 2, 0], sizes = [4, 2, 2, 1, 128], strides = [1, 1, 1, 1, 1]} : vector<4x2x2x6x128xf32> to vector<4x2x2x1x128xf32>
    %153 = tpu.concatenate %151, %152 in 3 : vector<4x2x2x1x128xf32>, vector<4x2x2x1x128xf32> -> vector<4x2x2x2x128xf32>
    %154 = vector.extract_strided_slice %150 {offsets = [0, 0, 0, 1, 0], sizes = [4, 2, 2, 1, 128], strides = [1, 1, 1, 1, 1]} : vector<4x2x2x6x128xf32> to vector<4x2x2x1x128xf32>
    %155 = vector.extract_strided_slice %150 {offsets = [0, 0, 0, 3, 0], sizes = [4, 2, 2, 1, 128], strides = [1, 1, 1, 1, 1]} : vector<4x2x2x6x128xf32> to vector<4x2x2x1x128xf32>
    %156 = tpu.concatenate %154, %155 in 3 : vector<4x2x2x1x128xf32>, vector<4x2x2x1x128xf32> -> vector<4x2x2x2x128xf32>
    %157 = vector.extract_strided_slice %150 {offsets = [0, 0, 0, 2, 0], sizes = [4, 2, 2, 1, 128], strides = [1, 1, 1, 1, 1]} : vector<4x2x2x6x128xf32> to vector<4x2x2x1x128xf32>
    %158 = vector.extract_strided_slice %150 {offsets = [0, 0, 0, 4, 0], sizes = [4, 2, 2, 1, 128], strides = [1, 1, 1, 1, 1]} : vector<4x2x2x6x128xf32> to vector<4x2x2x1x128xf32>
    %159 = tpu.concatenate %157, %158 in 3 : vector<4x2x2x1x128xf32>, vector<4x2x2x1x128xf32> -> vector<4x2x2x2x128xf32>
    %160 = vector.extract_strided_slice %135 {offsets = [0, 0, 2, 0, 0], sizes = [4, 2, 1, 6, 128], strides = [1, 1, 1, 1, 1]} : vector<4x2x6x6x128xf32> to vector<4x2x1x6x128xf32>
    %161 = vector.extract_strided_slice %135 {offsets = [0, 0, 4, 0, 0], sizes = [4, 2, 1, 6, 128], strides = [1, 1, 1, 1, 1]} : vector<4x2x6x6x128xf32> to vector<4x2x1x6x128xf32>
    %162 = tpu.concatenate %160, %161 in 2 : vector<4x2x1x6x128xf32>, vector<4x2x1x6x128xf32> -> vector<4x2x2x6x128xf32>
    %163 = vector.extract_strided_slice %162 {offsets = [0, 0, 0, 0, 0], sizes = [4, 2, 2, 1, 128], strides = [1, 1, 1, 1, 1]} : vector<4x2x2x6x128xf32> to vector<4x2x2x1x128xf32>
    %164 = vector.extract_strided_slice %162 {offsets = [0, 0, 0, 2, 0], sizes = [4, 2, 2, 1, 128], strides = [1, 1, 1, 1, 1]} : vector<4x2x2x6x128xf32> to vector<4x2x2x1x128xf32>
    %165 = tpu.concatenate %163, %164 in 3 : vector<4x2x2x1x128xf32>, vector<4x2x2x1x128xf32> -> vector<4x2x2x2x128xf32>
    %166 = vector.extract_strided_slice %162 {offsets = [0, 0, 0, 1, 0], sizes = [4, 2, 2, 1, 128], strides = [1, 1, 1, 1, 1]} : vector<4x2x2x6x128xf32> to vector<4x2x2x1x128xf32>
    %167 = vector.extract_strided_slice %162 {offsets = [0, 0, 0, 3, 0], sizes = [4, 2, 2, 1, 128], strides = [1, 1, 1, 1, 1]} : vector<4x2x2x6x128xf32> to vector<4x2x2x1x128xf32>
    %168 = tpu.concatenate %166, %167 in 3 : vector<4x2x2x1x128xf32>, vector<4x2x2x1x128xf32> -> vector<4x2x2x2x128xf32>
    %169 = vector.extract_strided_slice %162 {offsets = [0, 0, 0, 2, 0], sizes = [4, 2, 2, 1, 128], strides = [1, 1, 1, 1, 1]} : vector<4x2x2x6x128xf32> to vector<4x2x2x1x128xf32>
    %170 = vector.extract_strided_slice %162 {offsets = [0, 0, 0, 4, 0], sizes = [4, 2, 2, 1, 128], strides = [1, 1, 1, 1, 1]} : vector<4x2x2x6x128xf32> to vector<4x2x2x1x128xf32>
    %171 = tpu.concatenate %169, %170 in 3 : vector<4x2x2x1x128xf32>, vector<4x2x2x1x128xf32> -> vector<4x2x2x2x128xf32>
    %172 = tpu.concatenate %63, %66, %69, %75, %78, %81, %87, %90, %93, %102, %105, %108, %114, %117, %120, %126 in 4 : vector<4x2x2x2x128xf32>, vector<4x2x2x2x128xf32>, vector<4x2x2x2x128xf32>, vector<4x2x2x2x128xf32>, vector<4x2x2x2x128xf32>, vector<4x2x2x2x128xf32>, vector<4x2x2x2x128xf32>, vector<4x2x2x2x128xf32>, vector<4x2x2x2x128xf32>, vector<4x2x2x2x128xf32>, vector<4x2x2x2x128xf32>, vector<4x2x2x2x128xf32>, vector<4x2x2x2x128xf32>, vector<4x2x2x2x128xf32>, vector<4x2x2x2x128xf32>, vector<4x2x2x2x128xf32> -> vector<4x2x2x2x2048xf32>
    %173 = tpu.concatenate %129, %132, %141, %144, %147, %153, %156, %159, %165, %168, %171 in 4 : vector<4x2x2x2x128xf32>, vector<4x2x2x2x128xf32>, vector<4x2x2x2x128xf32>, vector<4x2x2x2x128xf32>, vector<4x2x2x2x128xf32>, vector<4x2x2x2x128xf32>, vector<4x2x2x2x128xf32>, vector<4x2x2x2x128xf32>, vector<4x2x2x2x128xf32>, vector<4x2x2x2x128xf32>, vector<4x2x2x2x128xf32> -> vector<4x2x2x2x1408xf32>
    %174 = tpu.concatenate %172, %173 in 4 : vector<4x2x2x2x2048xf32>, vector<4x2x2x2x1408xf32> -> vector<4x2x2x2x3456xf32>
    %175 = vector.shape_cast %174 : vector<4x2x2x2x3456xf32> to vector<32x3456xf32>
    %176 = arith.truncf %175 : vector<32x3456xf32> to vector<32x3456xbf16>
    %c0_22 = arith.constant 0 : index
    %c0_23 = arith.constant 0 : index
    %177 = vector.load %arg5[%c0_22, %c0_23] : memref<3456x128xbf16, #tpu.memory_space<vmem>>, vector<3456x128xbf16>
    %cst_24 = arith.constant dense<0.000000e+00> : vector<32x128xf32>
    %178 = tpu.matmul %176, %177, %cst_24 {dimension_numbers = #tpu.dot_dimension_numbers<[1], [0], [0], [1], [0, 0, 1, 1], [], []>} : vector<32x3456xbf16>, vector<3456x128xbf16>, vector<32x128xf32> -> vector<32x128xf32>
    %c0_25 = arith.constant 0 : index
    %c0_26 = arith.constant 0 : index
    %179 = vector.load %arg6[%c0_25, %c0_26] : memref<1x128xf32, #tpu.memory_space<vmem>>, vector<1x128xf32>
    %180 = vector.broadcast %179 : vector<1x128xf32> to vector<32x128xf32>
    %181 = arith.addf %178, %180 : vector<32x128xf32>
    %cst_27 = arith.constant 0.000000e+00 : f32
    %182 = vector.broadcast %cst_27 : f32 to vector<32x128xf32>
    %183 = arith.maximumf %181, %182 : vector<32x128xf32>
    %184 = vector.shape_cast %183 : vector<32x128xf32> to vector<4x8x128xf32>
    %cst_28 = arith.constant dense<0xFF800000> : vector<4x128xf32>
    %185 = vector.multi_reduction <maximumf>, %184, %cst_28 [1] : vector<4x8x128xf32> to vector<4x128xf32>
    %c0_29 = arith.constant 0 : index
    %c0_30 = arith.constant 0 : index
    %c0_31 = arith.constant 0 : index
    %186 = vector.load %arg2[%c0_29, %c0_30, %c0_31] : memref<1x4x4xf32, #tpu.memory_space<vmem>>, vector<1x4x4xf32>
    %187 = vector.shape_cast %186 : vector<1x4x4xf32> to vector<4x4xf32>
    %cst_32 = arith.constant 0.000000e+00 : f32
    %188 = vector.broadcast %cst_32 : f32 to vector<4x4xf32>
    %189 = arith.cmpf one, %187, %188 : vector<4x4xf32>
    %cst_33 = arith.constant 1.000000e+00 : f32
    %cst_34 = arith.constant 0.000000e+00 : f32
    %190 = vector.broadcast %cst_33 : f32 to vector<4x4xf32>
    %191 = vector.broadcast %cst_34 : f32 to vector<4x4xf32>
    %192 = arith.select %189, %190, %191 : vector<4x4xi1>, vector<4x4xf32>
    %193 = tpu.iota {dimensions = array<i32: 0>} : vector<4x4xi32>
    %194 = tpu.iota {dimensions = array<i32: 1>} : vector<4x4xi32>
    %195 = arith.cmpi eq, %193, %194 : vector<4x4xi32>
    %cst_35 = arith.constant 1.000000e+00 : f32
    %196 = vector.broadcast %cst_35 : f32 to vector<4x4xf32>
    %197 = arith.select %195, %196, %192 : vector<4x4xi1>, vector<4x4xf32>
    %cst_36 = arith.constant dense<0.000000e+00> : vector<4xf32>
    %198 = vector.multi_reduction <add>, %197, %cst_36 [1] : vector<4x4xf32> to vector<4xf32>
    %199 = vector.shape_cast %198 : vector<4xf32> to vector<4x1xf32>
    %cst_37 = arith.constant dense<0.000000e+00> : vector<4xf32>
    %200 = vector.multi_reduction <add>, %197, %cst_37 [0] : vector<4x4xf32> to vector<4xf32>
    %201 = vector.shape_cast %200 : vector<4xf32> to vector<1x4xf32>
    %cst_38 = arith.constant 0.000000e+00 : f32
    %202 = vector.broadcast %cst_38 : f32 to vector<4x1xf32>
    %203 = arith.cmpf ogt, %199, %202 : vector<4x1xf32>
    %204 = math.rsqrt %199 : vector<4x1xf32>
    %cst_39 = arith.constant 0.000000e+00 : f32
    %205 = vector.broadcast %cst_39 : f32 to vector<4x1xf32>
    %206 = arith.select %203, %204, %205 : vector<4x1xi1>, vector<4x1xf32>
    %cst_40 = arith.constant 0.000000e+00 : f32
    %207 = vector.broadcast %cst_40 : f32 to vector<1x4xf32>
    %208 = arith.cmpf ogt, %201, %207 : vector<1x4xf32>
    %209 = math.rsqrt %201 : vector<1x4xf32>
    %cst_41 = arith.constant 0.000000e+00 : f32
    %210 = vector.broadcast %cst_41 : f32 to vector<1x4xf32>
    %211 = arith.select %208, %209, %210 : vector<1x4xi1>, vector<1x4xf32>
    %212 = vector.broadcast %206 : vector<4x1xf32> to vector<4x4xf32>
    %213 = arith.mulf %212, %197 : vector<4x4xf32>
    %214 = vector.broadcast %211 : vector<1x4xf32> to vector<4x4xf32>
    %215 = arith.mulf %213, %214 : vector<4x4xf32>
    %216 = arith.truncf %185 : vector<4x128xf32> to vector<4x128xbf16>
    %c0_42 = arith.constant 0 : index
    %c0_43 = arith.constant 0 : index
    %217 = vector.load %arg7[%c0_42, %c0_43] : memref<128x128xbf16, #tpu.memory_space<vmem>>, vector<128x128xbf16>
    %cst_44 = arith.constant dense<0.000000e+00> : vector<4x128xf32>
    %218 = tpu.matmul %216, %217, %cst_44 {dimension_numbers = #tpu.dot_dimension_numbers<[1], [0], [0], [1], [0, 0, 1, 1], [], []>} : vector<4x128xbf16>, vector<128x128xbf16>, vector<4x128xf32> -> vector<4x128xf32>
    %cst_45 = arith.constant dense<0.000000e+00> : vector<4x128xf32>
    %219 = tpu.matmul %215, %218, %cst_45 {dimension_numbers = #tpu.dot_dimension_numbers<[1], [0], [0], [1], [0, 0, 1, 1], [], []>} : vector<4x4xf32>, vector<4x128xf32>, vector<4x128xf32> -> vector<4x128xf32>
    %c0_46 = arith.constant 0 : index
    %c0_47 = arith.constant 0 : index
    %220 = vector.load %arg8[%c0_46, %c0_47] : memref<1x128xf32, #tpu.memory_space<vmem>>, vector<1x128xf32>
    %221 = vector.broadcast %220 : vector<1x128xf32> to vector<4x128xf32>
    %222 = arith.addf %219, %221 : vector<4x128xf32>
    %cst_48 = arith.constant 0.000000e+00 : f32
    %223 = vector.broadcast %cst_48 : f32 to vector<4x128xf32>
    %224 = arith.maximumf %222, %223 : vector<4x128xf32>
    %225 = arith.truncf %224 : vector<4x128xf32> to vector<4x128xbf16>
    %c0_49 = arith.constant 0 : index
    %c0_50 = arith.constant 0 : index
    %226 = vector.load %arg9[%c0_49, %c0_50] : memref<128x64xbf16, #tpu.memory_space<vmem>>, vector<128x64xbf16>
    %cst_51 = arith.constant dense<0.000000e+00> : vector<4x64xf32>
    %227 = tpu.matmul %225, %226, %cst_51 {dimension_numbers = #tpu.dot_dimension_numbers<[1], [0], [0], [1], [0, 0, 1, 1], [], []>} : vector<4x128xbf16>, vector<128x64xbf16>, vector<4x64xf32> -> vector<4x64xf32>
    %cst_52 = arith.constant dense<0.000000e+00> : vector<4x64xf32>
    %228 = tpu.matmul %215, %227, %cst_52 {dimension_numbers = #tpu.dot_dimension_numbers<[1], [0], [0], [1], [0, 0, 1, 1], [], []>} : vector<4x4xf32>, vector<4x64xf32>, vector<4x64xf32> -> vector<4x64xf32>
    %c0_53 = arith.constant 0 : index
    %c0_54 = arith.constant 0 : index
    %229 = vector.load %arg10[%c0_53, %c0_54] : memref<1x64xf32, #tpu.memory_space<vmem>>, vector<1x64xf32>
    %230 = vector.broadcast %229 : vector<1x64xf32> to vector<4x64xf32>
    %231 = arith.addf %228, %230 : vector<4x64xf32>
    %cst_55 = arith.constant 0.000000e+00 : f32
    %232 = vector.broadcast %cst_55 : f32 to vector<4x64xf32>
    %233 = arith.maximumf %231, %232 : vector<4x64xf32>
    %234 = arith.truncf %233 : vector<4x64xf32> to vector<4x64xbf16>
    %c0_56 = arith.constant 0 : index
    %c0_57 = arith.constant 0 : index
    %235 = vector.load %arg11[%c0_56, %c0_57] : memref<64x32xbf16, #tpu.memory_space<vmem>>, vector<64x32xbf16>
    %cst_58 = arith.constant dense<0.000000e+00> : vector<4x32xf32>
    %236 = tpu.matmul %234, %235, %cst_58 {dimension_numbers = #tpu.dot_dimension_numbers<[1], [0], [0], [1], [0, 0, 1, 1], [], []>} : vector<4x64xbf16>, vector<64x32xbf16>, vector<4x32xf32> -> vector<4x32xf32>
    %cst_59 = arith.constant dense<0.000000e+00> : vector<4x32xf32>
    %237 = tpu.matmul %215, %236, %cst_59 {dimension_numbers = #tpu.dot_dimension_numbers<[1], [0], [0], [1], [0, 0, 1, 1], [], []>} : vector<4x4xf32>, vector<4x32xf32>, vector<4x32xf32> -> vector<4x32xf32>
    %c0_60 = arith.constant 0 : index
    %c0_61 = arith.constant 0 : index
    %238 = vector.load %arg12[%c0_60, %c0_61] : memref<1x32xf32, #tpu.memory_space<vmem>>, vector<1x32xf32>
    %239 = vector.broadcast %238 : vector<1x32xf32> to vector<4x32xf32>
    %240 = arith.addf %237, %239 : vector<4x32xf32>
    %cst_62 = arith.constant dense<0xFF800000> : vector<4xf32>
    %241 = vector.multi_reduction <maximumf>, %240, %cst_62 [1] : vector<4x32xf32> to vector<4xf32>
    %242 = vector.shape_cast %241 : vector<4xf32> to vector<4x1xf32>
    %243 = vector.shape_cast %242 : vector<4x1xf32> to vector<2x2xf32>
    %cst_63 = arith.constant dense<0xFF800000> : vector<2xf32>
    %244 = vector.multi_reduction <maximumf>, %243, %cst_63 [1] : vector<2x2xf32> to vector<2xf32>
    %245 = vector.shape_cast %244 : vector<2xf32> to vector<2x1xf32>
    %246 = vector.shape_cast %245 : vector<2x1xf32> to vector<1x2xf32>
    %c0_64 = arith.constant 0 : index
    %c0_65 = arith.constant 0 : index
    %247 = vector.load %arg13[%c0_64, %c0_65] : memref<2x4xf32, #tpu.memory_space<vmem>>, vector<2x4xf32>
    %cst_66 = arith.constant dense<0.000000e+00> : vector<1x4xf32>
    %248 = tpu.matmul %246, %247, %cst_66 {dimension_numbers = #tpu.dot_dimension_numbers<[1], [0], [0], [1], [0, 0, 1, 1], [], []>} : vector<1x2xf32>, vector<2x4xf32>, vector<1x4xf32> -> vector<1x4xf32>
    %c0_67 = arith.constant 0 : index
    %c0_68 = arith.constant 0 : index
    %249 = vector.load %arg14[%c0_67, %c0_68] : memref<1x4xf32, #tpu.memory_space<vmem>>, vector<1x4xf32>
    %250 = arith.addf %248, %249 : vector<1x4xf32>
    %cst_69 = arith.constant 0.000000e+00 : f32
    %251 = vector.broadcast %cst_69 : f32 to vector<1x4xf32>
    %252 = arith.maximumf %250, %251 : vector<1x4xf32>
    %c0_70 = arith.constant 0 : index
    %c0_71 = arith.constant 0 : index
    %253 = vector.load %arg15[%c0_70, %c0_71] : memref<4x3xf32, #tpu.memory_space<vmem>>, vector<4x3xf32>
    %cst_72 = arith.constant dense<0.000000e+00> : vector<1x3xf32>
    %254 = tpu.matmul %252, %253, %cst_72 {dimension_numbers = #tpu.dot_dimension_numbers<[1], [0], [0], [1], [0, 0, 1, 1], [], []>} : vector<1x4xf32>, vector<4x3xf32>, vector<1x3xf32> -> vector<1x3xf32>
    %c0_73 = arith.constant 0 : index
    %c0_74 = arith.constant 0 : index
    %255 = vector.load %arg16[%c0_73, %c0_74] : memref<1x3xf32, #tpu.memory_space<vmem>>, vector<1x3xf32>
    %256 = arith.addf %254, %255 : vector<1x3xf32>
    %cst_75 = arith.constant dense<0xFF800000> : vector<1xf32>
    %257 = vector.multi_reduction <maximumf>, %256, %cst_75 [1] : vector<1x3xf32> to vector<1xf32>
    %258 = vector.shape_cast %257 : vector<1xf32> to vector<1x1xf32>
    %259 = vector.broadcast %258 : vector<1x1xf32> to vector<1x3xf32>
    %260 = arith.subf %256, %259 : vector<1x3xf32>
    %261 = math.exp %260 : vector<1x3xf32>
    %cst_76 = arith.constant dense<0.000000e+00> : vector<1xf32>
    %262 = vector.multi_reduction <add>, %261, %cst_76 [1] : vector<1x3xf32> to vector<1xf32>
    %263 = vector.shape_cast %262 : vector<1xf32> to vector<1x1xf32>
    %264 = vector.broadcast %263 : vector<1x1xf32> to vector<1x3xf32>
    %265 = arith.divf %261, %264 : vector<1x3xf32>
    %266 = vector.shape_cast %265 : vector<1x3xf32> to vector<1x1x3xf32>
    %c0_77 = arith.constant 0 : index
    %c0_78 = arith.constant 0 : index
    %c0_79 = arith.constant 0 : index
    %267 = vector.load %arg17[%c0_77, %c0_78, %c0_79] : memref<1x1x3xf32, #tpu.memory_space<vmem>>, vector<1x1x3xf32>
    tpu.vector_store %arg17[%c0_77, %c0_78, %c0_79], %266 {strides = array<i32>} : memref<1x1x3xf32, #tpu.memory_space<vmem>>, vector<1x1x3xf32>,
    return
  }
  func.func @transform_0(%arg0: i32) -> (i32, i32, i32) {
    %c0_i32 = arith.constant 0 : i32
    %c0_i32_0 = arith.constant 0 : i32
    %c0_i32_1 = arith.constant 0 : i32
    return %arg0, %c0_i32, %c0_i32_0 : i32, i32, i32
  }
  func.func @transform_1(%arg0: i32) -> (i32, i32, i32) {
    %c0_i32 = arith.constant 0 : i32
    %c0_i32_0 = arith.constant 0 : i32
    %c0_i32_1 = arith.constant 0 : i32
    return %arg0, %c0_i32, %c0_i32_0 : i32, i32, i32
  }
  func.func @transform_2(%arg0: i32) -> (i32, i32) {
    %c0_i32 = arith.constant 0 : i32
    %c0_i32_0 = arith.constant 0 : i32
    %c0_i32_1 = arith.constant 0 : i32
    return %c0_i32, %c0_i32_0 : i32, i32
  }
  func.func @transform_3(%arg0: i32) -> (i32, i32) {
    %c0_i32 = arith.constant 0 : i32
    %c0_i32_0 = arith.constant 0 : i32
    %c0_i32_1 = arith.constant 0 : i32
    return %c0_i32, %c0_i32_0 : i32, i32
  }
  func.func @transform_4(%arg0: i32) -> (i32, i32) {
    %c0_i32 = arith.constant 0 : i32
    %c0_i32_0 = arith.constant 0 : i32
    %c0_i32_1 = arith.constant 0 : i32
    return %c0_i32, %c0_i32_0 : i32, i32
  }
  func.func @transform_5(%arg0: i32) -> (i32, i32) {
    %c0_i32 = arith.constant 0 : i32
    %c0_i32_0 = arith.constant 0 : i32
    %c0_i32_1 = arith.constant 0 : i32
    return %c0_i32, %c0_i32_0 : i32, i32
  }
  func.func @transform_6(%arg0: i32) -> (i32, i32) {
    %c0_i32 = arith.constant 0 : i32
    %c0_i32_0 = arith.constant 0 : i32
    %c0_i32_1 = arith.constant 0 : i32
    return %c0_i32, %c0_i32_0 : i32, i32
  }
  func.func @transform_7(%arg0: i32) -> (i32, i32) {
    %c0_i32 = arith.constant 0 : i32
    %c0_i32_0 = arith.constant 0 : i32
    %c0_i32_1 = arith.constant 0 : i32
    return %c0_i32, %c0_i32_0 : i32, i32
  }
  func.func @transform_8(%arg0: i32) -> (i32, i32) {
    %c0_i32 = arith.constant 0 : i32
    %c0_i32_0 = arith.constant 0 : i32
    %c0_i32_1 = arith.constant 0 : i32
    return %c0_i32, %c0_i32_0 : i32, i32
  }
  func.func @transform_9(%arg0: i32) -> (i32, i32) {
    %c0_i32 = arith.constant 0 : i32
    %c0_i32_0 = arith.constant 0 : i32
    %c0_i32_1 = arith.constant 0 : i32
    return %c0_i32, %c0_i32_0 : i32, i32
  }
  func.func @transform_10(%arg0: i32) -> (i32, i32) {
    %c0_i32 = arith.constant 0 : i32
    %c0_i32_0 = arith.constant 0 : i32
    %c0_i32_1 = arith.constant 0 : i32
    return %c0_i32, %c0_i32_0 : i32, i32
  }
  func.func @transform_11(%arg0: i32) -> (i32, i32) {
    %c0_i32 = arith.constant 0 : i32
    %c0_i32_0 = arith.constant 0 : i32
    %c0_i32_1 = arith.constant 0 : i32
    return %c0_i32, %c0_i32_0 : i32, i32
  }
  func.func @transform_12(%arg0: i32) -> (i32, i32) {
    %c0_i32 = arith.constant 0 : i32
    %c0_i32_0 = arith.constant 0 : i32
    %c0_i32_1 = arith.constant 0 : i32
    return %c0_i32, %c0_i32_0 : i32, i32
  }
  func.func @transform_13(%arg0: i32) -> (i32, i32) {
    %c0_i32 = arith.constant 0 : i32
    %c0_i32_0 = arith.constant 0 : i32
    %c0_i32_1 = arith.constant 0 : i32
    return %c0_i32, %c0_i32_0 : i32, i32
  }
  func.func @transform_14(%arg0: i32) -> (i32, i32) {
    %c0_i32 = arith.constant 0 : i32
    %c0_i32_0 = arith.constant 0 : i32
    %c0_i32_1 = arith.constant 0 : i32
    return %c0_i32, %c0_i32_0 : i32, i32
  }
  func.func @transform_15(%arg0: i32) -> (i32, i32) {
    %c0_i32 = arith.constant 0 : i32
    %c0_i32_0 = arith.constant 0 : i32
    %c0_i32_1 = arith.constant 0 : i32
    return %c0_i32, %c0_i32_0 : i32, i32
  }
  func.func @transform_16(%arg0: i32) -> (i32, i32, i32) {
    %c0_i32 = arith.constant 0 : i32
    %c0_i32_0 = arith.constant 0 : i32
    %c0_i32_1 = arith.constant 0 : i32
    return %arg0, %c0_i32, %c0_i32_0 : i32, i32, i32
  }
}

</mosaic_0001>

<llo_original>
// kernel: gcn_forward.1
$region0: #{gcn_forward.1}
  #allocation0 [shape = 'u32[]', space=smem, size = 0x4, offset = 0x4, fixed_abs, tag = 'smem constant byte address 0x4 - core index']
  #allocation1 [shape = 'u32[72,128]{1,0:T(1,128)}', space=vmem, size = 0x9000, scoped, tag = 'internal scratch']
  %s0 = inlined_call_operand.vmem [shape: bf16[2,2048,27], index: 0, kind: input, shape index: {}]
  %s1 = inlined_call_operand.vmem [shape: f32[2,4,4], index: 1, kind: input, shape index: {}]
  %s2 = inlined_call_operand.vmem [shape: bf16[27,128], index: 2, kind: input, shape index: {}]
  %s3 = inlined_call_operand.vmem [shape: f32[1,128], index: 3, kind: input, shape index: {}]
  %s4 = inlined_call_operand.vmem [shape: bf16[3456,128], index: 4, kind: input, shape index: {}]
  %s5 = inlined_call_operand.vmem [shape: f32[1,128], index: 5, kind: input, shape index: {}]
  %s6 = inlined_call_operand.vmem [shape: bf16[128,128], index: 6, kind: input, shape index: {}]
  %s7 = inlined_call_operand.vmem [shape: f32[1,128], index: 7, kind: input, shape index: {}]
  %s8 = inlined_call_operand.vmem [shape: bf16[128,64], index: 8, kind: input, shape index: {}]
  %s9 = inlined_call_operand.vmem [shape: f32[1,64], index: 9, kind: input, shape index: {}]
  %s10 = inlined_call_operand.vmem [shape: bf16[64,32], index: 10, kind: input, shape index: {}]
  %s11 = inlined_call_operand.vmem [shape: f32[1,32], index: 11, kind: input, shape index: {}]
  %s12 = inlined_call_operand.vmem [shape: f32[2,4], index: 12, kind: input, shape index: {}]
  %s13 = inlined_call_operand.vmem [shape: f32[1,4], index: 13, kind: input, shape index: {}]
  %s14 = inlined_call_operand.vmem [shape: f32[4,3], index: 14, kind: input, shape index: {}]
  %s15 = inlined_call_operand.vmem [shape: f32[1,3], index: 15, kind: input, shape index: {}]
  %s16 = inlined_call_operand.hbm [shape: f32[2,1,3], index: 16, kind: output, shape index: {}]
  %s17 = sld [smem:[#allocation0]]
  $region97: #{gcn_forward.1} parent=0
    _
  %s19 = ssub.s32 1, %s17
  %s20 = scalar_select 0, %s19, %s17
  $region1: #{gcn_forward.1} parent=0
    #allocation2 [shape = 'u8[1024]{0}', space=vmem, size = 0x400, scoped, tag = 'output window, operand 0']
    #allocation3 [shape = 's32[2]{0}', space=sflag, size = 0x8, scoped, tag = 'scoped memory for gcn_forward.1']
    %21 = vsyncpa [#allocation3], 0
    %s22 = scalar_lea.sflag [#allocation3], 1
    %23 = vsyncpa %s22, 0
    loop: start=0, step=1, limit=4
    $region2: #{gcn_forward.1} parent=1 // loop_pre_header
      _
    $region3: #{gcn_forward.1} parent=1 // loop_header
      %s25 = sphi 0, %s29
      %p26 = scmp.ge.s32.totalorder %s25, 4
      %s35 = sphi 0, %s37
      %s38 = sphi 0, %s35
      %s39 = sphi 0, %s38
      %s55 = sphi 0, %s39
      %s61 = sphi 0, %s63
      %s64 = sphi 0, %s61
      %s65 = sphi 0, %s64
      %s81 = sphi 0, %s65
      %s85 = sphi 0, %s85
      %s87 = sphi 0, %s85
      %s88 = sphi 0, %s87
      %s102 = sphi 0, %s88
      %s106 = sphi 0, %s106
      %s108 = sphi 0, %s106
      %s109 = sphi 0, %s108
      %s123 = sphi 0, %s109
      %s127 = sphi 0, %s127
      %s129 = sphi 0, %s127
      %s130 = sphi 0, %s129
      %s144 = sphi 0, %s130
      %s148 = sphi 0, %s148
      %s150 = sphi 0, %s148
      %s151 = sphi 0, %s150
      %s165 = sphi 0, %s151
      %s169 = sphi 0, %s169
      %s171 = sphi 0, %s169
      %s172 = sphi 0, %s171
      %s186 = sphi 0, %s172
      %s190 = sphi 0, %s190
      %s192 = sphi 0, %s190
      %s193 = sphi 0, %s192
      %s207 = sphi 0, %s193
      %s211 = sphi 0, %s211
      %s213 = sphi 0, %s211
      %s214 = sphi 0, %s213
      %s228 = sphi 0, %s214
      %s232 = sphi 0, %s232
      %s234 = sphi 0, %s232
      %s235 = sphi 0, %s234
      %s249 = sphi 0, %s235
      %s253 = sphi 0, %s253
      %s255 = sphi 0, %s253
      %s256 = sphi 0, %s255
      %s270 = sphi 0, %s256
      %s274 = sphi 0, %s274
      %s276 = sphi 0, %s274
      %s277 = sphi 0, %s276
      %s291 = sphi 0, %s277
      %s295 = sphi 0, %s295
      %s297 = sphi 0, %s295
      %s298 = sphi 0, %s297
      %s312 = sphi 0, %s298
      %s316 = sphi 0, %s316
      %s318 = sphi 0, %s316
      %s319 = sphi 0, %s318
      %s333 = sphi 0, %s319
      %s337 = sphi 0, %s337
      %s339 = sphi 0, %s337
      %s340 = sphi 0, %s339
      %s354 = sphi 0, %s340
      %s358 = sphi 0, %s358
      %s360 = sphi 0, %s358
      %s361 = sphi 0, %s360
      %s375 = sphi 0, %s361
      %s381 = sphi 0, %s383
      %s384 = sphi 0, %s381
      %s385 = sphi 0, %s384
      %s401 = sphi 0, %s385
    $region4: #{gcn_forward.1} parent=1 // loop_header_branch
      %28 = sbr.rel (%p26) target = $region8
    $region5: #{gcn_forward.1} parent=1 // loop_body
      %s30 = ssub.s32 %s25, 1
      %s31 = ssub.s32 %s25, 2
      %s32 = sadd.s32 %s25, 1
      %s33 = ssub.s32 %s25, %s32
      %p34 = scmp.eq.s32.totalorder %s33, 0
      %s36 = sadd.s32 %s35, 1
      %s37 = scalar_select %p34, %s35, %s36
      %p40 = pneg %p34
      %p41 = scmp.eq.s32.totalorder %s25, 1
      %p42 = por %p40, %p41
      %p43 = scmp.ne.s32.totalorder %s35, %s38
      %p44 = scmp.eq.s32.totalorder %s25, 0
      %p45 = por %p43, %p44
      %p46 = scmp.ne.s32.totalorder %s35, %s38
      %p47 = scmp.eq.s32.totalorder %s30, 1
      %p48 = por %p46, %p47
      %p49 = scmp.ne.s32.totalorder %s38, %s39
      %p50 = scmp.eq.s32.totalorder %s30, 0
      %p51 = por %p49, %p50
      %p52 = scmp.ne.s32.totalorder %s38, %s39
      %p53 = scmp.eq.s32.totalorder %s31, 1
      %p54 = por %p52, %p53
      %p56 = scmp.ne.s32.totalorder %s39, %s55
      %p57 = scmp.eq.s32.totalorder %s31, 0
      %p58 = por %p56, %p57
      %s59 = ssub.s32 %s25, %s32
      %p60 = scmp.eq.s32.totalorder %s59, 0
      %s62 = sadd.s32 %s61, 1
      %s63 = scalar_select %p60, %s61, %s62
      %p66 = pneg %p60
      %p67 = scmp.eq.s32.totalorder %s25, 1
      %p68 = por %p66, %p67
      %p69 = scmp.ne.s32.totalorder %s61, %s64
      %p70 = scmp.eq.s32.totalorder %s25, 0
      %p71 = por %p69, %p70
      %p72 = scmp.ne.s32.totalorder %s61, %s64
      %p73 = scmp.eq.s32.totalorder %s30, 1
      %p74 = por %p72, %p73
      %p75 = scmp.ne.s32.totalorder %s64, %s65
      %p76 = scmp.eq.s32.totalorder %s30, 0
      %p77 = por %p75, %p76
      %p78 = scmp.ne.s32.totalorder %s64, %s65
      %p79 = scmp.eq.s32.totalorder %s31, 1
      %p80 = por %p78, %p79
      %p82 = scmp.ne.s32.totalorder %s65, %s81
      %p83 = scmp.eq.s32.totalorder %s31, 0
      %p84 = por %p82, %p83
      %s86 = sadd.s32 %s85, 1
      %p89 = scmp.eq.s32.totalorder %s25, 1
      %p90 = scmp.ne.s32.totalorder %s85, %s87
      %p91 = scmp.eq.s32.totalorder %s25, 0
      %p92 = por %p90, %p91
      %p93 = scmp.ne.s32.totalorder %s85, %s87
      %p94 = scmp.eq.s32.totalorder %s30, 1
      %p95 = por %p93, %p94
      %p96 = scmp.ne.s32.totalorder %s87, %s88
      %p97 = scmp.eq.s32.totalorder %s30, 0
      %p98 = por %p96, %p97
      %p99 = scmp.ne.s32.totalorder %s87, %s88
      %p100 = scmp.eq.s32.totalorder %s31, 1
      %p101 = por %p99, %p100
      %p103 = scmp.ne.s32.totalorder %s88, %s102
      %p104 = scmp.eq.s32.totalorder %s31, 0
      %p105 = por %p103, %p104
      %s107 = sadd.s32 %s106, 1
      %p110 = scmp.eq.s32.totalorder %s25, 1
      %p111 = scmp.ne.s32.totalorder %s106, %s108
      %p112 = scmp.eq.s32.totalorder %s25, 0
      %p113 = por %p111, %p112
      %p114 = scmp.ne.s32.totalorder %s106, %s108
      %p115 = scmp.eq.s32.totalorder %s30, 1
      %p116 = por %p114, %p115
      %p117 = scmp.ne.s32.totalorder %s108, %s109
      %p118 = scmp.eq.s32.totalorder %s30, 0
      %p119 = por %p117, %p118
      %p120 = scmp.ne.s32.totalorder %s108, %s109
      %p121 = scmp.eq.s32.totalorder %s31, 1
      %p122 = por %p120, %p121
      %p124 = scmp.ne.s32.totalorder %s109, %s123
      %p125 = scmp.eq.s32.totalorder %s31, 0
      %p126 = por %p124, %p125
      %s128 = sadd.s32 %s127, 1
      %p131 = scmp.eq.s32.totalorder %s25, 1
      %p132 = scmp.ne.s32.totalorder %s127, %s129
      %p133 = scmp.eq.s32.totalorder %s25, 0
      %p134 = por %p132, %p133
      %p135 = scmp.ne.s32.totalorder %s127, %s129
      %p136 = scmp.eq.s32.totalorder %s30, 1
      %p137 = por %p135, %p136
      %p138 = scmp.ne.s32.totalorder %s129, %s130
      %p139 = scmp.eq.s32.totalorder %s30, 0
      %p140 = por %p138, %p139
      %p141 = scmp.ne.s32.totalorder %s129, %s130
      %p142 = scmp.eq.s32.totalorder %s31, 1
      %p143 = por %p141, %p142
      %p145 = scmp.ne.s32.totalorder %s130, %s144
      %p146 = scmp.eq.s32.totalorder %s31, 0
      %p147 = por %p145, %p146
      %s149 = sadd.s32 %s148, 1
      %p152 = scmp.eq.s32.totalorder %s25, 1
      %p153 = scmp.ne.s32.totalorder %s148, %s150
      %p154 = scmp.eq.s32.totalorder %s25, 0
      %p155 = por %p153, %p154
      %p156 = scmp.ne.s32.totalorder %s148, %s150
      %p157 = scmp.eq.s32.totalorder %s30, 1
      %p158 = por %p156, %p157
      %p159 = scmp.ne.s32.totalorder %s150, %s151
      %p160 = scmp.eq.s32.totalorder %s30, 0
      %p161 = por %p159, %p160
      %p162 = scmp.ne.s32.totalorder %s150, %s151
      %p163 = scmp.eq.s32.totalorder %s31, 1
      %p164 = por %p162, %p163
      %p166 = scmp.ne.s32.totalorder %s151, %s165
      %p167 = scmp.eq.s32.totalorder %s31, 0
      %p168 = por %p166, %p167
      %s170 = sadd.s32 %s169, 1
      %p173 = scmp.eq.s32.totalorder %s25, 1
      %p174 = scmp.ne.s32.totalorder %s169, %s171
      %p175 = scmp.eq.s32.totalorder %s25, 0
      %p176 = por %p174, %p175
      %p177 = scmp.ne.s32.totalorder %s169, %s171
      %p178 = scmp.eq.s32.totalorder %s30, 1
      %p179 = por %p177, %p178
      %p180 = scmp.ne.s32.totalorder %s171, %s172
      %p181 = scmp.eq.s32.totalorder %s30, 0
      %p182 = por %p180, %p181
      %p183 = scmp.ne.s32.totalorder %s171, %s172
      %p184 = scmp.eq.s32.totalorder %s31, 1
      %p185 = por %p183, %p184
      %p187 = scmp.ne.s32.totalorder %s172, %s186
      %p188 = scmp.eq.s32.totalorder %s31, 0
      %p189 = por %p187, %p188
      %s191 = sadd.s32 %s190, 1
      %p194 = scmp.eq.s32.totalorder %s25, 1
      %p195 = scmp.ne.s32.totalorder %s190, %s192
      %p196 = scmp.eq.s32.totalorder %s25, 0
      %p197 = por %p195, %p196
      %p198 = scmp.ne.s32.totalorder %s190, %s192
      %p199 = scmp.eq.s32.totalorder %s30, 1
      %p200 = por %p198, %p199
      %p201 = scmp.ne.s32.totalorder %s192, %s193
      %p202 = scmp.eq.s32.totalorder %s30, 0
      %p203 = por %p201, %p202
      %p204 = scmp.ne.s32.totalorder %s192, %s193
      %p205 = scmp.eq.s32.totalorder %s31, 1
      %p206 = por %p204, %p205
      %p208 = scmp.ne.s32.totalorder %s193, %s207
      %p209 = scmp.eq.s32.totalorder %s31, 0
      %p210 = por %p208, %p209
      %s212 = sadd.s32 %s211, 1
      %p215 = scmp.eq.s32.totalorder %s25, 1
      %p216 = scmp.ne.s32.totalorder %s211, %s213
      %p217 = scmp.eq.s32.totalorder %s25, 0
      %p218 = por %p216, %p217
      %p219 = scmp.ne.s32.totalorder %s211, %s213
      %p220 = scmp.eq.s32.totalorder %s30, 1
      %p221 = por %p219, %p220
      %p222 = scmp.ne.s32.totalorder %s213, %s214
      %p223 = scmp.eq.s32.totalorder %s30, 0
      %p224 = por %p222, %p223
      %p225 = scmp.ne.s32.totalorder %s213, %s214
      %p226 = scmp.eq.s32.totalorder %s31, 1
      %p227 = por %p225, %p226
      %p229 = scmp.ne.s32.totalorder %s214, %s228
      %p230 = scmp.eq.s32.totalorder %s31, 0
      %p231 = por %p229, %p230
      %s233 = sadd.s32 %s232, 1
      %p236 = scmp.eq.s32.totalorder %s25, 1
      %p237 = scmp.ne.s32.totalorder %s232, %s234
      %p238 = scmp.eq.s32.totalorder %s25, 0
      %p239 = por %p237, %p238
      %p240 = scmp.ne.s32.totalorder %s232, %s234
      %p241 = scmp.eq.s32.totalorder %s30, 1
      %p242 = por %p240, %p241
      %p243 = scmp.ne.s32.totalorder %s234, %s235
      %p244 = scmp.eq.s32.totalorder %s30, 0
      %p245 = por %p243, %p244
      %p246 = scmp.ne.s32.totalorder %s234, %s235
      %p247 = scmp.eq.s32.totalorder %s31, 1
      %p248 = por %p246, %p247
      %p250 = scmp.ne.s32.totalorder %s235, %s249
      %p251 = scmp.eq.s32.totalorder %s31, 0
      %p252 = por %p250, %p251
      %s254 = sadd.s32 %s253, 1
      %p257 = scmp.eq.s32.totalorder %s25, 1
      %p258 = scmp.ne.s32.totalorder %s253, %s255
      %p259 = scmp.eq.s32.totalorder %s25, 0
      %p260 = por %p258, %p259
      %p261 = scmp.ne.s32.totalorder %s253, %s255
      %p262 = scmp.eq.s32.totalorder %s30, 1
      %p263 = por %p261, %p262
      %p264 = scmp.ne.s32.totalorder %s255, %s256
      %p265 = scmp.eq.s32.totalorder %s30, 0
      %p266 = por %p264, %p265
      %p267 = scmp.ne.s32.totalorder %s255, %s256
      %p268 = scmp.eq.s32.totalorder %s31, 1
      %p269 = por %p267, %p268
      %p271 = scmp.ne.s32.totalorder %s256, %s270
      %p272 = scmp.eq.s32.totalorder %s31, 0
      %p273 = por %p271, %p272
      %s275 = sadd.s32 %s274, 1
      %p278 = scmp.eq.s32.totalorder %s25, 1
      %p279 = scmp.ne.s32.totalorder %s274, %s276
      %p280 = scmp.eq.s32.totalorder %s25, 0
      %p281 = por %p279, %p280
      %p282 = scmp.ne.s32.totalorder %s274, %s276
      %p283 = scmp.eq.s32.totalorder %s30, 1
      %p284 = por %p282, %p283
      %p285 = scmp.ne.s32.totalorder %s276, %s277
      %p286 = scmp.eq.s32.totalorder %s30, 0
      %p287 = por %p285, %p286
      %p288 = scmp.ne.s32.totalorder %s276, %s277
      %p289 = scmp.eq.s32.totalorder %s31, 1
      %p290 = por %p288, %p289
      %p292 = scmp.ne.s32.totalorder %s277, %s291
      %p293 = scmp.eq.s32.totalorder %s31, 0
      %p294 = por %p292, %p293
      %s296 = sadd.s32 %s295, 1
      %p299 = scmp.eq.s32.totalorder %s25, 1
      %p300 = scmp.ne.s32.totalorder %s295, %s297
      %p301 = scmp.eq.s32.totalorder %s25, 0
      %p302 = por %p300, %p301
      %p303 = scmp.ne.s32.totalorder %s295, %s297
      %p304 = scmp.eq.s32.totalorder %s30, 1
      %p305 = por %p303, %p304
      %p306 = scmp.ne.s32.totalorder %s297, %s298
      %p307 = scmp.eq.s32.totalorder %s30, 0
      %p308 = por %p306, %p307
      %p309 = scmp.ne.s32.totalorder %s297, %s298
      %p310 = scmp.eq.s32.totalorder %s31, 1
      %p311 = por %p309, %p310
      %p313 = scmp.ne.s32.totalorder %s298, %s312
      %p314 = scmp.eq.s32.totalorder %s31, 0
      %p315 = por %p313, %p314
      %s317 = sadd.s32 %s316, 1
      %p320 = scmp.eq.s32.totalorder %s25, 1
      %p321 = scmp.ne.s32.totalorder %s316, %s318
      %p322 = scmp.eq.s32.totalorder %s25, 0
      %p323 = por %p321, %p322
      %p324 = scmp.ne.s32.totalorder %s316, %s318
      %p325 = scmp.eq.s32.totalorder %s30, 1
      %p326 = por %p324, %p325
      %p327 = scmp.ne.s32.totalorder %s318, %s319
      %p328 = scmp.eq.s32.totalorder %s30, 0
      %p329 = por %p327, %p328
      %p330 = scmp.ne.s32.totalorder %s318, %s319
      %p331 = scmp.eq.s32.totalorder %s31, 1
      %p332 = por %p330, %p331
      %p334 = scmp.ne.s32.totalorder %s319, %s333
      %p335 = scmp.eq.s32.totalorder %s31, 0
      %p336 = por %p334, %p335
      %s338 = sadd.s32 %s337, 1
      %p341 = scmp.eq.s32.totalorder %s25, 1
      %p342 = scmp.ne.s32.totalorder %s337, %s339
      %p343 = scmp.eq.s32.totalorder %s25, 0
      %p344 = por %p342, %p343
      %p345 = scmp.ne.s32.totalorder %s337, %s339
      %p346 = scmp.eq.s32.totalorder %s30, 1
      %p347 = por %p345, %p346
      %p348 = scmp.ne.s32.totalorder %s339, %s340
      %p349 = scmp.eq.s32.totalorder %s30, 0
      %p350 = por %p348, %p349
      %p351 = scmp.ne.s32.totalorder %s339, %s340
      %p352 = scmp.eq.s32.totalorder %s31, 1
      %p353 = por %p351, %p352
      %p355 = scmp.ne.s32.totalorder %s340, %s354
      %p356 = scmp.eq.s32.totalorder %s31, 0
      %p357 = por %p355, %p356
      %s359 = sadd.s32 %s358, 1
      %p362 = scmp.eq.s32.totalorder %s25, 1
      %p363 = scmp.ne.s32.totalorder %s358, %s360
      %p364 = scmp.eq.s32.totalorder %s25, 0
      %p365 = por %p363, %p364
      %p366 = scmp.ne.s32.totalorder %s358, %s360
      %p367 = scmp.eq.s32.totalorder %s30, 1
      %p368 = por %p366, %p367
      %p369 = scmp.ne.s32.totalorder %s360, %s361
      %p370 = scmp.eq.s32.totalorder %s30, 0
      %p371 = por %p369, %p370
      %p372 = scmp.ne.s32.totalorder %s360, %s361
      %p373 = scmp.eq.s32.totalorder %s31, 1
      %p374 = por %p372, %p373
      %p376 = scmp.ne.s32.totalorder %s361, %s375
      %p377 = scmp.eq.s32.totalorder %s31, 0
      %p378 = por %p376, %p377
      %s379 = ssub.s32 %s25, %s32
      %p380 = scmp.eq.s32.totalorder %s379, 0
      %s382 = sadd.s32 %s381, 1
      %s383 = scalar_select %p380, %s381, %s382
      %p386 = pneg %p380
      %p387 = scmp.eq.s32.totalorder %s25, 1
      %p388 = por %p386, %p387
      %p389 = scmp.ne.s32.totalorder %s381, %s384
      %p390 = scmp.eq.s32.totalorder %s25, 0
      %p391 = por %p389, %p390
      %p392 = scmp.ne.s32.totalorder %s381, %s384
      %p393 = scmp.eq.s32.totalorder %s30, 1
      %p394 = por %p392, %p393
      %p395 = scmp.ne.s32.totalorder %s384, %s385
      %p396 = scmp.eq.s32.totalorder %s30, 0
      %p397 = por %p395, %p396
      %p398 = scmp.ne.s32.totalorder %s384, %s385
      %p399 = scmp.eq.s32.totalorder %s31, 1
      %p400 = por %p398, %p399
      %p402 = scmp.ne.s32.totalorder %s385, %s401
      %p403 = scmp.eq.s32.totalorder %s31, 0
      %p404 = por %p402, %p403
      %p405 = scmp.le.s32.totalorder 1, %s25
      %p406 = scmp.lt.s32.totalorder %s25, 3
      %p407 = pnand %p405, %p406
      %p408 = pneg %p407
      // Predicated region
      $region9: #{gcn_forward.1} parent=5 // pred_check
        _
      $region10: #{gcn_forward.1} parent=5 // pred_check_branch
        %410 = sbr.rel (%p407) target = $region12
      $region11: #{gcn_forward.1} parent=5 // pred_region
        %s411 = ssub.s32 %s25, 1
        // Predicated region
        $region13: #{gcn_forward.1} parent=11 // pred_check
          %p412 = pneg %p98
        $region14: #{gcn_forward.1} parent=11 // pred_check_branch
          %414 = sbr.rel (%p412) target = $region16
        $region15: #{gcn_forward.1} parent=11 // pred_region
          _
        $region16: #{gcn_forward.1} parent=11 // pred_fallthru
          _
        // Predicated region
        $region17: #{gcn_forward.1} parent=11 // pred_check
          %p415 = pneg %p119
        $region18: #{gcn_forward.1} parent=11 // pred_check_branch
          %417 = sbr.rel (%p415) target = $region20
        $region19: #{gcn_forward.1} parent=11 // pred_region
          _
        $region20: #{gcn_forward.1} parent=11 // pred_fallthru
          _
        // Predicated region
        $region21: #{gcn_forward.1} parent=11 // pred_check
          %p418 = pneg %p140
        $region22: #{gcn_forward.1} parent=11 // pred_check_branch
          %420 = sbr.rel (%p418) target = $region24
        $region23: #{gcn_forward.1} parent=11 // pred_region
          _
        $region24: #{gcn_forward.1} parent=11 // pred_fallthru
          _
        // Predicated region
        $region25: #{gcn_forward.1} parent=11 // pred_check
          %p421 = pneg %p161
        $region26: #{gcn_forward.1} parent=11 // pred_check_branch
          %423 = sbr.rel (%p421) target = $region28
        $region27: #{gcn_forward.1} parent=11 // pred_region
          _
        $region28: #{gcn_forward.1} parent=11 // pred_fallthru
          _
        // Predicated region
        $region29: #{gcn_forward.1} parent=11 // pred_check
          %p424 = pneg %p182
        $region30: #{gcn_forward.1} parent=11 // pred_check_branch
          %426 = sbr.rel (%p424) target = $region32
        $region31: #{gcn_forward.1} parent=11 // pred_region
          _
        $region32: #{gcn_forward.1} parent=11 // pred_fallthru
          _
        // Predicated region
        $region33: #{gcn_forward.1} parent=11 // pred_check
          %p427 = pneg %p203
        $region34: #{gcn_forward.1} parent=11 // pred_check_branch
          %429 = sbr.rel (%p427) target = $region36
        $region35: #{gcn_forward.1} parent=11 // pred_region
          _
        $region36: #{gcn_forward.1} parent=11 // pred_fallthru
          _
        // Predicated region
        $region37: #{gcn_forward.1} parent=11 // pred_check
          %p430 = pneg %p224
        $region38: #{gcn_forward.1} parent=11 // pred_check_branch
          %432 = sbr.rel (%p430) target = $region40
        $region39: #{gcn_forward.1} parent=11 // pred_region
          _
        $region40: #{gcn_forward.1} parent=11 // pred_fallthru
          _
        // Predicated region
        $region41: #{gcn_forward.1} parent=11 // pred_check
          %p433 = pneg %p245
        $region42: #{gcn_forward.1} parent=11 // pred_check_branch
          %435 = sbr.rel (%p433) target = $region44
        $region43: #{gcn_forward.1} parent=11 // pred_region
          _
        $region44: #{gcn_forward.1} parent=11 // pred_fallthru
          _
        // Predicated region
        $region45: #{gcn_forward.1} parent=11 // pred_check
          %p436 = pneg %p266
        $region46: #{gcn_forward.1} parent=11 // pred_check_branch
          %438 = sbr.rel (%p436) target = $region48
        $region47: #{gcn_forward.1} parent=11 // pred_region
          _
        $region48: #{gcn_forward.1} parent=11 // pred_fallthru
          _
        // Predicated region
        $region49: #{gcn_forward.1} parent=11 // pred_check
          %p439 = pneg %p287
        $region50: #{gcn_forward.1} parent=11 // pred_check_branch
          %441 = sbr.rel (%p439) target = $region52
        $region51: #{gcn_forward.1} parent=11 // pred_region
          _
        $region52: #{gcn_forward.1} parent=11 // pred_fallthru
          _
        // Predicated region
        $region53: #{gcn_forward.1} parent=11 // pred_check
          %p442 = pneg %p308
        $region54: #{gcn_forward.1} parent=11 // pred_check_branch
          %444 = sbr.rel (%p442) target = $region56
        $region55: #{gcn_forward.1} parent=11 // pred_region
          _
        $region56: #{gcn_forward.1} parent=11 // pred_fallthru
          _
        // Predicated region
        $region57: #{gcn_forward.1} parent=11 // pred_check
          %p445 = pneg %p329
        $region58: #{gcn_forward.1} parent=11 // pred_check_branch
          %447 = sbr.rel (%p445) target = $region60
        $region59: #{gcn_forward.1} parent=11 // pred_region
          _
        $region60: #{gcn_forward.1} parent=11 // pred_fallthru
          _
        // Predicated region
        $region61: #{gcn_forward.1} parent=11 // pred_check
          %p448 = pneg %p350
        $region62: #{gcn_forward.1} parent=11 // pred_check_branch
          %450 = sbr.rel (%p448) target = $region64
        $region63: #{gcn_forward.1} parent=11 // pred_region
          _
        $region64: #{gcn_forward.1} parent=11 // pred_fallthru
          _
        // Predicated region
        $region65: #{gcn_forward.1} parent=11 // pred_check
          %p451 = pneg %p371
        $region66: #{gcn_forward.1} parent=11 // pred_check_branch
          %453 = sbr.rel (%p451) target = $region68
        $region67: #{gcn_forward.1} parent=11 // pred_region
          _
        $region68: #{gcn_forward.1} parent=11 // pred_fallthru
          _
      $region12: #{gcn_forward.1} parent=5 // pred_fallthru
        _
      %p454 = scmp.lt.s32.totalorder %s25, 2
      // Predicated region
      $region69: #{gcn_forward.1} parent=5 // pred_check
        %p455 = pneg %p454
      $region70: #{gcn_forward.1} parent=5 // pred_check_branch
        %457 = sbr.rel (%p455) target = $region72
      $region71: #{gcn_forward.1} parent=5 // pred_region
        // Predicated region
        $region73: #{gcn_forward.1} parent=71 // pred_check
          %p458 = pneg %p45
        $region74: #{gcn_forward.1} parent=71 // pred_check_branch
          %460 = sbr.rel (%p458) target = $region76
        $region75: #{gcn_forward.1} parent=71 // pred_region
          %p461 = scmp.lt.s32.totalorder %s25, 1
          %s462 = scalar_select %p461, %s25, 1
          %s463 = smul.addr %s462, 256
          %s464 = smul.addr %s463, 4
          %s465 = scalar_lea.vmem %s0, %s464
        $region76: #{gcn_forward.1} parent=71 // pred_fallthru
          _
        // Predicated region
        $region77: #{gcn_forward.1} parent=71 // pred_check
          %p466 = pneg %p71
        $region78: #{gcn_forward.1} parent=71 // pred_check_branch
          %468 = sbr.rel (%p466) target = $region80
        $region79: #{gcn_forward.1} parent=71 // pred_region
          %p469 = scmp.lt.s32.totalorder %s25, 1
          %s470 = scalar_select %p469, %s25, 1
          %s471 = smul.addr %s470, 4
          %s472 = scalar_lea.vmem %s1, %s471
        $region80: #{gcn_forward.1} parent=71 // pred_fallthru
          _
      $region72: #{gcn_forward.1} parent=5 // pred_fallthru
        _
      %p473 = scmp.le.s32.totalorder 1, %s25
      %p474 = scmp.lt.s32.totalorder %s25, 3
      %p475 = pnand %p473, %p474
      %p476 = pneg %p475
      // Predicated region
      $region81: #{gcn_forward.1} parent=5 // pred_check
        _
      $region82: #{gcn_forward.1} parent=5 // pred_check_branch
        %478 = sbr.rel (%p475) target = $region84
      $region83: #{gcn_forward.1} parent=5 // pred_region
        %s479 = ssub.s32 %s25, 1
        %p480 = scmp.lt.s32.totalorder %s30, 1
        %s481 = scalar_select %p480, %s30, 1
        %s482 = smul.addr %s481, 256
        %s483 = smul.addr %s482, 4
        %s484 = scalar_lea.vmem %s0, %s483
        %p485 = pneg %p51
        %p486 = pneg %p48
        %p487 = scmp.lt.s32.totalorder %s30, 1
        %s488 = scalar_select %p487, %s30, 1
        %s489 = smul.addr %s488, 4
        %s490 = scalar_lea.vmem %s1, %s489
        %p491 = pneg %p77
        %p492 = pneg %p74
        %p493 = pneg %p98
        %p494 = pneg %p95
        %p495 = pneg %p119
        %p496 = pneg %p116
        %p497 = pneg %p140
        %p498 = pneg %p137
        %p499 = pneg %p161
        %p500 = pneg %p158
        %p501 = pneg %p182
        %p502 = pneg %p179
        %p503 = pneg %p203
        %p504 = pneg %p200
        %p505 = pneg %p224
        %p506 = pneg %p221
        %p507 = pneg %p245
        %p508 = pneg %p242
        %p509 = pneg %p266
        %p510 = pneg %p263
        %p511 = pneg %p287
        %p512 = pneg %p284
        %p513 = pneg %p308
        %p514 = pneg %p305
        %p515 = pneg %p329
        %p516 = pneg %p326
        %p517 = pneg %p350
        %p518 = pneg %p347
        %p519 = pneg %p371
        %p520 = pneg %p368
        %p521 = pneg %p397
        %p522 = pneg %p394
        %s523 = sand.u32 %s384, 1
        %s524 = scalar_lea.sflag [#allocation3], %s523
        %s525 = sand.u32 %s384, 1
        %s526 = scalar_lea.vmem [#allocation2], %s525
        %p527 = scmp.lt.s32.totalorder %s30, 1
        %s528 = scalar_select %p527, %s30, 1
        %s529 = smul.addr %s528, 256
        %s530 = smul.addr %s529, 4
        %s531 = scalar_lea.vmem %s0, %s530
        %p532 = scmp.lt.s32.totalorder %s30, 1
        %s533 = scalar_select %p532, %s30, 1
        %s534 = smul.addr %s533, 4
        %s535 = scalar_lea.vmem %s1, %s534
        %v537 = vld [vmem:[%s531] sm:$0xf]
        %v538 = vld [vmem:[%s531 + $0x4] sm:$0xf]
        %v539 = vld [vmem:[%s531 + $0x8] sm:$0xf]
        %v540 = vld [vmem:[%s531 + $0xc] sm:$0xf]
        %v541 = vld [vmem:[%s531 + $0x10] sm:$0xf]
        %v542 = vld [vmem:[%s531 + $0x14] sm:$0xf]
        %v543 = vld [vmem:[%s531 + $0x18] sm:$0xf]
        %v544 = vld [vmem:[%s531 + $0x1c] sm:$0xf]
        %v545 = vld [vmem:[%s531 + $0x20] sm:$0xf]
        %v546 = vld [vmem:[%s531 + $0x24] sm:$0xf]
        %v547 = vld [vmem:[%s531 + $0x28] sm:$0xf]
        %v548 = vld [vmem:[%s531 + $0x2c] sm:$0xf]
        %v549 = vld [vmem:[%s531 + $0x30] sm:$0xf]
        %v550 = vld [vmem:[%s531 + $0x34] sm:$0xf]
        %v551 = vld [vmem:[%s531 + $0x38] sm:$0xf]
        %v552 = vld [vmem:[%s531 + $0x3c] sm:$0xf]
        %v553 = vld [vmem:[%s531 + $0x40] sm:$0xf]
        %v554 = vld [vmem:[%s531 + $0x44] sm:$0xf]
        %v555 = vld [vmem:[%s531 + $0x48] sm:$0xf]
        %v556 = vld [vmem:[%s531 + $0x4c] sm:$0xf]
        %v557 = vld [vmem:[%s531 + $0x50] sm:$0xf]
        %v558 = vld [vmem:[%s531 + $0x54] sm:$0xf]
        %v559 = vld [vmem:[%s531 + $0x58] sm:$0xf]
        %v560 = vld [vmem:[%s531 + $0x5c] sm:$0xf]
        %v561 = vld [vmem:[%s531 + $0x60] sm:$0xf]
        %v562 = vld [vmem:[%s531 + $0x64] sm:$0xf]
        %v563 = vld [vmem:[%s531 + $0x68] sm:$0xf]
        %v564 = vld [vmem:[%s531 + $0x6c] sm:$0xf]
        %v565 = vld [vmem:[%s531 + $0x70] sm:$0xf]
        %v566 = vld [vmem:[%s531 + $0x74] sm:$0xf]
        %v567 = vld [vmem:[%s531 + $0x78] sm:$0xf]
        %v568 = vld [vmem:[%s531 + $0x7c] sm:$0xf]
        %v569 = vld [vmem:[%s531 + $0x80] sm:$0xf]
        %v570 = vld [vmem:[%s531 + $0x84] sm:$0xf]
        %v571 = vld [vmem:[%s531 + $0x88] sm:$0xf]
        %v572 = vld [vmem:[%s531 + $0x8c] sm:$0xf]
        %v573 = vld [vmem:[%s531 + $0x90] sm:$0xf]
        %v574 = vld [vmem:[%s531 + $0x94] sm:$0xf]
        %v575 = vld [vmem:[%s531 + $0x98] sm:$0xf]
        %v576 = vld [vmem:[%s531 + $0x9c] sm:$0xf]
        %v577 = vld [vmem:[%s531 + $0xa0] sm:$0xf]
        %v578 = vld [vmem:[%s531 + $0xa4] sm:$0xf]
        %v579 = vld [vmem:[%s531 + $0xa8] sm:$0xf]
        %v580 = vld [vmem:[%s531 + $0xac] sm:$0xf]
        %v581 = vld [vmem:[%s531 + $0xb0] sm:$0xf]
        %v582 = vld [vmem:[%s531 + $0xb4] sm:$0xf]
        %v583 = vld [vmem:[%s531 + $0xb8] sm:$0xf]
        %v584 = vld [vmem:[%s531 + $0xbc] sm:$0xf]
        %v585 = vld [vmem:[%s531 + $0xc0] sm:$0xf]
        %v586 = vld [vmem:[%s531 + $0xc4] sm:$0xf]
        %v587 = vld [vmem:[%s531 + $0xc8] sm:$0xf]
        %v588 = vld [vmem:[%s531 + $0xcc] sm:$0xf]
        %v589 = vld [vmem:[%s531 + $0xd0] sm:$0xf]
        %v590 = vld [vmem:[%s531 + $0xd4] sm:$0xf]
        %v591 = vld [vmem:[%s531 + $0xd8] sm:$0xf]
        %v592 = vld [vmem:[%s531 + $0xdc] sm:$0xf]
        %v593 = vld [vmem:[%s531 + $0xe0] sm:$0xf]
        %v594 = vld [vmem:[%s531 + $0xe4] sm:$0xf]
        %v595 = vld [vmem:[%s531 + $0xe8] sm:$0xf]
        %v596 = vld [vmem:[%s531 + $0xec] sm:$0xf]
        %v597 = vld [vmem:[%s531 + $0xf0] sm:$0xf]
        %v598 = vld [vmem:[%s531 + $0xf4] sm:$0xf]
        %v599 = vld [vmem:[%s531 + $0xf8] sm:$0xf]
        %v600 = vld [vmem:[%s531 + $0xfc] sm:$0xf]
        %v601 = vld [vmem:[%s531 + $0x100] sm:$0xf]
        %v602 = vld [vmem:[%s531 + $0x104] sm:$0xf]
        %v603 = vld [vmem:[%s531 + $0x108] sm:$0xf]
        %v604 = vld [vmem:[%s531 + $0x10c] sm:$0xf]
        %v605 = vld [vmem:[%s531 + $0x110] sm:$0xf]
        %v606 = vld [vmem:[%s531 + $0x114] sm:$0xf]
        %v607 = vld [vmem:[%s531 + $0x118] sm:$0xf]
        %v608 = vld [vmem:[%s531 + $0x11c] sm:$0xf]
        %v609 = vld [vmem:[%s531 + $0x120] sm:$0xf]
        %v610 = vld [vmem:[%s531 + $0x124] sm:$0xf]
        %v611 = vld [vmem:[%s531 + $0x128] sm:$0xf]
        %v612 = vld [vmem:[%s531 + $0x12c] sm:$0xf]
        %v613 = vld [vmem:[%s531 + $0x130] sm:$0xf]
        %v614 = vld [vmem:[%s531 + $0x134] sm:$0xf]
        %v615 = vld [vmem:[%s531 + $0x138] sm:$0xf]
        %v616 = vld [vmem:[%s531 + $0x13c] sm:$0xf]
        %v617 = vld [vmem:[%s531 + $0x140] sm:$0xf]
        %v618 = vld [vmem:[%s531 + $0x144] sm:$0xf]
        %v619 = vld [vmem:[%s531 + $0x148] sm:$0xf]
        %v620 = vld [vmem:[%s531 + $0x14c] sm:$0xf]
        %v621 = vld [vmem:[%s531 + $0x150] sm:$0xf]
        %v622 = vld [vmem:[%s531 + $0x154] sm:$0xf]
        %v623 = vld [vmem:[%s531 + $0x158] sm:$0xf]
        %v624 = vld [vmem:[%s531 + $0x15c] sm:$0xf]
        %v625 = vld [vmem:[%s531 + $0x160] sm:$0xf]
        %v626 = vld [vmem:[%s531 + $0x164] sm:$0xf]
        %v627 = vld [vmem:[%s531 + $0x168] sm:$0xf]
        %v628 = vld [vmem:[%s531 + $0x16c] sm:$0xf]
        %v629 = vld [vmem:[%s531 + $0x170] sm:$0xf]
        %v630 = vld [vmem:[%s531 + $0x174] sm:$0xf]
        %v631 = vld [vmem:[%s531 + $0x178] sm:$0xf]
        %v632 = vld [vmem:[%s531 + $0x17c] sm:$0xf]
        %v633 = vld [vmem:[%s531 + $0x180] sm:$0xf]
        %v634 = vld [vmem:[%s531 + $0x184] sm:$0xf]
        %v635 = vld [vmem:[%s531 + $0x188] sm:$0xf]
        %v636 = vld [vmem:[%s531 + $0x18c] sm:$0xf]
        %v637 = vld [vmem:[%s531 + $0x190] sm:$0xf]
        %v638 = vld [vmem:[%s531 + $0x194] sm:$0xf]
        %v639 = vld [vmem:[%s531 + $0x198] sm:$0xf]
        %v640 = vld [vmem:[%s531 + $0x19c] sm:$0xf]
        %v641 = vld [vmem:[%s531 + $0x1a0] sm:$0xf]
        %v642 = vld [vmem:[%s531 + $0x1a4] sm:$0xf]
        %v643 = vld [vmem:[%s531 + $0x1a8] sm:$0xf]
        %v644 = vld [vmem:[%s531 + $0x1ac] sm:$0xf]
        %v645 = vld [vmem:[%s531 + $0x1b0] sm:$0xf]
        %v646 = vld [vmem:[%s531 + $0x1b4] sm:$0xf]
        %v647 = vld [vmem:[%s531 + $0x1b8] sm:$0xf]
        %v648 = vld [vmem:[%s531 + $0x1bc] sm:$0xf]
        %v649 = vld [vmem:[%s531 + $0x1c0] sm:$0xf]
        %v650 = vld [vmem:[%s531 + $0x1c4] sm:$0xf]
        %v651 = vld [vmem:[%s531 + $0x1c8] sm:$0xf]
        %v652 = vld [vmem:[%s531 + $0x1cc] sm:$0xf]
        %v653 = vld [vmem:[%s531 + $0x1d0] sm:$0xf]
        %v654 = vld [vmem:[%s531 + $0x1d4] sm:$0xf]
        %v655 = vld [vmem:[%s531 + $0x1d8] sm:$0xf]
        %v656 = vld [vmem:[%s531 + $0x1dc] sm:$0xf]
        %v657 = vld [vmem:[%s531 + $0x1e0] sm:$0xf]
        %v658 = vld [vmem:[%s531 + $0x1e4] sm:$0xf]
        %v659 = vld [vmem:[%s531 + $0x1e8] sm:$0xf]
        %v660 = vld [vmem:[%s531 + $0x1ec] sm:$0xf]
        %v661 = vld [vmem:[%s531 + $0x1f0] sm:$0xf]
        %v662 = vld [vmem:[%s531 + $0x1f4] sm:$0xf]
        %v663 = vld [vmem:[%s531 + $0x1f8] sm:$0xf]
        %v664 = vld [vmem:[%s531 + $0x1fc] sm:$0xf]
        %v665 = vld [vmem:[%s531 + $0x200] sm:$0xf]
        %v666 = vld [vmem:[%s531 + $0x204] sm:$0xf]
        %v667 = vld [vmem:[%s531 + $0x208] sm:$0xf]
        %v668 = vld [vmem:[%s531 + $0x20c] sm:$0xf]
        %v669 = vld [vmem:[%s531 + $0x210] sm:$0xf]
        %v670 = vld [vmem:[%s531 + $0x214] sm:$0xf]
        %v671 = vld [vmem:[%s531 + $0x218] sm:$0xf]
        %v672 = vld [vmem:[%s531 + $0x21c] sm:$0xf]
        %v673 = vld [vmem:[%s531 + $0x220] sm:$0xf]
        %v674 = vld [vmem:[%s531 + $0x224] sm:$0xf]
        %v675 = vld [vmem:[%s531 + $0x228] sm:$0xf]
        %v676 = vld [vmem:[%s531 + $0x22c] sm:$0xf]
        %v677 = vld [vmem:[%s531 + $0x230] sm:$0xf]
        %v678 = vld [vmem:[%s531 + $0x234] sm:$0xf]
        %v679 = vld [vmem:[%s531 + $0x238] sm:$0xf]
        %v680 = vld [vmem:[%s531 + $0x23c] sm:$0xf]
        %v681 = vld [vmem:[%s531 + $0x240] sm:$0xf]
        %v682 = vld [vmem:[%s531 + $0x244] sm:$0xf]
        %v683 = vld [vmem:[%s531 + $0x248] sm:$0xf]
        %v684 = vld [vmem:[%s531 + $0x24c] sm:$0xf]
        %v685 = vld [vmem:[%s531 + $0x250] sm:$0xf]
        %v686 = vld [vmem:[%s531 + $0x254] sm:$0xf]
        %v687 = vld [vmem:[%s531 + $0x258] sm:$0xf]
        %v688 = vld [vmem:[%s531 + $0x25c] sm:$0xf]
        %v689 = vld [vmem:[%s531 + $0x260] sm:$0xf]
        %v690 = vld [vmem:[%s531 + $0x264] sm:$0xf]
        %v691 = vld [vmem:[%s531 + $0x268] sm:$0xf]
        %v692 = vld [vmem:[%s531 + $0x26c] sm:$0xf]
        %v693 = vld [vmem:[%s531 + $0x270] sm:$0xf]
        %v694 = vld [vmem:[%s531 + $0x274] sm:$0xf]
        %v695 = vld [vmem:[%s531 + $0x278] sm:$0xf]
        %v696 = vld [vmem:[%s531 + $0x27c] sm:$0xf]
        %v697 = vld [vmem:[%s531 + $0x280] sm:$0xf]
        %v698 = vld [vmem:[%s531 + $0x284] sm:$0xf]
        %v699 = vld [vmem:[%s531 + $0x288] sm:$0xf]
        %v700 = vld [vmem:[%s531 + $0x28c] sm:$0xf]
        %v701 = vld [vmem:[%s531 + $0x290] sm:$0xf]
        %v702 = vld [vmem:[%s531 + $0x294] sm:$0xf]
        %v703 = vld [vmem:[%s531 + $0x298] sm:$0xf]
        %v704 = vld [vmem:[%s531 + $0x29c] sm:$0xf]
        %v705 = vld [vmem:[%s531 + $0x2a0] sm:$0xf]
        %v706 = vld [vmem:[%s531 + $0x2a4] sm:$0xf]
        %v707 = vld [vmem:[%s531 + $0x2a8] sm:$0xf]
        %v708 = vld [vmem:[%s531 + $0x2ac] sm:$0xf]
        %v709 = vld [vmem:[%s531 + $0x2b0] sm:$0xf]
        %v710 = vld [vmem:[%s531 + $0x2b4] sm:$0xf]
        %v711 = vld [vmem:[%s531 + $0x2b8] sm:$0xf]
        %v712 = vld [vmem:[%s531 + $0x2bc] sm:$0xf]
        %v713 = vld [vmem:[%s531 + $0x2c0] sm:$0xf]
        %v714 = vld [vmem:[%s531 + $0x2c4] sm:$0xf]
        %v715 = vld [vmem:[%s531 + $0x2c8] sm:$0xf]
        %v716 = vld [vmem:[%s531 + $0x2cc] sm:$0xf]
        %v717 = vld [vmem:[%s531 + $0x2d0] sm:$0xf]
        %v718 = vld [vmem:[%s531 + $0x2d4] sm:$0xf]
        %v719 = vld [vmem:[%s531 + $0x2d8] sm:$0xf]
        %v720 = vld [vmem:[%s531 + $0x2dc] sm:$0xf]
        %v721 = vld [vmem:[%s531 + $0x2e0] sm:$0xf]
        %v722 = vld [vmem:[%s531 + $0x2e4] sm:$0xf]
        %v723 = vld [vmem:[%s531 + $0x2e8] sm:$0xf]
        %v724 = vld [vmem:[%s531 + $0x2ec] sm:$0xf]
        %v725 = vld [vmem:[%s531 + $0x2f0] sm:$0xf]
        %v726 = vld [vmem:[%s531 + $0x2f4] sm:$0xf]
        %v727 = vld [vmem:[%s531 + $0x2f8] sm:$0xf]
        %v728 = vld [vmem:[%s531 + $0x2fc] sm:$0xf]
        %v729 = vld [vmem:[%s531 + $0x300] sm:$0xf]
        %v730 = vld [vmem:[%s531 + $0x304] sm:$0xf]
        %v731 = vld [vmem:[%s531 + $0x308] sm:$0xf]
        %v732 = vld [vmem:[%s531 + $0x30c] sm:$0xf]
        %v733 = vld [vmem:[%s531 + $0x310] sm:$0xf]
        %v734 = vld [vmem:[%s531 + $0x314] sm:$0xf]
        %v735 = vld [vmem:[%s531 + $0x318] sm:$0xf]
        %v736 = vld [vmem:[%s531 + $0x31c] sm:$0xf]
        %v737 = vld [vmem:[%s531 + $0x320] sm:$0xf]
        %v738 = vld [vmem:[%s531 + $0x324] sm:$0xf]
        %v739 = vld [vmem:[%s531 + $0x328] sm:$0xf]
        %v740 = vld [vmem:[%s531 + $0x32c] sm:$0xf]
        %v741 = vld [vmem:[%s531 + $0x330] sm:$0xf]
        %v742 = vld [vmem:[%s531 + $0x334] sm:$0xf]
        %v743 = vld [vmem:[%s531 + $0x338] sm:$0xf]
        %v744 = vld [vmem:[%s531 + $0x33c] sm:$0xf]
        %v745 = vld [vmem:[%s531 + $0x340] sm:$0xf]
        %v746 = vld [vmem:[%s531 + $0x344] sm:$0xf]
        %v747 = vld [vmem:[%s531 + $0x348] sm:$0xf]
        %v748 = vld [vmem:[%s531 + $0x34c] sm:$0xf]
        %v749 = vld [vmem:[%s531 + $0x350] sm:$0xf]
        %v750 = vld [vmem:[%s531 + $0x354] sm:$0xf]
        %v751 = vld [vmem:[%s531 + $0x358] sm:$0xf]
        %v752 = vld [vmem:[%s531 + $0x35c] sm:$0xf]
        %v753 = vld [vmem:[%s531 + $0x360] sm:$0xf]
        %v754 = vld [vmem:[%s531 + $0x364] sm:$0xf]
        %v755 = vld [vmem:[%s531 + $0x368] sm:$0xf]
        %v756 = vld [vmem:[%s531 + $0x36c] sm:$0xf]
        %v757 = vld [vmem:[%s531 + $0x370] sm:$0xf]
        %v758 = vld [vmem:[%s531 + $0x374] sm:$0xf]
        %v759 = vld [vmem:[%s531 + $0x378] sm:$0xf]
        %v760 = vld [vmem:[%s531 + $0x37c] sm:$0xf]
        %v761 = vld [vmem:[%s531 + $0x380] sm:$0xf]
        %v762 = vld [vmem:[%s531 + $0x384] sm:$0xf]
        %v763 = vld [vmem:[%s531 + $0x388] sm:$0xf]
        %v764 = vld [vmem:[%s531 + $0x38c] sm:$0xf]
        %v765 = vld [vmem:[%s531 + $0x390] sm:$0xf]
        %v766 = vld [vmem:[%s531 + $0x394] sm:$0xf]
        %v767 = vld [vmem:[%s531 + $0x398] sm:$0xf]
        %v768 = vld [vmem:[%s531 + $0x39c] sm:$0xf]
        %v769 = vld [vmem:[%s531 + $0x3a0] sm:$0xf]
        %v770 = vld [vmem:[%s531 + $0x3a4] sm:$0xf]
        %v771 = vld [vmem:[%s531 + $0x3a8] sm:$0xf]
        %v772 = vld [vmem:[%s531 + $0x3ac] sm:$0xf]
        %v773 = vld [vmem:[%s531 + $0x3b0] sm:$0xf]
        %v774 = vld [vmem:[%s531 + $0x3b4] sm:$0xf]
        %v775 = vld [vmem:[%s531 + $0x3b8] sm:$0xf]
        %v776 = vld [vmem:[%s531 + $0x3bc] sm:$0xf]
        %v777 = vld [vmem:[%s531 + $0x3c0] sm:$0xf]
        %v778 = vld [vmem:[%s531 + $0x3c4] sm:$0xf]
        %v779 = vld [vmem:[%s531 + $0x3c8] sm:$0xf]
        %v780 = vld [vmem:[%s531 + $0x3cc] sm:$0xf]
        %v781 = vld [vmem:[%s531 + $0x3d0] sm:$0xf]
        %v782 = vld [vmem:[%s531 + $0x3d4] sm:$0xf]
        %v783 = vld [vmem:[%s531 + $0x3d8] sm:$0xf]
        %v784 = vld [vmem:[%s531 + $0x3dc] sm:$0xf]
        %v785 = vld [vmem:[%s531 + $0x3e0] sm:$0xf]
        %v786 = vld [vmem:[%s531 + $0x3e4] sm:$0xf]
        %v787 = vld [vmem:[%s531 + $0x3e8] sm:$0xf]
        %v788 = vld [vmem:[%s531 + $0x3ec] sm:$0xf]
        %v789 = vld [vmem:[%s531 + $0x3f0] sm:$0xf]
        %v790 = vld [vmem:[%s531 + $0x3f4] sm:$0xf]
        %v791 = vld [vmem:[%s531 + $0x3f8] sm:$0xf]
        %v792 = vld [vmem:[%s531 + $0x3fc] sm:$0xf]
        %v793 = vld [vmem:[%s2] sm:$0xf]
        %v794 = vld [vmem:[%s2 + $0x4] sm:$0xf]
        %v795 = vld [vmem:[%s2 + $0x8] sm:$0xf]
        %v796 = vld [vmem:[%s2 + $0xc] sm:$0x3]
        %v797 = vld [vmem:[%s3] sm:$0x1]
        %v799 = vperm.slane %v797, 0
        %v1057 = vunpack.c.l.b16 %v537
        %v1058 = vunpack.c.l.b16 %v538
        %v1059 = vunpack.c.l.b16 %v539
        %v1060 = vunpack.c.l.b16 %v540
        %v1061 = vunpack.c.l.b16 %v541
        %v1062 = vunpack.c.l.b16 %v542
        %v1063 = vunpack.c.l.b16 %v543
        %v1064 = vunpack.c.l.b16 %v544
        %v1065 = vunpack.c.l.b16 %v545
        %v1066 = vunpack.c.l.b16 %v546
        %v1067 = vunpack.c.l.b16 %v547
        %v1068 = vunpack.c.l.b16 %v548
        %v1069 = vunpack.c.l.b16 %v549
        %v1070 = vunpack.c.l.b16 %v550
        %v1071 = vunpack.c.l.b16 %v551
        %v1072 = vunpack.c.l.b16 %v552
        %v1073 = vunpack.c.l.b16 %v553
        %v1074 = vunpack.c.l.b16 %v554
        %v1075 = vunpack.c.l.b16 %v555
        %v1076 = vunpack.c.l.b16 %v556
        %v1077 = vunpack.c.l.b16 %v557
        %v1078 = vunpack.c.l.b16 %v558
        %v1079 = vunpack.c.l.b16 %v559
        %v1080 = vunpack.c.l.b16 %v560
        %v1081 = vunpack.c.l.b16 %v561
        %v1082 = vunpack.c.l.b16 %v562
        %v1083 = vunpack.c.l.b16 %v563
        %v1084 = vunpack.c.l.b16 %v564
        %v1085 = vunpack.c.l.b16 %v565
        %v1086 = vunpack.c.l.b16 %v566
        %v1087 = vunpack.c.l.b16 %v567
        %v1088 = vunpack.c.l.b16 %v568
        %v1089 = vunpack.c.l.b16 %v569
        %v1090 = vunpack.c.l.b16 %v570
        %v1091 = vunpack.c.l.b16 %v571
        %v1092 = vunpack.c.l.b16 %v572
        %v1093 = vunpack.c.l.b16 %v573
        %v1094 = vunpack.c.l.b16 %v574
        %v1095 = vunpack.c.l.b16 %v575
        %v1096 = vunpack.c.l.b16 %v576
        %v1097 = vunpack.c.l.b16 %v577
        %v1098 = vunpack.c.l.b16 %v578
        %v1099 = vunpack.c.l.b16 %v579
        %v1100 = vunpack.c.l.b16 %v580
        %v1101 = vunpack.c.l.b16 %v581
        %v1102 = vunpack.c.l.b16 %v582
        %v1103 = vunpack.c.l.b16 %v583
        %v1104 = vunpack.c.l.b16 %v584
        %v1105 = vunpack.c.l.b16 %v585
        %v1106 = vunpack.c.l.b16 %v586
        %v1107 = vunpack.c.l.b16 %v587
        %v1108 = vunpack.c.l.b16 %v588
        %v1109 = vunpack.c.l.b16 %v589
        %v1110 = vunpack.c.l.b16 %v590
        %v1111 = vunpack.c.l.b16 %v591
        %v1112 = vunpack.c.l.b16 %v592
        %v1113 = vunpack.c.l.b16 %v593
        %v1114 = vunpack.c.l.b16 %v594
        %v1115 = vunpack.c.l.b16 %v595
        %v1116 = vunpack.c.l.b16 %v596
        %v1117 = vunpack.c.l.b16 %v597
        %v1118 = vunpack.c.l.b16 %v598
        %v1119 = vunpack.c.l.b16 %v599
        %v1120 = vunpack.c.l.b16 %v600
        %v1121 = vunpack.c.l.b16 %v601
        %v1122 = vunpack.c.l.b16 %v602
        %v1123 = vunpack.c.l.b16 %v603
        %v1124 = vunpack.c.l.b16 %v604
        %v1125 = vunpack.c.l.b16 %v605
        %v1126 = vunpack.c.l.b16 %v606
        %v1127 = vunpack.c.l.b16 %v607
        %v1128 = vunpack.c.l.b16 %v608
        %v1129 = vunpack.c.l.b16 %v609
        %v1130 = vunpack.c.l.b16 %v610
        %v1131 = vunpack.c.l.b16 %v611
        %v1132 = vunpack.c.l.b16 %v612
        %v1133 = vunpack.c.l.b16 %v613
        %v1134 = vunpack.c.l.b16 %v614
        %v1135 = vunpack.c.l.b16 %v615
        %v1136 = vunpack.c.l.b16 %v616
        %v1137 = vunpack.c.l.b16 %v617
        %v1138 = vunpack.c.l.b16 %v618
        %v1139 = vunpack.c.l.b16 %v619
        %v1140 = vunpack.c.l.b16 %v620
        %v1141 = vunpack.c.l.b16 %v621
        %v1142 = vunpack.c.l.b16 %v622
        %v1143 = vunpack.c.l.b16 %v623
        %v1144 = vunpack.c.l.b16 %v624
        %v1145 = vunpack.c.l.b16 %v625
        %v1146 = vunpack.c.l.b16 %v626
        %v1147 = vunpack.c.l.b16 %v627
        %v1148 = vunpack.c.l.b16 %v628
        %v1149 = vunpack.c.l.b16 %v629
        %v1150 = vunpack.c.l.b16 %v630
        %v1151 = vunpack.c.l.b16 %v631
        %v1152 = vunpack.c.l.b16 %v632
        %v1153 = vunpack.c.l.b16 %v633
        %v1154 = vunpack.c.l.b16 %v634
        %v1155 = vunpack.c.l.b16 %v635
        %v1156 = vunpack.c.l.b16 %v636
        %v1157 = vunpack.c.l.b16 %v637
        %v1158 = vunpack.c.l.b16 %v638
        %v1159 = vunpack.c.l.b16 %v639
        %v1160 = vunpack.c.l.b16 %v640
        %v1161 = vunpack.c.l.b16 %v641
        %v1162 = vunpack.c.l.b16 %v642
        %v1163 = vunpack.c.l.b16 %v643
        %v1164 = vunpack.c.l.b16 %v644
        %v1165 = vunpack.c.l.b16 %v645
        %v1166 = vunpack.c.l.b16 %v646
        %v1167 = vunpack.c.l.b16 %v647
        %v1168 = vunpack.c.l.b16 %v648
        %v1169 = vunpack.c.l.b16 %v649
        %v1170 = vunpack.c.l.b16 %v650
        %v1171 = vunpack.c.l.b16 %v651
        %v1172 = vunpack.c.l.b16 %v652
        %v1173 = vunpack.c.l.b16 %v653
        %v1174 = vunpack.c.l.b16 %v654
        %v1175 = vunpack.c.l.b16 %v655
        %v1176 = vunpack.c.l.b16 %v656
        %v1177 = vunpack.c.l.b16 %v657
        %v1178 = vunpack.c.l.b16 %v658
        %v1179 = vunpack.c.l.b16 %v659
        %v1180 = vunpack.c.l.b16 %v660
        %v1181 = vunpack.c.l.b16 %v661
        %v1182 = vunpack.c.l.b16 %v662
        %v1183 = vunpack.c.l.b16 %v663
        %v1184 = vunpack.c.l.b16 %v664
        %v1185 = vunpack.c.l.b16 %v665
        %v1186 = vunpack.c.l.b16 %v666
        %v1187 = vunpack.c.l.b16 %v667
        %v1188 = vunpack.c.l.b16 %v668
        %v1189 = vunpack.c.l.b16 %v669
        %v1190 = vunpack.c.l.b16 %v670
        %v1191 = vunpack.c.l.b16 %v671
        %v1192 = vunpack.c.l.b16 %v672
        %v1193 = vunpack.c.l.b16 %v673
        %v1194 = vunpack.c.l.b16 %v674
        %v1195 = vunpack.c.l.b16 %v675
        %v1196 = vunpack.c.l.b16 %v676
        %v1197 = vunpack.c.l.b16 %v677
        %v1198 = vunpack.c.l.b16 %v678
        %v1199 = vunpack.c.l.b16 %v679
        %v1200 = vunpack.c.l.b16 %v680
        %v1201 = vunpack.c.l.b16 %v681
        %v1202 = vunpack.c.l.b16 %v682
        %v1203 = vunpack.c.l.b16 %v683
        %v1204 = vunpack.c.l.b16 %v684
        %v1205 = vunpack.c.l.b16 %v685
        %v1206 = vunpack.c.l.b16 %v686
        %v1207 = vunpack.c.l.b16 %v687
        %v1208 = vunpack.c.l.b16 %v688
        %v1209 = vunpack.c.l.b16 %v689
        %v1210 = vunpack.c.l.b16 %v690
        %v1211 = vunpack.c.l.b16 %v691
        %v1212 = vunpack.c.l.b16 %v692
        %v1213 = vunpack.c.l.b16 %v693
        %v1214 = vunpack.c.l.b16 %v694
        %v1215 = vunpack.c.l.b16 %v695
        %v1216 = vunpack.c.l.b16 %v696
        %v1217 = vunpack.c.l.b16 %v697
        %v1218 = vunpack.c.l.b16 %v698
        %v1219 = vunpack.c.l.b16 %v699
        %v1220 = vunpack.c.l.b16 %v700
        %v1221 = vunpack.c.l.b16 %v701
        %v1222 = vunpack.c.l.b16 %v702
        %v1223 = vunpack.c.l.b16 %v703
        %v1224 = vunpack.c.l.b16 %v704
        %v1225 = vunpack.c.l.b16 %v705
        %v1226 = vunpack.c.l.b16 %v706
        %v1227 = vunpack.c.l.b16 %v707
        %v1228 = vunpack.c.l.b16 %v708
        %v1229 = vunpack.c.l.b16 %v709
        %v1230 = vunpack.c.l.b16 %v710
        %v1231 = vunpack.c.l.b16 %v711
        %v1232 = vunpack.c.l.b16 %v712
        %v1233 = vunpack.c.l.b16 %v713
        %v1234 = vunpack.c.l.b16 %v714
        %v1235 = vunpack.c.l.b16 %v715
        %v1236 = vunpack.c.l.b16 %v716
        %v1237 = vunpack.c.l.b16 %v717
        %v1238 = vunpack.c.l.b16 %v718
        %v1239 = vunpack.c.l.b16 %v719
        %v1240 = vunpack.c.l.b16 %v720
        %v1241 = vunpack.c.l.b16 %v721
        %v1242 = vunpack.c.l.b16 %v722
        %v1243 = vunpack.c.l.b16 %v723
        %v1244 = vunpack.c.l.b16 %v724
        %v1245 = vunpack.c.l.b16 %v725
        %v1246 = vunpack.c.l.b16 %v726
        %v1247 = vunpack.c.l.b16 %v727
        %v1248 = vunpack.c.l.b16 %v728
        %v1249 = vunpack.c.l.b16 %v729
        %v1250 = vunpack.c.l.b16 %v730
        %v1251 = vunpack.c.l.b16 %v731
        %v1252 = vunpack.c.l.b16 %v732
        %v1253 = vunpack.c.l.b16 %v733
        %v1254 = vunpack.c.l.b16 %v734
        %v1255 = vunpack.c.l.b16 %v735
        %v1256 = vunpack.c.l.b16 %v736
        %v1257 = vunpack.c.l.b16 %v737
        %v1258 = vunpack.c.l.b16 %v738
        %v1259 = vunpack.c.l.b16 %v739
        %v1260 = vunpack.c.l.b16 %v740
        %v1261 = vunpack.c.l.b16 %v741
        %v1262 = vunpack.c.l.b16 %v742
        %v1263 = vunpack.c.l.b16 %v743
        %v1264 = vunpack.c.l.b16 %v744
        %v1265 = vunpack.c.l.b16 %v745
        %v1266 = vunpack.c.l.b16 %v746
        %v1267 = vunpack.c.l.b16 %v747
        %v1268 = vunpack.c.l.b16 %v748
        %v1269 = vunpack.c.l.b16 %v749
        %v1270 = vunpack.c.l.b16 %v750
        %v1271 = vunpack.c.l.b16 %v751
        %v1272 = vunpack.c.l.b16 %v752
        %v1273 = vunpack.c.l.b16 %v753
        %v1274 = vunpack.c.l.b16 %v754
        %v1275 = vunpack.c.l.b16 %v755
        %v1276 = vunpack.c.l.b16 %v756
        %v1277 = vunpack.c.l.b16 %v757
        %v1278 = vunpack.c.l.b16 %v758
        %v1279 = vunpack.c.l.b16 %v759
        %v1280 = vunpack.c.l.b16 %v760
        %v1281 = vunpack.c.l.b16 %v761
        %v1282 = vunpack.c.l.b16 %v762
        %v1283 = vunpack.c.l.b16 %v763
        %v1284 = vunpack.c.l.b16 %v764
        %v1285 = vunpack.c.l.b16 %v765
        %v1286 = vunpack.c.l.b16 %v766
        %v1287 = vunpack.c.l.b16 %v767
        %v1288 = vunpack.c.l.b16 %v768
        %v1289 = vunpack.c.l.b16 %v769
        %v1290 = vunpack.c.l.b16 %v770
        %v1291 = vunpack.c.l.b16 %v771
        %v1292 = vunpack.c.l.b16 %v772
        %v1293 = vunpack.c.l.b16 %v773
        %v1294 = vunpack.c.l.b16 %v774
        %v1295 = vunpack.c.l.b16 %v775
        %v1296 = vunpack.c.l.b16 %v776
        %v1297 = vunpack.c.l.b16 %v777
        %v1298 = vunpack.c.l.b16 %v778
        %v1299 = vunpack.c.l.b16 %v779
        %v1300 = vunpack.c.l.b16 %v780
        %v1301 = vunpack.c.l.b16 %v781
        %v1302 = vunpack.c.l.b16 %v782
        %v1303 = vunpack.c.l.b16 %v783
        %v1304 = vunpack.c.l.b16 %v784
        %v1305 = vunpack.c.l.b16 %v785
        %v1306 = vunpack.c.l.b16 %v786
        %v1307 = vunpack.c.l.b16 %v787
        %v1308 = vunpack.c.l.b16 %v788
        %v1309 = vunpack.c.l.b16 %v789
        %v1310 = vunpack.c.l.b16 %v790
        %v1311 = vunpack.c.l.b16 %v791
        %v1312 = vunpack.c.l.b16 %v792
        %v1313 = vpack.c.b16 %v1058, %v1057
        %v1314 = vpack.c.b16 %v1060, %v1059
        %v1315 = vpack.c.b16 %v1062, %v1061
        %v1316 = vpack.c.b16 %v1064, %v1063
        %v1317 = vpack.c.b16 %v1066, %v1065
        %v1318 = vpack.c.b16 %v1068, %v1067
        %v1319 = vpack.c.b16 %v1070, %v1069
        %v1320 = vpack.c.b16 %v1072, %v1071
        %v1321 = vpack.c.b16 %v1074, %v1073
        %v1322 = vpack.c.b16 %v1076, %v1075
        %v1323 = vpack.c.b16 %v1078, %v1077
        %v1324 = vpack.c.b16 %v1080, %v1079
        %v1325 = vpack.c.b16 %v1082, %v1081
        %v1326 = vpack.c.b16 %v1084, %v1083
        %v1327 = vpack.c.b16 %v1086, %v1085
        %v1328 = vpack.c.b16 %v1088, %v1087
        %v1329 = vpack.c.b16 %v1090, %v1089
        %v1330 = vpack.c.b16 %v1092, %v1091
        %v1331 = vpack.c.b16 %v1094, %v1093
        %v1332 = vpack.c.b16 %v1096, %v1095
        %v1333 = vpack.c.b16 %v1098, %v1097
        %v1334 = vpack.c.b16 %v1100, %v1099
        %v1335 = vpack.c.b16 %v1102, %v1101
        %v1336 = vpack.c.b16 %v1104, %v1103
        %v1337 = vpack.c.b16 %v1106, %v1105
        %v1338 = vpack.c.b16 %v1108, %v1107
        %v1339 = vpack.c.b16 %v1110, %v1109
        %v1340 = vpack.c.b16 %v1112, %v1111
        %v1341 = vpack.c.b16 %v1114, %v1113
        %v1342 = vpack.c.b16 %v1116, %v1115
        %v1343 = vpack.c.b16 %v1118, %v1117
        %v1344 = vpack.c.b16 %v1120, %v1119
        %v1345 = vpack.c.b16 %v1122, %v1121
        %v1346 = vpack.c.b16 %v1124, %v1123
        %v1347 = vpack.c.b16 %v1126, %v1125
        %v1348 = vpack.c.b16 %v1128, %v1127
        %v1349 = vpack.c.b16 %v1130, %v1129
        %v1350 = vpack.c.b16 %v1132, %v1131
        %v1351 = vpack.c.b16 %v1134, %v1133
        %v1352 = vpack.c.b16 %v1136, %v1135
        %v1353 = vpack.c.b16 %v1138, %v1137
        %v1354 = vpack.c.b16 %v1140, %v1139
        %v1355 = vpack.c.b16 %v1142, %v1141
        %v1356 = vpack.c.b16 %v1144, %v1143
        %v1357 = vpack.c.b16 %v1146, %v1145
        %v1358 = vpack.c.b16 %v1148, %v1147
        %v1359 = vpack.c.b16 %v1150, %v1149
        %v1360 = vpack.c.b16 %v1152, %v1151
        %v1361 = vpack.c.b16 %v1154, %v1153
        %v1362 = vpack.c.b16 %v1156, %v1155
        %v1363 = vpack.c.b16 %v1158, %v1157
        %v1364 = vpack.c.b16 %v1160, %v1159
        %v1365 = vpack.c.b16 %v1162, %v1161
        %v1366 = vpack.c.b16 %v1164, %v1163
        %v1367 = vpack.c.b16 %v1166, %v1165
        %v1368 = vpack.c.b16 %v1168, %v1167
        %v1369 = vpack.c.b16 %v1170, %v1169
        %v1370 = vpack.c.b16 %v1172, %v1171
        %v1371 = vpack.c.b16 %v1174, %v1173
        %v1372 = vpack.c.b16 %v1176, %v1175
        %v1373 = vpack.c.b16 %v1178, %v1177
        %v1374 = vpack.c.b16 %v1180, %v1179
        %v1375 = vpack.c.b16 %v1182, %v1181
        %v1376 = vpack.c.b16 %v1184, %v1183
        %v1377 = vpack.c.b16 %v1186, %v1185
        %v1378 = vpack.c.b16 %v1188, %v1187
        %v1379 = vpack.c.b16 %v1190, %v1189
        %v1380 = vpack.c.b16 %v1192, %v1191
        %v1381 = vpack.c.b16 %v1194, %v1193
        %v1382 = vpack.c.b16 %v1196, %v1195
        %v1383 = vpack.c.b16 %v1198, %v1197
        %v1384 = vpack.c.b16 %v1200, %v1199
        %v1385 = vpack.c.b16 %v1202, %v1201
        %v1386 = vpack.c.b16 %v1204, %v1203
        %v1387 = vpack.c.b16 %v1206, %v1205
        %v1388 = vpack.c.b16 %v1208, %v1207
        %v1389 = vpack.c.b16 %v1210, %v1209
        %v1390 = vpack.c.b16 %v1212, %v1211
        %v1391 = vpack.c.b16 %v1214, %v1213
        %v1392 = vpack.c.b16 %v1216, %v1215
        %v1393 = vpack.c.b16 %v1218, %v1217
        %v1394 = vpack.c.b16 %v1220, %v1219
        %v1395 = vpack.c.b16 %v1222, %v1221
        %v1396 = vpack.c.b16 %v1224, %v1223
        %v1397 = vpack.c.b16 %v1226, %v1225
        %v1398 = vpack.c.b16 %v1228, %v1227
        %v1399 = vpack.c.b16 %v1230, %v1229
        %v1400 = vpack.c.b16 %v1232, %v1231
        %v1401 = vpack.c.b16 %v1234, %v1233
        %v1402 = vpack.c.b16 %v1236, %v1235
        %v1403 = vpack.c.b16 %v1238, %v1237
        %v1404 = vpack.c.b16 %v1240, %v1239
        %v1405 = vpack.c.b16 %v1242, %v1241
        %v1406 = vpack.c.b16 %v1244, %v1243
        %v1407 = vpack.c.b16 %v1246, %v1245
        %v1408 = vpack.c.b16 %v1248, %v1247
        %v1409 = vpack.c.b16 %v1250, %v1249
        %v1410 = vpack.c.b16 %v1252, %v1251
        %v1411 = vpack.c.b16 %v1254, %v1253
        %v1412 = vpack.c.b16 %v1256, %v1255
        %v1413 = vpack.c.b16 %v1258, %v1257
        %v1414 = vpack.c.b16 %v1260, %v1259
        %v1415 = vpack.c.b16 %v1262, %v1261
        %v1416 = vpack.c.b16 %v1264, %v1263
        %v1417 = vpack.c.b16 %v1266, %v1265
        %v1418 = vpack.c.b16 %v1268, %v1267
        %v1419 = vpack.c.b16 %v1270, %v1269
        %v1420 = vpack.c.b16 %v1272, %v1271
        %v1421 = vpack.c.b16 %v1274, %v1273
        %v1422 = vpack.c.b16 %v1276, %v1275
        %v1423 = vpack.c.b16 %v1278, %v1277
        %v1424 = vpack.c.b16 %v1280, %v1279
        %v1425 = vpack.c.b16 %v1282, %v1281
        %v1426 = vpack.c.b16 %v1284, %v1283
        %v1427 = vpack.c.b16 %v1286, %v1285
        %v1428 = vpack.c.b16 %v1288, %v1287
        %v1429 = vpack.c.b16 %v1290, %v1289
        %v1430 = vpack.c.b16 %v1292, %v1291
        %v1431 = vpack.c.b16 %v1294, %v1293
        %v1432 = vpack.c.b16 %v1296, %v1295
        %v1433 = vpack.c.b16 %v1298, %v1297
        %v1434 = vpack.c.b16 %v1300, %v1299
        %v1435 = vpack.c.b16 %v1302, %v1301
        %v1436 = vpack.c.b16 %v1304, %v1303
        %v1437 = vpack.c.b16 %v1306, %v1305
        %v1438 = vpack.c.b16 %v1308, %v1307
        %v1439 = vpack.c.b16 %v1310, %v1309
        %v1440 = vpack.c.b16 %v1312, %v1311
        %v1445 = vunpack.c.l.b16 %v793
        %v1446 = vunpack.c.l.b16 %v794
        %v1447 = vunpack.c.l.b16 %v795
        %v1448 = vunpack.c.l.b16 %v796
        %v1449 = vpack.c.b16 %v1446, %v1445
        %v1450 = vpack.c.b16 %v1448, %v1447
        %vm1452 = vcmask 220160
        %v1454 = vsel %vm1452, %v1313, 0
        %v1457 = vsel %vm1452, %v1314, 0
        %v1460 = vsel %vm1452, %v1315, 0
        %v1463 = vsel %vm1452, %v1316, 0
        %v1466 = vsel %vm1452, %v1317, 0
        %v1469 = vsel %vm1452, %v1318, 0
        %v1472 = vsel %vm1452, %v1319, 0
        %v1475 = vsel %vm1452, %v1320, 0
        %v1478 = vsel %vm1452, %v1321, 0
        %v1481 = vsel %vm1452, %v1322, 0
        %v1484 = vsel %vm1452, %v1323, 0
        %v1487 = vsel %vm1452, %v1324, 0
        %v1490 = vsel %vm1452, %v1325, 0
        %v1493 = vsel %vm1452, %v1326, 0
        %v1496 = vsel %vm1452, %v1327, 0
        %v1499 = vsel %vm1452, %v1328, 0
        %v1502 = vsel %vm1452, %v1329, 0
        %v1505 = vsel %vm1452, %v1330, 0
        %v1508 = vsel %vm1452, %v1331, 0
        %v1511 = vsel %vm1452, %v1332, 0
        %v1514 = vsel %vm1452, %v1333, 0
        %v1517 = vsel %vm1452, %v1334, 0
        %v1520 = vsel %vm1452, %v1335, 0
        %v1523 = vsel %vm1452, %v1336, 0
        %v1526 = vsel %vm1452, %v1337, 0
        %v1529 = vsel %vm1452, %v1338, 0
        %v1532 = vsel %vm1452, %v1339, 0
        %v1535 = vsel %vm1452, %v1340, 0
        %v1538 = vsel %vm1452, %v1341, 0
        %v1541 = vsel %vm1452, %v1342, 0
        %v1544 = vsel %vm1452, %v1343, 0
        %v1547 = vsel %vm1452, %v1344, 0
        %v1550 = vsel %vm1452, %v1345, 0
        %v1553 = vsel %vm1452, %v1346, 0
        %v1556 = vsel %vm1452, %v1347, 0
        %v1559 = vsel %vm1452, %v1348, 0
        %v1562 = vsel %vm1452, %v1349, 0
        %v1565 = vsel %vm1452, %v1350, 0
        %v1568 = vsel %vm1452, %v1351, 0
        %v1571 = vsel %vm1452, %v1352, 0
        %v1574 = vsel %vm1452, %v1353, 0
        %v1577 = vsel %vm1452, %v1354, 0
        %v1580 = vsel %vm1452, %v1355, 0
        %v1583 = vsel %vm1452, %v1356, 0
        %v1586 = vsel %vm1452, %v1357, 0
        %v1589 = vsel %vm1452, %v1358, 0
        %v1592 = vsel %vm1452, %v1359, 0
        %v1595 = vsel %vm1452, %v1360, 0
        %v1598 = vsel %vm1452, %v1361, 0
        %v1601 = vsel %vm1452, %v1362, 0
        %v1604 = vsel %vm1452, %v1363, 0
        %v1607 = vsel %vm1452, %v1364, 0
        %v1610 = vsel %vm1452, %v1365, 0
        %v1613 = vsel %vm1452, %v1366, 0
        %v1616 = vsel %vm1452, %v1367, 0
        %v1619 = vsel %vm1452, %v1368, 0
        %v1622 = vsel %vm1452, %v1369, 0
        %v1625 = vsel %vm1452, %v1370, 0
        %v1628 = vsel %vm1452, %v1371, 0
        %v1631 = vsel %vm1452, %v1372, 0
        %v1634 = vsel %vm1452, %v1373, 0
        %v1637 = vsel %vm1452, %v1374, 0
        %v1640 = vsel %vm1452, %v1375, 0
        %v1643 = vsel %vm1452, %v1376, 0
        %v1646 = vsel %vm1452, %v1377, 0
        %v1649 = vsel %vm1452, %v1378, 0
        %v1652 = vsel %vm1452, %v1379, 0
        %v1655 = vsel %vm1452, %v1380, 0
        %v1658 = vsel %vm1452, %v1381, 0
        %v1661 = vsel %vm1452, %v1382, 0
        %v1664 = vsel %vm1452, %v1383, 0
        %v1667 = vsel %vm1452, %v1384, 0
        %v1670 = vsel %vm1452, %v1385, 0
        %v1673 = vsel %vm1452, %v1386, 0
        %v1676 = vsel %vm1452, %v1387, 0
        %v1679 = vsel %vm1452, %v1388, 0
        %v1682 = vsel %vm1452, %v1389, 0
        %v1685 = vsel %vm1452, %v1390, 0
        %v1688 = vsel %vm1452, %v1391, 0
        %v1691 = vsel %vm1452, %v1392, 0
        %v1694 = vsel %vm1452, %v1393, 0
        %v1697 = vsel %vm1452, %v1394, 0
        %v1700 = vsel %vm1452, %v1395, 0
        %v1703 = vsel %vm1452, %v1396, 0
        %v1706 = vsel %vm1452, %v1397, 0
        %v1709 = vsel %vm1452, %v1398, 0
        %v1712 = vsel %vm1452, %v1399, 0
        %v1715 = vsel %vm1452, %v1400, 0
        %v1718 = vsel %vm1452, %v1401, 0
        %v1721 = vsel %vm1452, %v1402, 0
        %v1724 = vsel %vm1452, %v1403, 0
        %v1727 = vsel %vm1452, %v1404, 0
        %v1730 = vsel %vm1452, %v1405, 0
        %v1733 = vsel %vm1452, %v1406, 0
        %v1736 = vsel %vm1452, %v1407, 0
        %v1739 = vsel %vm1452, %v1408, 0
        %v1742 = vsel %vm1452, %v1409, 0
        %v1745 = vsel %vm1452, %v1410, 0
        %v1748 = vsel %vm1452, %v1411, 0
        %v1751 = vsel %vm1452, %v1412, 0
        %v1754 = vsel %vm1452, %v1413, 0
        %v1757 = vsel %vm1452, %v1414, 0
        %v1760 = vsel %vm1452, %v1415, 0
        %v1763 = vsel %vm1452, %v1416, 0
        %v1766 = vsel %vm1452, %v1417, 0
        %v1769 = vsel %vm1452, %v1418, 0
        %v1772 = vsel %vm1452, %v1419, 0
        %v1775 = vsel %vm1452, %v1420, 0
        %v1778 = vsel %vm1452, %v1421, 0
        %v1781 = vsel %vm1452, %v1422, 0
        %v1784 = vsel %vm1452, %v1423, 0
        %v1787 = vsel %vm1452, %v1424, 0
        %v1790 = vsel %vm1452, %v1425, 0
        %v1793 = vsel %vm1452, %v1426, 0
        %v1796 = vsel %vm1452, %v1427, 0
        %v1799 = vsel %vm1452, %v1428, 0
        %v1802 = vsel %vm1452, %v1429, 0
        %v1805 = vsel %vm1452, %v1430, 0
        %v1808 = vsel %vm1452, %v1431, 0
        %v1811 = vsel %vm1452, %v1432, 0
        %v1814 = vsel %vm1452, %v1433, 0
        %v1817 = vsel %vm1452, %v1434, 0
        %v1820 = vsel %vm1452, %v1435, 0
        %v1823 = vsel %vm1452, %v1436, 0
        %v1826 = vsel %vm1452, %v1437, 0
        %v1829 = vsel %vm1452, %v1438, 0
        %v1832 = vsel %vm1452, %v1439, 0
        %v1835 = vsel %vm1452, %v1440, 0
        %vm1837 = vcmask 1044480
        %vm1838 = vcmask 1045504
        %v1839 = vsel %vm1837, 4294967295, 65535
        %v1840 = vsel %vm1838, %v1839, 0
        %v1842 = vand.u32 %v1450, %v1840
        %1844 = vmatpush.bf16.msra.mxu0 0
        %1845 = vmatpush.bf16.msra.mxu0 0
        %1846 = vmatpush.bf16.msra.mxu0 0
        %1847 = vmatpush.bf16.msra.mxu0 0
        %1848 = vmatpush.bf16.msra.mxu0 0
        %1849 = vmatpush.bf16.msra.mxu0 0
        %1850 = vmatpush.bf16.msra.mxu0 %v1842
        %1851 = vmatpush.bf16.msra.mxu0 %v1449
        %1852 = vmatmul.bf16.gmra.mxu0 %v1454
        %v1853 = vpop.f32.mrf.mxu0
        %v1854 = vadd.f32 %v799, %v1853
        %v1855 = vpop.f32.mrf.mxu0
        %v1856 = vadd.f32 %v799, %v1855
        %1857 = vmatmul.bf16.gmra.mxu0 %v1457
        %v1858 = vpop.f32.mrf.mxu0
        %v1859 = vadd.f32 %v799, %v1858
        %v1860 = vpop.f32.mrf.mxu0
        %v1861 = vadd.f32 %v799, %v1860
        %1862 = vmatmul.bf16.gmra.mxu0 %v1460
        %v1863 = vpop.f32.mrf.mxu0
        %v1864 = vadd.f32 %v799, %v1863
        %v1865 = vpop.f32.mrf.mxu0
        %v1866 = vadd.f32 %v799, %v1865
        %1867 = vmatmul.bf16.gmra.mxu0 %v1463
        %v1868 = vpop.f32.mrf.mxu0
        %v1869 = vadd.f32 %v799, %v1868
        %v1870 = vpop.f32.mrf.mxu0
        %v1871 = vadd.f32 %v799, %v1870
        %1872 = vmatmul.bf16.gmra.mxu0 %v1466
        %v1873 = vpop.f32.mrf.mxu0
        %v1874 = vadd.f32 %v799, %v1873
        %v1875 = vpop.f32.mrf.mxu0
        %v1876 = vadd.f32 %v799, %v1875
        %1877 = vmatmul.bf16.gmra.mxu0 %v1469
        %v1878 = vpop.f32.mrf.mxu0
        %v1879 = vadd.f32 %v799, %v1878
        %v1880 = vpop.f32.mrf.mxu0
        %v1881 = vadd.f32 %v799, %v1880
        %1882 = vmatmul.bf16.gmra.mxu0 %v1472
        %v1883 = vpop.f32.mrf.mxu0
        %v1884 = vadd.f32 %v799, %v1883
        %v1885 = vpop.f32.mrf.mxu0
        %v1886 = vadd.f32 %v799, %v1885
        %1887 = vmatmul.bf16.gmra.mxu0 %v1475
        %v1888 = vpop.f32.mrf.mxu0
        %v1889 = vadd.f32 %v799, %v1888
        %v1890 = vpop.f32.mrf.mxu0
        %v1891 = vadd.f32 %v799, %v1890
        %1892 = vmatmul.bf16.gmra.mxu0 %v1478
        %v1893 = vpop.f32.mrf.mxu0
        %v1894 = vadd.f32 %v799, %v1893
        %v1895 = vpop.f32.mrf.mxu0
        %v1896 = vadd.f32 %v799, %v1895
        %1897 = vmatmul.bf16.gmra.mxu0 %v1481
        %v1898 = vpop.f32.mrf.mxu0
        %v1899 = vadd.f32 %v799, %v1898
        %v1900 = vpop.f32.mrf.mxu0
        %v1901 = vadd.f32 %v799, %v1900
        %1902 = vmatmul.bf16.gmra.mxu0 %v1484
        %v1903 = vpop.f32.mrf.mxu0
        %v1904 = vadd.f32 %v799, %v1903
        %v1905 = vpop.f32.mrf.mxu0
        %v1906 = vadd.f32 %v799, %v1905
        %1907 = vmatmul.bf16.gmra.mxu0 %v1487
        %v1908 = vpop.f32.mrf.mxu0
        %v1909 = vadd.f32 %v799, %v1908
        %v1910 = vpop.f32.mrf.mxu0
        %v1911 = vadd.f32 %v799, %v1910
        %1912 = vmatmul.bf16.gmra.mxu0 %v1490
        %v1913 = vpop.f32.mrf.mxu0
        %v1914 = vadd.f32 %v799, %v1913
        %v1915 = vpop.f32.mrf.mxu0
        %v1916 = vadd.f32 %v799, %v1915
        %1917 = vmatmul.bf16.gmra.mxu0 %v1493
        %v1918 = vpop.f32.mrf.mxu0
        %v1919 = vadd.f32 %v799, %v1918
        %v1920 = vpop.f32.mrf.mxu0
        %v1921 = vadd.f32 %v799, %v1920
        %1922 = vmatmul.bf16.gmra.mxu0 %v1496
        %v1923 = vpop.f32.mrf.mxu0
        %v1924 = vadd.f32 %v799, %v1923
        %v1925 = vpop.f32.mrf.mxu0
        %v1926 = vadd.f32 %v799, %v1925
        %1927 = vmatmul.bf16.gmra.mxu0 %v1499
        %v1928 = vpop.f32.mrf.mxu0
        %v1929 = vadd.f32 %v799, %v1928
        %v1930 = vpop.f32.mrf.mxu0
        %v1931 = vadd.f32 %v799, %v1930
        %1932 = vmatmul.bf16.gmra.mxu0 %v1502
        %v1933 = vpop.f32.mrf.mxu0
        %v1934 = vadd.f32 %v799, %v1933
        %v1935 = vpop.f32.mrf.mxu0
        %v1936 = vadd.f32 %v799, %v1935
        %1937 = vmatmul.bf16.gmra.mxu0 %v1505
        %v1938 = vpop.f32.mrf.mxu0
        %v1939 = vadd.f32 %v799, %v1938
        %v1940 = vpop.f32.mrf.mxu0
        %v1941 = vadd.f32 %v799, %v1940
        %1942 = vmatmul.bf16.gmra.mxu0 %v1508
        %v1943 = vpop.f32.mrf.mxu0
        %v1944 = vadd.f32 %v799, %v1943
        %v1945 = vpop.f32.mrf.mxu0
        %v1946 = vadd.f32 %v799, %v1945
        %1947 = vmatmul.bf16.gmra.mxu0 %v1511
        %v1948 = vpop.f32.mrf.mxu0
        %v1949 = vadd.f32 %v799, %v1948
        %v1950 = vpop.f32.mrf.mxu0
        %v1951 = vadd.f32 %v799, %v1950
        %1952 = vmatmul.bf16.gmra.mxu0 %v1514
        %v1953 = vpop.f32.mrf.mxu0
        %v1954 = vadd.f32 %v799, %v1953
        %v1955 = vpop.f32.mrf.mxu0
        %v1956 = vadd.f32 %v799, %v1955
        %1957 = vmatmul.bf16.gmra.mxu0 %v1517
        %v1958 = vpop.f32.mrf.mxu0
        %v1959 = vadd.f32 %v799, %v1958
        %v1960 = vpop.f32.mrf.mxu0
        %v1961 = vadd.f32 %v799, %v1960
        %1962 = vmatmul.bf16.gmra.mxu0 %v1520
        %v1963 = vpop.f32.mrf.mxu0
        %v1964 = vadd.f32 %v799, %v1963
        %v1965 = vpop.f32.mrf.mxu0
        %v1966 = vadd.f32 %v799, %v1965
        %1967 = vmatmul.bf16.gmra.mxu0 %v1523
        %v1968 = vpop.f32.mrf.mxu0
        %v1969 = vadd.f32 %v799, %v1968
        %v1970 = vpop.f32.mrf.mxu0
        %v1971 = vadd.f32 %v799, %v1970
        %1972 = vmatmul.bf16.gmra.mxu0 %v1526
        %v1973 = vpop.f32.mrf.mxu0
        %v1974 = vadd.f32 %v799, %v1973
        %v1975 = vpop.f32.mrf.mxu0
        %v1976 = vadd.f32 %v799, %v1975
        %1977 = vmatmul.bf16.gmra.mxu0 %v1529
        %v1978 = vpop.f32.mrf.mxu0
        %v1979 = vadd.f32 %v799, %v1978
        %v1980 = vpop.f32.mrf.mxu0
        %v1981 = vadd.f32 %v799, %v1980
        %1982 = vmatmul.bf16.gmra.mxu0 %v1532
        %v1983 = vpop.f32.mrf.mxu0
        %v1984 = vadd.f32 %v799, %v1983
        %v1985 = vpop.f32.mrf.mxu0
        %v1986 = vadd.f32 %v799, %v1985
        %1987 = vmatmul.bf16.gmra.mxu0 %v1535
        %v1988 = vpop.f32.mrf.mxu0
        %v1989 = vadd.f32 %v799, %v1988
        %v1990 = vpop.f32.mrf.mxu0
        %v1991 = vadd.f32 %v799, %v1990
        %1992 = vmatmul.bf16.gmra.mxu0 %v1538
        %v1993 = vpop.f32.mrf.mxu0
        %v1994 = vadd.f32 %v799, %v1993
        %v1995 = vpop.f32.mrf.mxu0
        %v1996 = vadd.f32 %v799, %v1995
        %1997 = vmatmul.bf16.gmra.mxu0 %v1541
        %v1998 = vpop.f32.mrf.mxu0
        %v1999 = vadd.f32 %v799, %v1998
        %v2000 = vpop.f32.mrf.mxu0
        %v2001 = vadd.f32 %v799, %v2000
        %2002 = vmatmul.bf16.gmra.mxu0 %v1544
        %v2003 = vpop.f32.mrf.mxu0
        %v2004 = vadd.f32 %v799, %v2003
        %v2005 = vpop.f32.mrf.mxu0
        %v2006 = vadd.f32 %v799, %v2005
        %2007 = vmatmul.bf16.gmra.mxu0 %v1547
        %v2008 = vpop.f32.mrf.mxu0
        %v2009 = vadd.f32 %v799, %v2008
        %v2010 = vpop.f32.mrf.mxu0
        %v2011 = vadd.f32 %v799, %v2010
        %2012 = vmatmul.bf16.gmra.mxu0 %v1550
        %v2013 = vpop.f32.mrf.mxu0
        %v2014 = vadd.f32 %v799, %v2013
        %v2015 = vpop.f32.mrf.mxu0
        %v2016 = vadd.f32 %v799, %v2015
        %2017 = vmatmul.bf16.gmra.mxu0 %v1553
        %v2018 = vpop.f32.mrf.mxu0
        %v2019 = vadd.f32 %v799, %v2018
        %v2020 = vpop.f32.mrf.mxu0
        %v2021 = vadd.f32 %v799, %v2020
        %2022 = vmatmul.bf16.gmra.mxu0 %v1556
        %v2023 = vpop.f32.mrf.mxu0
        %v2024 = vadd.f32 %v799, %v2023
        %v2025 = vpop.f32.mrf.mxu0
        %v2026 = vadd.f32 %v799, %v2025
        %2027 = vmatmul.bf16.gmra.mxu0 %v1559
        %v2028 = vpop.f32.mrf.mxu0
        %v2029 = vadd.f32 %v799, %v2028
        %v2030 = vpop.f32.mrf.mxu0
        %v2031 = vadd.f32 %v799, %v2030
        %2032 = vmatmul.bf16.gmra.mxu0 %v1562
        %v2033 = vpop.f32.mrf.mxu0
        %v2034 = vadd.f32 %v799, %v2033
        %v2035 = vpop.f32.mrf.mxu0
        %v2036 = vadd.f32 %v799, %v2035
        %2037 = vmatmul.bf16.gmra.mxu0 %v1565
        %v2038 = vpop.f32.mrf.mxu0
        %v2039 = vadd.f32 %v799, %v2038
        %v2040 = vpop.f32.mrf.mxu0
        %v2041 = vadd.f32 %v799, %v2040
        %2042 = vmatmul.bf16.gmra.mxu0 %v1568
        %v2043 = vpop.f32.mrf.mxu0
        %v2044 = vadd.f32 %v799, %v2043
        %v2045 = vpop.f32.mrf.mxu0
        %v2046 = vadd.f32 %v799, %v2045
        %2047 = vmatmul.bf16.gmra.mxu0 %v1571
        %v2048 = vpop.f32.mrf.mxu0
        %v2049 = vadd.f32 %v799, %v2048
        %v2050 = vpop.f32.mrf.mxu0
        %v2051 = vadd.f32 %v799, %v2050
        %2052 = vmatmul.bf16.gmra.mxu0 %v1574
        %v2053 = vpop.f32.mrf.mxu0
        %v2054 = vadd.f32 %v799, %v2053
        %v2055 = vpop.f32.mrf.mxu0
        %v2056 = vadd.f32 %v799, %v2055
        %2057 = vmatmul.bf16.gmra.mxu0 %v1577
        %v2058 = vpop.f32.mrf.mxu0
        %v2059 = vadd.f32 %v799, %v2058
        %v2060 = vpop.f32.mrf.mxu0
        %v2061 = vadd.f32 %v799, %v2060
        %2062 = vmatmul.bf16.gmra.mxu0 %v1580
        %v2063 = vpop.f32.mrf.mxu0
        %v2064 = vadd.f32 %v799, %v2063
        %v2065 = vpop.f32.mrf.mxu0
        %v2066 = vadd.f32 %v799, %v2065
        %2067 = vmatmul.bf16.gmra.mxu0 %v1583
        %v2068 = vpop.f32.mrf.mxu0
        %v2069 = vadd.f32 %v799, %v2068
        %v2070 = vpop.f32.mrf.mxu0
        %v2071 = vadd.f32 %v799, %v2070
        %2072 = vmatmul.bf16.gmra.mxu0 %v1586
        %v2073 = vpop.f32.mrf.mxu0
        %v2074 = vadd.f32 %v799, %v2073
        %v2075 = vpop.f32.mrf.mxu0
        %v2076 = vadd.f32 %v799, %v2075
        %2077 = vmatmul.bf16.gmra.mxu0 %v1589
        %v2078 = vpop.f32.mrf.mxu0
        %v2079 = vadd.f32 %v799, %v2078
        %v2080 = vpop.f32.mrf.mxu0
        %v2081 = vadd.f32 %v799, %v2080
        %2082 = vmatmul.bf16.gmra.mxu0 %v1592
        %v2083 = vpop.f32.mrf.mxu0
        %v2084 = vadd.f32 %v799, %v2083
        %v2085 = vpop.f32.mrf.mxu0
        %v2086 = vadd.f32 %v799, %v2085
        %2087 = vmatmul.bf16.gmra.mxu0 %v1595
        %v2088 = vpop.f32.mrf.mxu0
        %v2089 = vadd.f32 %v799, %v2088
        %v2090 = vpop.f32.mrf.mxu0
        %v2091 = vadd.f32 %v799, %v2090
        %2092 = vmatmul.bf16.gmra.mxu0 %v1598
        %v2093 = vpop.f32.mrf.mxu0
        %v2094 = vadd.f32 %v799, %v2093
        %v2095 = vpop.f32.mrf.mxu0
        %v2096 = vadd.f32 %v799, %v2095
        %2097 = vmatmul.bf16.gmra.mxu0 %v1601
        %v2098 = vpop.f32.mrf.mxu0
        %v2099 = vadd.f32 %v799, %v2098
        %v2100 = vpop.f32.mrf.mxu0
        %v2101 = vadd.f32 %v799, %v2100
        %2102 = vmatmul.bf16.gmra.mxu0 %v1604
        %v2103 = vpop.f32.mrf.mxu0
        %v2104 = vadd.f32 %v799, %v2103
        %v2105 = vpop.f32.mrf.mxu0
        %v2106 = vadd.f32 %v799, %v2105
        %2107 = vmatmul.bf16.gmra.mxu0 %v1607
        %v2108 = vpop.f32.mrf.mxu0
        %v2109 = vadd.f32 %v799, %v2108
        %v2110 = vpop.f32.mrf.mxu0
        %v2111 = vadd.f32 %v799, %v2110
        %2112 = vmatmul.bf16.gmra.mxu0 %v1610
        %v2113 = vpop.f32.mrf.mxu0
        %v2114 = vadd.f32 %v799, %v2113
        %v2115 = vpop.f32.mrf.mxu0
        %v2116 = vadd.f32 %v799, %v2115
        %2117 = vmatmul.bf16.gmra.mxu0 %v1613
        %v2118 = vpop.f32.mrf.mxu0
        %v2119 = vadd.f32 %v799, %v2118
        %v2120 = vpop.f32.mrf.mxu0
        %v2121 = vadd.f32 %v799, %v2120
        %2122 = vmatmul.bf16.gmra.mxu0 %v1616
        %v2123 = vpop.f32.mrf.mxu0
        %v2124 = vadd.f32 %v799, %v2123
        %v2125 = vpop.f32.mrf.mxu0
        %v2126 = vadd.f32 %v799, %v2125
        %2127 = vmatmul.bf16.gmra.mxu0 %v1619
        %v2128 = vpop.f32.mrf.mxu0
        %v2129 = vadd.f32 %v799, %v2128
        %v2130 = vpop.f32.mrf.mxu0
        %v2131 = vadd.f32 %v799, %v2130
        %2132 = vmatmul.bf16.gmra.mxu0 %v1622
        %v2133 = vpop.f32.mrf.mxu0
        %v2134 = vadd.f32 %v799, %v2133
        %v2135 = vpop.f32.mrf.mxu0
        %v2136 = vadd.f32 %v799, %v2135
        %2137 = vmatmul.bf16.gmra.mxu0 %v1625
        %v2138 = vpop.f32.mrf.mxu0
        %v2139 = vadd.f32 %v799, %v2138
        %v2140 = vpop.f32.mrf.mxu0
        %v2141 = vadd.f32 %v799, %v2140
        %2142 = vmatmul.bf16.gmra.mxu0 %v1628
        %v2143 = vpop.f32.mrf.mxu0
        %v2144 = vadd.f32 %v799, %v2143
        %v2145 = vpop.f32.mrf.mxu0
        %v2146 = vadd.f32 %v799, %v2145
        %2147 = vmatmul.bf16.gmra.mxu0 %v1631
        %v2148 = vpop.f32.mrf.mxu0
        %v2149 = vadd.f32 %v799, %v2148
        %v2150 = vpop.f32.mrf.mxu0
        %v2151 = vadd.f32 %v799, %v2150
        %2152 = vmatmul.bf16.gmra.mxu0 %v1634
        %v2153 = vpop.f32.mrf.mxu0
        %v2154 = vadd.f32 %v799, %v2153
        %v2155 = vpop.f32.mrf.mxu0
        %v2156 = vadd.f32 %v799, %v2155
        %2157 = vmatmul.bf16.gmra.mxu0 %v1637
        %v2158 = vpop.f32.mrf.mxu0
        %v2159 = vadd.f32 %v799, %v2158
        %v2160 = vpop.f32.mrf.mxu0
        %v2161 = vadd.f32 %v799, %v2160
        %2162 = vmatmul.bf16.gmra.mxu0 %v1640
        %v2163 = vpop.f32.mrf.mxu0
        %v2164 = vadd.f32 %v799, %v2163
        %v2165 = vpop.f32.mrf.mxu0
        %v2166 = vadd.f32 %v799, %v2165
        %2167 = vmatmul.bf16.gmra.mxu0 %v1643
        %v2168 = vpop.f32.mrf.mxu0
        %v2169 = vadd.f32 %v799, %v2168
        %v2170 = vpop.f32.mrf.mxu0
        %v2171 = vadd.f32 %v799, %v2170
        %2172 = vmatmul.bf16.gmra.mxu0 %v1646
        %v2173 = vpop.f32.mrf.mxu0
        %v2174 = vadd.f32 %v799, %v2173
        %v2175 = vpop.f32.mrf.mxu0
        %v2176 = vadd.f32 %v799, %v2175
        %2177 = vmatmul.bf16.gmra.mxu0 %v1649
        %v2178 = vpop.f32.mrf.mxu0
        %v2179 = vadd.f32 %v799, %v2178
        %v2180 = vpop.f32.mrf.mxu0
        %v2181 = vadd.f32 %v799, %v2180
        %2182 = vmatmul.bf16.gmra.mxu0 %v1652
        %v2183 = vpop.f32.mrf.mxu0
        %v2184 = vadd.f32 %v799, %v2183
        %v2185 = vpop.f32.mrf.mxu0
        %v2186 = vadd.f32 %v799, %v2185
        %2187 = vmatmul.bf16.gmra.mxu0 %v1655
        %v2188 = vpop.f32.mrf.mxu0
        %v2189 = vadd.f32 %v799, %v2188
        %v2190 = vpop.f32.mrf.mxu0
        %v2191 = vadd.f32 %v799, %v2190
        %2192 = vmatmul.bf16.gmra.mxu0 %v1658
        %v2193 = vpop.f32.mrf.mxu0
        %v2194 = vadd.f32 %v799, %v2193
        %v2195 = vpop.f32.mrf.mxu0
        %v2196 = vadd.f32 %v799, %v2195
        %2197 = vmatmul.bf16.gmra.mxu0 %v1661
        %v2198 = vpop.f32.mrf.mxu0
        %v2199 = vadd.f32 %v799, %v2198
        %v2200 = vpop.f32.mrf.mxu0
        %v2201 = vadd.f32 %v799, %v2200
        %2202 = vmatmul.bf16.gmra.mxu0 %v1664
        %v2203 = vpop.f32.mrf.mxu0
        %v2204 = vadd.f32 %v799, %v2203
        %v2205 = vpop.f32.mrf.mxu0
        %v2206 = vadd.f32 %v799, %v2205
        %2207 = vmatmul.bf16.gmra.mxu0 %v1667
        %v2208 = vpop.f32.mrf.mxu0
        %v2209 = vadd.f32 %v799, %v2208
        %v2210 = vpop.f32.mrf.mxu0
        %v2211 = vadd.f32 %v799, %v2210
        %2212 = vmatmul.bf16.gmra.mxu0 %v1670
        %v2213 = vpop.f32.mrf.mxu0
        %v2214 = vadd.f32 %v799, %v2213
        %v2215 = vpop.f32.mrf.mxu0
        %v2216 = vadd.f32 %v799, %v2215
        %2217 = vmatmul.bf16.gmra.mxu0 %v1673
        %v2218 = vpop.f32.mrf.mxu0
        %v2219 = vadd.f32 %v799, %v2218
        %v2220 = vpop.f32.mrf.mxu0
        %v2221 = vadd.f32 %v799, %v2220
        %2222 = vmatmul.bf16.gmra.mxu0 %v1676
        %v2223 = vpop.f32.mrf.mxu0
        %v2224 = vadd.f32 %v799, %v2223
        %v2225 = vpop.f32.mrf.mxu0
        %v2226 = vadd.f32 %v799, %v2225
        %2227 = vmatmul.bf16.gmra.mxu0 %v1679
        %v2228 = vpop.f32.mrf.mxu0
        %v2229 = vadd.f32 %v799, %v2228
        %v2230 = vpop.f32.mrf.mxu0
        %v2231 = vadd.f32 %v799, %v2230
        %2232 = vmatmul.bf16.gmra.mxu0 %v1682
        %v2233 = vpop.f32.mrf.mxu0
        %v2234 = vadd.f32 %v799, %v2233
        %v2235 = vpop.f32.mrf.mxu0
        %v2236 = vadd.f32 %v799, %v2235
        %2237 = vmatmul.bf16.gmra.mxu0 %v1685
        %v2238 = vpop.f32.mrf.mxu0
        %v2239 = vadd.f32 %v799, %v2238
        %v2240 = vpop.f32.mrf.mxu0
        %v2241 = vadd.f32 %v799, %v2240
        %2242 = vmatmul.bf16.gmra.mxu0 %v1688
        %v2243 = vpop.f32.mrf.mxu0
        %v2244 = vadd.f32 %v799, %v2243
        %v2245 = vpop.f32.mrf.mxu0
        %v2246 = vadd.f32 %v799, %v2245
        %2247 = vmatmul.bf16.gmra.mxu0 %v1691
        %v2248 = vpop.f32.mrf.mxu0
        %v2249 = vadd.f32 %v799, %v2248
        %v2250 = vpop.f32.mrf.mxu0
        %v2251 = vadd.f32 %v799, %v2250
        %2252 = vmatmul.bf16.gmra.mxu0 %v1694
        %v2253 = vpop.f32.mrf.mxu0
        %v2254 = vadd.f32 %v799, %v2253
        %v2255 = vpop.f32.mrf.mxu0
        %v2256 = vadd.f32 %v799, %v2255
        %2257 = vmatmul.bf16.gmra.mxu0 %v1697
        %v2258 = vpop.f32.mrf.mxu0
        %v2259 = vadd.f32 %v799, %v2258
        %v2260 = vpop.f32.mrf.mxu0
        %v2261 = vadd.f32 %v799, %v2260
        %2262 = vmatmul.bf16.gmra.mxu0 %v1700
        %v2263 = vpop.f32.mrf.mxu0
        %v2264 = vadd.f32 %v799, %v2263
        %v2265 = vpop.f32.mrf.mxu0
        %v2266 = vadd.f32 %v799, %v2265
        %2267 = vmatmul.bf16.gmra.mxu0 %v1703
        %v2268 = vpop.f32.mrf.mxu0
        %v2269 = vadd.f32 %v799, %v2268
        %v2270 = vpop.f32.mrf.mxu0
        %v2271 = vadd.f32 %v799, %v2270
        %2272 = vmatmul.bf16.gmra.mxu0 %v1706
        %v2273 = vpop.f32.mrf.mxu0
        %v2274 = vadd.f32 %v799, %v2273
        %v2275 = vpop.f32.mrf.mxu0
        %v2276 = vadd.f32 %v799, %v2275
        %2277 = vmatmul.bf16.gmra.mxu0 %v1709
        %v2278 = vpop.f32.mrf.mxu0
        %v2279 = vadd.f32 %v799, %v2278
        %v2280 = vpop.f32.mrf.mxu0
        %v2281 = vadd.f32 %v799, %v2280
        %2282 = vmatmul.bf16.gmra.mxu0 %v1712
        %v2283 = vpop.f32.mrf.mxu0
        %v2284 = vadd.f32 %v799, %v2283
        %v2285 = vpop.f32.mrf.mxu0
        %v2286 = vadd.f32 %v799, %v2285
        %2287 = vmatmul.bf16.gmra.mxu0 %v1715
        %v2288 = vpop.f32.mrf.mxu0
        %v2289 = vadd.f32 %v799, %v2288
        %v2290 = vpop.f32.mrf.mxu0
        %v2291 = vadd.f32 %v799, %v2290
        %2292 = vmatmul.bf16.gmra.mxu0 %v1718
        %v2293 = vpop.f32.mrf.mxu0
        %v2294 = vadd.f32 %v799, %v2293
        %v2295 = vpop.f32.mrf.mxu0
        %v2296 = vadd.f32 %v799, %v2295
        %2297 = vmatmul.bf16.gmra.mxu0 %v1721
        %v2298 = vpop.f32.mrf.mxu0
        %v2299 = vadd.f32 %v799, %v2298
        %v2300 = vpop.f32.mrf.mxu0
        %v2301 = vadd.f32 %v799, %v2300
        %2302 = vmatmul.bf16.gmra.mxu0 %v1724
        %v2303 = vpop.f32.mrf.mxu0
        %v2304 = vadd.f32 %v799, %v2303
        %v2305 = vpop.f32.mrf.mxu0
        %v2306 = vadd.f32 %v799, %v2305
        %2307 = vmatmul.bf16.gmra.mxu0 %v1727
        %v2308 = vpop.f32.mrf.mxu0
        %v2309 = vadd.f32 %v799, %v2308
        %v2310 = vpop.f32.mrf.mxu0
        %v2311 = vadd.f32 %v799, %v2310
        %2312 = vmatmul.bf16.gmra.mxu0 %v1730
        %v2313 = vpop.f32.mrf.mxu0
        %v2314 = vadd.f32 %v799, %v2313
        %v2315 = vpop.f32.mrf.mxu0
        %v2316 = vadd.f32 %v799, %v2315
        %2317 = vmatmul.bf16.gmra.mxu0 %v1733
        %v2318 = vpop.f32.mrf.mxu0
        %v2319 = vadd.f32 %v799, %v2318
        %v2320 = vpop.f32.mrf.mxu0
        %v2321 = vadd.f32 %v799, %v2320
        %2322 = vmatmul.bf16.gmra.mxu0 %v1736
        %v2323 = vpop.f32.mrf.mxu0
        %v2324 = vadd.f32 %v799, %v2323
        %v2325 = vpop.f32.mrf.mxu0
        %v2326 = vadd.f32 %v799, %v2325
        %2327 = vmatmul.bf16.gmra.mxu0 %v1739
        %v2328 = vpop.f32.mrf.mxu0
        %v2329 = vadd.f32 %v799, %v2328
        %v2330 = vpop.f32.mrf.mxu0
        %v2331 = vadd.f32 %v799, %v2330
        %2332 = vmatmul.bf16.gmra.mxu0 %v1742
        %v2333 = vpop.f32.mrf.mxu0
        %v2334 = vadd.f32 %v799, %v2333
        %v2335 = vpop.f32.mrf.mxu0
        %v2336 = vadd.f32 %v799, %v2335
        %2337 = vmatmul.bf16.gmra.mxu0 %v1745
        %v2338 = vpop.f32.mrf.mxu0
        %v2339 = vadd.f32 %v799, %v2338
        %v2340 = vpop.f32.mrf.mxu0
        %v2341 = vadd.f32 %v799, %v2340
        %2342 = vmatmul.bf16.gmra.mxu0 %v1748
        %v2343 = vpop.f32.mrf.mxu0
        %v2344 = vadd.f32 %v799, %v2343
        %v2345 = vpop.f32.mrf.mxu0
        %v2346 = vadd.f32 %v799, %v2345
        %2347 = vmatmul.bf16.gmra.mxu0 %v1751
        %v2348 = vpop.f32.mrf.mxu0
        %v2349 = vadd.f32 %v799, %v2348
        %v2350 = vpop.f32.mrf.mxu0
        %v2351 = vadd.f32 %v799, %v2350
        %2352 = vmatmul.bf16.gmra.mxu0 %v1754
        %v2353 = vpop.f32.mrf.mxu0
        %v2354 = vadd.f32 %v799, %v2353
        %v2355 = vpop.f32.mrf.mxu0
        %v2356 = vadd.f32 %v799, %v2355
        %2357 = vmatmul.bf16.gmra.mxu0 %v1757
        %v2358 = vpop.f32.mrf.mxu0
        %v2359 = vadd.f32 %v799, %v2358
        %v2360 = vpop.f32.mrf.mxu0
        %v2361 = vadd.f32 %v799, %v2360
        %2362 = vmatmul.bf16.gmra.mxu0 %v1760
        %v2363 = vpop.f32.mrf.mxu0
        %v2364 = vadd.f32 %v799, %v2363
        %v2365 = vpop.f32.mrf.mxu0
        %v2366 = vadd.f32 %v799, %v2365
        %2367 = vmatmul.bf16.gmra.mxu0 %v1763
        %v2368 = vpop.f32.mrf.mxu0
        %v2369 = vadd.f32 %v799, %v2368
        %v2370 = vpop.f32.mrf.mxu0
        %v2371 = vadd.f32 %v799, %v2370
        %2372 = vmatmul.bf16.gmra.mxu0 %v1766
        %v2373 = vpop.f32.mrf.mxu0
        %v2374 = vadd.f32 %v799, %v2373
        %v2375 = vpop.f32.mrf.mxu0
        %v2376 = vadd.f32 %v799, %v2375
        %2377 = vmatmul.bf16.gmra.mxu0 %v1769
        %v2378 = vpop.f32.mrf.mxu0
        %v2379 = vadd.f32 %v799, %v2378
        %v2380 = vpop.f32.mrf.mxu0
        %v2381 = vadd.f32 %v799, %v2380
        %2382 = vmatmul.bf16.gmra.mxu0 %v1772
        %v2383 = vpop.f32.mrf.mxu0
        %v2384 = vadd.f32 %v799, %v2383
        %v2385 = vpop.f32.mrf.mxu0
        %v2386 = vadd.f32 %v799, %v2385
        %2387 = vmatmul.bf16.gmra.mxu0 %v1775
        %v2388 = vpop.f32.mrf.mxu0
        %v2389 = vadd.f32 %v799, %v2388
        %v2390 = vpop.f32.mrf.mxu0
        %v2391 = vadd.f32 %v799, %v2390
        %2392 = vmatmul.bf16.gmra.mxu0 %v1778
        %v2393 = vpop.f32.mrf.mxu0
        %v2394 = vadd.f32 %v799, %v2393
        %v2395 = vpop.f32.mrf.mxu0
        %v2396 = vadd.f32 %v799, %v2395
        %2397 = vmatmul.bf16.gmra.mxu0 %v1781
        %v2398 = vpop.f32.mrf.mxu0
        %v2399 = vadd.f32 %v799, %v2398
        %v2400 = vpop.f32.mrf.mxu0
        %v2401 = vadd.f32 %v799, %v2400
        %2402 = vmatmul.bf16.gmra.mxu0 %v1784
        %v2403 = vpop.f32.mrf.mxu0
        %v2404 = vadd.f32 %v799, %v2403
        %v2405 = vpop.f32.mrf.mxu0
        %v2406 = vadd.f32 %v799, %v2405
        %2407 = vmatmul.bf16.gmra.mxu0 %v1787
        %v2408 = vpop.f32.mrf.mxu0
        %v2409 = vadd.f32 %v799, %v2408
        %v2410 = vpop.f32.mrf.mxu0
        %v2411 = vadd.f32 %v799, %v2410
        %2412 = vmatmul.bf16.gmra.mxu0 %v1790
        %v2413 = vpop.f32.mrf.mxu0
        %v2414 = vadd.f32 %v799, %v2413
        %v2415 = vpop.f32.mrf.mxu0
        %v2416 = vadd.f32 %v799, %v2415
        %2417 = vmatmul.bf16.gmra.mxu0 %v1793
        %v2418 = vpop.f32.mrf.mxu0
        %v2419 = vadd.f32 %v799, %v2418
        %v2420 = vpop.f32.mrf.mxu0
        %v2421 = vadd.f32 %v799, %v2420
        %2422 = vmatmul.bf16.gmra.mxu0 %v1796
        %v2423 = vpop.f32.mrf.mxu0
        %v2424 = vadd.f32 %v799, %v2423
        %v2425 = vpop.f32.mrf.mxu0
        %v2426 = vadd.f32 %v799, %v2425
        %2427 = vmatmul.bf16.gmra.mxu0 %v1799
        %v2428 = vpop.f32.mrf.mxu0
        %v2429 = vadd.f32 %v799, %v2428
        %v2430 = vpop.f32.mrf.mxu0
        %v2431 = vadd.f32 %v799, %v2430
        %2432 = vmatmul.bf16.gmra.mxu0 %v1802
        %v2433 = vpop.f32.mrf.mxu0
        %v2434 = vadd.f32 %v799, %v2433
        %v2435 = vpop.f32.mrf.mxu0
        %v2436 = vadd.f32 %v799, %v2435
        %2437 = vmatmul.bf16.gmra.mxu0 %v1805
        %v2438 = vpop.f32.mrf.mxu0
        %v2439 = vadd.f32 %v799, %v2438
        %v2440 = vpop.f32.mrf.mxu0
        %v2441 = vadd.f32 %v799, %v2440
        %2442 = vmatmul.bf16.gmra.mxu0 %v1808
        %v2443 = vpop.f32.mrf.mxu0
        %v2444 = vadd.f32 %v799, %v2443
        %v2445 = vpop.f32.mrf.mxu0
        %v2446 = vadd.f32 %v799, %v2445
        %2447 = vmatmul.bf16.gmra.mxu0 %v1811
        %v2448 = vpop.f32.mrf.mxu0
        %v2449 = vadd.f32 %v799, %v2448
        %v2450 = vpop.f32.mrf.mxu0
        %v2451 = vadd.f32 %v799, %v2450
        %2452 = vmatmul.bf16.gmra.mxu0 %v1814
        %v2453 = vpop.f32.mrf.mxu0
        %v2454 = vadd.f32 %v799, %v2453
        %v2455 = vpop.f32.mrf.mxu0
        %v2456 = vadd.f32 %v799, %v2455
        %2457 = vmatmul.bf16.gmra.mxu0 %v1817
        %v2458 = vpop.f32.mrf.mxu0
        %v2459 = vadd.f32 %v799, %v2458
        %v2460 = vpop.f32.mrf.mxu0
        %v2461 = vadd.f32 %v799, %v2460
        %2462 = vmatmul.bf16.gmra.mxu0 %v1820
        %v2463 = vpop.f32.mrf.mxu0
        %v2464 = vadd.f32 %v799, %v2463
        %v2465 = vpop.f32.mrf.mxu0
        %v2466 = vadd.f32 %v799, %v2465
        %2467 = vmatmul.bf16.gmra.mxu0 %v1823
        %v2468 = vpop.f32.mrf.mxu0
        %v2469 = vadd.f32 %v799, %v2468
        %v2470 = vpop.f32.mrf.mxu0
        %v2471 = vadd.f32 %v799, %v2470
        %2472 = vmatmul.bf16.gmra.mxu0 %v1826
        %v2473 = vpop.f32.mrf.mxu0
        %v2474 = vadd.f32 %v799, %v2473
        %v2475 = vpop.f32.mrf.mxu0
        %v2476 = vadd.f32 %v799, %v2475
        %2477 = vmatmul.bf16.gmra.mxu0 %v1829
        %v2478 = vpop.f32.mrf.mxu0
        %v2479 = vadd.f32 %v799, %v2478
        %v2480 = vpop.f32.mrf.mxu0
        %v2481 = vadd.f32 %v799, %v2480
        %2482 = vmatmul.bf16.gmra.mxu0 %v1832
        %v2483 = vpop.f32.mrf.mxu0
        %v2484 = vadd.f32 %v799, %v2483
        %v2485 = vpop.f32.mrf.mxu0
        %v2486 = vadd.f32 %v799, %v2485
        %2487 = vmatmul.bf16.gmra.mxu0 %v1835
        %v2488 = vpop.f32.mrf.mxu0
        %v2489 = vadd.f32 %v799, %v2488
        %v2490 = vpop.f32.mrf.mxu0
        %v2491 = vadd.f32 %v799, %v2490
        %2492 = vdwg.mxu0
        %v2493 = vmax.f32 %v1854, 0.0
        %v2494 = vmax.f32 %v1856, 0.0
        %v2495 = vmax.f32 %v1859, 0.0
        %v2496 = vmax.f32 %v1861, 0.0
        %v2497 = vmax.f32 %v1864, 0.0
        %v2498 = vmax.f32 %v1866, 0.0
        %v2499 = vmax.f32 %v1869, 0.0
        %v2500 = vmax.f32 %v1871, 0.0
        %v2501 = vmax.f32 %v1874, 0.0
        %v2502 = vmax.f32 %v1876, 0.0
        %v2503 = vmax.f32 %v1879, 0.0
        %v2504 = vmax.f32 %v1881, 0.0
        %v2505 = vmax.f32 %v1884, 0.0
        %v2506 = vmax.f32 %v1886, 0.0
        %v2507 = vmax.f32 %v1889, 0.0
        %v2508 = vmax.f32 %v1891, 0.0
        %v2509 = vmax.f32 %v1894, 0.0
        %v2510 = vmax.f32 %v1896, 0.0
        %v2511 = vmax.f32 %v1899, 0.0
        %v2512 = vmax.f32 %v1901, 0.0
        %v2513 = vmax.f32 %v1904, 0.0
        %v2514 = vmax.f32 %v1906, 0.0
        %v2515 = vmax.f32 %v1909, 0.0
        %v2516 = vmax.f32 %v1911, 0.0
        %v2517 = vmax.f32 %v1914, 0.0
        %v2518 = vmax.f32 %v1916, 0.0
        %v2519 = vmax.f32 %v1919, 0.0
        %v2520 = vmax.f32 %v1921, 0.0
        %v2521 = vmax.f32 %v1924, 0.0
        %v2522 = vmax.f32 %v1926, 0.0
        %v2523 = vmax.f32 %v1929, 0.0
        %v2524 = vmax.f32 %v1931, 0.0
        %v2525 = vmax.f32 %v1934, 0.0
        %v2526 = vmax.f32 %v1936, 0.0
        %v2527 = vmax.f32 %v1939, 0.0
        %v2528 = vmax.f32 %v1941, 0.0
        %v2529 = vmax.f32 %v1944, 0.0
        %v2530 = vmax.f32 %v1946, 0.0
        %v2531 = vmax.f32 %v1949, 0.0
        %v2532 = vmax.f32 %v1951, 0.0
        %v2533 = vmax.f32 %v1954, 0.0
        %v2534 = vmax.f32 %v1956, 0.0
        %v2535 = vmax.f32 %v1959, 0.0
        %v2536 = vmax.f32 %v1961, 0.0
        %v2537 = vmax.f32 %v1964, 0.0
        %v2538 = vmax.f32 %v1966, 0.0
        %v2539 = vmax.f32 %v1969, 0.0
        %v2540 = vmax.f32 %v1971, 0.0
        %v2541 = vmax.f32 %v1974, 0.0
        %v2542 = vmax.f32 %v1976, 0.0
        %v2543 = vmax.f32 %v1979, 0.0
        %v2544 = vmax.f32 %v1981, 0.0
        %v2545 = vmax.f32 %v1984, 0.0
        %v2546 = vmax.f32 %v1986, 0.0
        %v2547 = vmax.f32 %v1989, 0.0
        %v2548 = vmax.f32 %v1991, 0.0
        %v2549 = vmax.f32 %v1994, 0.0
        %v2550 = vmax.f32 %v1996, 0.0
        %v2551 = vmax.f32 %v1999, 0.0
        %v2552 = vmax.f32 %v2001, 0.0
        %v2553 = vmax.f32 %v2004, 0.0
        %v2554 = vmax.f32 %v2006, 0.0
        %v2555 = vmax.f32 %v2009, 0.0
        %v2556 = vmax.f32 %v2011, 0.0
        %v2557 = vmax.f32 %v2014, 0.0
        %v2558 = vmax.f32 %v2016, 0.0
        %v2559 = vmax.f32 %v2019, 0.0
        %v2560 = vmax.f32 %v2021, 0.0
        %v2561 = vmax.f32 %v2024, 0.0
        %v2562 = vmax.f32 %v2026, 0.0
        %v2563 = vmax.f32 %v2029, 0.0
        %v2564 = vmax.f32 %v2031, 0.0
        %v2565 = vmax.f32 %v2034, 0.0
        %v2566 = vmax.f32 %v2036, 0.0
        %v2567 = vmax.f32 %v2039, 0.0
        %v2568 = vmax.f32 %v2041, 0.0
        %v2569 = vmax.f32 %v2044, 0.0
        %v2570 = vmax.f32 %v2046, 0.0
        %v2571 = vmax.f32 %v2049, 0.0
        %v2572 = vmax.f32 %v2051, 0.0
        %v2573 = vmax.f32 %v2054, 0.0
        %v2574 = vmax.f32 %v2056, 0.0
        %v2575 = vmax.f32 %v2059, 0.0
        %v2576 = vmax.f32 %v2061, 0.0
        %v2577 = vmax.f32 %v2064, 0.0
        %v2578 = vmax.f32 %v2066, 0.0
        %v2579 = vmax.f32 %v2069, 0.0
        %v2580 = vmax.f32 %v2071, 0.0
        %v2581 = vmax.f32 %v2074, 0.0
        %v2582 = vmax.f32 %v2076, 0.0
        %v2583 = vmax.f32 %v2079, 0.0
        %v2584 = vmax.f32 %v2081, 0.0
        %v2585 = vmax.f32 %v2084, 0.0
        %v2586 = vmax.f32 %v2086, 0.0
        %v2587 = vmax.f32 %v2089, 0.0
        %v2588 = vmax.f32 %v2091, 0.0
        %v2589 = vmax.f32 %v2094, 0.0
        %v2590 = vmax.f32 %v2096, 0.0
        %v2591 = vmax.f32 %v2099, 0.0
        %v2592 = vmax.f32 %v2101, 0.0
        %v2593 = vmax.f32 %v2104, 0.0
        %v2594 = vmax.f32 %v2106, 0.0
        %v2595 = vmax.f32 %v2109, 0.0
        %v2596 = vmax.f32 %v2111, 0.0
        %v2597 = vmax.f32 %v2114, 0.0
        %v2598 = vmax.f32 %v2116, 0.0
        %v2599 = vmax.f32 %v2119, 0.0
        %v2600 = vmax.f32 %v2121, 0.0
        %v2601 = vmax.f32 %v2124, 0.0
        %v2602 = vmax.f32 %v2126, 0.0
        %v2603 = vmax.f32 %v2129, 0.0
        %v2604 = vmax.f32 %v2131, 0.0
        %v2605 = vmax.f32 %v2134, 0.0
        %v2606 = vmax.f32 %v2136, 0.0
        %v2607 = vmax.f32 %v2139, 0.0
        %v2608 = vmax.f32 %v2141, 0.0
        %v2609 = vmax.f32 %v2144, 0.0
        %v2610 = vmax.f32 %v2146, 0.0
        %v2611 = vmax.f32 %v2149, 0.0
        %v2612 = vmax.f32 %v2151, 0.0
        %v2613 = vmax.f32 %v2154, 0.0
        %v2614 = vmax.f32 %v2156, 0.0
        %v2615 = vmax.f32 %v2159, 0.0
        %v2616 = vmax.f32 %v2161, 0.0
        %v2617 = vmax.f32 %v2164, 0.0
        %v2618 = vmax.f32 %v2166, 0.0
        %v2619 = vmax.f32 %v2169, 0.0
        %v2620 = vmax.f32 %v2171, 0.0
        %v2621 = vmax.f32 %v2174, 0.0
        %v2622 = vmax.f32 %v2176, 0.0
        %v2623 = vmax.f32 %v2179, 0.0
        %v2624 = vmax.f32 %v2181, 0.0
        %v2625 = vmax.f32 %v2184, 0.0
        %v2626 = vmax.f32 %v2186, 0.0
        %v2627 = vmax.f32 %v2189, 0.0
        %v2628 = vmax.f32 %v2191, 0.0
        %v2629 = vmax.f32 %v2194, 0.0
        %v2630 = vmax.f32 %v2196, 0.0
        %v2631 = vmax.f32 %v2199, 0.0
        %v2632 = vmax.f32 %v2201, 0.0
        %v2633 = vmax.f32 %v2204, 0.0
        %v2634 = vmax.f32 %v2206, 0.0
        %v2635 = vmax.f32 %v2209, 0.0
        %v2636 = vmax.f32 %v2211, 0.0
        %v2637 = vmax.f32 %v2214, 0.0
        %v2638 = vmax.f32 %v2216, 0.0
        %v2639 = vmax.f32 %v2219, 0.0
        %v2640 = vmax.f32 %v2221, 0.0
        %v2641 = vmax.f32 %v2224, 0.0
        %v2642 = vmax.f32 %v2226, 0.0
        %v2643 = vmax.f32 %v2229, 0.0
        %v2644 = vmax.f32 %v2231, 0.0
        %v2645 = vmax.f32 %v2234, 0.0
        %v2646 = vmax.f32 %v2236, 0.0
        %v2647 = vmax.f32 %v2239, 0.0
        %v2648 = vmax.f32 %v2241, 0.0
        %v2649 = vmax.f32 %v2244, 0.0
        %v2650 = vmax.f32 %v2246, 0.0
        %v2651 = vmax.f32 %v2249, 0.0
        %v2652 = vmax.f32 %v2251, 0.0
        %v2653 = vmax.f32 %v2254, 0.0
        %v2654 = vmax.f32 %v2256, 0.0
        %v2655 = vmax.f32 %v2259, 0.0
        %v2656 = vmax.f32 %v2261, 0.0
        %v2657 = vmax.f32 %v2264, 0.0
        %v2658 = vmax.f32 %v2266, 0.0
        %v2659 = vmax.f32 %v2269, 0.0
        %v2660 = vmax.f32 %v2271, 0.0
        %v2661 = vmax.f32 %v2274, 0.0
        %v2662 = vmax.f32 %v2276, 0.0
        %v2663 = vmax.f32 %v2279, 0.0
        %v2664 = vmax.f32 %v2281, 0.0
        %v2665 = vmax.f32 %v2284, 0.0
        %v2666 = vmax.f32 %v2286, 0.0
        %v2667 = vmax.f32 %v2289, 0.0
        %v2668 = vmax.f32 %v2291, 0.0
        %v2669 = vmax.f32 %v2294, 0.0
        %v2670 = vmax.f32 %v2296, 0.0
        %v2671 = vmax.f32 %v2299, 0.0
        %v2672 = vmax.f32 %v2301, 0.0
        %v2673 = vmax.f32 %v2304, 0.0
        %v2674 = vmax.f32 %v2306, 0.0
        %v2675 = vmax.f32 %v2309, 0.0
        %v2676 = vmax.f32 %v2311, 0.0
        %v2677 = vmax.f32 %v2314, 0.0
        %v2678 = vmax.f32 %v2316, 0.0
        %v2679 = vmax.f32 %v2319, 0.0
        %v2680 = vmax.f32 %v2321, 0.0
        %v2681 = vmax.f32 %v2324, 0.0
        %v2682 = vmax.f32 %v2326, 0.0
        %v2683 = vmax.f32 %v2329, 0.0
        %v2684 = vmax.f32 %v2331, 0.0
        %v2685 = vmax.f32 %v2334, 0.0
        %v2686 = vmax.f32 %v2336, 0.0
        %v2687 = vmax.f32 %v2339, 0.0
        %v2688 = vmax.f32 %v2341, 0.0
        %v2689 = vmax.f32 %v2344, 0.0
        %v2690 = vmax.f32 %v2346, 0.0
        %v2691 = vmax.f32 %v2349, 0.0
        %v2692 = vmax.f32 %v2351, 0.0
        %v2693 = vmax.f32 %v2354, 0.0
        %v2694 = vmax.f32 %v2356, 0.0
        %v2695 = vmax.f32 %v2359, 0.0
        %v2696 = vmax.f32 %v2361, 0.0
        %v2697 = vmax.f32 %v2364, 0.0
        %v2698 = vmax.f32 %v2366, 0.0
        %v2699 = vmax.f32 %v2369, 0.0
        %v2700 = vmax.f32 %v2371, 0.0
        %v2701 = vmax.f32 %v2374, 0.0
        %v2702 = vmax.f32 %v2376, 0.0
        %v2703 = vmax.f32 %v2379, 0.0
        %v2704 = vmax.f32 %v2381, 0.0
        %v2705 = vmax.f32 %v2384, 0.0
        %v2706 = vmax.f32 %v2386, 0.0
        %v2707 = vmax.f32 %v2389, 0.0
        %v2708 = vmax.f32 %v2391, 0.0
        %v2709 = vmax.f32 %v2394, 0.0
        %v2710 = vmax.f32 %v2396, 0.0
        %v2711 = vmax.f32 %v2399, 0.0
        %v2712 = vmax.f32 %v2401, 0.0
        %v2713 = vmax.f32 %v2404, 0.0
        %v2714 = vmax.f32 %v2406, 0.0
        %v2715 = vmax.f32 %v2409, 0.0
        %v2716 = vmax.f32 %v2411, 0.0
        %v2717 = vmax.f32 %v2414, 0.0
        %v2718 = vmax.f32 %v2416, 0.0
        %v2719 = vmax.f32 %v2419, 0.0
        %v2720 = vmax.f32 %v2421, 0.0
        %v2721 = vmax.f32 %v2424, 0.0
        %v2722 = vmax.f32 %v2426, 0.0
        %v2723 = vmax.f32 %v2429, 0.0
        %v2724 = vmax.f32 %v2431, 0.0
        %v2725 = vmax.f32 %v2434, 0.0
        %v2726 = vmax.f32 %v2436, 0.0
        %v2727 = vmax.f32 %v2439, 0.0
        %v2728 = vmax.f32 %v2441, 0.0
        %v2729 = vmax.f32 %v2444, 0.0
        %v2730 = vmax.f32 %v2446, 0.0
        %v2731 = vmax.f32 %v2449, 0.0
        %v2732 = vmax.f32 %v2451, 0.0
        %v2733 = vmax.f32 %v2454, 0.0
        %v2734 = vmax.f32 %v2456, 0.0
        %v2735 = vmax.f32 %v2459, 0.0
        %v2736 = vmax.f32 %v2461, 0.0
        %v2737 = vmax.f32 %v2464, 0.0
        %v2738 = vmax.f32 %v2466, 0.0
        %v2739 = vmax.f32 %v2469, 0.0
        %v2740 = vmax.f32 %v2471, 0.0
        %v2741 = vmax.f32 %v2474, 0.0
        %v2742 = vmax.f32 %v2476, 0.0
        %v2743 = vmax.f32 %v2479, 0.0
        %v2744 = vmax.f32 %v2481, 0.0
        %v2745 = vmax.f32 %v2484, 0.0
        %v2746 = vmax.f32 %v2486, 0.0
        %v2747 = vmax.f32 %v2489, 0.0
        %v2748 = vmax.f32 %v2491, 0.0
        %v2749 = vmax.f32 %v2493, %v2501
        %v2750 = vmax.f32 %v2494, %v2502
        %v2751 = vmax.f32 %v2495, %v2503
        %v2752 = vmax.f32 %v2496, %v2504
        %v2753 = vmax.f32 %v2497, %v2505
        %v2754 = vmax.f32 %v2498, %v2506
        %v2755 = vmax.f32 %v2499, %v2507
        %v2756 = vmax.f32 %v2500, %v2508
        %v2757 = vmax.f32 %v2557, %v2565
        %v2758 = vmax.f32 %v2558, %v2566
        %v2759 = vmax.f32 %v2559, %v2567
        %v2760 = vmax.f32 %v2560, %v2568
        %v2761 = vmax.f32 %v2561, %v2569
        %v2762 = vmax.f32 %v2562, %v2570
        %v2763 = vmax.f32 %v2563, %v2571
        %v2764 = vmax.f32 %v2564, %v2572
        %v2765 = vmax.f32 %v2621, %v2629
        %v2766 = vmax.f32 %v2622, %v2630
        %v2767 = vmax.f32 %v2623, %v2631
        %v2768 = vmax.f32 %v2624, %v2632
        %v2769 = vmax.f32 %v2625, %v2633
        %v2770 = vmax.f32 %v2626, %v2634
        %v2771 = vmax.f32 %v2627, %v2635
        %v2772 = vmax.f32 %v2628, %v2636
        %v2773 = vmax.f32 %v2685, %v2693
        %v2774 = vmax.f32 %v2686, %v2694
        %v2775 = vmax.f32 %v2687, %v2695
        %v2776 = vmax.f32 %v2688, %v2696
        %v2777 = vmax.f32 %v2689, %v2697
        %v2778 = vmax.f32 %v2690, %v2698
        %v2779 = vmax.f32 %v2691, %v2699
        %v2780 = vmax.f32 %v2692, %v2700
        %v2781 = vmax.f32 %v2501, %v2509
        %v2782 = vmax.f32 %v2781, %v2517
        %v2783 = vmax.f32 %v2502, %v2510
        %v2784 = vmax.f32 %v2783, %v2518
        %v2785 = vmax.f32 %v2503, %v2511
        %v2786 = vmax.f32 %v2785, %v2519
        %v2787 = vmax.f32 %v2504, %v2512
        %v2788 = vmax.f32 %v2787, %v2520
        %v2789 = vmax.f32 %v2505, %v2513
        %v2790 = vmax.f32 %v2789, %v2521
        %v2791 = vmax.f32 %v2506, %v2514
        %v2792 = vmax.f32 %v2791, %v2522
        %v2793 = vmax.f32 %v2507, %v2515
        %v2794 = vmax.f32 %v2793, %v2523
        %v2795 = vmax.f32 %v2508, %v2516
        %v2796 = vmax.f32 %v2795, %v2524
        %v2797 = vmax.f32 %v2565, %v2573
        %v2798 = vmax.f32 %v2797, %v2581
        %v2799 = vmax.f32 %v2566, %v2574
        %v2800 = vmax.f32 %v2799, %v2582
        %v2801 = vmax.f32 %v2567, %v2575
        %v2802 = vmax.f32 %v2801, %v2583
        %v2803 = vmax.f32 %v2568, %v2576
        %v2804 = vmax.f32 %v2803, %v2584
        %v2805 = vmax.f32 %v2569, %v2577
        %v2806 = vmax.f32 %v2805, %v2585
        %v2807 = vmax.f32 %v2570, %v2578
        %v2808 = vmax.f32 %v2807, %v2586
        %v2809 = vmax.f32 %v2571, %v2579
        %v2810 = vmax.f32 %v2809, %v2587
        %v2811 = vmax.f32 %v2572, %v2580
        %v2812 = vmax.f32 %v2811, %v2588
        %v2813 = vmax.f32 %v2629, %v2637
        %v2814 = vmax.f32 %v2813, %v2645
        %v2815 = vmax.f32 %v2630, %v2638
        %v2816 = vmax.f32 %v2815, %v2646
        %v2817 = vmax.f32 %v2631, %v2639
        %v2818 = vmax.f32 %v2817, %v2647
        %v2819 = vmax.f32 %v2632, %v2640
        %v2820 = vmax.f32 %v2819, %v2648
        %v2821 = vmax.f32 %v2633, %v2641
        %v2822 = vmax.f32 %v2821, %v2649
        %v2823 = vmax.f32 %v2634, %v2642
        %v2824 = vmax.f32 %v2823, %v2650
        %v2825 = vmax.f32 %v2635, %v2643
        %v2826 = vmax.f32 %v2825, %v2651
        %v2827 = vmax.f32 %v2636, %v2644
        %v2828 = vmax.f32 %v2827, %v2652
        %v2829 = vmax.f32 %v2693, %v2701
        %v2830 = vmax.f32 %v2829, %v2709
        %v2831 = vmax.f32 %v2694, %v2702
        %v2832 = vmax.f32 %v2831, %v2710
        %v2833 = vmax.f32 %v2695, %v2703
        %v2834 = vmax.f32 %v2833, %v2711
        %v2835 = vmax.f32 %v2696, %v2704
        %v2836 = vmax.f32 %v2835, %v2712
        %v2837 = vmax.f32 %v2697, %v2705
        %v2838 = vmax.f32 %v2837, %v2713
        %v2839 = vmax.f32 %v2698, %v2706
        %v2840 = vmax.f32 %v2839, %v2714
        %v2841 = vmax.f32 %v2699, %v2707
        %v2842 = vmax.f32 %v2841, %v2715
        %v2843 = vmax.f32 %v2700, %v2708
        %v2844 = vmax.f32 %v2843, %v2716
        %v2845 = vmax.f32 %v2517, %v2525
        %v2846 = vmax.f32 %v2845, %v2533
        %v2847 = vmax.f32 %v2518, %v2526
        %v2848 = vmax.f32 %v2847, %v2534
        %v2849 = vmax.f32 %v2519, %v2527
        %v2850 = vmax.f32 %v2849, %v2535
        %v2851 = vmax.f32 %v2520, %v2528
        %v2852 = vmax.f32 %v2851, %v2536
        %v2853 = vmax.f32 %v2521, %v2529
        %v2854 = vmax.f32 %v2853, %v2537
        %v2855 = vmax.f32 %v2522, %v2530
        %v2856 = vmax.f32 %v2855, %v2538
        %v2857 = vmax.f32 %v2523, %v2531
        %v2858 = vmax.f32 %v2857, %v2539
        %v2859 = vmax.f32 %v2524, %v2532
        %v2860 = vmax.f32 %v2859, %v2540
        %v2861 = vmax.f32 %v2581, %v2589
        %v2862 = vmax.f32 %v2861, %v2597
        %v2863 = vmax.f32 %v2582, %v2590
        %v2864 = vmax.f32 %v2863, %v2598
        %v2865 = vmax.f32 %v2583, %v2591
        %v2866 = vmax.f32 %v2865, %v2599
        %v2867 = vmax.f32 %v2584, %v2592
        %v2868 = vmax.f32 %v2867, %v2600
        %v2869 = vmax.f32 %v2585, %v2593
        %v2870 = vmax.f32 %v2869, %v2601
        %v2871 = vmax.f32 %v2586, %v2594
        %v2872 = vmax.f32 %v2871, %v2602
        %v2873 = vmax.f32 %v2587, %v2595
        %v2874 = vmax.f32 %v2873, %v2603
        %v2875 = vmax.f32 %v2588, %v2596
        %v2876 = vmax.f32 %v2875, %v2604
        %v2877 = vmax.f32 %v2645, %v2653
        %v2878 = vmax.f32 %v2877, %v2661
        %v2879 = vmax.f32 %v2646, %v2654
        %v2880 = vmax.f32 %v2879, %v2662
        %v2881 = vmax.f32 %v2647, %v2655
        %v2882 = vmax.f32 %v2881, %v2663
        %v2883 = vmax.f32 %v2648, %v2656
        %v2884 = vmax.f32 %v2883, %v2664
        %v2885 = vmax.f32 %v2649, %v2657
        %v2886 = vmax.f32 %v2885, %v2665
        %v2887 = vmax.f32 %v2650, %v2658
        %v2888 = vmax.f32 %v2887, %v2666
        %v2889 = vmax.f32 %v2651, %v2659
        %v2890 = vmax.f32 %v2889, %v2667
        %v2891 = vmax.f32 %v2652, %v2660
        %v2892 = vmax.f32 %v2891, %v2668
        %v2893 = vmax.f32 %v2709, %v2717
        %v2894 = vmax.f32 %v2893, %v2725
        %v2895 = vmax.f32 %v2710, %v2718
        %v2896 = vmax.f32 %v2895, %v2726
        %v2897 = vmax.f32 %v2711, %v2719
        %v2898 = vmax.f32 %v2897, %v2727
        %v2899 = vmax.f32 %v2712, %v2720
        %v2900 = vmax.f32 %v2899, %v2728
        %v2901 = vmax.f32 %v2713, %v2721
        %v2902 = vmax.f32 %v2901, %v2729
        %v2903 = vmax.f32 %v2714, %v2722
        %v2904 = vmax.f32 %v2903, %v2730
        %v2905 = vmax.f32 %v2715, %v2723
        %v2906 = vmax.f32 %v2905, %v2731
        %v2907 = vmax.f32 %v2716, %v2724
        %v2908 = vmax.f32 %v2907, %v2732
        %v2909 = vmax.f32 %v2533, %v2541
        %v2910 = vmax.f32 %v2909, %v2549
        %v2911 = vmax.f32 %v2534, %v2542
        %v2912 = vmax.f32 %v2911, %v2550
        %v2913 = vmax.f32 %v2535, %v2543
        %v2914 = vmax.f32 %v2913, %v2551
        %v2915 = vmax.f32 %v2536, %v2544
        %v2916 = vmax.f32 %v2915, %v2552
        %v2917 = vmax.f32 %v2537, %v2545
        %v2918 = vmax.f32 %v2917, %v2553
        %v2919 = vmax.f32 %v2538, %v2546
        %v2920 = vmax.f32 %v2919, %v2554
        %v2921 = vmax.f32 %v2539, %v2547
        %v2922 = vmax.f32 %v2921, %v2555
        %v2923 = vmax.f32 %v2540, %v2548
        %v2924 = vmax.f32 %v2923, %v2556
        %v2925 = vmax.f32 %v2597, %v2605
        %v2926 = vmax.f32 %v2925, %v2613
        %v2927 = vmax.f32 %v2598, %v2606
        %v2928 = vmax.f32 %v2927, %v2614
        %v2929 = vmax.f32 %v2599, %v2607
        %v2930 = vmax.f32 %v2929, %v2615
        %v2931 = vmax.f32 %v2600, %v2608
        %v2932 = vmax.f32 %v2931, %v2616
        %v2933 = vmax.f32 %v2601, %v2609
        %v2934 = vmax.f32 %v2933, %v2617
        %v2935 = vmax.f32 %v2602, %v2610
        %v2936 = vmax.f32 %v2935, %v2618
        %v2937 = vmax.f32 %v2603, %v2611
        %v2938 = vmax.f32 %v2937, %v2619
        %v2939 = vmax.f32 %v2604, %v2612
        %v2940 = vmax.f32 %v2939, %v2620
        %v2941 = vmax.f32 %v2661, %v2669
        %v2942 = vmax.f32 %v2941, %v2677
        %v2943 = vmax.f32 %v2662, %v2670
        %v2944 = vmax.f32 %v2943, %v2678
        %v2945 = vmax.f32 %v2663, %v2671
        %v2946 = vmax.f32 %v2945, %v2679
        %v2947 = vmax.f32 %v2664, %v2672
        %v2948 = vmax.f32 %v2947, %v2680
        %v2949 = vmax.f32 %v2665, %v2673
        %v2950 = vmax.f32 %v2949, %v2681
        %v2951 = vmax.f32 %v2666, %v2674
        %v2952 = vmax.f32 %v2951, %v2682
        %v2953 = vmax.f32 %v2667, %v2675
        %v2954 = vmax.f32 %v2953, %v2683
        %v2955 = vmax.f32 %v2668, %v2676
        %v2956 = vmax.f32 %v2955, %v2684
        %v2957 = vmax.f32 %v2725, %v2733
        %v2958 = vmax.f32 %v2957, %v2741
        %v2959 = vmax.f32 %v2726, %v2734
        %v2960 = vmax.f32 %v2959, %v2742
        %v2961 = vmax.f32 %v2727, %v2735
        %v2962 = vmax.f32 %v2961, %v2743
        %v2963 = vmax.f32 %v2728, %v2736
        %v2964 = vmax.f32 %v2963, %v2744
        %v2965 = vmax.f32 %v2729, %v2737
        %v2966 = vmax.f32 %v2965, %v2745
        %v2967 = vmax.f32 %v2730, %v2738
        %v2968 = vmax.f32 %v2967, %v2746
        %v2969 = vmax.f32 %v2731, %v2739
        %v2970 = vmax.f32 %v2969, %v2747
        %v2971 = vmax.f32 %v2732, %v2740
        %v2972 = vmax.f32 %v2971, %v2748
        %v2973 = vmax.f32 %v2749, %v2750
        %v2974 = vmax.f32 %v2782, %v2784
        %v2975 = vmax.f32 %v2846, %v2848
        %v2976 = vmax.f32 %v2910, %v2912
        %v2977 = vmax.f32 %v2757, %v2758
        %v2978 = vmax.f32 %v2798, %v2800
        %v2979 = vmax.f32 %v2862, %v2864
        %v2980 = vmax.f32 %v2926, %v2928
        %v2981 = vmax.f32 %v2765, %v2766
        %v2982 = vmax.f32 %v2814, %v2816
        %v2983 = vmax.f32 %v2878, %v2880
        %v2984 = vmax.f32 %v2942, %v2944
        %v2985 = vmax.f32 %v2773, %v2774
        %v2986 = vmax.f32 %v2830, %v2832
        %v2987 = vmax.f32 %v2894, %v2896
        %v2988 = vmax.f32 %v2958, %v2960
        %v2989 = vmax.f32 %v2750, %v2751
        %v2990 = vmax.f32 %v2989, %v2752
        %v2991 = vmax.f32 %v2784, %v2786
        %v2992 = vmax.f32 %v2991, %v2788
        %v2993 = vmax.f32 %v2848, %v2850
        %v2994 = vmax.f32 %v2993, %v2852
        %v2995 = vmax.f32 %v2912, %v2914
        %v2996 = vmax.f32 %v2995, %v2916
        %v2997 = vmax.f32 %v2758, %v2759
        %v2998 = vmax.f32 %v2997, %v2760
        %v2999 = vmax.f32 %v2800, %v2802
        %v3000 = vmax.f32 %v2999, %v2804
        %v3001 = vmax.f32 %v2864, %v2866
        %v3002 = vmax.f32 %v3001, %v2868
        %v3003 = vmax.f32 %v2928, %v2930
        %v3004 = vmax.f32 %v3003, %v2932
        %v3005 = vmax.f32 %v2766, %v2767
        %v3006 = vmax.f32 %v3005, %v2768
        %v3007 = vmax.f32 %v2816, %v2818
        %v3008 = vmax.f32 %v3007, %v2820
        %v3009 = vmax.f32 %v2880, %v2882
        %v3010 = vmax.f32 %v3009, %v2884
        %v3011 = vmax.f32 %v2944, %v2946
        %v3012 = vmax.f32 %v3011, %v2948
        %v3013 = vmax.f32 %v2774, %v2775
        %v3014 = vmax.f32 %v3013, %v2776
        %v3015 = vmax.f32 %v2832, %v2834
        %v3016 = vmax.f32 %v3015, %v2836
        %v3017 = vmax.f32 %v2896, %v2898
        %v3018 = vmax.f32 %v3017, %v2900
        %v3019 = vmax.f32 %v2960, %v2962
        %v3020 = vmax.f32 %v3019, %v2964
        %v3021 = vmax.f32 %v2752, %v2753
        %v3022 = vmax.f32 %v3021, %v2754
        %v3023 = vmax.f32 %v2788, %v2790
        %v3024 = vmax.f32 %v3023, %v2792
        %v3025 = vmax.f32 %v2852, %v2854
        %v3026 = vmax.f32 %v3025, %v2856
        %v3027 = vmax.f32 %v2916, %v2918
        %v3028 = vmax.f32 %v3027, %v2920
        %v3029 = vmax.f32 %v2760, %v2761
        %v3030 = vmax.f32 %v3029, %v2762
        %v3031 = vmax.f32 %v2804, %v2806
        %v3032 = vmax.f32 %v3031, %v2808
        %v3033 = vmax.f32 %v2868, %v2870
        %v3034 = vmax.f32 %v3033, %v2872
        %v3035 = vmax.f32 %v2932, %v2934
        %v3036 = vmax.f32 %v3035, %v2936
        %v3037 = vmax.f32 %v2768, %v2769
        %v3038 = vmax.f32 %v3037, %v2770
        %v3039 = vmax.f32 %v2820, %v2822
        %v3040 = vmax.f32 %v3039, %v2824
        %v3041 = vmax.f32 %v2884, %v2886
        %v3042 = vmax.f32 %v3041, %v2888
        %v3043 = vmax.f32 %v2948, %v2950
        %v3044 = vmax.f32 %v3043, %v2952
        %v3045 = vmax.f32 %v2776, %v2777
        %v3046 = vmax.f32 %v3045, %v2778
        %v3047 = vmax.f32 %v2836, %v2838
        %v3048 = vmax.f32 %v3047, %v2840
        %v3049 = vmax.f32 %v2900, %v2902
        %v3050 = vmax.f32 %v3049, %v2904
        %v3051 = vmax.f32 %v2964, %v2966
        %v3052 = vmax.f32 %v3051, %v2968
        %v3053 = vmax.f32 %v2754, %v2755
        %v3054 = vmax.f32 %v3053, %v2756
        %v3055 = vmax.f32 %v2792, %v2794
        %v3056 = vmax.f32 %v3055, %v2796
        %v3057 = vmax.f32 %v2856, %v2858
        %v3058 = vmax.f32 %v3057, %v2860
        %v3059 = vmax.f32 %v2920, %v2922
        %v3060 = vmax.f32 %v3059, %v2924
        %v3061 = vmax.f32 %v2762, %v2763
        %v3062 = vmax.f32 %v3061, %v2764
        %v3063 = vmax.f32 %v2808, %v2810
        %v3064 = vmax.f32 %v3063, %v2812
        %v3065 = vmax.f32 %v2872, %v2874
        %v3066 = vmax.f32 %v3065, %v2876
        %v3067 = vmax.f32 %v2936, %v2938
        %v3068 = vmax.f32 %v3067, %v2940
        %v3069 = vmax.f32 %v2770, %v2771
        %v3070 = vmax.f32 %v3069, %v2772
        %v3071 = vmax.f32 %v2824, %v2826
        %v3072 = vmax.f32 %v3071, %v2828
        %v3073 = vmax.f32 %v2888, %v2890
        %v3074 = vmax.f32 %v3073, %v2892
        %v3075 = vmax.f32 %v2952, %v2954
        %v3076 = vmax.f32 %v3075, %v2956
        %v3077 = vmax.f32 %v2778, %v2779
        %v3078 = vmax.f32 %v3077, %v2780
        %v3079 = vmax.f32 %v2840, %v2842
        %v3080 = vmax.f32 %v3079, %v2844
        %v3081 = vmax.f32 %v2904, %v2906
        %v3082 = vmax.f32 %v3081, %v2908
        %v3083 = vmax.f32 %v2968, %v2970
        %v3084 = vmax.f32 %v3083, %v2972
        %vm3085 = vcmask 1041408
        %v3086 = vsel %vm3085, %v2973, -inf
        %v3087 = vrot.slane %v3086, 4
        %v3088 = vmax.f32 %v3086, %v3087
        %v3089 = vrot.slane %v3088, 2
        %v3090 = vmax.f32 %v3088, %v3089
        %v3091 = vrot.slane %v3090, 1
        %v3092 = vmax.f32 %v3090, %v3091
        %v3093 = vsel %vm3085, %v2990, -inf
        %v3094 = vrot.slane %v3093, 4
        %v3095 = vmax.f32 %v3093, %v3094
        %v3096 = vrot.slane %v3095, 2
        %v3097 = vmax.f32 %v3095, %v3096
        %v3098 = vrot.slane %v3097, 1
        %v3099 = vmax.f32 %v3097, %v3098
        %v3100 = vsel %vm3085, %v3022, -inf
        %v3101 = vrot.slane %v3100, 4
        %v3102 = vmax.f32 %v3100, %v3101
        %v3103 = vrot.slane %v3102, 2
        %v3104 = vmax.f32 %v3102, %v3103
        %v3105 = vrot.slane %v3104, 1
        %v3106 = vmax.f32 %v3104, %v3105
        %v3107 = vsel %vm3085, %v3054, -inf
        %v3108 = vrot.slane %v3107, 4
        %v3109 = vmax.f32 %v3107, %v3108
        %v3110 = vrot.slane %v3109, 2
        %v3111 = vmax.f32 %v3109, %v3110
        %v3112 = vrot.slane %v3111, 1
        %v3113 = vmax.f32 %v3111, %v3112
        %v3114 = vsel %vm3085, %v2974, -inf
        %v3115 = vrot.slane %v3114, 4
        %v3116 = vmax.f32 %v3114, %v3115
        %v3117 = vrot.slane %v3116, 2
        %v3118 = vmax.f32 %v3116, %v3117
        %v3119 = vrot.slane %v3118, 1
        %v3120 = vmax.f32 %v3118, %v3119
        %v3121 = vsel %vm3085, %v2992, -inf
        %v3122 = vrot.slane %v3121, 4
        %v3123 = vmax.f32 %v3121, %v3122
        %v3124 = vrot.slane %v3123, 2
        %v3125 = vmax.f32 %v3123, %v3124
        %v3126 = vrot.slane %v3125, 1
        %v3127 = vmax.f32 %v3125, %v3126
        %v3128 = vsel %vm3085, %v3024, -inf
        %v3129 = vrot.slane %v3128, 4
        %v3130 = vmax.f32 %v3128, %v3129
        %v3131 = vrot.slane %v3130, 2
        %v3132 = vmax.f32 %v3130, %v3131
        %v3133 = vrot.slane %v3132, 1
        %v3134 = vmax.f32 %v3132, %v3133
        %v3135 = vsel %vm3085, %v3056, -inf
        %v3136 = vrot.slane %v3135, 4
        %v3137 = vmax.f32 %v3135, %v3136
        %v3138 = vrot.slane %v3137, 2
        %v3139 = vmax.f32 %v3137, %v3138
        %v3140 = vrot.slane %v3139, 1
        %v3141 = vmax.f32 %v3139, %v3140
        %v3142 = vsel %vm3085, %v2975, -inf
        %v3143 = vrot.slane %v3142, 4
        %v3144 = vmax.f32 %v3142, %v3143
        %v3145 = vrot.slane %v3144, 2
        %v3146 = vmax.f32 %v3144, %v3145
        %v3147 = vrot.slane %v3146, 1
        %v3148 = vmax.f32 %v3146, %v3147
        %v3149 = vsel %vm3085, %v2994, -inf
        %v3150 = vrot.slane %v3149, 4
        %v3151 = vmax.f32 %v3149, %v3150
        %v3152 = vrot.slane %v3151, 2
        %v3153 = vmax.f32 %v3151, %v3152
        %v3154 = vrot.slane %v3153, 1
        %v3155 = vmax.f32 %v3153, %v3154
        %v3156 = vsel %vm3085, %v3026, -inf
        %v3157 = vrot.slane %v3156, 4
        %v3158 = vmax.f32 %v3156, %v3157
        %v3159 = vrot.slane %v3158, 2
        %v3160 = vmax.f32 %v3158, %v3159
        %v3161 = vrot.slane %v3160, 1
        %v3162 = vmax.f32 %v3160, %v3161
        %v3163 = vsel %vm3085, %v3058, -inf
        %v3164 = vrot.slane %v3163, 4
        %v3165 = vmax.f32 %v3163, %v3164
        %v3166 = vrot.slane %v3165, 2
        %v3167 = vmax.f32 %v3165, %v3166
        %v3168 = vrot.slane %v3167, 1
        %v3169 = vmax.f32 %v3167, %v3168
        %v3170 = vsel %vm3085, %v2976, -inf
        %v3171 = vrot.slane %v3170, 4
        %v3172 = vmax.f32 %v3170, %v3171
        %v3173 = vrot.slane %v3172, 2
        %v3174 = vmax.f32 %v3172, %v3173
        %v3175 = vrot.slane %v3174, 1
        %v3176 = vmax.f32 %v3174, %v3175
        %v3177 = vsel %vm3085, %v2996, -inf
        %v3178 = vrot.slane %v3177, 4
        %v3179 = vmax.f32 %v3177, %v3178
        %v3180 = vrot.slane %v3179, 2
        %v3181 = vmax.f32 %v3179, %v3180
        %v3182 = vrot.slane %v3181, 1
        %v3183 = vmax.f32 %v3181, %v3182
        %v3184 = vsel %vm3085, %v3028, -inf
        %v3185 = vrot.slane %v3184, 4
        %v3186 = vmax.f32 %v3184, %v3185
        %v3187 = vrot.slane %v3186, 2
        %v3188 = vmax.f32 %v3186, %v3187
        %v3189 = vrot.slane %v3188, 1
        %v3190 = vmax.f32 %v3188, %v3189
        %v3191 = vsel %vm3085, %v3060, -inf
        %v3192 = vrot.slane %v3191, 4
        %v3193 = vmax.f32 %v3191, %v3192
        %v3194 = vrot.slane %v3193, 2
        %v3195 = vmax.f32 %v3193, %v3194
        %v3196 = vrot.slane %v3195, 1
        %v3197 = vmax.f32 %v3195, %v3196
        %v3198 = vsel %vm3085, %v2977, -inf
        %v3199 = vrot.slane %v3198, 4
        %v3200 = vmax.f32 %v3198, %v3199
        %v3201 = vrot.slane %v3200, 2
        %v3202 = vmax.f32 %v3200, %v3201
        %v3203 = vrot.slane %v3202, 1
        %v3204 = vmax.f32 %v3202, %v3203
        %v3205 = vsel %vm3085, %v2998, -inf
        %v3206 = vrot.slane %v3205, 4
        %v3207 = vmax.f32 %v3205, %v3206
        %v3208 = vrot.slane %v3207, 2
        %v3209 = vmax.f32 %v3207, %v3208
        %v3210 = vrot.slane %v3209, 1
        %v3211 = vmax.f32 %v3209, %v3210
        %v3212 = vsel %vm3085, %v3030, -inf
        %v3213 = vrot.slane %v3212, 4
        %v3214 = vmax.f32 %v3212, %v3213
        %v3215 = vrot.slane %v3214, 2
        %v3216 = vmax.f32 %v3214, %v3215
        %v3217 = vrot.slane %v3216, 1
        %v3218 = vmax.f32 %v3216, %v3217
        %v3219 = vsel %vm3085, %v3062, -inf
        %v3220 = vrot.slane %v3219, 4
        %v3221 = vmax.f32 %v3219, %v3220
        %v3222 = vrot.slane %v3221, 2
        %v3223 = vmax.f32 %v3221, %v3222
        %v3224 = vrot.slane %v3223, 1
        %v3225 = vmax.f32 %v3223, %v3224
        %v3226 = vsel %vm3085, %v2978, -inf
        %v3227 = vrot.slane %v3226, 4
        %v3228 = vmax.f32 %v3226, %v3227
        %v3229 = vrot.slane %v3228, 2
        %v3230 = vmax.f32 %v3228, %v3229
        %v3231 = vrot.slane %v3230, 1
        %v3232 = vmax.f32 %v3230, %v3231
        %v3233 = vsel %vm3085, %v3000, -inf
        %v3234 = vrot.slane %v3233, 4
        %v3235 = vmax.f32 %v3233, %v3234
        %v3236 = vrot.slane %v3235, 2
        %v3237 = vmax.f32 %v3235, %v3236
        %v3238 = vrot.slane %v3237, 1
        %v3239 = vmax.f32 %v3237, %v3238
        %v3240 = vsel %vm3085, %v3032, -inf
        %v3241 = vrot.slane %v3240, 4
        %v3242 = vmax.f32 %v3240, %v3241
        %v3243 = vrot.slane %v3242, 2
        %v3244 = vmax.f32 %v3242, %v3243
        %v3245 = vrot.slane %v3244, 1
        %v3246 = vmax.f32 %v3244, %v3245
        %v3247 = vsel %vm3085, %v3064, -inf
        %v3248 = vrot.slane %v3247, 4
        %v3249 = vmax.f32 %v3247, %v3248
        %v3250 = vrot.slane %v3249, 2
        %v3251 = vmax.f32 %v3249, %v3250
        %v3252 = vrot.slane %v3251, 1
        %v3253 = vmax.f32 %v3251, %v3252
        %v3254 = vsel %vm3085, %v2979, -inf
        %v3255 = vrot.slane %v3254, 4
        %v3256 = vmax.f32 %v3254, %v3255
        %v3257 = vrot.slane %v3256, 2
        %v3258 = vmax.f32 %v3256, %v3257
        %v3259 = vrot.slane %v3258, 1
        %v3260 = vmax.f32 %v3258, %v3259
        %v3261 = vsel %vm3085, %v3002, -inf
        %v3262 = vrot.slane %v3261, 4
        %v3263 = vmax.f32 %v3261, %v3262
        %v3264 = vrot.slane %v3263, 2
        %v3265 = vmax.f32 %v3263, %v3264
        %v3266 = vrot.slane %v3265, 1
        %v3267 = vmax.f32 %v3265, %v3266
        %v3268 = vsel %vm3085, %v3034, -inf
        %v3269 = vrot.slane %v3268, 4
        %v3270 = vmax.f32 %v3268, %v3269
        %v3271 = vrot.slane %v3270, 2
        %v3272 = vmax.f32 %v3270, %v3271
        %v3273 = vrot.slane %v3272, 1
        %v3274 = vmax.f32 %v3272, %v3273
        %v3275 = vsel %vm3085, %v3066, -inf
        %v3276 = vrot.slane %v3275, 4
        %v3277 = vmax.f32 %v3275, %v3276
        %v3278 = vrot.slane %v3277, 2
        %v3279 = vmax.f32 %v3277, %v3278
        %v3280 = vrot.slane %v3279, 1
        %v3281 = vmax.f32 %v3279, %v3280
        %v3282 = vsel %vm3085, %v2980, -inf
        %v3283 = vrot.slane %v3282, 4
        %v3284 = vmax.f32 %v3282, %v3283
        %v3285 = vrot.slane %v3284, 2
        %v3286 = vmax.f32 %v3284, %v3285
        %v3287 = vrot.slane %v3286, 1
        %v3288 = vmax.f32 %v3286, %v3287
        %v3289 = vsel %vm3085, %v3004, -inf
        %v3290 = vrot.slane %v3289, 4
        %v3291 = vmax.f32 %v3289, %v3290
        %v3292 = vrot.slane %v3291, 2
        %v3293 = vmax.f32 %v3291, %v3292
        %v3294 = vrot.slane %v3293, 1
        %v3295 = vmax.f32 %v3293, %v3294
        %v3296 = vsel %vm3085, %v3036, -inf
        %v3297 = vrot.slane %v3296, 4
        %v3298 = vmax.f32 %v3296, %v3297
        %v3299 = vrot.slane %v3298, 2
        %v3300 = vmax.f32 %v3298, %v3299
        %v3301 = vrot.slane %v3300, 1
        %v3302 = vmax.f32 %v3300, %v3301
        %v3303 = vsel %vm3085, %v3068, -inf
        %v3304 = vrot.slane %v3303, 4
        %v3305 = vmax.f32 %v3303, %v3304
        %v3306 = vrot.slane %v3305, 2
        %v3307 = vmax.f32 %v3305, %v3306
        %v3308 = vrot.slane %v3307, 1
        %v3309 = vmax.f32 %v3307, %v3308
        %v3310 = vsel %vm3085, %v2981, -inf
        %v3311 = vrot.slane %v3310, 4
        %v3312 = vmax.f32 %v3310, %v3311
        %v3313 = vrot.slane %v3312, 2
        %v3314 = vmax.f32 %v3312, %v3313
        %v3315 = vrot.slane %v3314, 1
        %v3316 = vmax.f32 %v3314, %v3315
        %v3317 = vsel %vm3085, %v3006, -inf
        %v3318 = vrot.slane %v3317, 4
        %v3319 = vmax.f32 %v3317, %v3318
        %v3320 = vrot.slane %v3319, 2
        %v3321 = vmax.f32 %v3319, %v3320
        %v3322 = vrot.slane %v3321, 1
        %v3323 = vmax.f32 %v3321, %v3322
        %v3324 = vsel %vm3085, %v3038, -inf
        %v3325 = vrot.slane %v3324, 4
        %v3326 = vmax.f32 %v3324, %v3325
        %v3327 = vrot.slane %v3326, 2
        %v3328 = vmax.f32 %v3326, %v3327
        %v3329 = vrot.slane %v3328, 1
        %v3330 = vmax.f32 %v3328, %v3329
        %v3331 = vsel %vm3085, %v3070, -inf
        %v3332 = vrot.slane %v3331, 4
        %v3333 = vmax.f32 %v3331, %v3332
        %v3334 = vrot.slane %v3333, 2
        %v3335 = vmax.f32 %v3333, %v3334
        %v3336 = vrot.slane %v3335, 1
        %v3337 = vmax.f32 %v3335, %v3336
        %v3338 = vsel %vm3085, %v2982, -inf
        %v3339 = vrot.slane %v3338, 4
        %v3340 = vmax.f32 %v3338, %v3339
        %v3341 = vrot.slane %v3340, 2
        %v3342 = vmax.f32 %v3340, %v3341
        %v3343 = vrot.slane %v3342, 1
        %v3344 = vmax.f32 %v3342, %v3343
        %v3345 = vsel %vm3085, %v3008, -inf
        %v3346 = vrot.slane %v3345, 4
        %v3347 = vmax.f32 %v3345, %v3346
        %v3348 = vrot.slane %v3347, 2
        %v3349 = vmax.f32 %v3347, %v3348
        %v3350 = vrot.slane %v3349, 1
        %v3351 = vmax.f32 %v3349, %v3350
        %v3352 = vsel %vm3085, %v3040, -inf
        %v3353 = vrot.slane %v3352, 4
        %v3354 = vmax.f32 %v3352, %v3353
        %v3355 = vrot.slane %v3354, 2
        %v3356 = vmax.f32 %v3354, %v3355
        %v3357 = vrot.slane %v3356, 1
        %v3358 = vmax.f32 %v3356, %v3357
        %v3359 = vsel %vm3085, %v3072, -inf
        %v3360 = vrot.slane %v3359, 4
        %v3361 = vmax.f32 %v3359, %v3360
        %v3362 = vrot.slane %v3361, 2
        %v3363 = vmax.f32 %v3361, %v3362
        %v3364 = vrot.slane %v3363, 1
        %v3365 = vmax.f32 %v3363, %v3364
        %v3366 = vsel %vm3085, %v2983, -inf
        %v3367 = vrot.slane %v3366, 4
        %v3368 = vmax.f32 %v3366, %v3367
        %v3369 = vrot.slane %v3368, 2
        %v3370 = vmax.f32 %v3368, %v3369
        %v3371 = vrot.slane %v3370, 1
        %v3372 = vmax.f32 %v3370, %v3371
        %v3373 = vsel %vm3085, %v3010, -inf
        %v3374 = vrot.slane %v3373, 4
        %v3375 = vmax.f32 %v3373, %v3374
        %v3376 = vrot.slane %v3375, 2
        %v3377 = vmax.f32 %v3375, %v3376
        %v3378 = vrot.slane %v3377, 1
        %v3379 = vmax.f32 %v3377, %v3378
        %v3380 = vsel %vm3085, %v3042, -inf
        %v3381 = vrot.slane %v3380, 4
        %v3382 = vmax.f32 %v3380, %v3381
        %v3383 = vrot.slane %v3382, 2
        %v3384 = vmax.f32 %v3382, %v3383
        %v3385 = vrot.slane %v3384, 1
        %v3386 = vmax.f32 %v3384, %v3385
        %v3387 = vsel %vm3085, %v3074, -inf
        %v3388 = vrot.slane %v3387, 4
        %v3389 = vmax.f32 %v3387, %v3388
        %v3390 = vrot.slane %v3389, 2
        %v3391 = vmax.f32 %v3389, %v3390
        %v3392 = vrot.slane %v3391, 1
        %v3393 = vmax.f32 %v3391, %v3392
        %v3394 = vsel %vm3085, %v2984, -inf
        %v3395 = vrot.slane %v3394, 4
        %v3396 = vmax.f32 %v3394, %v3395
        %v3397 = vrot.slane %v3396, 2
        %v3398 = vmax.f32 %v3396, %v3397
        %v3399 = vrot.slane %v3398, 1
        %v3400 = vmax.f32 %v3398, %v3399
        %v3401 = vsel %vm3085, %v3012, -inf
        %v3402 = vrot.slane %v3401, 4
        %v3403 = vmax.f32 %v3401, %v3402
        %v3404 = vrot.slane %v3403, 2
        %v3405 = vmax.f32 %v3403, %v3404
        %v3406 = vrot.slane %v3405, 1
        %v3407 = vmax.f32 %v3405, %v3406
        %v3408 = vsel %vm3085, %v3044, -inf
        %v3409 = vrot.slane %v3408, 4
        %v3410 = vmax.f32 %v3408, %v3409
        %v3411 = vrot.slane %v3410, 2
        %v3412 = vmax.f32 %v3410, %v3411
        %v3413 = vrot.slane %v3412, 1
        %v3414 = vmax.f32 %v3412, %v3413
        %v3415 = vsel %vm3085, %v3076, -inf
        %v3416 = vrot.slane %v3415, 4
        %v3417 = vmax.f32 %v3415, %v3416
        %v3418 = vrot.slane %v3417, 2
        %v3419 = vmax.f32 %v3417, %v3418
        %v3420 = vrot.slane %v3419, 1
        %v3421 = vmax.f32 %v3419, %v3420
        %v3422 = vsel %vm3085, %v2985, -inf
        %v3423 = vrot.slane %v3422, 4
        %v3424 = vmax.f32 %v3422, %v3423
        %v3425 = vrot.slane %v3424, 2
        %v3426 = vmax.f32 %v3424, %v3425
        %v3427 = vrot.slane %v3426, 1
        %v3428 = vmax.f32 %v3426, %v3427
        %v3429 = vsel %vm3085, %v3014, -inf
        %v3430 = vrot.slane %v3429, 4
        %v3431 = vmax.f32 %v3429, %v3430
        %v3432 = vrot.slane %v3431, 2
        %v3433 = vmax.f32 %v3431, %v3432
        %v3434 = vrot.slane %v3433, 1
        %v3435 = vmax.f32 %v3433, %v3434
        %v3436 = vsel %vm3085, %v3046, -inf
        %v3437 = vrot.slane %v3436, 4
        %v3438 = vmax.f32 %v3436, %v3437
        %v3439 = vrot.slane %v3438, 2
        %v3440 = vmax.f32 %v3438, %v3439
        %v3441 = vrot.slane %v3440, 1
        %v3442 = vmax.f32 %v3440, %v3441
        %v3443 = vsel %vm3085, %v3078, -inf
        %v3444 = vrot.slane %v3443, 4
        %v3445 = vmax.f32 %v3443, %v3444
        %v3446 = vrot.slane %v3445, 2
        %v3447 = vmax.f32 %v3445, %v3446
        %v3448 = vrot.slane %v3447, 1
        %v3449 = vmax.f32 %v3447, %v3448
        %v3450 = vsel %vm3085, %v2986, -inf
        %v3451 = vrot.slane %v3450, 4
        %v3452 = vmax.f32 %v3450, %v3451
        %v3453 = vrot.slane %v3452, 2
        %v3454 = vmax.f32 %v3452, %v3453
        %v3455 = vrot.slane %v3454, 1
        %v3456 = vmax.f32 %v3454, %v3455
        %v3457 = vsel %vm3085, %v3016, -inf
        %v3458 = vrot.slane %v3457, 4
        %v3459 = vmax.f32 %v3457, %v3458
        %v3460 = vrot.slane %v3459, 2
        %v3461 = vmax.f32 %v3459, %v3460
        %v3462 = vrot.slane %v3461, 1
        %v3463 = vmax.f32 %v3461, %v3462
        %v3464 = vsel %vm3085, %v3048, -inf
        %v3465 = vrot.slane %v3464, 4
        %v3466 = vmax.f32 %v3464, %v3465
        %v3467 = vrot.slane %v3466, 2
        %v3468 = vmax.f32 %v3466, %v3467
        %v3469 = vrot.slane %v3468, 1
        %v3470 = vmax.f32 %v3468, %v3469
        %v3471 = vsel %vm3085, %v3080, -inf
        %v3472 = vrot.slane %v3471, 4
        %v3473 = vmax.f32 %v3471, %v3472
        %v3474 = vrot.slane %v3473, 2
        %v3475 = vmax.f32 %v3473, %v3474
        %v3476 = vrot.slane %v3475, 1
        %v3477 = vmax.f32 %v3475, %v3476
        %v3478 = vsel %vm3085, %v2987, -inf
        %v3479 = vrot.slane %v3478, 4
        %v3480 = vmax.f32 %v3478, %v3479
        %v3481 = vrot.slane %v3480, 2
        %v3482 = vmax.f32 %v3480, %v3481
        %v3483 = vrot.slane %v3482, 1
        %v3484 = vmax.f32 %v3482, %v3483
        %v3485 = vsel %vm3085, %v3018, -inf
        %v3486 = vrot.slane %v3485, 4
        %v3487 = vmax.f32 %v3485, %v3486
        %v3488 = vrot.slane %v3487, 2
        %v3489 = vmax.f32 %v3487, %v3488
        %v3490 = vrot.slane %v3489, 1
        %v3491 = vmax.f32 %v3489, %v3490
        %v3492 = vsel %vm3085, %v3050, -inf
        %v3493 = vrot.slane %v3492, 4
        %v3494 = vmax.f32 %v3492, %v3493
        %v3495 = vrot.slane %v3494, 2
        %v3496 = vmax.f32 %v3494, %v3495
        %v3497 = vrot.slane %v3496, 1
        %v3498 = vmax.f32 %v3496, %v3497
        %v3499 = vsel %vm3085, %v3082, -inf
        %v3500 = vrot.slane %v3499, 4
        %v3501 = vmax.f32 %v3499, %v3500
        %v3502 = vrot.slane %v3501, 2
        %v3503 = vmax.f32 %v3501, %v3502
        %v3504 = vrot.slane %v3503, 1
        %v3505 = vmax.f32 %v3503, %v3504
        %v3506 = vsel %vm3085, %v2988, -inf
        %v3507 = vrot.slane %v3506, 4
        %v3508 = vmax.f32 %v3506, %v3507
        %v3509 = vrot.slane %v3508, 2
        %v3510 = vmax.f32 %v3508, %v3509
        %v3511 = vrot.slane %v3510, 1
        %v3512 = vmax.f32 %v3510, %v3511
        %v3513 = vsel %vm3085, %v3020, -inf
        %v3514 = vrot.slane %v3513, 4
        %v3515 = vmax.f32 %v3513, %v3514
        %v3516 = vrot.slane %v3515, 2
        %v3517 = vmax.f32 %v3515, %v3516
        %v3518 = vrot.slane %v3517, 1
        %v3519 = vmax.f32 %v3517, %v3518
        %v3520 = vsel %vm3085, %v3052, -inf
        %v3521 = vrot.slane %v3520, 4
        %v3522 = vmax.f32 %v3520, %v3521
        %v3523 = vrot.slane %v3522, 2
        %v3524 = vmax.f32 %v3522, %v3523
        %v3525 = vrot.slane %v3524, 1
        %v3526 = vmax.f32 %v3524, %v3525
        %v3527 = vsel %vm3085, %v3084, -inf
        %v3528 = vrot.slane %v3527, 4
        %v3529 = vmax.f32 %v3527, %v3528
        %v3530 = vrot.slane %v3529, 2
        %v3531 = vmax.f32 %v3529, %v3530
        %v3532 = vrot.slane %v3531, 1
        %v3533 = vmax.f32 %v3531, %v3532
        %vm3534 = vcmask 1043457
        %v3535 = vsel %vm3534, %v2973, -inf
        %v3536 = vrot.slane %v3535, 4
        %v3537 = vmax.f32 %v3535, %v3536
        %v3538 = vrot.slane %v3537, 2
        %v3539 = vmax.f32 %v3537, %v3538
        %v3540 = vrot.slane %v3539, 1
        %v3541 = vmax.f32 %v3539, %v3540
        %v3542 = vsel %vm3534, %v2990, -inf
        %v3543 = vrot.slane %v3542, 4
        %v3544 = vmax.f32 %v3542, %v3543
        %v3545 = vrot.slane %v3544, 2
        %v3546 = vmax.f32 %v3544, %v3545
        %v3547 = vrot.slane %v3546, 1
        %v3548 = vmax.f32 %v3546, %v3547
        %v3549 = vsel %vm3534, %v3022, -inf
        %v3550 = vrot.slane %v3549, 4
        %v3551 = vmax.f32 %v3549, %v3550
        %v3552 = vrot.slane %v3551, 2
        %v3553 = vmax.f32 %v3551, %v3552
        %v3554 = vrot.slane %v3553, 1
        %v3555 = vmax.f32 %v3553, %v3554
        %v3556 = vsel %vm3534, %v3054, -inf
        %v3557 = vrot.slane %v3556, 4
        %v3558 = vmax.f32 %v3556, %v3557
        %v3559 = vrot.slane %v3558, 2
        %v3560 = vmax.f32 %v3558, %v3559
        %v3561 = vrot.slane %v3560, 1
        %v3562 = vmax.f32 %v3560, %v3561
        %v3563 = vsel %vm3534, %v2974, -inf
        %v3564 = vrot.slane %v3563, 4
        %v3565 = vmax.f32 %v3563, %v3564
        %v3566 = vrot.slane %v3565, 2
        %v3567 = vmax.f32 %v3565, %v3566
        %v3568 = vrot.slane %v3567, 1
        %v3569 = vmax.f32 %v3567, %v3568
        %v3570 = vsel %vm3534, %v2992, -inf
        %v3571 = vrot.slane %v3570, 4
        %v3572 = vmax.f32 %v3570, %v3571
        %v3573 = vrot.slane %v3572, 2
        %v3574 = vmax.f32 %v3572, %v3573
        %v3575 = vrot.slane %v3574, 1
        %v3576 = vmax.f32 %v3574, %v3575
        %v3577 = vsel %vm3534, %v3024, -inf
        %v3578 = vrot.slane %v3577, 4
        %v3579 = vmax.f32 %v3577, %v3578
        %v3580 = vrot.slane %v3579, 2
        %v3581 = vmax.f32 %v3579, %v3580
        %v3582 = vrot.slane %v3581, 1
        %v3583 = vmax.f32 %v3581, %v3582
        %v3584 = vsel %vm3534, %v3056, -inf
        %v3585 = vrot.slane %v3584, 4
        %v3586 = vmax.f32 %v3584, %v3585
        %v3587 = vrot.slane %v3586, 2
        %v3588 = vmax.f32 %v3586, %v3587
        %v3589 = vrot.slane %v3588, 1
        %v3590 = vmax.f32 %v3588, %v3589
        %v3591 = vsel %vm3534, %v2975, -inf
        %v3592 = vrot.slane %v3591, 4
        %v3593 = vmax.f32 %v3591, %v3592
        %v3594 = vrot.slane %v3593, 2
        %v3595 = vmax.f32 %v3593, %v3594
        %v3596 = vrot.slane %v3595, 1
        %v3597 = vmax.f32 %v3595, %v3596
        %v3598 = vsel %vm3534, %v2994, -inf
        %v3599 = vrot.slane %v3598, 4
        %v3600 = vmax.f32 %v3598, %v3599
        %v3601 = vrot.slane %v3600, 2
        %v3602 = vmax.f32 %v3600, %v3601
        %v3603 = vrot.slane %v3602, 1
        %v3604 = vmax.f32 %v3602, %v3603
        %v3605 = vsel %vm3534, %v3026, -inf
        %v3606 = vrot.slane %v3605, 4
        %v3607 = vmax.f32 %v3605, %v3606
        %v3608 = vrot.slane %v3607, 2
        %v3609 = vmax.f32 %v3607, %v3608
        %v3610 = vrot.slane %v3609, 1
        %v3611 = vmax.f32 %v3609, %v3610
        %v3612 = vsel %vm3534, %v3058, -inf
        %v3613 = vrot.slane %v3612, 4
        %v3614 = vmax.f32 %v3612, %v3613
        %v3615 = vrot.slane %v3614, 2
        %v3616 = vmax.f32 %v3614, %v3615
        %v3617 = vrot.slane %v3616, 1
        %v3618 = vmax.f32 %v3616, %v3617
        %v3619 = vsel %vm3534, %v2976, -inf
        %v3620 = vrot.slane %v3619, 4
        %v3621 = vmax.f32 %v3619, %v3620
        %v3622 = vrot.slane %v3621, 2
        %v3623 = vmax.f32 %v3621, %v3622
        %v3624 = vrot.slane %v3623, 1
        %v3625 = vmax.f32 %v3623, %v3624
        %v3626 = vsel %vm3534, %v2996, -inf
        %v3627 = vrot.slane %v3626, 4
        %v3628 = vmax.f32 %v3626, %v3627
        %v3629 = vrot.slane %v3628, 2
        %v3630 = vmax.f32 %v3628, %v3629
        %v3631 = vrot.slane %v3630, 1
        %v3632 = vmax.f32 %v3630, %v3631
        %v3633 = vsel %vm3534, %v3028, -inf
        %v3634 = vrot.slane %v3633, 4
        %v3635 = vmax.f32 %v3633, %v3634
        %v3636 = vrot.slane %v3635, 2
        %v3637 = vmax.f32 %v3635, %v3636
        %v3638 = vrot.slane %v3637, 1
        %v3639 = vmax.f32 %v3637, %v3638
        %v3640 = vsel %vm3534, %v3060, -inf
        %v3641 = vrot.slane %v3640, 4
        %v3642 = vmax.f32 %v3640, %v3641
        %v3643 = vrot.slane %v3642, 2
        %v3644 = vmax.f32 %v3642, %v3643
        %v3645 = vrot.slane %v3644, 1
        %v3646 = vmax.f32 %v3644, %v3645
        %v3647 = vsel %vm3534, %v2977, -inf
        %v3648 = vrot.slane %v3647, 4
        %v3649 = vmax.f32 %v3647, %v3648
        %v3650 = vrot.slane %v3649, 2
        %v3651 = vmax.f32 %v3649, %v3650
        %v3652 = vrot.slane %v3651, 1
        %v3653 = vmax.f32 %v3651, %v3652
        %v3654 = vsel %vm3534, %v2998, -inf
        %v3655 = vrot.slane %v3654, 4
        %v3656 = vmax.f32 %v3654, %v3655
        %v3657 = vrot.slane %v3656, 2
        %v3658 = vmax.f32 %v3656, %v3657
        %v3659 = vrot.slane %v3658, 1
        %v3660 = vmax.f32 %v3658, %v3659
        %v3661 = vsel %vm3534, %v3030, -inf
        %v3662 = vrot.slane %v3661, 4
        %v3663 = vmax.f32 %v3661, %v3662
        %v3664 = vrot.slane %v3663, 2
        %v3665 = vmax.f32 %v3663, %v3664
        %v3666 = vrot.slane %v3665, 1
        %v3667 = vmax.f32 %v3665, %v3666
        %v3668 = vsel %vm3534, %v3062, -inf
        %v3669 = vrot.slane %v3668, 4
        %v3670 = vmax.f32 %v3668, %v3669
        %v3671 = vrot.slane %v3670, 2
        %v3672 = vmax.f32 %v3670, %v3671
        %v3673 = vrot.slane %v3672, 1
        %v3674 = vmax.f32 %v3672, %v3673
        %v3675 = vsel %vm3534, %v2978, -inf
        %v3676 = vrot.slane %v3675, 4
        %v3677 = vmax.f32 %v3675, %v3676
        %v3678 = vrot.slane %v3677, 2
        %v3679 = vmax.f32 %v3677, %v3678
        %v3680 = vrot.slane %v3679, 1
        %v3681 = vmax.f32 %v3679, %v3680
        %v3682 = vsel %vm3534, %v3000, -inf
        %v3683 = vrot.slane %v3682, 4
        %v3684 = vmax.f32 %v3682, %v3683
        %v3685 = vrot.slane %v3684, 2
        %v3686 = vmax.f32 %v3684, %v3685
        %v3687 = vrot.slane %v3686, 1
        %v3688 = vmax.f32 %v3686, %v3687
        %v3689 = vsel %vm3534, %v3032, -inf
        %v3690 = vrot.slane %v3689, 4
        %v3691 = vmax.f32 %v3689, %v3690
        %v3692 = vrot.slane %v3691, 2
        %v3693 = vmax.f32 %v3691, %v3692
        %v3694 = vrot.slane %v3693, 1
        %v3695 = vmax.f32 %v3693, %v3694
        %v3696 = vsel %vm3534, %v3064, -inf
        %v3697 = vrot.slane %v3696, 4
        %v3698 = vmax.f32 %v3696, %v3697
        %v3699 = vrot.slane %v3698, 2
        %v3700 = vmax.f32 %v3698, %v3699
        %v3701 = vrot.slane %v3700, 1
        %v3702 = vmax.f32 %v3700, %v3701
        %v3703 = vsel %vm3534, %v2979, -inf
        %v3704 = vrot.slane %v3703, 4
        %v3705 = vmax.f32 %v3703, %v3704
        %v3706 = vrot.slane %v3705, 2
        %v3707 = vmax.f32 %v3705, %v3706
        %v3708 = vrot.slane %v3707, 1
        %v3709 = vmax.f32 %v3707, %v3708
        %v3710 = vsel %vm3534, %v3002, -inf
        %v3711 = vrot.slane %v3710, 4
        %v3712 = vmax.f32 %v3710, %v3711
        %v3713 = vrot.slane %v3712, 2
        %v3714 = vmax.f32 %v3712, %v3713
        %v3715 = vrot.slane %v3714, 1
        %v3716 = vmax.f32 %v3714, %v3715
        %v3717 = vsel %vm3534, %v3034, -inf
        %v3718 = vrot.slane %v3717, 4
        %v3719 = vmax.f32 %v3717, %v3718
        %v3720 = vrot.slane %v3719, 2
        %v3721 = vmax.f32 %v3719, %v3720
        %v3722 = vrot.slane %v3721, 1
        %v3723 = vmax.f32 %v3721, %v3722
        %v3724 = vsel %vm3534, %v3066, -inf
        %v3725 = vrot.slane %v3724, 4
        %v3726 = vmax.f32 %v3724, %v3725
        %v3727 = vrot.slane %v3726, 2
        %v3728 = vmax.f32 %v3726, %v3727
        %v3729 = vrot.slane %v3728, 1
        %v3730 = vmax.f32 %v3728, %v3729
        %v3731 = vsel %vm3534, %v2980, -inf
        %v3732 = vrot.slane %v3731, 4
        %v3733 = vmax.f32 %v3731, %v3732
        %v3734 = vrot.slane %v3733, 2
        %v3735 = vmax.f32 %v3733, %v3734
        %v3736 = vrot.slane %v3735, 1
        %v3737 = vmax.f32 %v3735, %v3736
        %v3738 = vsel %vm3534, %v3004, -inf
        %v3739 = vrot.slane %v3738, 4
        %v3740 = vmax.f32 %v3738, %v3739
        %v3741 = vrot.slane %v3740, 2
        %v3742 = vmax.f32 %v3740, %v3741
        %v3743 = vrot.slane %v3742, 1
        %v3744 = vmax.f32 %v3742, %v3743
        %v3745 = vsel %vm3534, %v3036, -inf
        %v3746 = vrot.slane %v3745, 4
        %v3747 = vmax.f32 %v3745, %v3746
        %v3748 = vrot.slane %v3747, 2
        %v3749 = vmax.f32 %v3747, %v3748
        %v3750 = vrot.slane %v3749, 1
        %v3751 = vmax.f32 %v3749, %v3750
        %v3752 = vsel %vm3534, %v3068, -inf
        %v3753 = vrot.slane %v3752, 4
        %v3754 = vmax.f32 %v3752, %v3753
        %v3755 = vrot.slane %v3754, 2
        %v3756 = vmax.f32 %v3754, %v3755
        %v3757 = vrot.slane %v3756, 1
        %v3758 = vmax.f32 %v3756, %v3757
        %v3759 = vsel %vm3534, %v2981, -inf
        %v3760 = vrot.slane %v3759, 4
        %v3761 = vmax.f32 %v3759, %v3760
        %v3762 = vrot.slane %v3761, 2
        %v3763 = vmax.f32 %v3761, %v3762
        %v3764 = vrot.slane %v3763, 1
        %v3765 = vmax.f32 %v3763, %v3764
        %v3766 = vsel %vm3534, %v3006, -inf
        %v3767 = vrot.slane %v3766, 4
        %v3768 = vmax.f32 %v3766, %v3767
        %v3769 = vrot.slane %v3768, 2
        %v3770 = vmax.f32 %v3768, %v3769
        %v3771 = vrot.slane %v3770, 1
        %v3772 = vmax.f32 %v3770, %v3771
        %v3773 = vsel %vm3534, %v3038, -inf
        %v3774 = vrot.slane %v3773, 4
        %v3775 = vmax.f32 %v3773, %v3774
        %v3776 = vrot.slane %v3775, 2
        %v3777 = vmax.f32 %v3775, %v3776
        %v3778 = vrot.slane %v3777, 1
        %v3779 = vmax.f32 %v3777, %v3778
        %v3780 = vsel %vm3534, %v3070, -inf
        %v3781 = vrot.slane %v3780, 4
        %v3782 = vmax.f32 %v3780, %v3781
        %v3783 = vrot.slane %v3782, 2
        %v3784 = vmax.f32 %v3782, %v3783
        %v3785 = vrot.slane %v3784, 1
        %v3786 = vmax.f32 %v3784, %v3785
        %v3787 = vsel %vm3534, %v2982, -inf
        %v3788 = vrot.slane %v3787, 4
        %v3789 = vmax.f32 %v3787, %v3788
        %v3790 = vrot.slane %v3789, 2
        %v3791 = vmax.f32 %v3789, %v3790
        %v3792 = vrot.slane %v3791, 1
        %v3793 = vmax.f32 %v3791, %v3792
        %v3794 = vsel %vm3534, %v3008, -inf
        %v3795 = vrot.slane %v3794, 4
        %v3796 = vmax.f32 %v3794, %v3795
        %v3797 = vrot.slane %v3796, 2
        %v3798 = vmax.f32 %v3796, %v3797
        %v3799 = vrot.slane %v3798, 1
        %v3800 = vmax.f32 %v3798, %v3799
        %v3801 = vsel %vm3534, %v3040, -inf
        %v3802 = vrot.slane %v3801, 4
        %v3803 = vmax.f32 %v3801, %v3802
        %v3804 = vrot.slane %v3803, 2
        %v3805 = vmax.f32 %v3803, %v3804
        %v3806 = vrot.slane %v3805, 1
        %v3807 = vmax.f32 %v3805, %v3806
        %v3808 = vsel %vm3534, %v3072, -inf
        %v3809 = vrot.slane %v3808, 4
        %v3810 = vmax.f32 %v3808, %v3809
        %v3811 = vrot.slane %v3810, 2
        %v3812 = vmax.f32 %v3810, %v3811
        %v3813 = vrot.slane %v3812, 1
        %v3814 = vmax.f32 %v3812, %v3813
        %v3815 = vsel %vm3534, %v2983, -inf
        %v3816 = vrot.slane %v3815, 4
        %v3817 = vmax.f32 %v3815, %v3816
        %v3818 = vrot.slane %v3817, 2
        %v3819 = vmax.f32 %v3817, %v3818
        %v3820 = vrot.slane %v3819, 1
        %v3821 = vmax.f32 %v3819, %v3820
        %v3822 = vsel %vm3534, %v3010, -inf
        %v3823 = vrot.slane %v3822, 4
        %v3824 = vmax.f32 %v3822, %v3823
        %v3825 = vrot.slane %v3824, 2
        %v3826 = vmax.f32 %v3824, %v3825
        %v3827 = vrot.slane %v3826, 1
        %v3828 = vmax.f32 %v3826, %v3827
        %v3829 = vsel %vm3534, %v3042, -inf
        %v3830 = vrot.slane %v3829, 4
        %v3831 = vmax.f32 %v3829, %v3830
        %v3832 = vrot.slane %v3831, 2
        %v3833 = vmax.f32 %v3831, %v3832
        %v3834 = vrot.slane %v3833, 1
        %v3835 = vmax.f32 %v3833, %v3834
        %v3836 = vsel %vm3534, %v3074, -inf
        %v3837 = vrot.slane %v3836, 4
        %v3838 = vmax.f32 %v3836, %v3837
        %v3839 = vrot.slane %v3838, 2
        %v3840 = vmax.f32 %v3838, %v3839
        %v3841 = vrot.slane %v3840, 1
        %v3842 = vmax.f32 %v3840, %v3841
        %v3843 = vsel %vm3534, %v2984, -inf
        %v3844 = vrot.slane %v3843, 4
        %v3845 = vmax.f32 %v3843, %v3844
        %v3846 = vrot.slane %v3845, 2
        %v3847 = vmax.f32 %v3845, %v3846
        %v3848 = vrot.slane %v3847, 1
        %v3849 = vmax.f32 %v3847, %v3848
        %v3850 = vsel %vm3534, %v3012, -inf
        %v3851 = vrot.slane %v3850, 4
        %v3852 = vmax.f32 %v3850, %v3851
        %v3853 = vrot.slane %v3852, 2
        %v3854 = vmax.f32 %v3852, %v3853
        %v3855 = vrot.slane %v3854, 1
        %v3856 = vmax.f32 %v3854, %v3855
        %v3857 = vsel %vm3534, %v3044, -inf
        %v3858 = vrot.slane %v3857, 4
        %v3859 = vmax.f32 %v3857, %v3858
        %v3860 = vrot.slane %v3859, 2
        %v3861 = vmax.f32 %v3859, %v3860
        %v3862 = vrot.slane %v3861, 1
        %v3863 = vmax.f32 %v3861, %v3862
        %v3864 = vsel %vm3534, %v3076, -inf
        %v3865 = vrot.slane %v3864, 4
        %v3866 = vmax.f32 %v3864, %v3865
        %v3867 = vrot.slane %v3866, 2
        %v3868 = vmax.f32 %v3866, %v3867
        %v3869 = vrot.slane %v3868, 1
        %v3870 = vmax.f32 %v3868, %v3869
        %v3871 = vsel %vm3534, %v2985, -inf
        %v3872 = vrot.slane %v3871, 4
        %v3873 = vmax.f32 %v3871, %v3872
        %v3874 = vrot.slane %v3873, 2
        %v3875 = vmax.f32 %v3873, %v3874
        %v3876 = vrot.slane %v3875, 1
        %v3877 = vmax.f32 %v3875, %v3876
        %v3878 = vsel %vm3534, %v3014, -inf
        %v3879 = vrot.slane %v3878, 4
        %v3880 = vmax.f32 %v3878, %v3879
        %v3881 = vrot.slane %v3880, 2
        %v3882 = vmax.f32 %v3880, %v3881
        %v3883 = vrot.slane %v3882, 1
        %v3884 = vmax.f32 %v3882, %v3883
        %v3885 = vsel %vm3534, %v3046, -inf
        %v3886 = vrot.slane %v3885, 4
        %v3887 = vmax.f32 %v3885, %v3886
        %v3888 = vrot.slane %v3887, 2
        %v3889 = vmax.f32 %v3887, %v3888
        %v3890 = vrot.slane %v3889, 1
        %v3891 = vmax.f32 %v3889, %v3890
        %v3892 = vsel %vm3534, %v3078, -inf
        %v3893 = vrot.slane %v3892, 4
        %v3894 = vmax.f32 %v3892, %v3893
        %v3895 = vrot.slane %v3894, 2
        %v3896 = vmax.f32 %v3894, %v3895
        %v3897 = vrot.slane %v3896, 1
        %v3898 = vmax.f32 %v3896, %v3897
        %v3899 = vsel %vm3534, %v2986, -inf
        %v3900 = vrot.slane %v3899, 4
        %v3901 = vmax.f32 %v3899, %v3900
        %v3902 = vrot.slane %v3901, 2
        %v3903 = vmax.f32 %v3901, %v3902
        %v3904 = vrot.slane %v3903, 1
        %v3905 = vmax.f32 %v3903, %v3904
        %v3906 = vsel %vm3534, %v3016, -inf
        %v3907 = vrot.slane %v3906, 4
        %v3908 = vmax.f32 %v3906, %v3907
        %v3909 = vrot.slane %v3908, 2
        %v3910 = vmax.f32 %v3908, %v3909
        %v3911 = vrot.slane %v3910, 1
        %v3912 = vmax.f32 %v3910, %v3911
        %v3913 = vsel %vm3534, %v3048, -inf
        %v3914 = vrot.slane %v3913, 4
        %v3915 = vmax.f32 %v3913, %v3914
        %v3916 = vrot.slane %v3915, 2
        %v3917 = vmax.f32 %v3915, %v3916
        %v3918 = vrot.slane %v3917, 1
        %v3919 = vmax.f32 %v3917, %v3918
        %v3920 = vsel %vm3534, %v3080, -inf
        %v3921 = vrot.slane %v3920, 4
        %v3922 = vmax.f32 %v3920, %v3921
        %v3923 = vrot.slane %v3922, 2
        %v3924 = vmax.f32 %v3922, %v3923
        %v3925 = vrot.slane %v3924, 1
        %v3926 = vmax.f32 %v3924, %v3925
        %v3927 = vsel %vm3534, %v2987, -inf
        %v3928 = vrot.slane %v3927, 4
        %v3929 = vmax.f32 %v3927, %v3928
        %v3930 = vrot.slane %v3929, 2
        %v3931 = vmax.f32 %v3929, %v3930
        %v3932 = vrot.slane %v3931, 1
        %v3933 = vmax.f32 %v3931, %v3932
        %v3934 = vsel %vm3534, %v3018, -inf
        %v3935 = vrot.slane %v3934, 4
        %v3936 = vmax.f32 %v3934, %v3935
        %v3937 = vrot.slane %v3936, 2
        %v3938 = vmax.f32 %v3936, %v3937
        %v3939 = vrot.slane %v3938, 1
        %v3940 = vmax.f32 %v3938, %v3939
        %v3941 = vsel %vm3534, %v3050, -inf
        %v3942 = vrot.slane %v3941, 4
        %v3943 = vmax.f32 %v3941, %v3942
        %v3944 = vrot.slane %v3943, 2
        %v3945 = vmax.f32 %v3943, %v3944
        %v3946 = vrot.slane %v3945, 1
        %v3947 = vmax.f32 %v3945, %v3946
        %v3948 = vsel %vm3534, %v3082, -inf
        %v3949 = vrot.slane %v3948, 4
        %v3950 = vmax.f32 %v3948, %v3949
        %v3951 = vrot.slane %v3950, 2
        %v3952 = vmax.f32 %v3950, %v3951
        %v3953 = vrot.slane %v3952, 1
        %v3954 = vmax.f32 %v3952, %v3953
        %v3955 = vsel %vm3534, %v2988, -inf
        %v3956 = vrot.slane %v3955, 4
        %v3957 = vmax.f32 %v3955, %v3956
        %v3958 = vrot.slane %v3957, 2
        %v3959 = vmax.f32 %v3957, %v3958
        %v3960 = vrot.slane %v3959, 1
        %v3961 = vmax.f32 %v3959, %v3960
        %v3962 = vsel %vm3534, %v3020, -inf
        %v3963 = vrot.slane %v3962, 4
        %v3964 = vmax.f32 %v3962, %v3963
        %v3965 = vrot.slane %v3964, 2
        %v3966 = vmax.f32 %v3964, %v3965
        %v3967 = vrot.slane %v3966, 1
        %v3968 = vmax.f32 %v3966, %v3967
        %v3969 = vsel %vm3534, %v3052, -inf
        %v3970 = vrot.slane %v3969, 4
        %v3971 = vmax.f32 %v3969, %v3970
        %v3972 = vrot.slane %v3971, 2
        %v3973 = vmax.f32 %v3971, %v3972
        %v3974 = vrot.slane %v3973, 1
        %v3975 = vmax.f32 %v3973, %v3974
        %v3976 = vsel %vm3534, %v3084, -inf
        %v3977 = vrot.slane %v3976, 4
        %v3978 = vmax.f32 %v3976, %v3977
        %v3979 = vrot.slane %v3978, 2
        %v3980 = vmax.f32 %v3978, %v3979
        %v3981 = vrot.slane %v3980, 1
        %v3982 = vmax.f32 %v3980, %v3981
        %vm3983 = vcmask 1045507
        %v3984 = vsel %vm3983, %v2973, -inf
        %v3985 = vrot.slane %v3984, 4
        %v3986 = vmax.f32 %v3984, %v3985
        %v3987 = vrot.slane %v3986, 2
        %v3988 = vmax.f32 %v3986, %v3987
        %v3989 = vrot.slane %v3988, 1
        %v3990 = vmax.f32 %v3988, %v3989
        %v3991 = vsel %vm3983, %v2990, -inf
        %v3992 = vrot.slane %v3991, 4
        %v3993 = vmax.f32 %v3991, %v3992
        %v3994 = vrot.slane %v3993, 2
        %v3995 = vmax.f32 %v3993, %v3994
        %v3996 = vrot.slane %v3995, 1
        %v3997 = vmax.f32 %v3995, %v3996
        %v3998 = vsel %vm3983, %v3022, -inf
        %v3999 = vrot.slane %v3998, 4
        %v4000 = vmax.f32 %v3998, %v3999
        %v4001 = vrot.slane %v4000, 2
        %v4002 = vmax.f32 %v4000, %v4001
        %v4003 = vrot.slane %v4002, 1
        %v4004 = vmax.f32 %v4002, %v4003
        %v4005 = vsel %vm3983, %v3054, -inf
        %v4006 = vrot.slane %v4005, 4
        %v4007 = vmax.f32 %v4005, %v4006
        %v4008 = vrot.slane %v4007, 2
        %v4009 = vmax.f32 %v4007, %v4008
        %v4010 = vrot.slane %v4009, 1
        %v4011 = vmax.f32 %v4009, %v4010
        %v4012 = vsel %vm3983, %v2974, -inf
        %v4013 = vrot.slane %v4012, 4
        %v4014 = vmax.f32 %v4012, %v4013
        %v4015 = vrot.slane %v4014, 2
        %v4016 = vmax.f32 %v4014, %v4015
        %v4017 = vrot.slane %v4016, 1
        %v4018 = vmax.f32 %v4016, %v4017
        %v4019 = vsel %vm3983, %v2992, -inf
        %v4020 = vrot.slane %v4019, 4
        %v4021 = vmax.f32 %v4019, %v4020
        %v4022 = vrot.slane %v4021, 2
        %v4023 = vmax.f32 %v4021, %v4022
        %v4024 = vrot.slane %v4023, 1
        %v4025 = vmax.f32 %v4023, %v4024
        %v4026 = vsel %vm3983, %v3024, -inf
        %v4027 = vrot.slane %v4026, 4
        %v4028 = vmax.f32 %v4026, %v4027
        %v4029 = vrot.slane %v4028, 2
        %v4030 = vmax.f32 %v4028, %v4029
        %v4031 = vrot.slane %v4030, 1
        %v4032 = vmax.f32 %v4030, %v4031
        %v4033 = vsel %vm3983, %v3056, -inf
        %v4034 = vrot.slane %v4033, 4
        %v4035 = vmax.f32 %v4033, %v4034
        %v4036 = vrot.slane %v4035, 2
        %v4037 = vmax.f32 %v4035, %v4036
        %v4038 = vrot.slane %v4037, 1
        %v4039 = vmax.f32 %v4037, %v4038
        %v4040 = vsel %vm3983, %v2975, -inf
        %v4041 = vrot.slane %v4040, 4
        %v4042 = vmax.f32 %v4040, %v4041
        %v4043 = vrot.slane %v4042, 2
        %v4044 = vmax.f32 %v4042, %v4043
        %v4045 = vrot.slane %v4044, 1
        %v4046 = vmax.f32 %v4044, %v4045
        %v4047 = vsel %vm3983, %v2994, -inf
        %v4048 = vrot.slane %v4047, 4
        %v4049 = vmax.f32 %v4047, %v4048
        %v4050 = vrot.slane %v4049, 2
        %v4051 = vmax.f32 %v4049, %v4050
        %v4052 = vrot.slane %v4051, 1
        %v4053 = vmax.f32 %v4051, %v4052
        %v4054 = vsel %vm3983, %v3026, -inf
        %v4055 = vrot.slane %v4054, 4
        %v4056 = vmax.f32 %v4054, %v4055
        %v4057 = vrot.slane %v4056, 2
        %v4058 = vmax.f32 %v4056, %v4057
        %v4059 = vrot.slane %v4058, 1
        %v4060 = vmax.f32 %v4058, %v4059
        %v4061 = vsel %vm3983, %v3058, -inf
        %v4062 = vrot.slane %v4061, 4
        %v4063 = vmax.f32 %v4061, %v4062
        %v4064 = vrot.slane %v4063, 2
        %v4065 = vmax.f32 %v4063, %v4064
        %v4066 = vrot.slane %v4065, 1
        %v4067 = vmax.f32 %v4065, %v4066
        %v4068 = vsel %vm3983, %v2976, -inf
        %v4069 = vrot.slane %v4068, 4
        %v4070 = vmax.f32 %v4068, %v4069
        %v4071 = vrot.slane %v4070, 2
        %v4072 = vmax.f32 %v4070, %v4071
        %v4073 = vrot.slane %v4072, 1
        %v4074 = vmax.f32 %v4072, %v4073
        %v4075 = vsel %vm3983, %v2996, -inf
        %v4076 = vrot.slane %v4075, 4
        %v4077 = vmax.f32 %v4075, %v4076
        %v4078 = vrot.slane %v4077, 2
        %v4079 = vmax.f32 %v4077, %v4078
        %v4080 = vrot.slane %v4079, 1
        %v4081 = vmax.f32 %v4079, %v4080
        %v4082 = vsel %vm3983, %v3028, -inf
        %v4083 = vrot.slane %v4082, 4
        %v4084 = vmax.f32 %v4082, %v4083
        %v4085 = vrot.slane %v4084, 2
        %v4086 = vmax.f32 %v4084, %v4085
        %v4087 = vrot.slane %v4086, 1
        %v4088 = vmax.f32 %v4086, %v4087
        %v4089 = vsel %vm3983, %v3060, -inf
        %v4090 = vrot.slane %v4089, 4
        %v4091 = vmax.f32 %v4089, %v4090
        %v4092 = vrot.slane %v4091, 2
        %v4093 = vmax.f32 %v4091, %v4092
        %v4094 = vrot.slane %v4093, 1
        %v4095 = vmax.f32 %v4093, %v4094
        %v4096 = vsel %vm3983, %v2977, -inf
        %v4097 = vrot.slane %v4096, 4
        %v4098 = vmax.f32 %v4096, %v4097
        %v4099 = vrot.slane %v4098, 2
        %v4100 = vmax.f32 %v4098, %v4099
        %v4101 = vrot.slane %v4100, 1
        %v4102 = vmax.f32 %v4100, %v4101
        %v4103 = vsel %vm3983, %v2998, -inf
        %v4104 = vrot.slane %v4103, 4
        %v4105 = vmax.f32 %v4103, %v4104
        %v4106 = vrot.slane %v4105, 2
        %v4107 = vmax.f32 %v4105, %v4106
        %v4108 = vrot.slane %v4107, 1
        %v4109 = vmax.f32 %v4107, %v4108
        %v4110 = vsel %vm3983, %v3030, -inf
        %v4111 = vrot.slane %v4110, 4
        %v4112 = vmax.f32 %v4110, %v4111
        %v4113 = vrot.slane %v4112, 2
        %v4114 = vmax.f32 %v4112, %v4113
        %v4115 = vrot.slane %v4114, 1
        %v4116 = vmax.f32 %v4114, %v4115
        %v4117 = vsel %vm3983, %v3062, -inf
        %v4118 = vrot.slane %v4117, 4
        %v4119 = vmax.f32 %v4117, %v4118
        %v4120 = vrot.slane %v4119, 2
        %v4121 = vmax.f32 %v4119, %v4120
        %v4122 = vrot.slane %v4121, 1
        %v4123 = vmax.f32 %v4121, %v4122
        %v4124 = vsel %vm3983, %v2978, -inf
        %v4125 = vrot.slane %v4124, 4
        %v4126 = vmax.f32 %v4124, %v4125
        %v4127 = vrot.slane %v4126, 2
        %v4128 = vmax.f32 %v4126, %v4127
        %v4129 = vrot.slane %v4128, 1
        %v4130 = vmax.f32 %v4128, %v4129
        %v4131 = vsel %vm3983, %v3000, -inf
        %v4132 = vrot.slane %v4131, 4
        %v4133 = vmax.f32 %v4131, %v4132
        %v4134 = vrot.slane %v4133, 2
        %v4135 = vmax.f32 %v4133, %v4134
        %v4136 = vrot.slane %v4135, 1
        %v4137 = vmax.f32 %v4135, %v4136
        %v4138 = vsel %vm3983, %v3032, -inf
        %v4139 = vrot.slane %v4138, 4
        %v4140 = vmax.f32 %v4138, %v4139
        %v4141 = vrot.slane %v4140, 2
        %v4142 = vmax.f32 %v4140, %v4141
        %v4143 = vrot.slane %v4142, 1
        %v4144 = vmax.f32 %v4142, %v4143
        %v4145 = vsel %vm3983, %v3064, -inf
        %v4146 = vrot.slane %v4145, 4
        %v4147 = vmax.f32 %v4145, %v4146
        %v4148 = vrot.slane %v4147, 2
        %v4149 = vmax.f32 %v4147, %v4148
        %v4150 = vrot.slane %v4149, 1
        %v4151 = vmax.f32 %v4149, %v4150
        %v4152 = vsel %vm3983, %v2979, -inf
        %v4153 = vrot.slane %v4152, 4
        %v4154 = vmax.f32 %v4152, %v4153
        %v4155 = vrot.slane %v4154, 2
        %v4156 = vmax.f32 %v4154, %v4155
        %v4157 = vrot.slane %v4156, 1
        %v4158 = vmax.f32 %v4156, %v4157
        %v4159 = vsel %vm3983, %v3002, -inf
        %v4160 = vrot.slane %v4159, 4
        %v4161 = vmax.f32 %v4159, %v4160
        %v4162 = vrot.slane %v4161, 2
        %v4163 = vmax.f32 %v4161, %v4162
        %v4164 = vrot.slane %v4163, 1
        %v4165 = vmax.f32 %v4163, %v4164
        %v4166 = vsel %vm3983, %v3034, -inf
        %v4167 = vrot.slane %v4166, 4
        %v4168 = vmax.f32 %v4166, %v4167
        %v4169 = vrot.slane %v4168, 2
        %v4170 = vmax.f32 %v4168, %v4169
        %v4171 = vrot.slane %v4170, 1
        %v4172 = vmax.f32 %v4170, %v4171
        %v4173 = vsel %vm3983, %v3066, -inf
        %v4174 = vrot.slane %v4173, 4
        %v4175 = vmax.f32 %v4173, %v4174
        %v4176 = vrot.slane %v4175, 2
        %v4177 = vmax.f32 %v4175, %v4176
        %v4178 = vrot.slane %v4177, 1
        %v4179 = vmax.f32 %v4177, %v4178
        %v4180 = vsel %vm3983, %v2980, -inf
        %v4181 = vrot.slane %v4180, 4
        %v4182 = vmax.f32 %v4180, %v4181
        %v4183 = vrot.slane %v4182, 2
        %v4184 = vmax.f32 %v4182, %v4183
        %v4185 = vrot.slane %v4184, 1
        %v4186 = vmax.f32 %v4184, %v4185
        %v4187 = vsel %vm3983, %v3004, -inf
        %v4188 = vrot.slane %v4187, 4
        %v4189 = vmax.f32 %v4187, %v4188
        %v4190 = vrot.slane %v4189, 2
        %v4191 = vmax.f32 %v4189, %v4190
        %v4192 = vrot.slane %v4191, 1
        %v4193 = vmax.f32 %v4191, %v4192
        %v4194 = vsel %vm3983, %v3036, -inf
        %v4195 = vrot.slane %v4194, 4
        %v4196 = vmax.f32 %v4194, %v4195
        %v4197 = vrot.slane %v4196, 2
        %v4198 = vmax.f32 %v4196, %v4197
        %v4199 = vrot.slane %v4198, 1
        %v4200 = vmax.f32 %v4198, %v4199
        %v4201 = vsel %vm3983, %v3068, -inf
        %v4202 = vrot.slane %v4201, 4
        %v4203 = vmax.f32 %v4201, %v4202
        %v4204 = vrot.slane %v4203, 2
        %v4205 = vmax.f32 %v4203, %v4204
        %v4206 = vrot.slane %v4205, 1
        %v4207 = vmax.f32 %v4205, %v4206
        %v4208 = vsel %vm3983, %v2981, -inf
        %v4209 = vrot.slane %v4208, 4
        %v4210 = vmax.f32 %v4208, %v4209
        %v4211 = vrot.slane %v4210, 2
        %v4212 = vmax.f32 %v4210, %v4211
        %v4213 = vrot.slane %v4212, 1
        %v4214 = vmax.f32 %v4212, %v4213
        %v4215 = vsel %vm3983, %v3006, -inf
        %v4216 = vrot.slane %v4215, 4
        %v4217 = vmax.f32 %v4215, %v4216
        %v4218 = vrot.slane %v4217, 2
        %v4219 = vmax.f32 %v4217, %v4218
        %v4220 = vrot.slane %v4219, 1
        %v4221 = vmax.f32 %v4219, %v4220
        %v4222 = vsel %vm3983, %v3038, -inf
        %v4223 = vrot.slane %v4222, 4
        %v4224 = vmax.f32 %v4222, %v4223
        %v4225 = vrot.slane %v4224, 2
        %v4226 = vmax.f32 %v4224, %v4225
        %v4227 = vrot.slane %v4226, 1
        %v4228 = vmax.f32 %v4226, %v4227
        %v4229 = vsel %vm3983, %v3070, -inf
        %v4230 = vrot.slane %v4229, 4
        %v4231 = vmax.f32 %v4229, %v4230
        %v4232 = vrot.slane %v4231, 2
        %v4233 = vmax.f32 %v4231, %v4232
        %v4234 = vrot.slane %v4233, 1
        %v4235 = vmax.f32 %v4233, %v4234
        %v4236 = vsel %vm3983, %v2982, -inf
        %v4237 = vrot.slane %v4236, 4
        %v4238 = vmax.f32 %v4236, %v4237
        %v4239 = vrot.slane %v4238, 2
        %v4240 = vmax.f32 %v4238, %v4239
        %v4241 = vrot.slane %v4240, 1
        %v4242 = vmax.f32 %v4240, %v4241
        %v4243 = vsel %vm3983, %v3008, -inf
        %v4244 = vrot.slane %v4243, 4
        %v4245 = vmax.f32 %v4243, %v4244
        %v4246 = vrot.slane %v4245, 2
        %v4247 = vmax.f32 %v4245, %v4246
        %v4248 = vrot.slane %v4247, 1
        %v4249 = vmax.f32 %v4247, %v4248
        %v4250 = vsel %vm3983, %v3040, -inf
        %v4251 = vrot.slane %v4250, 4
        %v4252 = vmax.f32 %v4250, %v4251
        %v4253 = vrot.slane %v4252, 2
        %v4254 = vmax.f32 %v4252, %v4253
        %v4255 = vrot.slane %v4254, 1
        %v4256 = vmax.f32 %v4254, %v4255
        %v4257 = vsel %vm3983, %v3072, -inf
        %v4258 = vrot.slane %v4257, 4
        %v4259 = vmax.f32 %v4257, %v4258
        %v4260 = vrot.slane %v4259, 2
        %v4261 = vmax.f32 %v4259, %v4260
        %v4262 = vrot.slane %v4261, 1
        %v4263 = vmax.f32 %v4261, %v4262
        %v4264 = vsel %vm3983, %v2983, -inf
        %v4265 = vrot.slane %v4264, 4
        %v4266 = vmax.f32 %v4264, %v4265
        %v4267 = vrot.slane %v4266, 2
        %v4268 = vmax.f32 %v4266, %v4267
        %v4269 = vrot.slane %v4268, 1
        %v4270 = vmax.f32 %v4268, %v4269
        %v4271 = vsel %vm3983, %v3010, -inf
        %v4272 = vrot.slane %v4271, 4
        %v4273 = vmax.f32 %v4271, %v4272
        %v4274 = vrot.slane %v4273, 2
        %v4275 = vmax.f32 %v4273, %v4274
        %v4276 = vrot.slane %v4275, 1
        %v4277 = vmax.f32 %v4275, %v4276
        %v4278 = vsel %vm3983, %v3042, -inf
        %v4279 = vrot.slane %v4278, 4
        %v4280 = vmax.f32 %v4278, %v4279
        %v4281 = vrot.slane %v4280, 2
        %v4282 = vmax.f32 %v4280, %v4281
        %v4283 = vrot.slane %v4282, 1
        %v4284 = vmax.f32 %v4282, %v4283
        %v4285 = vsel %vm3983, %v3074, -inf
        %v4286 = vrot.slane %v4285, 4
        %v4287 = vmax.f32 %v4285, %v4286
        %v4288 = vrot.slane %v4287, 2
        %v4289 = vmax.f32 %v4287, %v4288
        %v4290 = vrot.slane %v4289, 1
        %v4291 = vmax.f32 %v4289, %v4290
        %v4292 = vsel %vm3983, %v2984, -inf
        %v4293 = vrot.slane %v4292, 4
        %v4294 = vmax.f32 %v4292, %v4293
        %v4295 = vrot.slane %v4294, 2
        %v4296 = vmax.f32 %v4294, %v4295
        %v4297 = vrot.slane %v4296, 1
        %v4298 = vmax.f32 %v4296, %v4297
        %v4299 = vsel %vm3983, %v3012, -inf
        %v4300 = vrot.slane %v4299, 4
        %v4301 = vmax.f32 %v4299, %v4300
        %v4302 = vrot.slane %v4301, 2
        %v4303 = vmax.f32 %v4301, %v4302
        %v4304 = vrot.slane %v4303, 1
        %v4305 = vmax.f32 %v4303, %v4304
        %v4306 = vsel %vm3983, %v3044, -inf
        %v4307 = vrot.slane %v4306, 4
        %v4308 = vmax.f32 %v4306, %v4307
        %v4309 = vrot.slane %v4308, 2
        %v4310 = vmax.f32 %v4308, %v4309
        %v4311 = vrot.slane %v4310, 1
        %v4312 = vmax.f32 %v4310, %v4311
        %v4313 = vsel %vm3983, %v3076, -inf
        %v4314 = vrot.slane %v4313, 4
        %v4315 = vmax.f32 %v4313, %v4314
        %v4316 = vrot.slane %v4315, 2
        %v4317 = vmax.f32 %v4315, %v4316
        %v4318 = vrot.slane %v4317, 1
        %v4319 = vmax.f32 %v4317, %v4318
        %v4320 = vsel %vm3983, %v2985, -inf
        %v4321 = vrot.slane %v4320, 4
        %v4322 = vmax.f32 %v4320, %v4321
        %v4323 = vrot.slane %v4322, 2
        %v4324 = vmax.f32 %v4322, %v4323
        %v4325 = vrot.slane %v4324, 1
        %v4326 = vmax.f32 %v4324, %v4325
        %v4327 = vsel %vm3983, %v3014, -inf
        %v4328 = vrot.slane %v4327, 4
        %v4329 = vmax.f32 %v4327, %v4328
        %v4330 = vrot.slane %v4329, 2
        %v4331 = vmax.f32 %v4329, %v4330
        %v4332 = vrot.slane %v4331, 1
        %v4333 = vmax.f32 %v4331, %v4332
        %v4334 = vsel %vm3983, %v3046, -inf
        %v4335 = vrot.slane %v4334, 4
        %v4336 = vmax.f32 %v4334, %v4335
        %v4337 = vrot.slane %v4336, 2
        %v4338 = vmax.f32 %v4336, %v4337
        %v4339 = vrot.slane %v4338, 1
        %v4340 = vmax.f32 %v4338, %v4339
        %v4341 = vsel %vm3983, %v3078, -inf
        %v4342 = vrot.slane %v4341, 4
        %v4343 = vmax.f32 %v4341, %v4342
        %v4344 = vrot.slane %v4343, 2
        %v4345 = vmax.f32 %v4343, %v4344
        %v4346 = vrot.slane %v4345, 1
        %v4347 = vmax.f32 %v4345, %v4346
        %v4348 = vsel %vm3983, %v2986, -inf
        %v4349 = vrot.slane %v4348, 4
        %v4350 = vmax.f32 %v4348, %v4349
        %v4351 = vrot.slane %v4350, 2
        %v4352 = vmax.f32 %v4350, %v4351
        %v4353 = vrot.slane %v4352, 1
        %v4354 = vmax.f32 %v4352, %v4353
        %v4355 = vsel %vm3983, %v3016, -inf
        %v4356 = vrot.slane %v4355, 4
        %v4357 = vmax.f32 %v4355, %v4356
        %v4358 = vrot.slane %v4357, 2
        %v4359 = vmax.f32 %v4357, %v4358
        %v4360 = vrot.slane %v4359, 1
        %v4361 = vmax.f32 %v4359, %v4360
        %v4362 = vsel %vm3983, %v3048, -inf
        %v4363 = vrot.slane %v4362, 4
        %v4364 = vmax.f32 %v4362, %v4363
        %v4365 = vrot.slane %v4364, 2
        %v4366 = vmax.f32 %v4364, %v4365
        %v4367 = vrot.slane %v4366, 1
        %v4368 = vmax.f32 %v4366, %v4367
        %v4369 = vsel %vm3983, %v3080, -inf
        %v4370 = vrot.slane %v4369, 4
        %v4371 = vmax.f32 %v4369, %v4370
        %v4372 = vrot.slane %v4371, 2
        %v4373 = vmax.f32 %v4371, %v4372
        %v4374 = vrot.slane %v4373, 1
        %v4375 = vmax.f32 %v4373, %v4374
        %v4376 = vsel %vm3983, %v2987, -inf
        %v4377 = vrot.slane %v4376, 4
        %v4378 = vmax.f32 %v4376, %v4377
        %v4379 = vrot.slane %v4378, 2
        %v4380 = vmax.f32 %v4378, %v4379
        %v4381 = vrot.slane %v4380, 1
        %v4382 = vmax.f32 %v4380, %v4381
        %v4383 = vsel %vm3983, %v3018, -inf
        %v4384 = vrot.slane %v4383, 4
        %v4385 = vmax.f32 %v4383, %v4384
        %v4386 = vrot.slane %v4385, 2
        %v4387 = vmax.f32 %v4385, %v4386
        %v4388 = vrot.slane %v4387, 1
        %v4389 = vmax.f32 %v4387, %v4388
        %v4390 = vsel %vm3983, %v3050, -inf
        %v4391 = vrot.slane %v4390, 4
        %v4392 = vmax.f32 %v4390, %v4391
        %v4393 = vrot.slane %v4392, 2
        %v4394 = vmax.f32 %v4392, %v4393
        %v4395 = vrot.slane %v4394, 1
        %v4396 = vmax.f32 %v4394, %v4395
        %v4397 = vsel %vm3983, %v3082, -inf
        %v4398 = vrot.slane %v4397, 4
        %v4399 = vmax.f32 %v4397, %v4398
        %v4400 = vrot.slane %v4399, 2
        %v4401 = vmax.f32 %v4399, %v4400
        %v4402 = vrot.slane %v4401, 1
        %v4403 = vmax.f32 %v4401, %v4402
        %v4404 = vsel %vm3983, %v2988, -inf
        %v4405 = vrot.slane %v4404, 4
        %v4406 = vmax.f32 %v4404, %v4405
        %v4407 = vrot.slane %v4406, 2
        %v4408 = vmax.f32 %v4406, %v4407
        %v4409 = vrot.slane %v4408, 1
        %v4410 = vmax.f32 %v4408, %v4409
        %v4411 = vsel %vm3983, %v3020, -inf
        %v4412 = vrot.slane %v4411, 4
        %v4413 = vmax.f32 %v4411, %v4412
        %v4414 = vrot.slane %v4413, 2
        %v4415 = vmax.f32 %v4413, %v4414
        %v4416 = vrot.slane %v4415, 1
        %v4417 = vmax.f32 %v4415, %v4416
        %v4418 = vsel %vm3983, %v3052, -inf
        %v4419 = vrot.slane %v4418, 4
        %v4420 = vmax.f32 %v4418, %v4419
        %v4421 = vrot.slane %v4420, 2
        %v4422 = vmax.f32 %v4420, %v4421
        %v4423 = vrot.slane %v4422, 1
        %v4424 = vmax.f32 %v4422, %v4423
        %v4425 = vsel %vm3983, %v3084, -inf
        %v4426 = vrot.slane %v4425, 4
        %v4427 = vmax.f32 %v4425, %v4426
        %v4428 = vrot.slane %v4427, 2
        %v4429 = vmax.f32 %v4427, %v4428
        %v4430 = vrot.slane %v4429, 1
        %v4431 = vmax.f32 %v4429, %v4430
        %vm4432 = vcmask 1047557
        %v4433 = vsel %vm4432, %v2973, -inf
        %v4434 = vrot.slane %v4433, 4
        %v4435 = vmax.f32 %v4433, %v4434
        %v4436 = vrot.slane %v4435, 2
        %v4437 = vmax.f32 %v4435, %v4436
        %v4438 = vrot.slane %v4437, 1
        %v4439 = vmax.f32 %v4437, %v4438
        %v4440 = vsel %vm4432, %v2990, -inf
        %v4441 = vrot.slane %v4440, 4
        %v4442 = vmax.f32 %v4440, %v4441
        %v4443 = vrot.slane %v4442, 2
        %v4444 = vmax.f32 %v4442, %v4443
        %v4445 = vrot.slane %v4444, 1
        %v4446 = vmax.f32 %v4444, %v4445
        %v4447 = vsel %vm4432, %v3022, -inf
        %v4448 = vrot.slane %v4447, 4
        %v4449 = vmax.f32 %v4447, %v4448
        %v4450 = vrot.slane %v4449, 2
        %v4451 = vmax.f32 %v4449, %v4450
        %v4452 = vrot.slane %v4451, 1
        %v4453 = vmax.f32 %v4451, %v4452
        %v4454 = vsel %vm4432, %v3054, -inf
        %v4455 = vrot.slane %v4454, 4
        %v4456 = vmax.f32 %v4454, %v4455
        %v4457 = vrot.slane %v4456, 2
        %v4458 = vmax.f32 %v4456, %v4457
        %v4459 = vrot.slane %v4458, 1
        %v4460 = vmax.f32 %v4458, %v4459
        %v4461 = vsel %vm4432, %v2974, -inf
        %v4462 = vrot.slane %v4461, 4
        %v4463 = vmax.f32 %v4461, %v4462
        %v4464 = vrot.slane %v4463, 2
        %v4465 = vmax.f32 %v4463, %v4464
        %v4466 = vrot.slane %v4465, 1
        %v4467 = vmax.f32 %v4465, %v4466
        %v4468 = vsel %vm4432, %v2992, -inf
        %v4469 = vrot.slane %v4468, 4
        %v4470 = vmax.f32 %v4468, %v4469
        %v4471 = vrot.slane %v4470, 2
        %v4472 = vmax.f32 %v4470, %v4471
        %v4473 = vrot.slane %v4472, 1
        %v4474 = vmax.f32 %v4472, %v4473
        %v4475 = vsel %vm4432, %v3024, -inf
        %v4476 = vrot.slane %v4475, 4
        %v4477 = vmax.f32 %v4475, %v4476
        %v4478 = vrot.slane %v4477, 2
        %v4479 = vmax.f32 %v4477, %v4478
        %v4480 = vrot.slane %v4479, 1
        %v4481 = vmax.f32 %v4479, %v4480
        %v4482 = vsel %vm4432, %v3056, -inf
        %v4483 = vrot.slane %v4482, 4
        %v4484 = vmax.f32 %v4482, %v4483
        %v4485 = vrot.slane %v4484, 2
        %v4486 = vmax.f32 %v4484, %v4485
        %v4487 = vrot.slane %v4486, 1
        %v4488 = vmax.f32 %v4486, %v4487
        %v4489 = vsel %vm4432, %v2975, -inf
        %v4490 = vrot.slane %v4489, 4
        %v4491 = vmax.f32 %v4489, %v4490
        %v4492 = vrot.slane %v4491, 2
        %v4493 = vmax.f32 %v4491, %v4492
        %v4494 = vrot.slane %v4493, 1
        %v4495 = vmax.f32 %v4493, %v4494
        %v4496 = vsel %vm4432, %v2994, -inf
        %v4497 = vrot.slane %v4496, 4
        %v4498 = vmax.f32 %v4496, %v4497
        %v4499 = vrot.slane %v4498, 2
        %v4500 = vmax.f32 %v4498, %v4499
        %v4501 = vrot.slane %v4500, 1
        %v4502 = vmax.f32 %v4500, %v4501
        %v4503 = vsel %vm4432, %v3026, -inf
        %v4504 = vrot.slane %v4503, 4
        %v4505 = vmax.f32 %v4503, %v4504
        %v4506 = vrot.slane %v4505, 2
        %v4507 = vmax.f32 %v4505, %v4506
        %v4508 = vrot.slane %v4507, 1
        %v4509 = vmax.f32 %v4507, %v4508
        %v4510 = vsel %vm4432, %v3058, -inf
        %v4511 = vrot.slane %v4510, 4
        %v4512 = vmax.f32 %v4510, %v4511
        %v4513 = vrot.slane %v4512, 2
        %v4514 = vmax.f32 %v4512, %v4513
        %v4515 = vrot.slane %v4514, 1
        %v4516 = vmax.f32 %v4514, %v4515
        %v4517 = vsel %vm4432, %v2976, -inf
        %v4518 = vrot.slane %v4517, 4
        %v4519 = vmax.f32 %v4517, %v4518
        %v4520 = vrot.slane %v4519, 2
        %v4521 = vmax.f32 %v4519, %v4520
        %v4522 = vrot.slane %v4521, 1
        %v4523 = vmax.f32 %v4521, %v4522
        %v4524 = vsel %vm4432, %v2996, -inf
        %v4525 = vrot.slane %v4524, 4
        %v4526 = vmax.f32 %v4524, %v4525
        %v4527 = vrot.slane %v4526, 2
        %v4528 = vmax.f32 %v4526, %v4527
        %v4529 = vrot.slane %v4528, 1
        %v4530 = vmax.f32 %v4528, %v4529
        %v4531 = vsel %vm4432, %v3028, -inf
        %v4532 = vrot.slane %v4531, 4
        %v4533 = vmax.f32 %v4531, %v4532
        %v4534 = vrot.slane %v4533, 2
        %v4535 = vmax.f32 %v4533, %v4534
        %v4536 = vrot.slane %v4535, 1
        %v4537 = vmax.f32 %v4535, %v4536
        %v4538 = vsel %vm4432, %v3060, -inf
        %v4539 = vrot.slane %v4538, 4
        %v4540 = vmax.f32 %v4538, %v4539
        %v4541 = vrot.slane %v4540, 2
        %v4542 = vmax.f32 %v4540, %v4541
        %v4543 = vrot.slane %v4542, 1
        %v4544 = vmax.f32 %v4542, %v4543
        %v4545 = vsel %vm4432, %v2977, -inf
        %v4546 = vrot.slane %v4545, 4
        %v4547 = vmax.f32 %v4545, %v4546
        %v4548 = vrot.slane %v4547, 2
        %v4549 = vmax.f32 %v4547, %v4548
        %v4550 = vrot.slane %v4549, 1
        %v4551 = vmax.f32 %v4549, %v4550
        %v4552 = vsel %vm4432, %v2998, -inf
        %v4553 = vrot.slane %v4552, 4
        %v4554 = vmax.f32 %v4552, %v4553
        %v4555 = vrot.slane %v4554, 2
        %v4556 = vmax.f32 %v4554, %v4555
        %v4557 = vrot.slane %v4556, 1
        %v4558 = vmax.f32 %v4556, %v4557
        %v4559 = vsel %vm4432, %v3030, -inf
        %v4560 = vrot.slane %v4559, 4
        %v4561 = vmax.f32 %v4559, %v4560
        %v4562 = vrot.slane %v4561, 2
        %v4563 = vmax.f32 %v4561, %v4562
        %v4564 = vrot.slane %v4563, 1
        %v4565 = vmax.f32 %v4563, %v4564
        %v4566 = vsel %vm4432, %v3062, -inf
        %v4567 = vrot.slane %v4566, 4
        %v4568 = vmax.f32 %v4566, %v4567
        %v4569 = vrot.slane %v4568, 2
        %v4570 = vmax.f32 %v4568, %v4569
        %v4571 = vrot.slane %v4570, 1
        %v4572 = vmax.f32 %v4570, %v4571
        %v4573 = vsel %vm4432, %v2978, -inf
        %v4574 = vrot.slane %v4573, 4
        %v4575 = vmax.f32 %v4573, %v4574
        %v4576 = vrot.slane %v4575, 2
        %v4577 = vmax.f32 %v4575, %v4576
        %v4578 = vrot.slane %v4577, 1
        %v4579 = vmax.f32 %v4577, %v4578
        %v4580 = vsel %vm4432, %v3000, -inf
        %v4581 = vrot.slane %v4580, 4
        %v4582 = vmax.f32 %v4580, %v4581
        %v4583 = vrot.slane %v4582, 2
        %v4584 = vmax.f32 %v4582, %v4583
        %v4585 = vrot.slane %v4584, 1
        %v4586 = vmax.f32 %v4584, %v4585
        %v4587 = vsel %vm4432, %v3032, -inf
        %v4588 = vrot.slane %v4587, 4
        %v4589 = vmax.f32 %v4587, %v4588
        %v4590 = vrot.slane %v4589, 2
        %v4591 = vmax.f32 %v4589, %v4590
        %v4592 = vrot.slane %v4591, 1
        %v4593 = vmax.f32 %v4591, %v4592
        %v4594 = vsel %vm4432, %v3064, -inf
        %v4595 = vrot.slane %v4594, 4
        %v4596 = vmax.f32 %v4594, %v4595
        %v4597 = vrot.slane %v4596, 2
        %v4598 = vmax.f32 %v4596, %v4597
        %v4599 = vrot.slane %v4598, 1
        %v4600 = vmax.f32 %v4598, %v4599
        %v4601 = vsel %vm4432, %v2979, -inf
        %v4602 = vrot.slane %v4601, 4
        %v4603 = vmax.f32 %v4601, %v4602
        %v4604 = vrot.slane %v4603, 2
        %v4605 = vmax.f32 %v4603, %v4604
        %v4606 = vrot.slane %v4605, 1
        %v4607 = vmax.f32 %v4605, %v4606
        %v4608 = vsel %vm4432, %v3002, -inf
        %v4609 = vrot.slane %v4608, 4
        %v4610 = vmax.f32 %v4608, %v4609
        %v4611 = vrot.slane %v4610, 2
        %v4612 = vmax.f32 %v4610, %v4611
        %v4613 = vrot.slane %v4612, 1
        %v4614 = vmax.f32 %v4612, %v4613
        %v4615 = vsel %vm4432, %v3034, -inf
        %v4616 = vrot.slane %v4615, 4
        %v4617 = vmax.f32 %v4615, %v4616
        %v4618 = vrot.slane %v4617, 2
        %v4619 = vmax.f32 %v4617, %v4618
        %v4620 = vrot.slane %v4619, 1
        %v4621 = vmax.f32 %v4619, %v4620
        %v4622 = vsel %vm4432, %v3066, -inf
        %v4623 = vrot.slane %v4622, 4
        %v4624 = vmax.f32 %v4622, %v4623
        %v4625 = vrot.slane %v4624, 2
        %v4626 = vmax.f32 %v4624, %v4625
        %v4627 = vrot.slane %v4626, 1
        %v4628 = vmax.f32 %v4626, %v4627
        %v4629 = vsel %vm4432, %v2980, -inf
        %v4630 = vrot.slane %v4629, 4
        %v4631 = vmax.f32 %v4629, %v4630
        %v4632 = vrot.slane %v4631, 2
        %v4633 = vmax.f32 %v4631, %v4632
        %v4634 = vrot.slane %v4633, 1
        %v4635 = vmax.f32 %v4633, %v4634
        %v4636 = vsel %vm4432, %v3004, -inf
        %v4637 = vrot.slane %v4636, 4
        %v4638 = vmax.f32 %v4636, %v4637
        %v4639 = vrot.slane %v4638, 2
        %v4640 = vmax.f32 %v4638, %v4639
        %v4641 = vrot.slane %v4640, 1
        %v4642 = vmax.f32 %v4640, %v4641
        %v4643 = vsel %vm4432, %v3036, -inf
        %v4644 = vrot.slane %v4643, 4
        %v4645 = vmax.f32 %v4643, %v4644
        %v4646 = vrot.slane %v4645, 2
        %v4647 = vmax.f32 %v4645, %v4646
        %v4648 = vrot.slane %v4647, 1
        %v4649 = vmax.f32 %v4647, %v4648
        %v4650 = vsel %vm4432, %v3068, -inf
        %v4651 = vrot.slane %v4650, 4
        %v4652 = vmax.f32 %v4650, %v4651
        %v4653 = vrot.slane %v4652, 2
        %v4654 = vmax.f32 %v4652, %v4653
        %v4655 = vrot.slane %v4654, 1
        %v4656 = vmax.f32 %v4654, %v4655
        %v4657 = vsel %vm4432, %v2981, -inf
        %v4658 = vrot.slane %v4657, 4
        %v4659 = vmax.f32 %v4657, %v4658
        %v4660 = vrot.slane %v4659, 2
        %v4661 = vmax.f32 %v4659, %v4660
        %v4662 = vrot.slane %v4661, 1
        %v4663 = vmax.f32 %v4661, %v4662
        %v4664 = vsel %vm4432, %v3006, -inf
        %v4665 = vrot.slane %v4664, 4
        %v4666 = vmax.f32 %v4664, %v4665
        %v4667 = vrot.slane %v4666, 2
        %v4668 = vmax.f32 %v4666, %v4667
        %v4669 = vrot.slane %v4668, 1
        %v4670 = vmax.f32 %v4668, %v4669
        %v4671 = vsel %vm4432, %v3038, -inf
        %v4672 = vrot.slane %v4671, 4
        %v4673 = vmax.f32 %v4671, %v4672
        %v4674 = vrot.slane %v4673, 2
        %v4675 = vmax.f32 %v4673, %v4674
        %v4676 = vrot.slane %v4675, 1
        %v4677 = vmax.f32 %v4675, %v4676
        %v4678 = vsel %vm4432, %v3070, -inf
        %v4679 = vrot.slane %v4678, 4
        %v4680 = vmax.f32 %v4678, %v4679
        %v4681 = vrot.slane %v4680, 2
        %v4682 = vmax.f32 %v4680, %v4681
        %v4683 = vrot.slane %v4682, 1
        %v4684 = vmax.f32 %v4682, %v4683
        %v4685 = vsel %vm4432, %v2982, -inf
        %v4686 = vrot.slane %v4685, 4
        %v4687 = vmax.f32 %v4685, %v4686
        %v4688 = vrot.slane %v4687, 2
        %v4689 = vmax.f32 %v4687, %v4688
        %v4690 = vrot.slane %v4689, 1
        %v4691 = vmax.f32 %v4689, %v4690
        %v4692 = vsel %vm4432, %v3008, -inf
        %v4693 = vrot.slane %v4692, 4
        %v4694 = vmax.f32 %v4692, %v4693
        %v4695 = vrot.slane %v4694, 2
        %v4696 = vmax.f32 %v4694, %v4695
        %v4697 = vrot.slane %v4696, 1
        %v4698 = vmax.f32 %v4696, %v4697
        %v4699 = vsel %vm4432, %v3040, -inf
        %v4700 = vrot.slane %v4699, 4
        %v4701 = vmax.f32 %v4699, %v4700
        %v4702 = vrot.slane %v4701, 2
        %v4703 = vmax.f32 %v4701, %v4702
        %v4704 = vrot.slane %v4703, 1
        %v4705 = vmax.f32 %v4703, %v4704
        %v4706 = vsel %vm4432, %v3072, -inf
        %v4707 = vrot.slane %v4706, 4
        %v4708 = vmax.f32 %v4706, %v4707
        %v4709 = vrot.slane %v4708, 2
        %v4710 = vmax.f32 %v4708, %v4709
        %v4711 = vrot.slane %v4710, 1
        %v4712 = vmax.f32 %v4710, %v4711
        %v4713 = vsel %vm4432, %v2983, -inf
        %v4714 = vrot.slane %v4713, 4
        %v4715 = vmax.f32 %v4713, %v4714
        %v4716 = vrot.slane %v4715, 2
        %v4717 = vmax.f32 %v4715, %v4716
        %v4718 = vrot.slane %v4717, 1
        %v4719 = vmax.f32 %v4717, %v4718
        %v4720 = vsel %vm4432, %v3010, -inf
        %v4721 = vrot.slane %v4720, 4
        %v4722 = vmax.f32 %v4720, %v4721
        %v4723 = vrot.slane %v4722, 2
        %v4724 = vmax.f32 %v4722, %v4723
        %v4725 = vrot.slane %v4724, 1
        %v4726 = vmax.f32 %v4724, %v4725
        %v4727 = vsel %vm4432, %v3042, -inf
        %v4728 = vrot.slane %v4727, 4
        %v4729 = vmax.f32 %v4727, %v4728
        %v4730 = vrot.slane %v4729, 2
        %v4731 = vmax.f32 %v4729, %v4730
        %v4732 = vrot.slane %v4731, 1
        %v4733 = vmax.f32 %v4731, %v4732
        %v4734 = vsel %vm4432, %v3074, -inf
        %v4735 = vrot.slane %v4734, 4
        %v4736 = vmax.f32 %v4734, %v4735
        %v4737 = vrot.slane %v4736, 2
        %v4738 = vmax.f32 %v4736, %v4737
        %v4739 = vrot.slane %v4738, 1
        %v4740 = vmax.f32 %v4738, %v4739
        %v4741 = vsel %vm4432, %v2984, -inf
        %v4742 = vrot.slane %v4741, 4
        %v4743 = vmax.f32 %v4741, %v4742
        %v4744 = vrot.slane %v4743, 2
        %v4745 = vmax.f32 %v4743, %v4744
        %v4746 = vrot.slane %v4745, 1
        %v4747 = vmax.f32 %v4745, %v4746
        %v4748 = vsel %vm4432, %v3012, -inf
        %v4749 = vrot.slane %v4748, 4
        %v4750 = vmax.f32 %v4748, %v4749
        %v4751 = vrot.slane %v4750, 2
        %v4752 = vmax.f32 %v4750, %v4751
        %v4753 = vrot.slane %v4752, 1
        %v4754 = vmax.f32 %v4752, %v4753
        %v4755 = vsel %vm4432, %v3044, -inf
        %v4756 = vrot.slane %v4755, 4
        %v4757 = vmax.f32 %v4755, %v4756
        %v4758 = vrot.slane %v4757, 2
        %v4759 = vmax.f32 %v4757, %v4758
        %v4760 = vrot.slane %v4759, 1
        %v4761 = vmax.f32 %v4759, %v4760
        %v4762 = vsel %vm4432, %v3076, -inf
        %v4763 = vrot.slane %v4762, 4
        %v4764 = vmax.f32 %v4762, %v4763
        %v4765 = vrot.slane %v4764, 2
        %v4766 = vmax.f32 %v4764, %v4765
        %v4767 = vrot.slane %v4766, 1
        %v4768 = vmax.f32 %v4766, %v4767
        %v4769 = vsel %vm4432, %v2985, -inf
        %v4770 = vrot.slane %v4769, 4
        %v4771 = vmax.f32 %v4769, %v4770
        %v4772 = vrot.slane %v4771, 2
        %v4773 = vmax.f32 %v4771, %v4772
        %v4774 = vrot.slane %v4773, 1
        %v4775 = vmax.f32 %v4773, %v4774
        %v4776 = vsel %vm4432, %v3014, -inf
        %v4777 = vrot.slane %v4776, 4
        %v4778 = vmax.f32 %v4776, %v4777
        %v4779 = vrot.slane %v4778, 2
        %v4780 = vmax.f32 %v4778, %v4779
        %v4781 = vrot.slane %v4780, 1
        %v4782 = vmax.f32 %v4780, %v4781
        %v4783 = vsel %vm4432, %v3046, -inf
        %v4784 = vrot.slane %v4783, 4
        %v4785 = vmax.f32 %v4783, %v4784
        %v4786 = vrot.slane %v4785, 2
        %v4787 = vmax.f32 %v4785, %v4786
        %v4788 = vrot.slane %v4787, 1
        %v4789 = vmax.f32 %v4787, %v4788
        %v4790 = vsel %vm4432, %v3078, -inf
        %v4791 = vrot.slane %v4790, 4
        %v4792 = vmax.f32 %v4790, %v4791
        %v4793 = vrot.slane %v4792, 2
        %v4794 = vmax.f32 %v4792, %v4793
        %v4795 = vrot.slane %v4794, 1
        %v4796 = vmax.f32 %v4794, %v4795
        %v4797 = vsel %vm4432, %v2986, -inf
        %v4798 = vrot.slane %v4797, 4
        %v4799 = vmax.f32 %v4797, %v4798
        %v4800 = vrot.slane %v4799, 2
        %v4801 = vmax.f32 %v4799, %v4800
        %v4802 = vrot.slane %v4801, 1
        %v4803 = vmax.f32 %v4801, %v4802
        %v4804 = vsel %vm4432, %v3016, -inf
        %v4805 = vrot.slane %v4804, 4
        %v4806 = vmax.f32 %v4804, %v4805
        %v4807 = vrot.slane %v4806, 2
        %v4808 = vmax.f32 %v4806, %v4807
        %v4809 = vrot.slane %v4808, 1
        %v4810 = vmax.f32 %v4808, %v4809
        %v4811 = vsel %vm4432, %v3048, -inf
        %v4812 = vrot.slane %v4811, 4
        %v4813 = vmax.f32 %v4811, %v4812
        %v4814 = vrot.slane %v4813, 2
        %v4815 = vmax.f32 %v4813, %v4814
        %v4816 = vrot.slane %v4815, 1
        %v4817 = vmax.f32 %v4815, %v4816
        %v4818 = vsel %vm4432, %v3080, -inf
        %v4819 = vrot.slane %v4818, 4
        %v4820 = vmax.f32 %v4818, %v4819
        %v4821 = vrot.slane %v4820, 2
        %v4822 = vmax.f32 %v4820, %v4821
        %v4823 = vrot.slane %v4822, 1
        %v4824 = vmax.f32 %v4822, %v4823
        %v4825 = vsel %vm4432, %v2987, -inf
        %v4826 = vrot.slane %v4825, 4
        %v4827 = vmax.f32 %v4825, %v4826
        %v4828 = vrot.slane %v4827, 2
        %v4829 = vmax.f32 %v4827, %v4828
        %v4830 = vrot.slane %v4829, 1
        %v4831 = vmax.f32 %v4829, %v4830
        %v4832 = vsel %vm4432, %v3018, -inf
        %v4833 = vrot.slane %v4832, 4
        %v4834 = vmax.f32 %v4832, %v4833
        %v4835 = vrot.slane %v4834, 2
        %v4836 = vmax.f32 %v4834, %v4835
        %v4837 = vrot.slane %v4836, 1
        %v4838 = vmax.f32 %v4836, %v4837
        %v4839 = vsel %vm4432, %v3050, -inf
        %v4840 = vrot.slane %v4839, 4
        %v4841 = vmax.f32 %v4839, %v4840
        %v4842 = vrot.slane %v4841, 2
        %v4843 = vmax.f32 %v4841, %v4842
        %v4844 = vrot.slane %v4843, 1
        %v4845 = vmax.f32 %v4843, %v4844
        %v4846 = vsel %vm4432, %v3082, -inf
        %v4847 = vrot.slane %v4846, 4
        %v4848 = vmax.f32 %v4846, %v4847
        %v4849 = vrot.slane %v4848, 2
        %v4850 = vmax.f32 %v4848, %v4849
        %v4851 = vrot.slane %v4850, 1
        %v4852 = vmax.f32 %v4850, %v4851
        %v4853 = vsel %vm4432, %v2988, -inf
        %v4854 = vrot.slane %v4853, 4
        %v4855 = vmax.f32 %v4853, %v4854
        %v4856 = vrot.slane %v4855, 2
        %v4857 = vmax.f32 %v4855, %v4856
        %v4858 = vrot.slane %v4857, 1
        %v4859 = vmax.f32 %v4857, %v4858
        %v4860 = vsel %vm4432, %v3020, -inf
        %v4861 = vrot.slane %v4860, 4
        %v4862 = vmax.f32 %v4860, %v4861
        %v4863 = vrot.slane %v4862, 2
        %v4864 = vmax.f32 %v4862, %v4863
        %v4865 = vrot.slane %v4864, 1
        %v4866 = vmax.f32 %v4864, %v4865
        %v4867 = vsel %vm4432, %v3052, -inf
        %v4868 = vrot.slane %v4867, 4
        %v4869 = vmax.f32 %v4867, %v4868
        %v4870 = vrot.slane %v4869, 2
        %v4871 = vmax.f32 %v4869, %v4870
        %v4872 = vrot.slane %v4871, 1
        %v4873 = vmax.f32 %v4871, %v4872
        %v4874 = vsel %vm4432, %v3084, -inf
        %v4875 = vrot.slane %v4874, 4
        %v4876 = vmax.f32 %v4874, %v4875
        %v4877 = vrot.slane %v4876, 2
        %v4878 = vmax.f32 %v4876, %v4877
        %v4879 = vrot.slane %v4878, 1
        %v4880 = vmax.f32 %v4878, %v4879
        %vm4881 = vcmask 1040384
        %v4882 = vsel %vm4881, %v3092, %v3541
        %v4883 = vsel %vm4881, %v3099, %v3548
        %v4884 = vsel %vm4881, %v3106, %v3555
        %v4885 = vsel %vm4881, %v3113, %v3562
        %v4886 = vsel %vm4881, %v3120, %v3569
        %v4887 = vsel %vm4881, %v3127, %v3576
        %v4888 = vsel %vm4881, %v3134, %v3583
        %v4889 = vsel %vm4881, %v3141, %v3590
        %v4890 = vsel %vm4881, %v3148, %v3597
        %v4891 = vsel %vm4881, %v3155, %v3604
        %v4892 = vsel %vm4881, %v3162, %v3611
        %v4893 = vsel %vm4881, %v3169, %v3618
        %v4894 = vsel %vm4881, %v3176, %v3625
        %v4895 = vsel %vm4881, %v3183, %v3632
        %v4896 = vsel %vm4881, %v3190, %v3639
        %v4897 = vsel %vm4881, %v3197, %v3646
        %v4898 = vsel %vm4881, %v3204, %v3653
        %v4899 = vsel %vm4881, %v3211, %v3660
        %v4900 = vsel %vm4881, %v3218, %v3667
        %v4901 = vsel %vm4881, %v3225, %v3674
        %v4902 = vsel %vm4881, %v3232, %v3681
        %v4903 = vsel %vm4881, %v3239, %v3688
        %v4904 = vsel %vm4881, %v3246, %v3695
        %v4905 = vsel %vm4881, %v3253, %v3702
        %v4906 = vsel %vm4881, %v3260, %v3709
        %v4907 = vsel %vm4881, %v3267, %v3716
        %v4908 = vsel %vm4881, %v3274, %v3723
        %v4909 = vsel %vm4881, %v3281, %v3730
        %v4910 = vsel %vm4881, %v3288, %v3737
        %v4911 = vsel %vm4881, %v3295, %v3744
        %v4912 = vsel %vm4881, %v3302, %v3751
        %v4913 = vsel %vm4881, %v3309, %v3758
        %v4914 = vsel %vm4881, %v3316, %v3765
        %v4915 = vsel %vm4881, %v3323, %v3772
        %v4916 = vsel %vm4881, %v3330, %v3779
        %v4917 = vsel %vm4881, %v3337, %v3786
        %v4918 = vsel %vm4881, %v3344, %v3793
        %v4919 = vsel %vm4881, %v3351, %v3800
        %v4920 = vsel %vm4881, %v3358, %v3807
        %v4921 = vsel %vm4881, %v3365, %v3814
        %v4922 = vsel %vm4881, %v3372, %v3821
        %v4923 = vsel %vm4881, %v3379, %v3828
        %v4924 = vsel %vm4881, %v3386, %v3835
        %v4925 = vsel %vm4881, %v3393, %v3842
        %v4926 = vsel %vm4881, %v3400, %v3849
        %v4927 = vsel %vm4881, %v3407, %v3856
        %v4928 = vsel %vm4881, %v3414, %v3863
        %v4929 = vsel %vm4881, %v3421, %v3870
        %v4930 = vsel %vm4881, %v3428, %v3877
        %v4931 = vsel %vm4881, %v3435, %v3884
        %v4932 = vsel %vm4881, %v3442, %v3891
        %v4933 = vsel %vm4881, %v3449, %v3898
        %v4934 = vsel %vm4881, %v3456, %v3905
        %v4935 = vsel %vm4881, %v3463, %v3912
        %v4936 = vsel %vm4881, %v3470, %v3919
        %v4937 = vsel %vm4881, %v3477, %v3926
        %v4938 = vsel %vm4881, %v3484, %v3933
        %v4939 = vsel %vm4881, %v3491, %v3940
        %v4940 = vsel %vm4881, %v3498, %v3947
        %v4941 = vsel %vm4881, %v3505, %v3954
        %v4942 = vsel %vm4881, %v3512, %v3961
        %v4943 = vsel %vm4881, %v3519, %v3968
        %v4944 = vsel %vm4881, %v3526, %v3975
        %v4945 = vsel %vm4881, %v3533, %v3982
        %v4946 = vsel %vm3085, %v4882, %v3990
        %v4947 = vsel %vm3085, %v4883, %v3997
        %v4948 = vsel %vm3085, %v4884, %v4004
        %v4949 = vsel %vm3085, %v4885, %v4011
        %v4950 = vsel %vm3085, %v4886, %v4018
        %v4951 = vsel %vm3085, %v4887, %v4025
        %v4952 = vsel %vm3085, %v4888, %v4032
        %v4953 = vsel %vm3085, %v4889, %v4039
        %v4954 = vsel %vm3085, %v4890, %v4046
        %v4955 = vsel %vm3085, %v4891, %v4053
        %v4956 = vsel %vm3085, %v4892, %v4060
        %v4957 = vsel %vm3085, %v4893, %v4067
        %v4958 = vsel %vm3085, %v4894, %v4074
        %v4959 = vsel %vm3085, %v4895, %v4081
        %v4960 = vsel %vm3085, %v4896, %v4088
        %v4961 = vsel %vm3085, %v4897, %v4095
        %v4962 = vsel %vm3085, %v4898, %v4102
        %v4963 = vsel %vm3085, %v4899, %v4109
        %v4964 = vsel %vm3085, %v4900, %v4116
        %v4965 = vsel %vm3085, %v4901, %v4123
        %v4966 = vsel %vm3085, %v4902, %v4130
        %v4967 = vsel %vm3085, %v4903, %v4137
        %v4968 = vsel %vm3085, %v4904, %v4144
        %v4969 = vsel %vm3085, %v4905, %v4151
        %v4970 = vsel %vm3085, %v4906, %v4158
        %v4971 = vsel %vm3085, %v4907, %v4165
        %v4972 = vsel %vm3085, %v4908, %v4172
        %v4973 = vsel %vm3085, %v4909, %v4179
        %v4974 = vsel %vm3085, %v4910, %v4186
        %v4975 = vsel %vm3085, %v4911, %v4193
        %v4976 = vsel %vm3085, %v4912, %v4200
        %v4977 = vsel %vm3085, %v4913, %v4207
        %v4978 = vsel %vm3085, %v4914, %v4214
        %v4979 = vsel %vm3085, %v4915, %v4221
        %v4980 = vsel %vm3085, %v4916, %v4228
        %v4981 = vsel %vm3085, %v4917, %v4235
        %v4982 = vsel %vm3085, %v4918, %v4242
        %v4983 = vsel %vm3085, %v4919, %v4249
        %v4984 = vsel %vm3085, %v4920, %v4256
        %v4985 = vsel %vm3085, %v4921, %v4263
        %v4986 = vsel %vm3085, %v4922, %v4270
        %v4987 = vsel %vm3085, %v4923, %v4277
        %v4988 = vsel %vm3085, %v4924, %v4284
        %v4989 = vsel %vm3085, %v4925, %v4291
        %v4990 = vsel %vm3085, %v4926, %v4298
        %v4991 = vsel %vm3085, %v4927, %v4305
        %v4992 = vsel %vm3085, %v4928, %v4312
        %v4993 = vsel %vm3085, %v4929, %v4319
        %v4994 = vsel %vm3085, %v4930, %v4326
        %v4995 = vsel %vm3085, %v4931, %v4333
        %v4996 = vsel %vm3085, %v4932, %v4340
        %v4997 = vsel %vm3085, %v4933, %v4347
        %v4998 = vsel %vm3085, %v4934, %v4354
        %v4999 = vsel %vm3085, %v4935, %v4361
        %v5000 = vsel %vm3085, %v4936, %v4368
        %v5001 = vsel %vm3085, %v4937, %v4375
        %v5002 = vsel %vm3085, %v4938, %v4382
        %v5003 = vsel %vm3085, %v4939, %v4389
        %v5004 = vsel %vm3085, %v4940, %v4396
        %v5005 = vsel %vm3085, %v4941, %v4403
        %v5006 = vsel %vm3085, %v4942, %v4410
        %v5007 = vsel %vm3085, %v4943, %v4417
        %v5008 = vsel %vm3085, %v4944, %v4424
        %v5009 = vsel %vm3085, %v4945, %v4431
        %vm5010 = vcmask 1042432
        %v5011 = vsel %vm5010, %v4946, %v4439
        %v5012 = vsel %vm5010, %v4947, %v4446
        %v5013 = vsel %vm5010, %v4948, %v4453
        %v5014 = vsel %vm5010, %v4949, %v4460
        %v5015 = vsel %vm5010, %v4950, %v4467
        %v5016 = vsel %vm5010, %v4951, %v4474
        %v5017 = vsel %vm5010, %v4952, %v4481
        %v5018 = vsel %vm5010, %v4953, %v4488
        %v5019 = vsel %vm5010, %v4954, %v4495
        %v5020 = vsel %vm5010, %v4955, %v4502
        %v5021 = vsel %vm5010, %v4956, %v4509
        %v5022 = vsel %vm5010, %v4957, %v4516
        %v5023 = vsel %vm5010, %v4958, %v4523
        %v5024 = vsel %vm5010, %v4959, %v4530
        %v5025 = vsel %vm5010, %v4960, %v4537
        %v5026 = vsel %vm5010, %v4961, %v4544
        %v5027 = vsel %vm5010, %v4962, %v4551
        %v5028 = vsel %vm5010, %v4963, %v4558
        %v5029 = vsel %vm5010, %v4964, %v4565
        %v5030 = vsel %vm5010, %v4965, %v4572
        %v5031 = vsel %vm5010, %v4966, %v4579
        %v5032 = vsel %vm5010, %v4967, %v4586
        %v5033 = vsel %vm5010, %v4968, %v4593
        %v5034 = vsel %vm5010, %v4969, %v4600
        %v5035 = vsel %vm5010, %v4970, %v4607
        %v5036 = vsel %vm5010, %v4971, %v4614
        %v5037 = vsel %vm5010, %v4972, %v4621
        %v5038 = vsel %vm5010, %v4973, %v4628
        %v5039 = vsel %vm5010, %v4974, %v4635
        %v5040 = vsel %vm5010, %v4975, %v4642
        %v5041 = vsel %vm5010, %v4976, %v4649
        %v5042 = vsel %vm5010, %v4977, %v4656
        %v5043 = vsel %vm5010, %v4978, %v4663
        %v5044 = vsel %vm5010, %v4979, %v4670
        %v5045 = vsel %vm5010, %v4980, %v4677
        %v5046 = vsel %vm5010, %v4981, %v4684
        %v5047 = vsel %vm5010, %v4982, %v4691
        %v5048 = vsel %vm5010, %v4983, %v4698
        %v5049 = vsel %vm5010, %v4984, %v4705
        %v5050 = vsel %vm5010, %v4985, %v4712
        %v5051 = vsel %vm5010, %v4986, %v4719
        %v5052 = vsel %vm5010, %v4987, %v4726
        %v5053 = vsel %vm5010, %v4988, %v4733
        %v5054 = vsel %vm5010, %v4989, %v4740
        %v5055 = vsel %vm5010, %v4990, %v4747
        %v5056 = vsel %vm5010, %v4991, %v4754
        %v5057 = vsel %vm5010, %v4992, %v4761
        %v5058 = vsel %vm5010, %v4993, %v4768
        %v5059 = vsel %vm5010, %v4994, %v4775
        %v5060 = vsel %vm5010, %v4995, %v4782
        %v5061 = vsel %vm5010, %v4996, %v4789
        %v5062 = vsel %vm5010, %v4997, %v4796
        %v5063 = vsel %vm5010, %v4998, %v4803
        %v5064 = vsel %vm5010, %v4999, %v4810
        %v5065 = vsel %vm5010, %v5000, %v4817
        %v5066 = vsel %vm5010, %v5001, %v4824
        %v5067 = vsel %vm5010, %v5002, %v4831
        %v5068 = vsel %vm5010, %v5003, %v4838
        %v5069 = vsel %vm5010, %v5004, %v4845
        %v5070 = vsel %vm5010, %v5005, %v4852
        %v5071 = vsel %vm5010, %v5006, %v4859
        %v5072 = vsel %vm5010, %v5007, %v4866
        %v5073 = vsel %vm5010, %v5008, %v4873
        %v5074 = vsel %vm5010, %v5009, %v4880
        %v5140 = vrot.slane 0.0, 7
        %v5141 = vrot.slane %v5011, 7
        %v5142 = vrot.slane %v5012, 7
        %v5143 = vrot.slane %v5013, 7
        %v5144 = vrot.slane %v5014, 7
        %v5145 = vrot.slane %v5015, 7
        %v5146 = vrot.slane %v5016, 7
        %v5147 = vrot.slane %v5017, 7
        %v5148 = vrot.slane %v5018, 7
        %v5149 = vrot.slane %v5019, 7
        %v5150 = vrot.slane %v5020, 7
        %v5151 = vrot.slane %v5021, 7
        %v5152 = vrot.slane %v5022, 7
        %v5153 = vrot.slane %v5023, 7
        %v5154 = vrot.slane %v5024, 7
        %v5155 = vrot.slane %v5025, 7
        %v5156 = vrot.slane %v5026, 7
        %v5157 = vrot.slane %v5027, 7
        %v5158 = vrot.slane %v5028, 7
        %v5159 = vrot.slane %v5029, 7
        %v5160 = vrot.slane %v5030, 7
        %v5161 = vrot.slane %v5031, 7
        %v5162 = vrot.slane %v5032, 7
        %v5163 = vrot.slane %v5033, 7
        %v5164 = vrot.slane %v5034, 7
        %v5165 = vrot.slane %v5035, 7
        %v5166 = vrot.slane %v5036, 7
        %v5167 = vrot.slane %v5037, 7
        %v5168 = vrot.slane %v5038, 7
        %v5169 = vrot.slane %v5039, 7
        %v5170 = vrot.slane %v5040, 7
        %v5171 = vrot.slane %v5041, 7
        %v5172 = vrot.slane %v5042, 7
        %v5173 = vrot.slane %v5043, 7
        %v5174 = vrot.slane %v5044, 7
        %v5175 = vrot.slane %v5045, 7
        %v5176 = vrot.slane %v5046, 7
        %v5177 = vrot.slane %v5047, 7
        %v5178 = vrot.slane %v5048, 7
        %v5179 = vrot.slane %v5049, 7
        %v5180 = vrot.slane %v5050, 7
        %v5181 = vrot.slane %v5051, 7
        %v5182 = vrot.slane %v5052, 7
        %v5183 = vrot.slane %v5053, 7
        %v5184 = vrot.slane %v5054, 7
        %v5185 = vrot.slane %v5055, 7
        %v5186 = vrot.slane %v5056, 7
        %v5187 = vrot.slane %v5057, 7
        %v5188 = vrot.slane %v5058, 7
        %v5189 = vrot.slane %v5059, 7
        %v5190 = vrot.slane %v5060, 7
        %v5191 = vrot.slane %v5061, 7
        %v5192 = vrot.slane %v5062, 7
        %v5193 = vrot.slane %v5063, 7
        %v5194 = vrot.slane %v5064, 7
        %v5195 = vrot.slane %v5065, 7
        %v5196 = vrot.slane %v5066, 7
        %v5197 = vrot.slane %v5067, 7
        %v5198 = vrot.slane %v5068, 7
        %v5199 = vrot.slane %v5069, 7
        %v5200 = vrot.slane %v5070, 7
        %v5201 = vrot.slane %v5071, 7
        %v5202 = vrot.slane %v5072, 7
        %v5203 = vrot.slane %v5073, 7
        %v5204 = vrot.slane %v5074, 7
        %v5270 = vsel %vm4881, 0.0, %v5140
        %v5271 = vsel %vm4881, 0.0, %v5141
        %v5272 = vsel %vm4881, 0.0, %v5142
        %v5273 = vsel %vm4881, 0.0, %v5143
        %v5274 = vsel %vm4881, 0.0, %v5144
        %v5275 = vsel %vm4881, 0.0, %v5145
        %v5276 = vsel %vm4881, 0.0, %v5146
        %v5277 = vsel %vm4881, 0.0, %v5147
        %v5278 = vsel %vm4881, 0.0, %v5148
        %v5279 = vsel %vm4881, 0.0, %v5149
        %v5280 = vsel %vm4881, 0.0, %v5150
        %v5281 = vsel %vm4881, 0.0, %v5151
        %v5282 = vsel %vm4881, 0.0, %v5152
        %v5283 = vsel %vm4881, 0.0, %v5153
        %v5284 = vsel %vm4881, 0.0, %v5154
        %v5285 = vsel %vm4881, 0.0, %v5155
        %v5286 = vsel %vm4881, 0.0, %v5156
        %v5287 = vsel %vm4881, 0.0, %v5157
        %v5288 = vsel %vm4881, 0.0, %v5158
        %v5289 = vsel %vm4881, 0.0, %v5159
        %v5290 = vsel %vm4881, 0.0, %v5160
        %v5291 = vsel %vm4881, 0.0, %v5161
        %v5292 = vsel %vm4881, 0.0, %v5162
        %v5293 = vsel %vm4881, 0.0, %v5163
        %v5294 = vsel %vm4881, 0.0, %v5164
        %v5295 = vsel %vm4881, 0.0, %v5165
        %v5296 = vsel %vm4881, 0.0, %v5166
        %v5297 = vsel %vm4881, 0.0, %v5167
        %v5298 = vsel %vm4881, 0.0, %v5168
        %v5299 = vsel %vm4881, 0.0, %v5169
        %v5300 = vsel %vm4881, 0.0, %v5170
        %v5301 = vsel %vm4881, 0.0, %v5171
        %v5302 = vsel %vm4881, 0.0, %v5172
        %v5303 = vsel %vm4881, 0.0, %v5173
        %v5304 = vsel %vm4881, 0.0, %v5174
        %v5305 = vsel %vm4881, 0.0, %v5175
        %v5306 = vsel %vm4881, 0.0, %v5176
        %v5307 = vsel %vm4881, 0.0, %v5177
        %v5308 = vsel %vm4881, 0.0, %v5178
        %v5309 = vsel %vm4881, 0.0, %v5179
        %v5310 = vsel %vm4881, 0.0, %v5180
        %v5311 = vsel %vm4881, 0.0, %v5181
        %v5312 = vsel %vm4881, 0.0, %v5182
        %v5313 = vsel %vm4881, 0.0, %v5183
        %v5314 = vsel %vm4881, 0.0, %v5184
        %v5315 = vsel %vm4881, 0.0, %v5185
        %v5316 = vsel %vm4881, 0.0, %v5186
        %v5317 = vsel %vm4881, 0.0, %v5187
        %v5318 = vsel %vm4881, 0.0, %v5188
        %v5319 = vsel %vm4881, 0.0, %v5189
        %v5320 = vsel %vm4881, 0.0, %v5190
        %v5321 = vsel %vm4881, 0.0, %v5191
        %v5322 = vsel %vm4881, 0.0, %v5192
        %v5323 = vsel %vm4881, 0.0, %v5193
        %v5324 = vsel %vm4881, 0.0, %v5194
        %v5325 = vsel %vm4881, 0.0, %v5195
        %v5326 = vsel %vm4881, 0.0, %v5196
        %v5327 = vsel %vm4881, 0.0, %v5197
        %v5328 = vsel %vm4881, 0.0, %v5198
        %v5329 = vsel %vm4881, 0.0, %v5199
        %v5330 = vsel %vm4881, 0.0, %v5200
        %v5331 = vsel %vm4881, 0.0, %v5201
        %v5332 = vsel %vm4881, 0.0, %v5202
        %v5333 = vsel %vm4881, 0.0, %v5203
        %v5334 = vsel %vm4881, 0.0, %v5204
        %v5335 = vsel %vm1837, %v5270, 0.0
        %v5336 = vsel %vm1837, %v5271, 0.0
        %v5337 = vsel %vm1837, %v5272, 0.0
        %v5338 = vsel %vm1837, %v5273, 0.0
        %v5339 = vsel %vm1837, %v5274, 0.0
        %v5340 = vsel %vm1837, %v5275, 0.0
        %v5341 = vsel %vm1837, %v5276, 0.0
        %v5342 = vsel %vm1837, %v5277, 0.0
        %v5343 = vsel %vm1837, %v5278, 0.0
        %v5344 = vsel %vm1837, %v5279, 0.0
        %v5345 = vsel %vm1837, %v5280, 0.0
        %v5346 = vsel %vm1837, %v5281, 0.0
        %v5347 = vsel %vm1837, %v5282, 0.0
        %v5348 = vsel %vm1837, %v5283, 0.0
        %v5349 = vsel %vm1837, %v5284, 0.0
        %v5350 = vsel %vm1837, %v5285, 0.0
        %v5351 = vsel %vm1837, %v5286, 0.0
        %v5352 = vsel %vm1837, %v5287, 0.0
        %v5353 = vsel %vm1837, %v5288, 0.0
        %v5354 = vsel %vm1837, %v5289, 0.0
        %v5355 = vsel %vm1837, %v5290, 0.0
        %v5356 = vsel %vm1837, %v5291, 0.0
        %v5357 = vsel %vm1837, %v5292, 0.0
        %v5358 = vsel %vm1837, %v5293, 0.0
        %v5359 = vsel %vm1837, %v5294, 0.0
        %v5360 = vsel %vm1837, %v5295, 0.0
        %v5361 = vsel %vm1837, %v5296, 0.0
        %v5362 = vsel %vm1837, %v5297, 0.0
        %v5363 = vsel %vm1837, %v5298, 0.0
        %v5364 = vsel %vm1837, %v5299, 0.0
        %v5365 = vsel %vm1837, %v5300, 0.0
        %v5366 = vsel %vm1837, %v5301, 0.0
        %v5367 = vsel %vm1837, %v5302, 0.0
        %v5368 = vsel %vm1837, %v5303, 0.0
        %v5369 = vsel %vm1837, %v5304, 0.0
        %v5370 = vsel %vm1837, %v5305, 0.0
        %v5371 = vsel %vm1837, %v5306, 0.0
        %v5372 = vsel %vm1837, %v5307, 0.0
        %v5373 = vsel %vm1837, %v5308, 0.0
        %v5374 = vsel %vm1837, %v5309, 0.0
        %v5375 = vsel %vm1837, %v5310, 0.0
        %v5376 = vsel %vm1837, %v5311, 0.0
        %v5377 = vsel %vm1837, %v5312, 0.0
        %v5378 = vsel %vm1837, %v5313, 0.0
        %v5379 = vsel %vm1837, %v5314, 0.0
        %v5380 = vsel %vm1837, %v5315, 0.0
        %v5381 = vsel %vm1837, %v5316, 0.0
        %v5382 = vsel %vm1837, %v5317, 0.0
        %v5383 = vsel %vm1837, %v5318, 0.0
        %v5384 = vsel %vm1837, %v5319, 0.0
        %v5385 = vsel %vm1837, %v5320, 0.0
        %v5386 = vsel %vm1837, %v5321, 0.0
        %v5387 = vsel %vm1837, %v5322, 0.0
        %v5388 = vsel %vm1837, %v5323, 0.0
        %v5389 = vsel %vm1837, %v5324, 0.0
        %v5390 = vsel %vm1837, %v5325, 0.0
        %v5391 = vsel %vm1837, %v5326, 0.0
        %v5392 = vsel %vm1837, %v5327, 0.0
        %v5393 = vsel %vm1837, %v5328, 0.0
        %v5394 = vsel %vm1837, %v5329, 0.0
        %v5395 = vsel %vm1837, %v5330, 0.0
        %v5396 = vsel %vm1837, %v5331, 0.0
        %v5397 = vsel %vm1837, %v5332, 0.0
        %v5398 = vsel %vm1837, %v5333, 0.0
        %v5399 = vsel %vm1837, %v5334, 0.0
        %v5405 = vrot.slane %v5335, 1
        %v5406 = vrot.slane %v5341, 1
        %v5407 = vrot.slane %v5357, 1
        %v5408 = vrot.slane %v5373, 1
        %v5409 = vrot.slane %v5389, 1
        %v5415 = vsel %vm4881, %v5335, %v5405
        %v5416 = vsel %vm4881, %v5341, %v5406
        %v5417 = vsel %vm4881, %v5357, %v5407
        %v5418 = vsel %vm4881, %v5373, %v5408
        %v5419 = vsel %vm4881, %v5389, %v5409
        %v5420 = vrot.slane %v5335, 2
        %v5421 = vrot.slane %v5341, 2
        %v5422 = vrot.slane %v5357, 2
        %v5423 = vrot.slane %v5373, 2
        %v5424 = vrot.slane %v5389, 2
        %v5430 = vsel %vm4881, %v5405, %v5420
        %v5431 = vsel %vm4881, %v5406, %v5421
        %v5432 = vsel %vm4881, %v5407, %v5422
        %v5433 = vsel %vm4881, %v5408, %v5423
        %v5434 = vsel %vm4881, %v5409, %v5424
        %v5435 = vrot.slane %v5335, 3
        %v5436 = vrot.slane %v5341, 3
        %v5437 = vrot.slane %v5357, 3
        %v5438 = vrot.slane %v5373, 3
        %v5439 = vrot.slane %v5389, 3
        %v5445 = vsel %vm4881, %v5420, %v5435
        %v5446 = vsel %vm4881, %v5421, %v5436
        %v5447 = vsel %vm4881, %v5422, %v5437
        %v5448 = vsel %vm4881, %v5423, %v5438
        %v5449 = vsel %vm4881, %v5424, %v5439
        %v5458 = vrot.slane %v5340, 1
        %v5459 = vrot.slane %v5342, 1
        %v5460 = vrot.slane %v5356, 1
        %v5461 = vrot.slane %v5358, 1
        %v5462 = vrot.slane %v5372, 1
        %v5463 = vrot.slane %v5374, 1
        %v5464 = vrot.slane %v5388, 1
        %v5465 = vrot.slane %v5390, 1
        %v5474 = vsel %vm4881, %v5340, %v5458
        %v5475 = vsel %vm4881, %v5342, %v5459
        %v5476 = vsel %vm4881, %v5356, %v5460
        %v5477 = vsel %vm4881, %v5358, %v5461
        %v5478 = vsel %vm4881, %v5372, %v5462
        %v5479 = vsel %vm4881, %v5374, %v5463
        %v5480 = vsel %vm4881, %v5388, %v5464
        %v5481 = vsel %vm4881, %v5390, %v5465
        %v5482 = vrot.slane %v5340, 2
        %v5483 = vrot.slane %v5342, 2
        %v5484 = vrot.slane %v5356, 2
        %v5485 = vrot.slane %v5358, 2
        %v5486 = vrot.slane %v5372, 2
        %v5487 = vrot.slane %v5374, 2
        %v5488 = vrot.slane %v5388, 2
        %v5489 = vrot.slane %v5390, 2
        %v5498 = vsel %vm4881, %v5458, %v5482
        %v5499 = vsel %vm4881, %v5459, %v5483
        %v5500 = vsel %vm4881, %v5460, %v5484
        %v5501 = vsel %vm4881, %v5461, %v5485
        %v5502 = vsel %vm4881, %v5462, %v5486
        %v5503 = vsel %vm4881, %v5463, %v5487
        %v5504 = vsel %vm4881, %v5464, %v5488
        %v5505 = vsel %vm4881, %v5465, %v5489
        %v5506 = vrot.slane %v5340, 3
        %v5507 = vrot.slane %v5342, 3
        %v5508 = vrot.slane %v5356, 3
        %v5509 = vrot.slane %v5358, 3
        %v5510 = vrot.slane %v5372, 3
        %v5511 = vrot.slane %v5374, 3
        %v5512 = vrot.slane %v5388, 3
        %v5513 = vrot.slane %v5390, 3
        %v5522 = vsel %vm4881, %v5482, %v5506
        %v5523 = vsel %vm4881, %v5483, %v5507
        %v5524 = vsel %vm4881, %v5484, %v5508
        %v5525 = vsel %vm4881, %v5485, %v5509
        %v5526 = vsel %vm4881, %v5486, %v5510
        %v5527 = vsel %vm4881, %v5487, %v5511
        %v5528 = vsel %vm4881, %v5488, %v5512
        %v5529 = vsel %vm4881, %v5489, %v5513
        %v5534 = vrot.slane %v5343, 1
        %v5535 = vrot.slane %v5359, 1
        %v5536 = vrot.slane %v5375, 1
        %v5537 = vrot.slane %v5391, 1
        %v5542 = vsel %vm4881, %v5343, %v5534
        %v5543 = vsel %vm4881, %v5359, %v5535
        %v5544 = vsel %vm4881, %v5375, %v5536
        %v5545 = vsel %vm4881, %v5391, %v5537
        %v5546 = vrot.slane %v5343, 2
        %v5547 = vrot.slane %v5359, 2
        %v5548 = vrot.slane %v5375, 2
        %v5549 = vrot.slane %v5391, 2
        %v5554 = vsel %vm4881, %v5534, %v5546
        %v5555 = vsel %vm4881, %v5535, %v5547
        %v5556 = vsel %vm4881, %v5536, %v5548
        %v5557 = vsel %vm4881, %v5537, %v5549
        %v5558 = vrot.slane %v5343, 3
        %v5559 = vrot.slane %v5359, 3
        %v5560 = vrot.slane %v5375, 3
        %v5561 = vrot.slane %v5391, 3
        %v5566 = vsel %vm4881, %v5546, %v5558
        %v5567 = vsel %vm4881, %v5547, %v5559
        %v5568 = vsel %vm4881, %v5548, %v5560
        %v5569 = vsel %vm4881, %v5549, %v5561
        %v5578 = vrot.slane %v5337, 1
        %v5579 = vrot.slane %v5345, 1
        %v5580 = vrot.slane %v5353, 1
        %v5581 = vrot.slane %v5361, 1
        %v5582 = vrot.slane %v5369, 1
        %v5583 = vrot.slane %v5377, 1
        %v5584 = vrot.slane %v5385, 1
        %v5585 = vrot.slane %v5393, 1
        %v5594 = vsel %vm4881, %v5337, %v5578
        %v5595 = vsel %vm4881, %v5345, %v5579
        %v5596 = vsel %vm4881, %v5353, %v5580
        %v5597 = vsel %vm4881, %v5361, %v5581
        %v5598 = vsel %vm4881, %v5369, %v5582
        %v5599 = vsel %vm4881, %v5377, %v5583
        %v5600 = vsel %vm4881, %v5385, %v5584
        %v5601 = vsel %vm4881, %v5393, %v5585
        %v5602 = vrot.slane %v5337, 2
        %v5603 = vrot.slane %v5345, 2
        %v5604 = vrot.slane %v5353, 2
        %v5605 = vrot.slane %v5361, 2
        %v5606 = vrot.slane %v5369, 2
        %v5607 = vrot.slane %v5377, 2
        %v5608 = vrot.slane %v5385, 2
        %v5609 = vrot.slane %v5393, 2
        %v5618 = vsel %vm4881, %v5578, %v5602
        %v5619 = vsel %vm4881, %v5579, %v5603
        %v5620 = vsel %vm4881, %v5580, %v5604
        %v5621 = vsel %vm4881, %v5581, %v5605
        %v5622 = vsel %vm4881, %v5582, %v5606
        %v5623 = vsel %vm4881, %v5583, %v5607
        %v5624 = vsel %vm4881, %v5584, %v5608
        %v5625 = vsel %vm4881, %v5585, %v5609
        %v5626 = vrot.slane %v5337, 3
        %v5627 = vrot.slane %v5345, 3
        %v5628 = vrot.slane %v5353, 3
        %v5629 = vrot.slane %v5361, 3
        %v5630 = vrot.slane %v5369, 3
        %v5631 = vrot.slane %v5377, 3
        %v5632 = vrot.slane %v5385, 3
        %v5633 = vrot.slane %v5393, 3
        %v5642 = vsel %vm4881, %v5602, %v5626
        %v5643 = vsel %vm4881, %v5603, %v5627
        %v5644 = vsel %vm4881, %v5604, %v5628
        %v5645 = vsel %vm4881, %v5605, %v5629
        %v5646 = vsel %vm4881, %v5606, %v5630
        %v5647 = vsel %vm4881, %v5607, %v5631
        %v5648 = vsel %vm4881, %v5608, %v5632
        %v5649 = vsel %vm4881, %v5609, %v5633
        %v5666 = vrot.slane %v5336, 1
        %v5667 = vrot.slane %v5338, 1
        %v5668 = vrot.slane %v5344, 1
        %v5669 = vrot.slane %v5346, 1
        %v5670 = vrot.slane %v5352, 1
        %v5671 = vrot.slane %v5354, 1
        %v5672 = vrot.slane %v5360, 1
        %v5673 = vrot.slane %v5362, 1
        %v5674 = vrot.slane %v5368, 1
        %v5675 = vrot.slane %v5370, 1
        %v5676 = vrot.slane %v5376, 1
        %v5677 = vrot.slane %v5378, 1
        %v5678 = vrot.slane %v5384, 1
        %v5679 = vrot.slane %v5386, 1
        %v5680 = vrot.slane %v5392, 1
        %v5681 = vrot.slane %v5394, 1
        %v5698 = vsel %vm4881, %v5336, %v5666
        %v5699 = vsel %vm4881, %v5338, %v5667
        %v5700 = vsel %vm4881, %v5344, %v5668
        %v5701 = vsel %vm4881, %v5346, %v5669
        %v5702 = vsel %vm4881, %v5352, %v5670
        %v5703 = vsel %vm4881, %v5354, %v5671
        %v5704 = vsel %vm4881, %v5360, %v5672
        %v5705 = vsel %vm4881, %v5362, %v5673
        %v5706 = vsel %vm4881, %v5368, %v5674
        %v5707 = vsel %vm4881, %v5370, %v5675
        %v5708 = vsel %vm4881, %v5376, %v5676
        %v5709 = vsel %vm4881, %v5378, %v5677
        %v5710 = vsel %vm4881, %v5384, %v5678
        %v5711 = vsel %vm4881, %v5386, %v5679
        %v5712 = vsel %vm4881, %v5392, %v5680
        %v5713 = vsel %vm4881, %v5394, %v5681
        %v5714 = vrot.slane %v5336, 2
        %v5715 = vrot.slane %v5338, 2
        %v5716 = vrot.slane %v5344, 2
        %v5717 = vrot.slane %v5346, 2
        %v5718 = vrot.slane %v5352, 2
        %v5719 = vrot.slane %v5354, 2
        %v5720 = vrot.slane %v5360, 2
        %v5721 = vrot.slane %v5362, 2
        %v5722 = vrot.slane %v5368, 2
        %v5723 = vrot.slane %v5370, 2
        %v5724 = vrot.slane %v5376, 2
        %v5725 = vrot.slane %v5378, 2
        %v5726 = vrot.slane %v5384, 2
        %v5727 = vrot.slane %v5386, 2
        %v5728 = vrot.slane %v5392, 2
        %v5729 = vrot.slane %v5394, 2
        %v5746 = vsel %vm4881, %v5666, %v5714
        %v5747 = vsel %vm4881, %v5667, %v5715
        %v5748 = vsel %vm4881, %v5668, %v5716
        %v5749 = vsel %vm4881, %v5669, %v5717
        %v5750 = vsel %vm4881, %v5670, %v5718
        %v5751 = vsel %vm4881, %v5671, %v5719
        %v5752 = vsel %vm4881, %v5672, %v5720
        %v5753 = vsel %vm4881, %v5673, %v5721
        %v5754 = vsel %vm4881, %v5674, %v5722
        %v5755 = vsel %vm4881, %v5675, %v5723
        %v5756 = vsel %vm4881, %v5676, %v5724
        %v5757 = vsel %vm4881, %v5677, %v5725
        %v5758 = vsel %vm4881, %v5678, %v5726
        %v5759 = vsel %vm4881, %v5679, %v5727
        %v5760 = vsel %vm4881, %v5680, %v5728
        %v5761 = vsel %vm4881, %v5681, %v5729
        %v5762 = vrot.slane %v5336, 3
        %v5763 = vrot.slane %v5338, 3
        %v5764 = vrot.slane %v5344, 3
        %v5765 = vrot.slane %v5346, 3
        %v5766 = vrot.slane %v5352, 3
        %v5767 = vrot.slane %v5354, 3
        %v5768 = vrot.slane %v5360, 3
        %v5769 = vrot.slane %v5362, 3
        %v5770 = vrot.slane %v5368, 3
        %v5771 = vrot.slane %v5370, 3
        %v5772 = vrot.slane %v5376, 3
        %v5773 = vrot.slane %v5378, 3
        %v5774 = vrot.slane %v5384, 3
        %v5775 = vrot.slane %v5386, 3
        %v5776 = vrot.slane %v5392, 3
        %v5777 = vrot.slane %v5394, 3
        %v5794 = vsel %vm4881, %v5714, %v5762
        %v5795 = vsel %vm4881, %v5715, %v5763
        %v5796 = vsel %vm4881, %v5716, %v5764
        %v5797 = vsel %vm4881, %v5717, %v5765
        %v5798 = vsel %vm4881, %v5718, %v5766
        %v5799 = vsel %vm4881, %v5719, %v5767
        %v5800 = vsel %vm4881, %v5720, %v5768
        %v5801 = vsel %vm4881, %v5721, %v5769
        %v5802 = vsel %vm4881, %v5722, %v5770
        %v5803 = vsel %vm4881, %v5723, %v5771
        %v5804 = vsel %vm4881, %v5724, %v5772
        %v5805 = vsel %vm4881, %v5725, %v5773
        %v5806 = vsel %vm4881, %v5726, %v5774
        %v5807 = vsel %vm4881, %v5727, %v5775
        %v5808 = vsel %vm4881, %v5728, %v5776
        %v5809 = vsel %vm4881, %v5729, %v5777
        %v5818 = vrot.slane %v5339, 1
        %v5819 = vrot.slane %v5347, 1
        %v5820 = vrot.slane %v5355, 1
        %v5821 = vrot.slane %v5363, 1
        %v5822 = vrot.slane %v5371, 1
        %v5823 = vrot.slane %v5379, 1
        %v5824 = vrot.slane %v5387, 1
        %v5825 = vrot.slane %v5395, 1
        %v5834 = vsel %vm4881, %v5339, %v5818
        %v5835 = vsel %vm4881, %v5347, %v5819
        %v5836 = vsel %vm4881, %v5355, %v5820
        %v5837 = vsel %vm4881, %v5363, %v5821
        %v5838 = vsel %vm4881, %v5371, %v5822
        %v5839 = vsel %vm4881, %v5379, %v5823
        %v5840 = vsel %vm4881, %v5387, %v5824
        %v5841 = vsel %vm4881, %v5395, %v5825
        %v5842 = vrot.slane %v5339, 2
        %v5843 = vrot.slane %v5347, 2
        %v5844 = vrot.slane %v5355, 2
        %v5845 = vrot.slane %v5363, 2
        %v5846 = vrot.slane %v5371, 2
        %v5847 = vrot.slane %v5379, 2
        %v5848 = vrot.slane %v5387, 2
        %v5849 = vrot.slane %v5395, 2
        %v5858 = vsel %vm4881, %v5818, %v5842
        %v5859 = vsel %vm4881, %v5819, %v5843
        %v5860 = vsel %vm4881, %v5820, %v5844
        %v5861 = vsel %vm4881, %v5821, %v5845
        %v5862 = vsel %vm4881, %v5822, %v5846
        %v5863 = vsel %vm4881, %v5823, %v5847
        %v5864 = vsel %vm4881, %v5824, %v5848
        %v5865 = vsel %vm4881, %v5825, %v5849
        %v5866 = vrot.slane %v5339, 3
        %v5867 = vrot.slane %v5347, 3
        %v5868 = vrot.slane %v5355, 3
        %v5869 = vrot.slane %v5363, 3
        %v5870 = vrot.slane %v5371, 3
        %v5871 = vrot.slane %v5379, 3
        %v5872 = vrot.slane %v5387, 3
        %v5873 = vrot.slane %v5395, 3
        %v5882 = vsel %vm4881, %v5842, %v5866
        %v5883 = vsel %vm4881, %v5843, %v5867
        %v5884 = vsel %vm4881, %v5844, %v5868
        %v5885 = vsel %vm4881, %v5845, %v5869
        %v5886 = vsel %vm4881, %v5846, %v5870
        %v5887 = vsel %vm4881, %v5847, %v5871
        %v5888 = vsel %vm4881, %v5848, %v5872
        %v5889 = vsel %vm4881, %v5849, %v5873
        %v5894 = vrot.slane %v5349, 1
        %v5895 = vrot.slane %v5365, 1
        %v5896 = vrot.slane %v5381, 1
        %v5897 = vrot.slane %v5397, 1
        %v5902 = vsel %vm4881, %v5349, %v5894
        %v5903 = vsel %vm4881, %v5365, %v5895
        %v5904 = vsel %vm4881, %v5381, %v5896
        %v5905 = vsel %vm4881, %v5397, %v5897
        %v5906 = vrot.slane %v5349, 2
        %v5907 = vrot.slane %v5365, 2
        %v5908 = vrot.slane %v5381, 2
        %v5909 = vrot.slane %v5397, 2
        %v5914 = vsel %vm4881, %v5894, %v5906
        %v5915 = vsel %vm4881, %v5895, %v5907
        %v5916 = vsel %vm4881, %v5896, %v5908
        %v5917 = vsel %vm4881, %v5897, %v5909
        %v5918 = vrot.slane %v5349, 3
        %v5919 = vrot.slane %v5365, 3
        %v5920 = vrot.slane %v5381, 3
        %v5921 = vrot.slane %v5397, 3
        %v5926 = vsel %vm4881, %v5906, %v5918
        %v5927 = vsel %vm4881, %v5907, %v5919
        %v5928 = vsel %vm4881, %v5908, %v5920
        %v5929 = vsel %vm4881, %v5909, %v5921
        %v5938 = vrot.slane %v5348, 1
        %v5939 = vrot.slane %v5350, 1
        %v5940 = vrot.slane %v5364, 1
        %v5941 = vrot.slane %v5366, 1
        %v5942 = vrot.slane %v5380, 1
        %v5943 = vrot.slane %v5382, 1
        %v5944 = vrot.slane %v5396, 1
        %v5945 = vrot.slane %v5398, 1
        %v5954 = vsel %vm4881, %v5348, %v5938
        %v5955 = vsel %vm4881, %v5350, %v5939
        %v5956 = vsel %vm4881, %v5364, %v5940
        %v5957 = vsel %vm4881, %v5366, %v5941
        %v5958 = vsel %vm4881, %v5380, %v5942
        %v5959 = vsel %vm4881, %v5382, %v5943
        %v5960 = vsel %vm4881, %v5396, %v5944
        %v5961 = vsel %vm4881, %v5398, %v5945
        %v5962 = vrot.slane %v5348, 2
        %v5963 = vrot.slane %v5350, 2
        %v5964 = vrot.slane %v5364, 2
        %v5965 = vrot.slane %v5366, 2
        %v5966 = vrot.slane %v5380, 2
        %v5967 = vrot.slane %v5382, 2
        %v5968 = vrot.slane %v5396, 2
        %v5969 = vrot.slane %v5398, 2
        %v5978 = vsel %vm4881, %v5938, %v5962
        %v5979 = vsel %vm4881, %v5939, %v5963
        %v5980 = vsel %vm4881, %v5940, %v5964
        %v5981 = vsel %vm4881, %v5941, %v5965
        %v5982 = vsel %vm4881, %v5942, %v5966
        %v5983 = vsel %vm4881, %v5943, %v5967
        %v5984 = vsel %vm4881, %v5944, %v5968
        %v5985 = vsel %vm4881, %v5945, %v5969
        %v5986 = vrot.slane %v5348, 3
        %v5987 = vrot.slane %v5350, 3
        %v5988 = vrot.slane %v5364, 3
        %v5989 = vrot.slane %v5366, 3
        %v5990 = vrot.slane %v5380, 3
        %v5991 = vrot.slane %v5382, 3
        %v5992 = vrot.slane %v5396, 3
        %v5993 = vrot.slane %v5398, 3
        %v6002 = vsel %vm4881, %v5962, %v5986
        %v6003 = vsel %vm4881, %v5963, %v5987
        %v6004 = vsel %vm4881, %v5964, %v5988
        %v6005 = vsel %vm4881, %v5965, %v5989
        %v6006 = vsel %vm4881, %v5966, %v5990
        %v6007 = vsel %vm4881, %v5967, %v5991
        %v6008 = vsel %vm4881, %v5968, %v5992
        %v6009 = vsel %vm4881, %v5969, %v5993
        %v6014 = vrot.slane %v5351, 1
        %v6015 = vrot.slane %v5367, 1
        %v6016 = vrot.slane %v5383, 1
        %v6017 = vrot.slane %v5399, 1
        %v6022 = vsel %vm4881, %v5351, %v6014
        %v6023 = vsel %vm4881, %v5367, %v6015
        %v6024 = vsel %vm4881, %v5383, %v6016
        %v6025 = vsel %vm4881, %v5399, %v6017
        %v6026 = vrot.slane %v5351, 2
        %v6027 = vrot.slane %v5367, 2
        %v6028 = vrot.slane %v5383, 2
        %v6029 = vrot.slane %v5399, 2
        %v6034 = vsel %vm4881, %v6014, %v6026
        %v6035 = vsel %vm4881, %v6015, %v6027
        %v6036 = vsel %vm4881, %v6016, %v6028
        %v6037 = vsel %vm4881, %v6017, %v6029
        %v6038 = vrot.slane %v5351, 3
        %v6039 = vrot.slane %v5367, 3
        %v6040 = vrot.slane %v5383, 3
        %v6041 = vrot.slane %v5399, 3
        %v6046 = vsel %vm4881, %v6026, %v6038
        %v6047 = vsel %vm4881, %v6027, %v6039
        %v6048 = vsel %vm4881, %v6028, %v6040
        %v6049 = vsel %vm4881, %v6029, %v6041
        %v6245 = vrot.slane %v5430, 6
        %v6246 = vrot.slane %v5445, 4
        %v6247 = vrot.slane %v5415, 2
        %v6248 = vrot.slane %v5445, 6
        %v6249 = vrot.slane %v5415, 4
        %v6250 = vrot.slane %v5430, 2
        %v6251 = vrot.slane %v5415, 6
        %v6252 = vrot.slane %v5430, 4
        %v6253 = vrot.slane %v5445, 2
        %v6254 = vrot.slane %v5746, 6
        %v6255 = vrot.slane %v5794, 4
        %v6256 = vrot.slane %v5594, 2
        %v6257 = vrot.slane %v5642, 6
        %v6258 = vrot.slane %v5474, 6
        %v6259 = vrot.slane %v5498, 4
        %v6260 = vrot.slane %v5522, 2
        %v6261 = vrot.slane %v5431, 6
        %v6262 = vrot.slane %v5446, 4
        %v6263 = vrot.slane %v5594, 6
        %v6264 = vrot.slane %v5618, 4
        %v6265 = vrot.slane %v5642, 2
        %v6266 = vrot.slane %v5747, 6
        %v6267 = vrot.slane %v5795, 4
        %v6268 = vrot.slane %v5834, 2
        %v6269 = vrot.slane %v5882, 6
        %v6270 = vrot.slane %v5416, 4
        %v6271 = vrot.slane %v5431, 2
        %v6272 = vrot.slane %v5475, 6
        %v6273 = vrot.slane %v5499, 4
        %v6274 = vrot.slane %v5523, 2
        %v6275 = vrot.slane %v5554, 6
        %v6276 = vrot.slane %v5566, 4
        %v6277 = vrot.slane %v5474, 2
        %v6278 = vrot.slane %v5522, 6
        %v6279 = vrot.slane %v5748, 6
        %v6280 = vrot.slane %v5796, 4
        %v6281 = vrot.slane %v5595, 2
        %v6282 = vrot.slane %v5643, 6
        %v6283 = vrot.slane %v5954, 6
        %v6284 = vrot.slane %v5978, 4
        %v6285 = vrot.slane %v6002, 2
        %v6286 = vrot.slane %v5914, 6
        %v6287 = vrot.slane %v5926, 4
        %v6288 = vrot.slane %v5475, 2
        %v6289 = vrot.slane %v5523, 6
        %v6290 = vrot.slane %v5542, 4
        %v6291 = vrot.slane %v5554, 2
        %v6292 = vrot.slane %v5595, 6
        %v6293 = vrot.slane %v5619, 4
        %v6294 = vrot.slane %v5643, 2
        %v6295 = vrot.slane %v5749, 6
        %v6296 = vrot.slane %v5797, 4
        %v6297 = vrot.slane %v5835, 2
        %v6298 = vrot.slane %v5883, 6
        %v6299 = vrot.slane %v5902, 4
        %v6300 = vrot.slane %v5914, 2
        %v6301 = vrot.slane %v5955, 6
        %v6302 = vrot.slane %v5979, 4
        %v6303 = vrot.slane %v6003, 2
        %v6304 = vrot.slane %v6034, 6
        %v6305 = vrot.slane %v6046, 4
        %v6306 = vrot.slane %v5750, 6
        %v6307 = vrot.slane %v5798, 4
        %v6308 = vrot.slane %v5596, 2
        %v6309 = vrot.slane %v5644, 6
        %v6310 = vrot.slane %v5476, 6
        %v6311 = vrot.slane %v5500, 4
        %v6312 = vrot.slane %v5524, 2
        %v6313 = vrot.slane %v5432, 6
        %v6314 = vrot.slane %v5447, 4
        %v6315 = vrot.slane %v5596, 6
        %v6316 = vrot.slane %v5620, 4
        %v6317 = vrot.slane %v5644, 2
        %v6318 = vrot.slane %v5751, 6
        %v6319 = vrot.slane %v5799, 4
        %v6320 = vrot.slane %v5836, 2
        %v6321 = vrot.slane %v5884, 6
        %v6322 = vrot.slane %v5417, 4
        %v6323 = vrot.slane %v5432, 2
        %v6324 = vrot.slane %v5477, 6
        %v6325 = vrot.slane %v5501, 4
        %v6326 = vrot.slane %v5525, 2
        %v6327 = vrot.slane %v5555, 6
        %v6328 = vrot.slane %v5567, 4
        %v6329 = vrot.slane %v5476, 2
        %v6330 = vrot.slane %v5524, 6
        %v6331 = vrot.slane %v5752, 6
        %v6332 = vrot.slane %v5800, 4
        %v6333 = vrot.slane %v5597, 2
        %v6334 = vrot.slane %v5645, 6
        %v6335 = vrot.slane %v5956, 6
        %v6336 = vrot.slane %v5980, 4
        %v6337 = vrot.slane %v6004, 2
        %v6338 = vrot.slane %v5915, 6
        %v6339 = vrot.slane %v5927, 4
        %v6340 = vrot.slane %v5477, 2
        %v6341 = vrot.slane %v5525, 6
        %v6342 = vrot.slane %v5543, 4
        %v6343 = vrot.slane %v5555, 2
        %v6344 = vrot.slane %v5597, 6
        %v6345 = vrot.slane %v5621, 4
        %v6346 = vrot.slane %v5645, 2
        %v6347 = vrot.slane %v5753, 6
        %v6348 = vrot.slane %v5801, 4
        %v6349 = vrot.slane %v5837, 2
        %v6350 = vrot.slane %v5885, 6
        %v6351 = vrot.slane %v5903, 4
        %v6352 = vrot.slane %v5915, 2
        %v6353 = vrot.slane %v5957, 6
        %v6354 = vrot.slane %v5981, 4
        %v6355 = vrot.slane %v6005, 2
        %v6356 = vrot.slane %v6035, 6
        %v6357 = vrot.slane %v6047, 4
        %v6358 = vrot.slane %v5754, 6
        %v6359 = vrot.slane %v5802, 4
        %v6360 = vrot.slane %v5598, 2
        %v6361 = vrot.slane %v5646, 6
        %v6362 = vrot.slane %v5478, 6
        %v6363 = vrot.slane %v5502, 4
        %v6364 = vrot.slane %v5526, 2
        %v6365 = vrot.slane %v5433, 6
        %v6366 = vrot.slane %v5448, 4
        %v6367 = vrot.slane %v5598, 6
        %v6368 = vrot.slane %v5622, 4
        %v6369 = vrot.slane %v5646, 2
        %v6370 = vrot.slane %v5755, 6
        %v6371 = vrot.slane %v5803, 4
        %v6372 = vrot.slane %v5838, 2
        %v6373 = vrot.slane %v5886, 6
        %v6374 = vrot.slane %v5418, 4
        %v6375 = vrot.slane %v5433, 2
        %v6376 = vrot.slane %v5479, 6
        %v6377 = vrot.slane %v5503, 4
        %v6378 = vrot.slane %v5527, 2
        %v6379 = vrot.slane %v5556, 6
        %v6380 = vrot.slane %v5568, 4
        %v6381 = vrot.slane %v5478, 2
        %v6382 = vrot.slane %v5526, 6
        %v6383 = vrot.slane %v5756, 6
        %v6384 = vrot.slane %v5804, 4
        %v6385 = vrot.slane %v5599, 2
        %v6386 = vrot.slane %v5647, 6
        %v6387 = vrot.slane %v5958, 6
        %v6388 = vrot.slane %v5982, 4
        %v6389 = vrot.slane %v6006, 2
        %v6390 = vrot.slane %v5916, 6
        %v6391 = vrot.slane %v5928, 4
        %v6392 = vrot.slane %v5479, 2
        %v6393 = vrot.slane %v5527, 6
        %v6394 = vrot.slane %v5544, 4
        %v6395 = vrot.slane %v5556, 2
        %v6396 = vrot.slane %v5599, 6
        %v6397 = vrot.slane %v5623, 4
        %v6398 = vrot.slane %v5647, 2
        %v6399 = vrot.slane %v5757, 6
        %v6400 = vrot.slane %v5805, 4
        %v6401 = vrot.slane %v5839, 2
        %v6402 = vrot.slane %v5887, 6
        %v6403 = vrot.slane %v5904, 4
        %v6404 = vrot.slane %v5916, 2
        %v6405 = vrot.slane %v5959, 6
        %v6406 = vrot.slane %v5983, 4
        %v6407 = vrot.slane %v6007, 2
        %v6408 = vrot.slane %v6036, 6
        %v6409 = vrot.slane %v6048, 4
        %v6410 = vrot.slane %v5758, 6
        %v6411 = vrot.slane %v5806, 4
        %v6412 = vrot.slane %v5600, 2
        %v6413 = vrot.slane %v5648, 6
        %v6414 = vrot.slane %v5480, 6
        %v6415 = vrot.slane %v5504, 4
        %v6416 = vrot.slane %v5528, 2
        %v6417 = vrot.slane %v5434, 6
        %v6418 = vrot.slane %v5449, 4
        %v6419 = vrot.slane %v5600, 6
        %v6420 = vrot.slane %v5624, 4
        %v6421 = vrot.slane %v5648, 2
        %v6422 = vrot.slane %v5759, 6
        %v6423 = vrot.slane %v5807, 4
        %v6424 = vrot.slane %v5840, 2
        %v6425 = vrot.slane %v5888, 6
        %v6426 = vrot.slane %v5419, 4
        %v6427 = vrot.slane %v5434, 2
        %v6428 = vrot.slane %v5481, 6
        %v6429 = vrot.slane %v5505, 4
        %v6430 = vrot.slane %v5529, 2
        %v6431 = vrot.slane %v5557, 6
        %v6432 = vrot.slane %v5569, 4
        %v6433 = vrot.slane %v5480, 2
        %v6434 = vrot.slane %v5528, 6
        %v6435 = vrot.slane %v5760, 6
        %v6436 = vrot.slane %v5808, 4
        %v6437 = vrot.slane %v5601, 2
        %v6438 = vrot.slane %v5649, 6
        %v6439 = vrot.slane %v5960, 6
        %v6440 = vrot.slane %v5984, 4
        %v6441 = vrot.slane %v6008, 2
        %v6442 = vrot.slane %v5917, 6
        %v6443 = vrot.slane %v5929, 4
        %v6444 = vrot.slane %v5481, 2
        %v6445 = vrot.slane %v5529, 6
        %v6446 = vrot.slane %v5545, 4
        %v6447 = vrot.slane %v5557, 2
        %v6448 = vrot.slane %v5601, 6
        %v6449 = vrot.slane %v5625, 4
        %v6450 = vrot.slane %v5649, 2
        %v6451 = vrot.slane %v5761, 6
        %v6452 = vrot.slane %v5809, 4
        %v6453 = vrot.slane %v5841, 2
        %v6454 = vrot.slane %v5889, 6
        %v6455 = vrot.slane %v5905, 4
        %v6456 = vrot.slane %v5917, 2
        %v6457 = vrot.slane %v5961, 6
        %v6458 = vrot.slane %v5985, 4
        %v6459 = vrot.slane %v6009, 2
        %v6460 = vrot.slane %v6037, 6
        %v6461 = vrot.slane %v6049, 4
        %v6462 = vsel %vm3085, %v5415, %v6245
        %vm6463 = vcmask 1045508
        %v6464 = vsel %vm6463, %v6246, %v6247
        %vm6465 = vcmask 1043456
        %v6466 = vsel %vm6465, %v6462, %v6464
        %v6467 = vsel %vm3085, %v5430, %v6248
        %v6468 = vsel %vm6463, %v6249, %v6250
        %v6469 = vsel %vm6465, %v6467, %v6468
        %v6470 = vsel %vm3085, %v5445, %v6251
        %v6471 = vsel %vm6463, %v6252, %v6253
        %v6472 = vsel %vm6465, %v6470, %v6471
        %v6473 = vsel %vm3085, %v5698, %v6254
        %v6474 = vsel %vm6463, %v6255, %v6256
        %v6475 = vsel %vm6465, %v6473, %v6474
        %v6476 = vsel %vm3085, %v5618, %v6257
        %v6477 = vsel %vm6465, %v6476, %v6468
        %v6478 = vsel %vm3085, %v5445, %v6258
        %v6479 = vsel %vm6463, %v6259, %v6260
        %v6480 = vsel %vm6465, %v6478, %v6479
        %v6481 = vsel %vm3085, %v5416, %v6261
        %v6482 = vsel %vm6465, %v6481, %v6262
        %v6483 = vsel %vm3085, %v5445, %v6263
        %v6484 = vsel %vm6463, %v6264, %v6265
        %v6485 = vsel %vm6465, %v6483, %v6484
        %v6486 = vsel %vm3085, %v5699, %v6266
        %v6487 = vsel %vm6463, %v6267, %v6268
        %v6488 = vsel %vm6465, %v6486, %v6487
        %v6489 = vsel %vm3085, %v5858, %v6269
        %v6490 = vsel %vm6463, %v6270, %v6271
        %v6491 = vsel %vm6465, %v6489, %v6490
        %v6492 = vsel %vm3085, %v5446, %v6272
        %v6493 = vsel %vm6463, %v6273, %v6274
        %v6494 = vsel %vm6465, %v6492, %v6493
        %v6495 = vsel %vm3085, %v5542, %v6275
        %v6496 = vsel %vm6465, %v6495, %v6276
        %v6497 = vsel %vm6463, %v6246, %v6277
        %v6498 = vsel %vm6465, %v6462, %v6497
        %v6499 = vsel %vm3085, %v5498, %v6278
        %v6500 = vsel %vm6465, %v6499, %v6490
        %v6501 = vsel %vm3085, %v5446, %v6251
        %v6502 = vsel %vm6465, %v6501, %v6471
        %v6503 = vsel %vm3085, %v5700, %v6279
        %v6504 = vsel %vm6463, %v6280, %v6281
        %v6505 = vsel %vm6465, %v6503, %v6504
        %v6506 = vsel %vm3085, %v5619, %v6282
        %v6507 = vsel %vm6465, %v6506, %v6468
        %v6508 = vsel %vm3085, %v5445, %v6283
        %v6509 = vsel %vm6463, %v6284, %v6285
        %v6510 = vsel %vm6465, %v6508, %v6509
        %v6511 = vsel %vm3085, %v5902, %v6286
        %v6512 = vsel %vm6465, %v6511, %v6287
        %v6513 = vsel %vm6463, %v6262, %v6288
        %v6514 = vsel %vm6465, %v6481, %v6513
        %v6515 = vsel %vm3085, %v5499, %v6289
        %v6516 = vsel %vm6463, %v6290, %v6291
        %v6517 = vsel %vm6465, %v6515, %v6516
        %v6518 = vsel %vm3085, %v5566, %v6292
        %v6519 = vsel %vm6463, %v6293, %v6294
        %v6520 = vsel %vm6465, %v6518, %v6519
        %v6521 = vsel %vm3085, %v5701, %v6295
        %v6522 = vsel %vm6463, %v6296, %v6297
        %v6523 = vsel %vm6465, %v6521, %v6522
        %v6524 = vsel %vm3085, %v5859, %v6298
        %v6525 = vsel %vm6463, %v6299, %v6300
        %v6526 = vsel %vm6465, %v6524, %v6525
        %v6527 = vsel %vm3085, %v5926, %v6301
        %v6528 = vsel %vm6463, %v6302, %v6303
        %v6529 = vsel %vm6465, %v6527, %v6528
        %v6530 = vsel %vm3085, %v6022, %v6304
        %v6531 = vsel %vm6465, %v6530, %v6305
        %v6532 = vsel %vm3085, %v5702, %v6306
        %v6533 = vsel %vm6463, %v6307, %v6308
        %v6534 = vsel %vm6465, %v6532, %v6533
        %v6535 = vsel %vm3085, %v5620, %v6309
        %v6536 = vsel %vm6465, %v6535, %v6468
        %v6537 = vsel %vm3085, %v5445, %v6310
        %v6538 = vsel %vm6463, %v6311, %v6312
        %v6539 = vsel %vm6465, %v6537, %v6538
        %v6540 = vsel %vm3085, %v5417, %v6313
        %v6541 = vsel %vm6465, %v6540, %v6314
        %v6542 = vsel %vm3085, %v5445, %v6315
        %v6543 = vsel %vm6463, %v6316, %v6317
        %v6544 = vsel %vm6465, %v6542, %v6543
        %v6545 = vsel %vm3085, %v5703, %v6318
        %v6546 = vsel %vm6463, %v6319, %v6320
        %v6547 = vsel %vm6465, %v6545, %v6546
        %v6548 = vsel %vm3085, %v5860, %v6321
        %v6549 = vsel %vm6463, %v6322, %v6323
        %v6550 = vsel %vm6465, %v6548, %v6549
        %v6551 = vsel %vm3085, %v5447, %v6324
        %v6552 = vsel %vm6463, %v6325, %v6326
        %v6553 = vsel %vm6465, %v6551, %v6552
        %v6554 = vsel %vm3085, %v5543, %v6327
        %v6555 = vsel %vm6465, %v6554, %v6328
        %v6556 = vsel %vm6463, %v6246, %v6329
        %v6557 = vsel %vm6465, %v6462, %v6556
        %v6558 = vsel %vm3085, %v5500, %v6330
        %v6559 = vsel %vm6465, %v6558, %v6549
        %v6560 = vsel %vm3085, %v5447, %v6251
        %v6561 = vsel %vm6465, %v6560, %v6471
        %v6562 = vsel %vm3085, %v5704, %v6331
        %v6563 = vsel %vm6463, %v6332, %v6333
        %v6564 = vsel %vm6465, %v6562, %v6563
        %v6565 = vsel %vm3085, %v5621, %v6334
        %v6566 = vsel %vm6465, %v6565, %v6468
        %v6567 = vsel %vm3085, %v5445, %v6335
        %v6568 = vsel %vm6463, %v6336, %v6337
        %v6569 = vsel %vm6465, %v6567, %v6568
        %v6570 = vsel %vm3085, %v5903, %v6338
        %v6571 = vsel %vm6465, %v6570, %v6339
        %v6572 = vsel %vm6463, %v6314, %v6340
        %v6573 = vsel %vm6465, %v6540, %v6572
        %v6574 = vsel %vm3085, %v5501, %v6341
        %v6575 = vsel %vm6463, %v6342, %v6343
        %v6576 = vsel %vm6465, %v6574, %v6575
        %v6577 = vsel %vm3085, %v5567, %v6344
        %v6578 = vsel %vm6463, %v6345, %v6346
        %v6579 = vsel %vm6465, %v6577, %v6578
        %v6580 = vsel %vm3085, %v5705, %v6347
        %v6581 = vsel %vm6463, %v6348, %v6349
        %v6582 = vsel %vm6465, %v6580, %v6581
        %v6583 = vsel %vm3085, %v5861, %v6350
        %v6584 = vsel %vm6463, %v6351, %v6352
        %v6585 = vsel %vm6465, %v6583, %v6584
        %v6586 = vsel %vm3085, %v5927, %v6353
        %v6587 = vsel %vm6463, %v6354, %v6355
        %v6588 = vsel %vm6465, %v6586, %v6587
        %v6589 = vsel %vm3085, %v6023, %v6356
        %v6590 = vsel %vm6465, %v6589, %v6357
        %v6591 = vsel %vm3085, %v5706, %v6358
        %v6592 = vsel %vm6463, %v6359, %v6360
        %v6593 = vsel %vm6465, %v6591, %v6592
        %v6594 = vsel %vm3085, %v5622, %v6361
        %v6595 = vsel %vm6465, %v6594, %v6468
        %v6596 = vsel %vm3085, %v5445, %v6362
        %v6597 = vsel %vm6463, %v6363, %v6364
        %v6598 = vsel %vm6465, %v6596, %v6597
        %v6599 = vsel %vm3085, %v5418, %v6365
        %v6600 = vsel %vm6465, %v6599, %v6366
        %v6601 = vsel %vm3085, %v5445, %v6367
        %v6602 = vsel %vm6463, %v6368, %v6369
        %v6603 = vsel %vm6465, %v6601, %v6602
        %v6604 = vsel %vm3085, %v5707, %v6370
        %v6605 = vsel %vm6463, %v6371, %v6372
        %v6606 = vsel %vm6465, %v6604, %v6605
        %v6607 = vsel %vm3085, %v5862, %v6373
        %v6608 = vsel %vm6463, %v6374, %v6375
        %v6609 = vsel %vm6465, %v6607, %v6608
        %v6610 = vsel %vm3085, %v5448, %v6376
        %v6611 = vsel %vm6463, %v6377, %v6378
        %v6612 = vsel %vm6465, %v6610, %v6611
        %v6613 = vsel %vm3085, %v5544, %v6379
        %v6614 = vsel %vm6465, %v6613, %v6380
        %v6615 = vsel %vm6463, %v6246, %v6381
        %v6616 = vsel %vm6465, %v6462, %v6615
        %v6617 = vsel %vm3085, %v5502, %v6382
        %v6618 = vsel %vm6465, %v6617, %v6608
        %v6619 = vsel %vm3085, %v5448, %v6251
        %v6620 = vsel %vm6465, %v6619, %v6471
        %v6621 = vsel %vm3085, %v5708, %v6383
        %v6622 = vsel %vm6463, %v6384, %v6385
        %v6623 = vsel %vm6465, %v6621, %v6622
        %v6624 = vsel %vm3085, %v5623, %v6386
        %v6625 = vsel %vm6465, %v6624, %v6468
        %v6626 = vsel %vm3085, %v5445, %v6387
        %v6627 = vsel %vm6463, %v6388, %v6389
        %v6628 = vsel %vm6465, %v6626, %v6627
        %v6629 = vsel %vm3085, %v5904, %v6390
        %v6630 = vsel %vm6465, %v6629, %v6391
        %v6631 = vsel %vm6463, %v6366, %v6392
        %v6632 = vsel %vm6465, %v6599, %v6631
        %v6633 = vsel %vm3085, %v5503, %v6393
        %v6634 = vsel %vm6463, %v6394, %v6395
        %v6635 = vsel %vm6465, %v6633, %v6634
        %v6636 = vsel %vm3085, %v5568, %v6396
        %v6637 = vsel %vm6463, %v6397, %v6398
        %v6638 = vsel %vm6465, %v6636, %v6637
        %v6639 = vsel %vm3085, %v5709, %v6399
        %v6640 = vsel %vm6463, %v6400, %v6401
        %v6641 = vsel %vm6465, %v6639, %v6640
        %v6642 = vsel %vm3085, %v5863, %v6402
        %v6643 = vsel %vm6463, %v6403, %v6404
        %v6644 = vsel %vm6465, %v6642, %v6643
        %v6645 = vsel %vm3085, %v5928, %v6405
        %v6646 = vsel %vm6463, %v6406, %v6407
        %v6647 = vsel %vm6465, %v6645, %v6646
        %v6648 = vsel %vm3085, %v6024, %v6408
        %v6649 = vsel %vm6465, %v6648, %v6409
        %v6650 = vsel %vm3085, %v5710, %v6410
        %v6651 = vsel %vm6463, %v6411, %v6412
        %v6652 = vsel %vm6465, %v6650, %v6651
        %v6653 = vsel %vm3085, %v5624, %v6413
        %v6654 = vsel %vm6465, %v6653, %v6468
        %v6655 = vsel %vm3085, %v5445, %v6414
        %v6656 = vsel %vm6463, %v6415, %v6416
        %v6657 = vsel %vm6465, %v6655, %v6656
        %v6658 = vsel %vm3085, %v5419, %v6417
        %v6659 = vsel %vm6465, %v6658, %v6418
        %v6660 = vsel %vm3085, %v5445, %v6419
        %v6661 = vsel %vm6463, %v6420, %v6421
        %v6662 = vsel %vm6465, %v6660, %v6661
        %v6663 = vsel %vm3085, %v5711, %v6422
        %v6664 = vsel %vm6463, %v6423, %v6424
        %v6665 = vsel %vm6465, %v6663, %v6664
        %v6666 = vsel %vm3085, %v5864, %v6425
        %v6667 = vsel %vm6463, %v6426, %v6427
        %v6668 = vsel %vm6465, %v6666, %v6667
        %v6669 = vsel %vm3085, %v5449, %v6428
        %v6670 = vsel %vm6463, %v6429, %v6430
        %v6671 = vsel %vm6465, %v6669, %v6670
        %v6672 = vsel %vm3085, %v5545, %v6431
        %v6673 = vsel %vm6465, %v6672, %v6432
        %v6674 = vsel %vm6463, %v6246, %v6433
        %v6675 = vsel %vm6465, %v6462, %v6674
        %v6676 = vsel %vm3085, %v5504, %v6434
        %v6677 = vsel %vm6465, %v6676, %v6667
        %v6678 = vsel %vm3085, %v5449, %v6251
        %v6679 = vsel %vm6465, %v6678, %v6471
        %v6680 = vsel %vm3085, %v5712, %v6435
        %v6681 = vsel %vm6463, %v6436, %v6437
        %v6682 = vsel %vm6465, %v6680, %v6681
        %v6683 = vsel %vm3085, %v5625, %v6438
        %v6684 = vsel %vm6465, %v6683, %v6468
        %v6685 = vsel %vm3085, %v5445, %v6439
        %v6686 = vsel %vm6463, %v6440, %v6441
        %v6687 = vsel %vm6465, %v6685, %v6686
        %v6688 = vsel %vm3085, %v5905, %v6442
        %v6689 = vsel %vm6465, %v6688, %v6443
        %v6690 = vsel %vm6463, %v6418, %v6444
        %v6691 = vsel %vm6465, %v6658, %v6690
        %v6692 = vsel %vm3085, %v5505, %v6445
        %v6693 = vsel %vm6463, %v6446, %v6447
        %v6694 = vsel %vm6465, %v6692, %v6693
        %v6695 = vsel %vm3085, %v5569, %v6448
        %v6696 = vsel %vm6463, %v6449, %v6450
        %v6697 = vsel %vm6465, %v6695, %v6696
        %v6698 = vsel %vm3085, %v5713, %v6451
        %v6699 = vsel %vm6463, %v6452, %v6453
        %v6700 = vsel %vm6465, %v6698, %v6699
        %v6701 = vsel %vm3085, %v5865, %v6454
        %v6702 = vsel %vm6463, %v6455, %v6456
        %v6703 = vsel %vm6465, %v6701, %v6702
        %v6704 = vsel %vm3085, %v5929, %v6457
        %v6705 = vsel %vm6463, %v6458, %v6459
        %v6706 = vsel %vm6465, %v6704, %v6705
        %v6707 = vsel %vm3085, %v6025, %v6460
        %v6708 = vsel %vm6465, %v6707, %v6461
        %6709 = vst [vmem:[#allocation1] ss:$4 sm:$0xff] %v6466
        %s6710 = scalar_lea.vmem [#allocation1], 1
        %6711 = vst [vmem:[%s6710] ss:$4 sm:$0xff] %v6466
        %s6712 = scalar_lea.vmem [#allocation1], 2
        %6713 = vst [vmem:[%s6712] ss:$4 sm:$0xff] %v6498
        %s6714 = scalar_lea.vmem [#allocation1], 3
        %6715 = vst [vmem:[%s6714] ss:$4 sm:$0xff] %v6514
        %s6716 = scalar_lea.vmem [#allocation1], 32
        %6717 = vst [vmem:[%s6716] ss:$4 sm:$0xff] %v6469
        %s6718 = scalar_lea.vmem [#allocation1], 33
        %6719 = vst [vmem:[%s6718] ss:$4 sm:$0xff] %v6469
        %s6720 = scalar_lea.vmem [#allocation1], 34
        %6721 = vst [vmem:[%s6720] ss:$4 sm:$0xff] %v6500
        %s6722 = scalar_lea.vmem [#allocation1], 35
        %6723 = vst [vmem:[%s6722] ss:$4 sm:$0xff] %v6517
        %v6724 = vld.sshfl [vmem:[#allocation1] sm:$0xff pattern:$0x73625140]
        %v6725 = vld.sshfl [vmem:[#allocation1 + $0x8] sm:$0xff pattern:$0x73625140]
        %v6726 = vld.sshfl [vmem:[#allocation1 + $0x10] sm:$0xff pattern:$0x73625140]
        %v6727 = vld.sshfl [vmem:[#allocation1 + $0x18] sm:$0xff pattern:$0x73625140]
        %v6728 = vld.sshfl [vmem:[#allocation1 + $0x20] sm:$0xff pattern:$0x73625140]
        %v6729 = vld.sshfl [vmem:[#allocation1 + $0x28] sm:$0xff pattern:$0x73625140]
        %v6730 = vld.sshfl [vmem:[#allocation1 + $0x30] sm:$0xff pattern:$0x73625140]
        %v6731 = vld.sshfl [vmem:[#allocation1 + $0x38] sm:$0xff pattern:$0x73625140]
        %6732 = vst [vmem:[#allocation1] ss:$4 sm:$0xff] %v6472
        %6733 = vst [vmem:[%s6710] ss:$4 sm:$0xff] %v6485
        %6734 = vst [vmem:[%s6712] ss:$4 sm:$0xff] %v6502
        %6735 = vst [vmem:[%s6714] ss:$4 sm:$0xff] %v6520
        %6736 = vst [vmem:[%s6716] ss:$4 sm:$0xff] %v6475
        %6737 = vst [vmem:[%s6718] ss:$4 sm:$0xff] %v6488
        %6738 = vst [vmem:[%s6720] ss:$4 sm:$0xff] %v6505
        %6739 = vst [vmem:[%s6722] ss:$4 sm:$0xff] %v6523
        %v6740 = vld.sshfl [vmem:[#allocation1] sm:$0xff pattern:$0x73625140]
        %v6741 = vld.sshfl [vmem:[#allocation1 + $0x8] sm:$0xff pattern:$0x73625140]
        %v6742 = vld.sshfl [vmem:[#allocation1 + $0x10] sm:$0xff pattern:$0x73625140]
        %v6743 = vld.sshfl [vmem:[#allocation1 + $0x18] sm:$0xff pattern:$0x73625140]
        %v6744 = vld.sshfl [vmem:[#allocation1 + $0x20] sm:$0xff pattern:$0x73625140]
        %v6745 = vld.sshfl [vmem:[#allocation1 + $0x28] sm:$0xff pattern:$0x73625140]
        %v6746 = vld.sshfl [vmem:[#allocation1 + $0x30] sm:$0xff pattern:$0x73625140]
        %v6747 = vld.sshfl [vmem:[#allocation1 + $0x38] sm:$0xff pattern:$0x73625140]
        %6748 = vst [vmem:[#allocation1] ss:$4 sm:$0xff] %v6477
        %6749 = vst [vmem:[%s6710] ss:$4 sm:$0xff] %v6491
        %6750 = vst [vmem:[%s6712] ss:$4 sm:$0xff] %v6507
        %6751 = vst [vmem:[%s6714] ss:$4 sm:$0xff] %v6526
        %6752 = vst [vmem:[%s6716] ss:$4 sm:$0xff] %v6480
        %6753 = vst [vmem:[%s6718] ss:$4 sm:$0xff] %v6494
        %6754 = vst [vmem:[%s6720] ss:$4 sm:$0xff] %v6510
        %6755 = vst [vmem:[%s6722] ss:$4 sm:$0xff] %v6529
        %v6756 = vld.sshfl [vmem:[#allocation1] sm:$0xff pattern:$0x73625140]
        %v6757 = vld.sshfl [vmem:[#allocation1 + $0x8] sm:$0xff pattern:$0x73625140]
        %v6758 = vld.sshfl [vmem:[#allocation1 + $0x10] sm:$0xff pattern:$0x73625140]
        %v6759 = vld.sshfl [vmem:[#allocation1 + $0x18] sm:$0xff pattern:$0x73625140]
        %v6760 = vld.sshfl [vmem:[#allocation1 + $0x20] sm:$0xff pattern:$0x73625140]
        %v6761 = vld.sshfl [vmem:[#allocation1 + $0x28] sm:$0xff pattern:$0x73625140]
        %v6762 = vld.sshfl [vmem:[#allocation1 + $0x30] sm:$0xff pattern:$0x73625140]
        %v6763 = vld.sshfl [vmem:[#allocation1 + $0x38] sm:$0xff pattern:$0x73625140]
        %6764 = vst [vmem:[#allocation1] ss:$4 sm:$0xff] %v6482
        %6765 = vst [vmem:[%s6710] ss:$4 sm:$0xff] %v6496
        %6766 = vst [vmem:[%s6712] ss:$4 sm:$0xff] %v6512
        %6767 = vst [vmem:[%s6714] ss:$4 sm:$0xff] %v6531
        %6768 = vst [vmem:[%s6716] ss:$4 sm:$0xff] %v6466
        %6769 = vst [vmem:[%s6718] ss:$4 sm:$0xff] %v6466
        %6770 = vst [vmem:[%s6720] ss:$4 sm:$0xff] %v6557
        %6771 = vst [vmem:[%s6722] ss:$4 sm:$0xff] %v6573
        %v6772 = vld.sshfl [vmem:[#allocation1] sm:$0xff pattern:$0x73625140]
        %v6773 = vld.sshfl [vmem:[#allocation1 + $0x8] sm:$0xff pattern:$0x73625140]
        %v6774 = vld.sshfl [vmem:[#allocation1 + $0x10] sm:$0xff pattern:$0x73625140]
        %v6775 = vld.sshfl [vmem:[#allocation1 + $0x20] sm:$0xff pattern:$0x73625140]
        %v6776 = vld.sshfl [vmem:[#allocation1 + $0x28] sm:$0xff pattern:$0x73625140]
        %v6777 = vld.sshfl [vmem:[#allocation1 + $0x30] sm:$0xff pattern:$0x73625140]
        %v6778 = vld.sshfl [vmem:[#allocation1 + $0x38] sm:$0xff pattern:$0x73625140]
        %6779 = vst [vmem:[#allocation1] ss:$4 sm:$0xff] %v6469
        %6780 = vst [vmem:[%s6710] ss:$4 sm:$0xff] %v6469
        %6781 = vst [vmem:[%s6712] ss:$4 sm:$0xff] %v6559
        %6782 = vst [vmem:[%s6714] ss:$4 sm:$0xff] %v6576
        %6783 = vst [vmem:[%s6716] ss:$4 sm:$0xff] %v6472
        %6784 = vst [vmem:[%s6718] ss:$4 sm:$0xff] %v6544
        %6785 = vst [vmem:[%s6720] ss:$4 sm:$0xff] %v6561
        %6786 = vst [vmem:[%s6722] ss:$4 sm:$0xff] %v6579
        %v6787 = vld.sshfl [vmem:[#allocation1] sm:$0xff pattern:$0x73625140]
        %v6788 = vld.sshfl [vmem:[#allocation1 + $0x8] sm:$0xff pattern:$0x73625140]
        %v6789 = vld.sshfl [vmem:[#allocation1 + $0x10] sm:$0xff pattern:$0x73625140]
        %v6790 = vld.sshfl [vmem:[#allocation1 + $0x18] sm:$0xff pattern:$0x73625140]
        %v6791 = vld.sshfl [vmem:[#allocation1 + $0x20] sm:$0xff pattern:$0x73625140]
        %v6792 = vld.sshfl [vmem:[#allocation1 + $0x28] sm:$0xff pattern:$0x73625140]
        %v6793 = vld.sshfl [vmem:[#allocation1 + $0x30] sm:$0xff pattern:$0x73625140]
        %v6794 = vld.sshfl [vmem:[#allocation1 + $0x38] sm:$0xff pattern:$0x73625140]
        %6795 = vst [vmem:[#allocation1] ss:$4 sm:$0xff] %v6534
        %6796 = vst [vmem:[%s6710] ss:$4 sm:$0xff] %v6547
        %6797 = vst [vmem:[%s6712] ss:$4 sm:$0xff] %v6564
        %6798 = vst [vmem:[%s6714] ss:$4 sm:$0xff] %v6582
        %6799 = vst [vmem:[%s6716] ss:$4 sm:$0xff] %v6536
        %6800 = vst [vmem:[%s6718] ss:$4 sm:$0xff] %v6550
        %6801 = vst [vmem:[%s6720] ss:$4 sm:$0xff] %v6566
        %6802 = vst [vmem:[%s6722] ss:$4 sm:$0xff] %v6585
        %v6803 = vld.sshfl [vmem:[#allocation1] sm:$0xff pattern:$0x73625140]
        %v6804 = vld.sshfl [vmem:[#allocation1 + $0x8] sm:$0xff pattern:$0x73625140]
        %v6805 = vld.sshfl [vmem:[#allocation1 + $0x10] sm:$0xff pattern:$0x73625140]
        %v6806 = vld.sshfl [vmem:[#allocation1 + $0x18] sm:$0xff pattern:$0x73625140]
        %v6807 = vld.sshfl [vmem:[#allocation1 + $0x20] sm:$0xff pattern:$0x73625140]
        %v6808 = vld.sshfl [vmem:[#allocation1 + $0x28] sm:$0xff pattern:$0x73625140]
        %v6809 = vld.sshfl [vmem:[#allocation1 + $0x30] sm:$0xff pattern:$0x73625140]
        %v6810 = vld.sshfl [vmem:[#allocation1 + $0x38] sm:$0xff pattern:$0x73625140]
        %6811 = vst [vmem:[#allocation1] ss:$4 sm:$0xff] %v6539
        %6812 = vst [vmem:[%s6710] ss:$4 sm:$0xff] %v6553
        %6813 = vst [vmem:[%s6712] ss:$4 sm:$0xff] %v6569
        %6814 = vst [vmem:[%s6714] ss:$4 sm:$0xff] %v6588
        %6815 = vst [vmem:[%s6716] ss:$4 sm:$0xff] %v6541
        %6816 = vst [vmem:[%s6718] ss:$4 sm:$0xff] %v6555
        %6817 = vst [vmem:[%s6720] ss:$4 sm:$0xff] %v6571
        %6818 = vst [vmem:[%s6722] ss:$4 sm:$0xff] %v6590
        %v6819 = vld.sshfl [vmem:[#allocation1] sm:$0xff pattern:$0x73625140]
        %v6820 = vld.sshfl [vmem:[#allocation1 + $0x8] sm:$0xff pattern:$0x73625140]
        %v6821 = vld.sshfl [vmem:[#allocation1 + $0x10] sm:$0xff pattern:$0x73625140]
        %v6822 = vld.sshfl [vmem:[#allocation1 + $0x18] sm:$0xff pattern:$0x73625140]
        %v6823 = vld.sshfl [vmem:[#allocation1 + $0x20] sm:$0xff pattern:$0x73625140]
        %v6824 = vld.sshfl [vmem:[#allocation1 + $0x28] sm:$0xff pattern:$0x73625140]
        %v6825 = vld.sshfl [vmem:[#allocation1 + $0x30] sm:$0xff pattern:$0x73625140]
        %6826 = vst [vmem:[#allocation1] ss:$4 sm:$0xff] %v6466
        %6827 = vst [vmem:[%s6710] ss:$4 sm:$0xff] %v6466
        %6828 = vst [vmem:[%s6712] ss:$4 sm:$0xff] %v6616
        %6829 = vst [vmem:[%s6714] ss:$4 sm:$0xff] %v6632
        %6830 = vst [vmem:[%s6716] ss:$4 sm:$0xff] %v6469
        %6831 = vst [vmem:[%s6718] ss:$4 sm:$0xff] %v6469
        %6832 = vst [vmem:[%s6720] ss:$4 sm:$0xff] %v6618
        %6833 = vst [vmem:[%s6722] ss:$4 sm:$0xff] %v6635
        %v6834 = vld.sshfl [vmem:[#allocation1] sm:$0xff pattern:$0x73625140]
        %v6835 = vld.sshfl [vmem:[#allocation1 + $0x8] sm:$0xff pattern:$0x73625140]
        %v6836 = vld.sshfl [vmem:[#allocation1 + $0x10] sm:$0xff pattern:$0x73625140]
        %v6837 = vld.sshfl [vmem:[#allocation1 + $0x18] sm:$0xff pattern:$0x73625140]
        %v6838 = vld.sshfl [vmem:[#allocation1 + $0x20] sm:$0xff pattern:$0x73625140]
        %v6839 = vld.sshfl [vmem:[#allocation1 + $0x28] sm:$0xff pattern:$0x73625140]
        %v6840 = vld.sshfl [vmem:[#allocation1 + $0x30] sm:$0xff pattern:$0x73625140]
        %v6841 = vld.sshfl [vmem:[#allocation1 + $0x38] sm:$0xff pattern:$0x73625140]
        %6842 = vst [vmem:[#allocation1] ss:$4 sm:$0xff] %v6472
        %6843 = vst [vmem:[%s6710] ss:$4 sm:$0xff] %v6603
        %6844 = vst [vmem:[%s6712] ss:$4 sm:$0xff] %v6620
        %6845 = vst [vmem:[%s6714] ss:$4 sm:$0xff] %v6638
        %6846 = vst [vmem:[%s6716] ss:$4 sm:$0xff] %v6593
        %6847 = vst [vmem:[%s6718] ss:$4 sm:$0xff] %v6606
        %6848 = vst [vmem:[%s6720] ss:$4 sm:$0xff] %v6623
        %6849 = vst [vmem:[%s6722] ss:$4 sm:$0xff] %v6641
        %v6850 = vld.sshfl [vmem:[#allocation1] sm:$0xff pattern:$0x73625140]
        %v6851 = vld.sshfl [vmem:[#allocation1 + $0x8] sm:$0xff pattern:$0x73625140]
        %v6852 = vld.sshfl [vmem:[#allocation1 + $0x10] sm:$0xff pattern:$0x73625140]
        %v6853 = vld.sshfl [vmem:[#allocation1 + $0x18] sm:$0xff pattern:$0x73625140]
        %v6854 = vld.sshfl [vmem:[#allocation1 + $0x20] sm:$0xff pattern:$0x73625140]
        %v6855 = vld.sshfl [vmem:[#allocation1 + $0x28] sm:$0xff pattern:$0x73625140]
        %v6856 = vld.sshfl [vmem:[#allocation1 + $0x30] sm:$0xff pattern:$0x73625140]
        %v6857 = vld.sshfl [vmem:[#allocation1 + $0x38] sm:$0xff pattern:$0x73625140]
        %6858 = vst [vmem:[#allocation1] ss:$4 sm:$0xff] %v6595
        %6859 = vst [vmem:[%s6710] ss:$4 sm:$0xff] %v6609
        %6860 = vst [vmem:[%s6712] ss:$4 sm:$0xff] %v6625
        %6861 = vst [vmem:[%s6714] ss:$4 sm:$0xff] %v6644
        %6862 = vst [vmem:[%s6716] ss:$4 sm:$0xff] %v6598
        %6863 = vst [vmem:[%s6718] ss:$4 sm:$0xff] %v6612
        %6864 = vst [vmem:[%s6720] ss:$4 sm:$0xff] %v6628
        %6865 = vst [vmem:[%s6722] ss:$4 sm:$0xff] %v6647
        %v6866 = vld.sshfl [vmem:[#allocation1] sm:$0xff pattern:$0x73625140]
        %v6867 = vld.sshfl [vmem:[#allocation1 + $0x8] sm:$0xff pattern:$0x73625140]
        %v6868 = vld.sshfl [vmem:[#allocation1 + $0x10] sm:$0xff pattern:$0x73625140]
        %v6869 = vld.sshfl [vmem:[#allocation1 + $0x18] sm:$0xff pattern:$0x73625140]
        %v6870 = vld.sshfl [vmem:[#allocation1 + $0x20] sm:$0xff pattern:$0x73625140]
        %v6871 = vld.sshfl [vmem:[#allocation1 + $0x28] sm:$0xff pattern:$0x73625140]
        %v6872 = vld.sshfl [vmem:[#allocation1 + $0x30] sm:$0xff pattern:$0x73625140]
        %v6873 = vld.sshfl [vmem:[#allocation1 + $0x38] sm:$0xff pattern:$0x73625140]
        %6874 = vst [vmem:[#allocation1] ss:$4 sm:$0xff] %v6600
        %6875 = vst [vmem:[%s6710] ss:$4 sm:$0xff] %v6614
        %6876 = vst [vmem:[%s6712] ss:$4 sm:$0xff] %v6630
        %6877 = vst [vmem:[%s6714] ss:$4 sm:$0xff] %v6649
        %6878 = vst [vmem:[%s6716] ss:$4 sm:$0xff] %v6466
        %6879 = vst [vmem:[%s6718] ss:$4 sm:$0xff] %v6466
        %6880 = vst [vmem:[%s6720] ss:$4 sm:$0xff] %v6675
        %6881 = vst [vmem:[%s6722] ss:$4 sm:$0xff] %v6691
        %v6882 = vld.sshfl [vmem:[#allocation1] sm:$0xff pattern:$0x73625140]
        %v6883 = vld.sshfl [vmem:[#allocation1 + $0x8] sm:$0xff pattern:$0x73625140]
        %v6884 = vld.sshfl [vmem:[#allocation1 + $0x10] sm:$0xff pattern:$0x73625140]
        %v6885 = vld.sshfl [vmem:[#allocation1 + $0x20] sm:$0xff pattern:$0x73625140]
        %v6886 = vld.sshfl [vmem:[#allocation1 + $0x28] sm:$0xff pattern:$0x73625140]
        %v6887 = vld.sshfl [vmem:[#allocation1 + $0x30] sm:$0xff pattern:$0x73625140]
        %v6888 = vld.sshfl [vmem:[#allocation1 + $0x38] sm:$0xff pattern:$0x73625140]
        %6889 = vst [vmem:[#allocation1] ss:$4 sm:$0xff] %v6469
        %6890 = vst [vmem:[%s6710] ss:$4 sm:$0xff] %v6469
        %6891 = vst [vmem:[%s6712] ss:$4 sm:$0xff] %v6677
        %6892 = vst [vmem:[%s6714] ss:$4 sm:$0xff] %v6694
        %6893 = vst [vmem:[%s6716] ss:$4 sm:$0xff] %v6472
        %6894 = vst [vmem:[%s6718] ss:$4 sm:$0xff] %v6662
        %6895 = vst [vmem:[%s6720] ss:$4 sm:$0xff] %v6679
        %6896 = vst [vmem:[%s6722] ss:$4 sm:$0xff] %v6697
        %v6897 = vld.sshfl [vmem:[#allocation1] sm:$0xff pattern:$0x73625140]
        %v6898 = vld.sshfl [vmem:[#allocation1 + $0x8] sm:$0xff pattern:$0x73625140]
        %v6899 = vld.sshfl [vmem:[#allocation1 + $0x10] sm:$0xff pattern:$0x73625140]
        %v6900 = vld.sshfl [vmem:[#allocation1 + $0x18] sm:$0xff pattern:$0x73625140]
        %v6901 = vld.sshfl [vmem:[#allocation1 + $0x20] sm:$0xff pattern:$0x73625140]
        %v6902 = vld.sshfl [vmem:[#allocation1 + $0x28] sm:$0xff pattern:$0x73625140]
        %v6903 = vld.sshfl [vmem:[#allocation1 + $0x30] sm:$0xff pattern:$0x73625140]
        %v6904 = vld.sshfl [vmem:[#allocation1 + $0x38] sm:$0xff pattern:$0x73625140]
        %6905 = vst [vmem:[#allocation1] ss:$4 sm:$0xff] %v6652
        %6906 = vst [vmem:[%s6710] ss:$4 sm:$0xff] %v6665
        %6907 = vst [vmem:[%s6712] ss:$4 sm:$0xff] %v6682
        %6908 = vst [vmem:[%s6714] ss:$4 sm:$0xff] %v6700
        %6909 = vst [vmem:[%s6716] ss:$4 sm:$0xff] %v6654
        %6910 = vst [vmem:[%s6718] ss:$4 sm:$0xff] %v6668
        %6911 = vst [vmem:[%s6720] ss:$4 sm:$0xff] %v6684
        %6912 = vst [vmem:[%s6722] ss:$4 sm:$0xff] %v6703
        %v6913 = vld.sshfl [vmem:[#allocation1] sm:$0xff pattern:$0x73625140]
        %v6914 = vld.sshfl [vmem:[#allocation1 + $0x8] sm:$0xff pattern:$0x73625140]
        %v6915 = vld.sshfl [vmem:[#allocation1 + $0x10] sm:$0xff pattern:$0x73625140]
        %v6916 = vld.sshfl [vmem:[#allocation1 + $0x18] sm:$0xff pattern:$0x73625140]
        %v6917 = vld.sshfl [vmem:[#allocation1 + $0x20] sm:$0xff pattern:$0x73625140]
        %v6918 = vld.sshfl [vmem:[#allocation1 + $0x28] sm:$0xff pattern:$0x73625140]
        %v6919 = vld.sshfl [vmem:[#allocation1 + $0x30] sm:$0xff pattern:$0x73625140]
        %v6920 = vld.sshfl [vmem:[#allocation1 + $0x38] sm:$0xff pattern:$0x73625140]
        %6921 = vst [vmem:[#allocation1] ss:$4 sm:$0xff] %v6657
        %6922 = vst [vmem:[%s6710] ss:$4 sm:$0xff] %v6671
        %6923 = vst [vmem:[%s6712] ss:$4 sm:$0xff] %v6687
        %6924 = vst [vmem:[%s6714] ss:$4 sm:$0xff] %v6706
        %6925 = vst [vmem:[%s6716] ss:$4 sm:$0xff] %v6659
        %6926 = vst [vmem:[%s6718] ss:$4 sm:$0xff] %v6673
        %6927 = vst [vmem:[%s6720] ss:$4 sm:$0xff] %v6689
        %6928 = vst [vmem:[%s6722] ss:$4 sm:$0xff] %v6708
        %v6929 = vld.sshfl [vmem:[#allocation1] sm:$0xff pattern:$0x73625140]
        %v6930 = vld.sshfl [vmem:[#allocation1 + $0x8] sm:$0xff pattern:$0x73625140]
        %v6931 = vld.sshfl [vmem:[#allocation1 + $0x10] sm:$0xff pattern:$0x73625140]
        %v6932 = vld.sshfl [vmem:[#allocation1 + $0x18] sm:$0xff pattern:$0x73625140]
        %v6933 = vld.sshfl [vmem:[#allocation1 + $0x20] sm:$0xff pattern:$0x73625140]
        %v6934 = vld.sshfl [vmem:[#allocation1 + $0x28] sm:$0xff pattern:$0x73625140]
        %v6935 = vld.sshfl [vmem:[#allocation1 + $0x30] sm:$0xff pattern:$0x73625140]
        %v7044 = vpack.c.bf16 %v6775, %v6724
        %v7045 = vpack.c.bf16 %v6776, %v6725
        %v7046 = vpack.c.bf16 %v6777, %v6726
        %v7047 = vpack.c.bf16 %v6778, %v6727
        %v7048 = vpack.c.bf16 %v6787, %v6728
        %v7049 = vpack.c.bf16 %v6788, %v6729
        %v7050 = vpack.c.bf16 %v6789, %v6730
        %v7051 = vpack.c.bf16 %v6790, %v6731
        %v7052 = vpack.c.bf16 %v6791, %v6740
        %v7053 = vpack.c.bf16 %v6792, %v6741
        %v7054 = vpack.c.bf16 %v6793, %v6742
        %v7055 = vpack.c.bf16 %v6794, %v6743
        %v7056 = vpack.c.bf16 %v6803, %v6744
        %v7057 = vpack.c.bf16 %v6804, %v6745
        %v7058 = vpack.c.bf16 %v6805, %v6746
        %v7059 = vpack.c.bf16 %v6806, %v6747
        %v7060 = vpack.c.bf16 %v6807, %v6756
        %v7061 = vpack.c.bf16 %v6808, %v6757
        %v7062 = vpack.c.bf16 %v6809, %v6758
        %v7063 = vpack.c.bf16 %v6810, %v6759
        %v7064 = vpack.c.bf16 %v6819, %v6760
        %v7065 = vpack.c.bf16 %v6820, %v6761
        %v7066 = vpack.c.bf16 %v6821, %v6762
        %v7067 = vpack.c.bf16 %v6822, %v6763
        %v7068 = vpack.c.bf16 %v6823, %v6772
        %v7069 = vpack.c.bf16 %v6824, %v6773
        %v7070 = vpack.c.bf16 %v6825, %v6774
        %v7071 = vpack.c.bf16 %v6885, %v6834
        %v7072 = vpack.c.bf16 %v6886, %v6835
        %v7073 = vpack.c.bf16 %v6887, %v6836
        %v7074 = vpack.c.bf16 %v6888, %v6837
        %v7075 = vpack.c.bf16 %v6897, %v6838
        %v7076 = vpack.c.bf16 %v6898, %v6839
        %v7077 = vpack.c.bf16 %v6899, %v6840
        %v7078 = vpack.c.bf16 %v6900, %v6841
        %v7079 = vpack.c.bf16 %v6901, %v6850
        %v7080 = vpack.c.bf16 %v6902, %v6851
        %v7081 = vpack.c.bf16 %v6903, %v6852
        %v7082 = vpack.c.bf16 %v6904, %v6853
        %v7083 = vpack.c.bf16 %v6913, %v6854
        %v7084 = vpack.c.bf16 %v6914, %v6855
        %v7085 = vpack.c.bf16 %v6915, %v6856
        %v7086 = vpack.c.bf16 %v6916, %v6857
        %v7087 = vpack.c.bf16 %v6917, %v6866
        %v7088 = vpack.c.bf16 %v6918, %v6867
        %v7089 = vpack.c.bf16 %v6919, %v6868
        %v7090 = vpack.c.bf16 %v6920, %v6869
        %v7091 = vpack.c.bf16 %v6929, %v6870
        %v7092 = vpack.c.bf16 %v6930, %v6871
        %v7093 = vpack.c.bf16 %v6931, %v6872
        %v7094 = vpack.c.bf16 %v6932, %v6873
        %v7095 = vpack.c.bf16 %v6933, %v6882
        %v7096 = vpack.c.bf16 %v6934, %v6883
        %v7097 = vpack.c.bf16 %v6935, %v6884
        %v7098 = vld [vmem:[%s4] sm:$0xf]
        %v7099 = vld [vmem:[%s4 + $0x4] sm:$0xf]
        %v7100 = vld [vmem:[%s4 + $0x8] sm:$0xf]
        %v7101 = vld [vmem:[%s4 + $0xc] sm:$0xf]
        %v7102 = vld [vmem:[%s4 + $0x10] sm:$0xf]
        %v7103 = vld [vmem:[%s4 + $0x14] sm:$0xf]
        %v7104 = vld [vmem:[%s4 + $0x18] sm:$0xf]
        %v7105 = vld [vmem:[%s4 + $0x1c] sm:$0xf]
        %v7106 = vld [vmem:[%s4 + $0x20] sm:$0xf]
        %v7107 = vld [vmem:[%s4 + $0x24] sm:$0xf]
        %v7108 = vld [vmem:[%s4 + $0x28] sm:$0xf]
        %v7109 = vld [vmem:[%s4 + $0x2c] sm:$0xf]
        %v7110 = vld [vmem:[%s4 + $0x30] sm:$0xf]
        %v7111 = vld [vmem:[%s4 + $0x34] sm:$0xf]
        %v7112 = vld [vmem:[%s4 + $0x38] sm:$0xf]
        %v7113 = vld [vmem:[%s4 + $0x3c] sm:$0xf]
        %v7114 = vld [vmem:[%s4 + $0x40] sm:$0xf]
        %v7115 = vld [vmem:[%s4 + $0x44] sm:$0xf]
        %v7116 = vld [vmem:[%s4 + $0x48] sm:$0xf]
        %v7117 = vld [vmem:[%s4 + $0x4c] sm:$0xf]
        %v7118 = vld [vmem:[%s4 + $0x50] sm:$0xf]
        %v7119 = vld [vmem:[%s4 + $0x54] sm:$0xf]
        %v7120 = vld [vmem:[%s4 + $0x58] sm:$0xf]
        %v7121 = vld [vmem:[%s4 + $0x5c] sm:$0xf]
        %v7122 = vld [vmem:[%s4 + $0x60] sm:$0xf]
        %v7123 = vld [vmem:[%s4 + $0x64] sm:$0xf]
        %v7124 = vld [vmem:[%s4 + $0x68] sm:$0xf]
        %v7125 = vld [vmem:[%s4 + $0x6c] sm:$0xf]
        %v7126 = vld [vmem:[%s4 + $0x70] sm:$0xf]
        %v7127 = vld [vmem:[%s4 + $0x74] sm:$0xf]
        %v7128 = vld [vmem:[%s4 + $0x78] sm:$0xf]
        %v7129 = vld [vmem:[%s4 + $0x7c] sm:$0xf]
        %v7130 = vld [vmem:[%s4 + $0x80] sm:$0xf]
        %v7131 = vld [vmem:[%s4 + $0x84] sm:$0xf]
        %v7132 = vld [vmem:[%s4 + $0x88] sm:$0xf]
        %v7133 = vld [vmem:[%s4 + $0x8c] sm:$0xf]
        %v7134 = vld [vmem:[%s4 + $0x90] sm:$0xf]
        %v7135 = vld [vmem:[%s4 + $0x94] sm:$0xf]
        %v7136 = vld [vmem:[%s4 + $0x98] sm:$0xf]
        %v7137 = vld [vmem:[%s4 + $0x9c] sm:$0xf]
        %v7138 = vld [vmem:[%s4 + $0xa0] sm:$0xf]
        %v7139 = vld [vmem:[%s4 + $0xa4] sm:$0xf]
        %v7140 = vld [vmem:[%s4 + $0xa8] sm:$0xf]
        %v7141 = vld [vmem:[%s4 + $0xac] sm:$0xf]
        %v7142 = vld [vmem:[%s4 + $0xb0] sm:$0xf]
        %v7143 = vld [vmem:[%s4 + $0xb4] sm:$0xf]
        %v7144 = vld [vmem:[%s4 + $0xb8] sm:$0xf]
        %v7145 = vld [vmem:[%s4 + $0xbc] sm:$0xf]
        %v7146 = vld [vmem:[%s4 + $0xc0] sm:$0xf]
        %v7147 = vld [vmem:[%s4 + $0xc4] sm:$0xf]
        %v7148 = vld [vmem:[%s4 + $0xc8] sm:$0xf]
        %v7149 = vld [vmem:[%s4 + $0xcc] sm:$0xf]
        %v7150 = vld [vmem:[%s4 + $0xd0] sm:$0xf]
        %v7151 = vld [vmem:[%s4 + $0xd4] sm:$0xf]
        %v7152 = vld [vmem:[%s4 + $0xd8] sm:$0xf]
        %v7153 = vld [vmem:[%s4 + $0xdc] sm:$0xf]
        %v7154 = vld [vmem:[%s4 + $0xe0] sm:$0xf]
        %v7155 = vld [vmem:[%s4 + $0xe4] sm:$0xf]
        %v7156 = vld [vmem:[%s4 + $0xe8] sm:$0xf]
        %v7157 = vld [vmem:[%s4 + $0xec] sm:$0xf]
        %v7158 = vld [vmem:[%s4 + $0xf0] sm:$0xf]
        %v7159 = vld [vmem:[%s4 + $0xf4] sm:$0xf]
        %v7160 = vld [vmem:[%s4 + $0xf8] sm:$0xf]
        %v7161 = vld [vmem:[%s4 + $0xfc] sm:$0xf]
        %v7162 = vld [vmem:[%s4 + $0x100] sm:$0xf]
        %v7163 = vld [vmem:[%s4 + $0x104] sm:$0xf]
        %v7164 = vld [vmem:[%s4 + $0x108] sm:$0xf]
        %v7165 = vld [vmem:[%s4 + $0x10c] sm:$0xf]
        %v7166 = vld [vmem:[%s4 + $0x110] sm:$0xf]
        %v7167 = vld [vmem:[%s4 + $0x114] sm:$0xf]
        %v7168 = vld [vmem:[%s4 + $0x118] sm:$0xf]
        %v7169 = vld [vmem:[%s4 + $0x11c] sm:$0xf]
        %v7170 = vld [vmem:[%s4 + $0x120] sm:$0xf]
        %v7171 = vld [vmem:[%s4 + $0x124] sm:$0xf]
        %v7172 = vld [vmem:[%s4 + $0x128] sm:$0xf]
        %v7173 = vld [vmem:[%s4 + $0x12c] sm:$0xf]
        %v7174 = vld [vmem:[%s4 + $0x130] sm:$0xf]
        %v7175 = vld [vmem:[%s4 + $0x134] sm:$0xf]
        %v7176 = vld [vmem:[%s4 + $0x138] sm:$0xf]
        %v7177 = vld [vmem:[%s4 + $0x13c] sm:$0xf]
        %v7178 = vld [vmem:[%s4 + $0x140] sm:$0xf]
        %v7179 = vld [vmem:[%s4 + $0x144] sm:$0xf]
        %v7180 = vld [vmem:[%s4 + $0x148] sm:$0xf]
        %v7181 = vld [vmem:[%s4 + $0x14c] sm:$0xf]
        %v7182 = vld [vmem:[%s4 + $0x150] sm:$0xf]
        %v7183 = vld [vmem:[%s4 + $0x154] sm:$0xf]
        %v7184 = vld [vmem:[%s4 + $0x158] sm:$0xf]
        %v7185 = vld [vmem:[%s4 + $0x15c] sm:$0xf]
        %v7186 = vld [vmem:[%s4 + $0x160] sm:$0xf]
        %v7187 = vld [vmem:[%s4 + $0x164] sm:$0xf]
        %v7188 = vld [vmem:[%s4 + $0x168] sm:$0xf]
        %v7189 = vld [vmem:[%s4 + $0x16c] sm:$0xf]
        %v7190 = vld [vmem:[%s4 + $0x170] sm:$0xf]
        %v7191 = vld [vmem:[%s4 + $0x174] sm:$0xf]
        %v7192 = vld [vmem:[%s4 + $0x178] sm:$0xf]
        %v7193 = vld [vmem:[%s4 + $0x17c] sm:$0xf]
        %v7194 = vld [vmem:[%s4 + $0x180] sm:$0xf]
        %v7195 = vld [vmem:[%s4 + $0x184] sm:$0xf]
        %v7196 = vld [vmem:[%s4 + $0x188] sm:$0xf]
        %v7197 = vld [vmem:[%s4 + $0x18c] sm:$0xf]
        %v7198 = vld [vmem:[%s4 + $0x190] sm:$0xf]
        %v7199 = vld [vmem:[%s4 + $0x194] sm:$0xf]
        %v7200 = vld [vmem:[%s4 + $0x198] sm:$0xf]
        %v7201 = vld [vmem:[%s4 + $0x19c] sm:$0xf]
        %v7202 = vld [vmem:[%s4 + $0x1a0] sm:$0xf]
        %v7203 = vld [vmem:[%s4 + $0x1a4] sm:$0xf]
        %v7204 = vld [vmem:[%s4 + $0x1a8] sm:$0xf]
        %v7205 = vld [vmem:[%s4 + $0x1ac] sm:$0xf]
        %v7206 = vld [vmem:[%s4 + $0x1b0] sm:$0xf]
        %v7207 = vld [vmem:[%s4 + $0x1b4] sm:$0xf]
        %v7208 = vld [vmem:[%s4 + $0x1b8] sm:$0xf]
        %v7209 = vld [vmem:[%s4 + $0x1bc] sm:$0xf]
        %v7210 = vld [vmem:[%s4 + $0x1c0] sm:$0xf]
        %v7211 = vld [vmem:[%s4 + $0x1c4] sm:$0xf]
        %v7212 = vld [vmem:[%s4 + $0x1c8] sm:$0xf]
        %v7213 = vld [vmem:[%s4 + $0x1cc] sm:$0xf]
        %v7214 = vld [vmem:[%s4 + $0x1d0] sm:$0xf]
        %v7215 = vld [vmem:[%s4 + $0x1d4] sm:$0xf]
        %v7216 = vld [vmem:[%s4 + $0x1d8] sm:$0xf]
        %v7217 = vld [vmem:[%s4 + $0x1dc] sm:$0xf]
        %v7218 = vld [vmem:[%s4 + $0x1e0] sm:$0xf]
        %v7219 = vld [vmem:[%s4 + $0x1e4] sm:$0xf]
        %v7220 = vld [vmem:[%s4 + $0x1e8] sm:$0xf]
        %v7221 = vld [vmem:[%s4 + $0x1ec] sm:$0xf]
        %v7222 = vld [vmem:[%s4 + $0x1f0] sm:$0xf]
        %v7223 = vld [vmem:[%s4 + $0x1f4] sm:$0xf]
        %v7224 = vld [vmem:[%s4 + $0x1f8] sm:$0xf]
        %v7225 = vld [vmem:[%s4 + $0x1fc] sm:$0xf]
        %v7226 = vld [vmem:[%s4 + $0x200] sm:$0xf]
        %v7227 = vld [vmem:[%s4 + $0x204] sm:$0xf]
        %v7228 = vld [vmem:[%s4 + $0x208] sm:$0xf]
        %v7229 = vld [vmem:[%s4 + $0x20c] sm:$0xf]
        %v7230 = vld [vmem:[%s4 + $0x210] sm:$0xf]
        %v7231 = vld [vmem:[%s4 + $0x214] sm:$0xf]
        %v7232 = vld [vmem:[%s4 + $0x218] sm:$0xf]
        %v7233 = vld [vmem:[%s4 + $0x21c] sm:$0xf]
        %v7234 = vld [vmem:[%s4 + $0x220] sm:$0xf]
        %v7235 = vld [vmem:[%s4 + $0x224] sm:$0xf]
        %v7236 = vld [vmem:[%s4 + $0x228] sm:$0xf]
        %v7237 = vld [vmem:[%s4 + $0x22c] sm:$0xf]
        %v7238 = vld [vmem:[%s4 + $0x230] sm:$0xf]
        %v7239 = vld [vmem:[%s4 + $0x234] sm:$0xf]
        %v7240 = vld [vmem:[%s4 + $0x238] sm:$0xf]
        %v7241 = vld [vmem:[%s4 + $0x23c] sm:$0xf]
        %v7242 = vld [vmem:[%s4 + $0x240] sm:$0xf]
        %v7243 = vld [vmem:[%s4 + $0x244] sm:$0xf]
        %v7244 = vld [vmem:[%s4 + $0x248] sm:$0xf]
        %v7245 = vld [vmem:[%s4 + $0x24c] sm:$0xf]
        %v7246 = vld [vmem:[%s4 + $0x250] sm:$0xf]
        %v7247 = vld [vmem:[%s4 + $0x254] sm:$0xf]
        %v7248 = vld [vmem:[%s4 + $0x258] sm:$0xf]
        %v7249 = vld [vmem:[%s4 + $0x25c] sm:$0xf]
        %v7250 = vld [vmem:[%s4 + $0x260] sm:$0xf]
        %v7251 = vld [vmem:[%s4 + $0x264] sm:$0xf]
        %v7252 = vld [vmem:[%s4 + $0x268] sm:$0xf]
        %v7253 = vld [vmem:[%s4 + $0x26c] sm:$0xf]
        %v7254 = vld [vmem:[%s4 + $0x270] sm:$0xf]
        %v7255 = vld [vmem:[%s4 + $0x274] sm:$0xf]
        %v7256 = vld [vmem:[%s4 + $0x278] sm:$0xf]
        %v7257 = vld [vmem:[%s4 + $0x27c] sm:$0xf]
        %v7258 = vld [vmem:[%s4 + $0x280] sm:$0xf]
        %v7259 = vld [vmem:[%s4 + $0x284] sm:$0xf]
        %v7260 = vld [vmem:[%s4 + $0x288] sm:$0xf]
        %v7261 = vld [vmem:[%s4 + $0x28c] sm:$0xf]
        %v7262 = vld [vmem:[%s4 + $0x290] sm:$0xf]
        %v7263 = vld [vmem:[%s4 + $0x294] sm:$0xf]
        %v7264 = vld [vmem:[%s4 + $0x298] sm:$0xf]
        %v7265 = vld [vmem:[%s4 + $0x29c] sm:$0xf]
        %v7266 = vld [vmem:[%s4 + $0x2a0] sm:$0xf]
        %v7267 = vld [vmem:[%s4 + $0x2a4] sm:$0xf]
        %v7268 = vld [vmem:[%s4 + $0x2a8] sm:$0xf]
        %v7269 = vld [vmem:[%s4 + $0x2ac] sm:$0xf]
        %v7270 = vld [vmem:[%s4 + $0x2b0] sm:$0xf]
        %v7271 = vld [vmem:[%s4 + $0x2b4] sm:$0xf]
        %v7272 = vld [vmem:[%s4 + $0x2b8] sm:$0xf]
        %v7273 = vld [vmem:[%s4 + $0x2bc] sm:$0xf]
        %v7274 = vld [vmem:[%s4 + $0x2c0] sm:$0xf]
        %v7275 = vld [vmem:[%s4 + $0x2c4] sm:$0xf]
        %v7276 = vld [vmem:[%s4 + $0x2c8] sm:$0xf]
        %v7277 = vld [vmem:[%s4 + $0x2cc] sm:$0xf]
        %v7278 = vld [vmem:[%s4 + $0x2d0] sm:$0xf]
        %v7279 = vld [vmem:[%s4 + $0x2d4] sm:$0xf]
        %v7280 = vld [vmem:[%s4 + $0x2d8] sm:$0xf]
        %v7281 = vld [vmem:[%s4 + $0x2dc] sm:$0xf]
        %v7282 = vld [vmem:[%s4 + $0x2e0] sm:$0xf]
        %v7283 = vld [vmem:[%s4 + $0x2e4] sm:$0xf]
        %v7284 = vld [vmem:[%s4 + $0x2e8] sm:$0xf]
        %v7285 = vld [vmem:[%s4 + $0x2ec] sm:$0xf]
        %v7286 = vld [vmem:[%s4 + $0x2f0] sm:$0xf]
        %v7287 = vld [vmem:[%s4 + $0x2f4] sm:$0xf]
        %v7288 = vld [vmem:[%s4 + $0x2f8] sm:$0xf]
        %v7289 = vld [vmem:[%s4 + $0x2fc] sm:$0xf]
        %v7290 = vld [vmem:[%s4 + $0x300] sm:$0xf]
        %v7291 = vld [vmem:[%s4 + $0x304] sm:$0xf]
        %v7292 = vld [vmem:[%s4 + $0x308] sm:$0xf]
        %v7293 = vld [vmem:[%s4 + $0x30c] sm:$0xf]
        %v7294 = vld [vmem:[%s4 + $0x310] sm:$0xf]
        %v7295 = vld [vmem:[%s4 + $0x314] sm:$0xf]
        %v7296 = vld [vmem:[%s4 + $0x318] sm:$0xf]
        %v7297 = vld [vmem:[%s4 + $0x31c] sm:$0xf]
        %v7298 = vld [vmem:[%s4 + $0x320] sm:$0xf]
        %v7299 = vld [vmem:[%s4 + $0x324] sm:$0xf]
        %v7300 = vld [vmem:[%s4 + $0x328] sm:$0xf]
        %v7301 = vld [vmem:[%s4 + $0x32c] sm:$0xf]
        %v7302 = vld [vmem:[%s4 + $0x330] sm:$0xf]
        %v7303 = vld [vmem:[%s4 + $0x334] sm:$0xf]
        %v7304 = vld [vmem:[%s4 + $0x338] sm:$0xf]
        %v7305 = vld [vmem:[%s4 + $0x33c] sm:$0xf]
        %v7306 = vld [vmem:[%s4 + $0x340] sm:$0xf]
        %v7307 = vld [vmem:[%s4 + $0x344] sm:$0xf]
        %v7308 = vld [vmem:[%s4 + $0x348] sm:$0xf]
        %v7309 = vld [vmem:[%s4 + $0x34c] sm:$0xf]
        %v7310 = vld [vmem:[%s4 + $0x350] sm:$0xf]
        %v7311 = vld [vmem:[%s4 + $0x354] sm:$0xf]
        %v7312 = vld [vmem:[%s4 + $0x358] sm:$0xf]
        %v7313 = vld [vmem:[%s4 + $0x35c] sm:$0xf]
        %v7314 = vld [vmem:[%s4 + $0x360] sm:$0xf]
        %v7315 = vld [vmem:[%s4 + $0x364] sm:$0xf]
        %v7316 = vld [vmem:[%s4 + $0x368] sm:$0xf]
        %v7317 = vld [vmem:[%s4 + $0x36c] sm:$0xf]
        %v7318 = vld [vmem:[%s4 + $0x370] sm:$0xf]
        %v7319 = vld [vmem:[%s4 + $0x374] sm:$0xf]
        %v7320 = vld [vmem:[%s4 + $0x378] sm:$0xf]
        %v7321 = vld [vmem:[%s4 + $0x37c] sm:$0xf]
        %v7322 = vld [vmem:[%s4 + $0x380] sm:$0xf]
        %v7323 = vld [vmem:[%s4 + $0x384] sm:$0xf]
        %v7324 = vld [vmem:[%s4 + $0x388] sm:$0xf]
        %v7325 = vld [vmem:[%s4 + $0x38c] sm:$0xf]
        %v7326 = vld [vmem:[%s4 + $0x390] sm:$0xf]
        %v7327 = vld [vmem:[%s4 + $0x394] sm:$0xf]
        %v7328 = vld [vmem:[%s4 + $0x398] sm:$0xf]
        %v7329 = vld [vmem:[%s4 + $0x39c] sm:$0xf]
        %v7330 = vld [vmem:[%s4 + $0x3a0] sm:$0xf]
        %v7331 = vld [vmem:[%s4 + $0x3a4] sm:$0xf]
        %v7332 = vld [vmem:[%s4 + $0x3a8] sm:$0xf]
        %v7333 = vld [vmem:[%s4 + $0x3ac] sm:$0xf]
        %v7334 = vld [vmem:[%s4 + $0x3b0] sm:$0xf]
        %v7335 = vld [vmem:[%s4 + $0x3b4] sm:$0xf]
        %v7336 = vld [vmem:[%s4 + $0x3b8] sm:$0xf]
        %v7337 = vld [vmem:[%s4 + $0x3bc] sm:$0xf]
        %v7338 = vld [vmem:[%s4 + $0x3c0] sm:$0xf]
        %v7339 = vld [vmem:[%s4 + $0x3c4] sm:$0xf]
        %v7340 = vld [vmem:[%s4 + $0x3c8] sm:$0xf]
        %v7341 = vld [vmem:[%s4 + $0x3cc] sm:$0xf]
        %v7342 = vld [vmem:[%s4 + $0x3d0] sm:$0xf]
        %v7343 = vld [vmem:[%s4 + $0x3d4] sm:$0xf]
        %v7344 = vld [vmem:[%s4 + $0x3d8] sm:$0xf]
        %v7345 = vld [vmem:[%s4 + $0x3dc] sm:$0xf]
        %v7346 = vld [vmem:[%s4 + $0x3e0] sm:$0xf]
        %v7347 = vld [vmem:[%s4 + $0x3e4] sm:$0xf]
        %v7348 = vld [vmem:[%s4 + $0x3e8] sm:$0xf]
        %v7349 = vld [vmem:[%s4 + $0x3ec] sm:$0xf]
        %v7350 = vld [vmem:[%s4 + $0x3f0] sm:$0xf]
        %v7351 = vld [vmem:[%s4 + $0x3f4] sm:$0xf]
        %v7352 = vld [vmem:[%s4 + $0x3f8] sm:$0xf]
        %v7353 = vld [vmem:[%s4 + $0x3fc] sm:$0xf]
        %v7354 = vld [vmem:[%s4 + $0x400] sm:$0xf]
        %v7355 = vld [vmem:[%s4 + $0x404] sm:$0xf]
        %v7356 = vld [vmem:[%s4 + $0x408] sm:$0xf]
        %v7357 = vld [vmem:[%s4 + $0x40c] sm:$0xf]
        %v7358 = vld [vmem:[%s4 + $0x410] sm:$0xf]
        %v7359 = vld [vmem:[%s4 + $0x414] sm:$0xf]
        %v7360 = vld [vmem:[%s4 + $0x418] sm:$0xf]
        %v7361 = vld [vmem:[%s4 + $0x41c] sm:$0xf]
        %v7362 = vld [vmem:[%s4 + $0x420] sm:$0xf]
        %v7363 = vld [vmem:[%s4 + $0x424] sm:$0xf]
        %v7364 = vld [vmem:[%s4 + $0x428] sm:$0xf]
        %v7365 = vld [vmem:[%s4 + $0x42c] sm:$0xf]
        %v7366 = vld [vmem:[%s4 + $0x430] sm:$0xf]
        %v7367 = vld [vmem:[%s4 + $0x434] sm:$0xf]
        %v7368 = vld [vmem:[%s4 + $0x438] sm:$0xf]
        %v7369 = vld [vmem:[%s4 + $0x43c] sm:$0xf]
        %v7370 = vld [vmem:[%s4 + $0x440] sm:$0xf]
        %v7371 = vld [vmem:[%s4 + $0x444] sm:$0xf]
        %v7372 = vld [vmem:[%s4 + $0x448] sm:$0xf]
        %v7373 = vld [vmem:[%s4 + $0x44c] sm:$0xf]
        %v7374 = vld [vmem:[%s4 + $0x450] sm:$0xf]
        %v7375 = vld [vmem:[%s4 + $0x454] sm:$0xf]
        %v7376 = vld [vmem:[%s4 + $0x458] sm:$0xf]
        %v7377 = vld [vmem:[%s4 + $0x45c] sm:$0xf]
        %v7378 = vld [vmem:[%s4 + $0x460] sm:$0xf]
        %v7379 = vld [vmem:[%s4 + $0x464] sm:$0xf]
        %v7380 = vld [vmem:[%s4 + $0x468] sm:$0xf]
        %v7381 = vld [vmem:[%s4 + $0x46c] sm:$0xf]
        %v7382 = vld [vmem:[%s4 + $0x470] sm:$0xf]
        %v7383 = vld [vmem:[%s4 + $0x474] sm:$0xf]
        %v7384 = vld [vmem:[%s4 + $0x478] sm:$0xf]
        %v7385 = vld [vmem:[%s4 + $0x47c] sm:$0xf]
        %v7386 = vld [vmem:[%s4 + $0x480] sm:$0xf]
        %v7387 = vld [vmem:[%s4 + $0x484] sm:$0xf]
        %v7388 = vld [vmem:[%s4 + $0x488] sm:$0xf]
        %v7389 = vld [vmem:[%s4 + $0x48c] sm:$0xf]
        %v7390 = vld [vmem:[%s4 + $0x490] sm:$0xf]
        %v7391 = vld [vmem:[%s4 + $0x494] sm:$0xf]
        %v7392 = vld [vmem:[%s4 + $0x498] sm:$0xf]
        %v7393 = vld [vmem:[%s4 + $0x49c] sm:$0xf]
        %v7394 = vld [vmem:[%s4 + $0x4a0] sm:$0xf]
        %v7395 = vld [vmem:[%s4 + $0x4a4] sm:$0xf]
        %v7396 = vld [vmem:[%s4 + $0x4a8] sm:$0xf]
        %v7397 = vld [vmem:[%s4 + $0x4ac] sm:$0xf]
        %v7398 = vld [vmem:[%s4 + $0x4b0] sm:$0xf]
        %v7399 = vld [vmem:[%s4 + $0x4b4] sm:$0xf]
        %v7400 = vld [vmem:[%s4 + $0x4b8] sm:$0xf]
        %v7401 = vld [vmem:[%s4 + $0x4bc] sm:$0xf]
        %v7402 = vld [vmem:[%s4 + $0x4c0] sm:$0xf]
        %v7403 = vld [vmem:[%s4 + $0x4c4] sm:$0xf]
        %v7404 = vld [vmem:[%s4 + $0x4c8] sm:$0xf]
        %v7405 = vld [vmem:[%s4 + $0x4cc] sm:$0xf]
        %v7406 = vld [vmem:[%s4 + $0x4d0] sm:$0xf]
        %v7407 = vld [vmem:[%s4 + $0x4d4] sm:$0xf]
        %v7408 = vld [vmem:[%s4 + $0x4d8] sm:$0xf]
        %v7409 = vld [vmem:[%s4 + $0x4dc] sm:$0xf]
        %v7410 = vld [vmem:[%s4 + $0x4e0] sm:$0xf]
        %v7411 = vld [vmem:[%s4 + $0x4e4] sm:$0xf]
        %v7412 = vld [vmem:[%s4 + $0x4e8] sm:$0xf]
        %v7413 = vld [vmem:[%s4 + $0x4ec] sm:$0xf]
        %v7414 = vld [vmem:[%s4 + $0x4f0] sm:$0xf]
        %v7415 = vld [vmem:[%s4 + $0x4f4] sm:$0xf]
        %v7416 = vld [vmem:[%s4 + $0x4f8] sm:$0xf]
        %v7417 = vld [vmem:[%s4 + $0x4fc] sm:$0xf]
        %v7418 = vld [vmem:[%s4 + $0x500] sm:$0xf]
        %v7419 = vld [vmem:[%s4 + $0x504] sm:$0xf]
        %v7420 = vld [vmem:[%s4 + $0x508] sm:$0xf]
        %v7421 = vld [vmem:[%s4 + $0x50c] sm:$0xf]
        %v7422 = vld [vmem:[%s4 + $0x510] sm:$0xf]
        %v7423 = vld [vmem:[%s4 + $0x514] sm:$0xf]
        %v7424 = vld [vmem:[%s4 + $0x518] sm:$0xf]
        %v7425 = vld [vmem:[%s4 + $0x51c] sm:$0xf]
        %v7426 = vld [vmem:[%s4 + $0x520] sm:$0xf]
        %v7427 = vld [vmem:[%s4 + $0x524] sm:$0xf]
        %v7428 = vld [vmem:[%s4 + $0x528] sm:$0xf]
        %v7429 = vld [vmem:[%s4 + $0x52c] sm:$0xf]
        %v7430 = vld [vmem:[%s4 + $0x530] sm:$0xf]
        %v7431 = vld [vmem:[%s4 + $0x534] sm:$0xf]
        %v7432 = vld [vmem:[%s4 + $0x538] sm:$0xf]
        %v7433 = vld [vmem:[%s4 + $0x53c] sm:$0xf]
        %v7434 = vld [vmem:[%s4 + $0x540] sm:$0xf]
        %v7435 = vld [vmem:[%s4 + $0x544] sm:$0xf]
        %v7436 = vld [vmem:[%s4 + $0x548] sm:$0xf]
        %v7437 = vld [vmem:[%s4 + $0x54c] sm:$0xf]
        %v7438 = vld [vmem:[%s4 + $0x550] sm:$0xf]
        %v7439 = vld [vmem:[%s4 + $0x554] sm:$0xf]
        %v7440 = vld [vmem:[%s4 + $0x558] sm:$0xf]
        %v7441 = vld [vmem:[%s4 + $0x55c] sm:$0xf]
        %v7442 = vld [vmem:[%s4 + $0x560] sm:$0xf]
        %v7443 = vld [vmem:[%s4 + $0x564] sm:$0xf]
        %v7444 = vld [vmem:[%s4 + $0x568] sm:$0xf]
        %v7445 = vld [vmem:[%s4 + $0x56c] sm:$0xf]
        %v7446 = vld [vmem:[%s4 + $0x570] sm:$0xf]
        %v7447 = vld [vmem:[%s4 + $0x574] sm:$0xf]
        %v7448 = vld [vmem:[%s4 + $0x578] sm:$0xf]
        %v7449 = vld [vmem:[%s4 + $0x57c] sm:$0xf]
        %v7450 = vld [vmem:[%s4 + $0x580] sm:$0xf]
        %v7451 = vld [vmem:[%s4 + $0x584] sm:$0xf]
        %v7452 = vld [vmem:[%s4 + $0x588] sm:$0xf]
        %v7453 = vld [vmem:[%s4 + $0x58c] sm:$0xf]
        %v7454 = vld [vmem:[%s4 + $0x590] sm:$0xf]
        %v7455 = vld [vmem:[%s4 + $0x594] sm:$0xf]
        %v7456 = vld [vmem:[%s4 + $0x598] sm:$0xf]
        %v7457 = vld [vmem:[%s4 + $0x59c] sm:$0xf]
        %v7458 = vld [vmem:[%s4 + $0x5a0] sm:$0xf]
        %v7459 = vld [vmem:[%s4 + $0x5a4] sm:$0xf]
        %v7460 = vld [vmem:[%s4 + $0x5a8] sm:$0xf]
        %v7461 = vld [vmem:[%s4 + $0x5ac] sm:$0xf]
        %v7462 = vld [vmem:[%s4 + $0x5b0] sm:$0xf]
        %v7463 = vld [vmem:[%s4 + $0x5b4] sm:$0xf]
        %v7464 = vld [vmem:[%s4 + $0x5b8] sm:$0xf]
        %v7465 = vld [vmem:[%s4 + $0x5bc] sm:$0xf]
        %v7466 = vld [vmem:[%s4 + $0x5c0] sm:$0xf]
        %v7467 = vld [vmem:[%s4 + $0x5c4] sm:$0xf]
        %v7468 = vld [vmem:[%s4 + $0x5c8] sm:$0xf]
        %v7469 = vld [vmem:[%s4 + $0x5cc] sm:$0xf]
        %v7470 = vld [vmem:[%s4 + $0x5d0] sm:$0xf]
        %v7471 = vld [vmem:[%s4 + $0x5d4] sm:$0xf]
        %v7472 = vld [vmem:[%s4 + $0x5d8] sm:$0xf]
        %v7473 = vld [vmem:[%s4 + $0x5dc] sm:$0xf]
        %v7474 = vld [vmem:[%s4 + $0x5e0] sm:$0xf]
        %v7475 = vld [vmem:[%s4 + $0x5e4] sm:$0xf]
        %v7476 = vld [vmem:[%s4 + $0x5e8] sm:$0xf]
        %v7477 = vld [vmem:[%s4 + $0x5ec] sm:$0xf]
        %v7478 = vld [vmem:[%s4 + $0x5f0] sm:$0xf]
        %v7479 = vld [vmem:[%s4 + $0x5f4] sm:$0xf]
        %v7480 = vld [vmem:[%s4 + $0x5f8] sm:$0xf]
        %v7481 = vld [vmem:[%s4 + $0x5fc] sm:$0xf]
        %v7482 = vld [vmem:[%s4 + $0x600] sm:$0xf]
        %v7483 = vld [vmem:[%s4 + $0x604] sm:$0xf]
        %v7484 = vld [vmem:[%s4 + $0x608] sm:$0xf]
        %v7485 = vld [vmem:[%s4 + $0x60c] sm:$0xf]
        %v7486 = vld [vmem:[%s4 + $0x610] sm:$0xf]
        %v7487 = vld [vmem:[%s4 + $0x614] sm:$0xf]
        %v7488 = vld [vmem:[%s4 + $0x618] sm:$0xf]
        %v7489 = vld [vmem:[%s4 + $0x61c] sm:$0xf]
        %v7490 = vld [vmem:[%s4 + $0x620] sm:$0xf]
        %v7491 = vld [vmem:[%s4 + $0x624] sm:$0xf]
        %v7492 = vld [vmem:[%s4 + $0x628] sm:$0xf]
        %v7493 = vld [vmem:[%s4 + $0x62c] sm:$0xf]
        %v7494 = vld [vmem:[%s4 + $0x630] sm:$0xf]
        %v7495 = vld [vmem:[%s4 + $0x634] sm:$0xf]
        %v7496 = vld [vmem:[%s4 + $0x638] sm:$0xf]
        %v7497 = vld [vmem:[%s4 + $0x63c] sm:$0xf]
        %v7498 = vld [vmem:[%s4 + $0x640] sm:$0xf]
        %v7499 = vld [vmem:[%s4 + $0x644] sm:$0xf]
        %v7500 = vld [vmem:[%s4 + $0x648] sm:$0xf]
        %v7501 = vld [vmem:[%s4 + $0x64c] sm:$0xf]
        %v7502 = vld [vmem:[%s4 + $0x650] sm:$0xf]
        %v7503 = vld [vmem:[%s4 + $0x654] sm:$0xf]
        %v7504 = vld [vmem:[%s4 + $0x658] sm:$0xf]
        %v7505 = vld [vmem:[%s4 + $0x65c] sm:$0xf]
        %v7506 = vld [vmem:[%s4 + $0x660] sm:$0xf]
        %v7507 = vld [vmem:[%s4 + $0x664] sm:$0xf]
        %v7508 = vld [vmem:[%s4 + $0x668] sm:$0xf]
        %v7509 = vld [vmem:[%s4 + $0x66c] sm:$0xf]
        %v7510 = vld [vmem:[%s4 + $0x670] sm:$0xf]
        %v7511 = vld [vmem:[%s4 + $0x674] sm:$0xf]
        %v7512 = vld [vmem:[%s4 + $0x678] sm:$0xf]
        %v7513 = vld [vmem:[%s4 + $0x67c] sm:$0xf]
        %v7514 = vld [vmem:[%s4 + $0x680] sm:$0xf]
        %v7515 = vld [vmem:[%s4 + $0x684] sm:$0xf]
        %v7516 = vld [vmem:[%s4 + $0x688] sm:$0xf]
        %v7517 = vld [vmem:[%s4 + $0x68c] sm:$0xf]
        %v7518 = vld [vmem:[%s4 + $0x690] sm:$0xf]
        %v7519 = vld [vmem:[%s4 + $0x694] sm:$0xf]
        %v7520 = vld [vmem:[%s4 + $0x698] sm:$0xf]
        %v7521 = vld [vmem:[%s4 + $0x69c] sm:$0xf]
        %v7522 = vld [vmem:[%s4 + $0x6a0] sm:$0xf]
        %v7523 = vld [vmem:[%s4 + $0x6a4] sm:$0xf]
        %v7524 = vld [vmem:[%s4 + $0x6a8] sm:$0xf]
        %v7525 = vld [vmem:[%s4 + $0x6ac] sm:$0xf]
        %v7526 = vld [vmem:[%s4 + $0x6b0] sm:$0xf]
        %v7527 = vld [vmem:[%s4 + $0x6b4] sm:$0xf]
        %v7528 = vld [vmem:[%s4 + $0x6b8] sm:$0xf]
        %v7529 = vld [vmem:[%s4 + $0x6bc] sm:$0xf]
        %v7530 = vld [vmem:[%s5] sm:$0x1]
        %v7532 = vperm.slane %v7530, 0
        %v7966 = vunpack.c.l.b16 %v7098
        %v7967 = vunpack.c.l.b16 %v7099
        %v7968 = vunpack.c.l.b16 %v7100
        %v7969 = vunpack.c.l.b16 %v7101
        %v7970 = vunpack.c.l.b16 %v7102
        %v7971 = vunpack.c.l.b16 %v7103
        %v7972 = vunpack.c.l.b16 %v7104
        %v7973 = vunpack.c.l.b16 %v7105
        %v7974 = vunpack.c.l.b16 %v7106
        %v7975 = vunpack.c.l.b16 %v7107
        %v7976 = vunpack.c.l.b16 %v7108
        %v7977 = vunpack.c.l.b16 %v7109
        %v7978 = vunpack.c.l.b16 %v7110
        %v7979 = vunpack.c.l.b16 %v7111
        %v7980 = vunpack.c.l.b16 %v7112
        %v7981 = vunpack.c.l.b16 %v7113
        %v7982 = vunpack.c.l.b16 %v7114
        %v7983 = vunpack.c.l.b16 %v7115
        %v7984 = vunpack.c.l.b16 %v7116
        %v7985 = vunpack.c.l.b16 %v7117
        %v7986 = vunpack.c.l.b16 %v7118
        %v7987 = vunpack.c.l.b16 %v7119
        %v7988 = vunpack.c.l.b16 %v7120
        %v7989 = vunpack.c.l.b16 %v7121
        %v7990 = vunpack.c.l.b16 %v7122
        %v7991 = vunpack.c.l.b16 %v7123
        %v7992 = vunpack.c.l.b16 %v7124
        %v7993 = vunpack.c.l.b16 %v7125
        %v7994 = vunpack.c.l.b16 %v7126
        %v7995 = vunpack.c.l.b16 %v7127
        %v7996 = vunpack.c.l.b16 %v7128
        %v7997 = vunpack.c.l.b16 %v7129
        %v7998 = vunpack.c.l.b16 %v7130
        %v7999 = vunpack.c.l.b16 %v7131
        %v8000 = vunpack.c.l.b16 %v7132
        %v8001 = vunpack.c.l.b16 %v7133
        %v8002 = vunpack.c.l.b16 %v7134
        %v8003 = vunpack.c.l.b16 %v7135
        %v8004 = vunpack.c.l.b16 %v7136
        %v8005 = vunpack.c.l.b16 %v7137
        %v8006 = vunpack.c.l.b16 %v7138
        %v8007 = vunpack.c.l.b16 %v7139
        %v8008 = vunpack.c.l.b16 %v7140
        %v8009 = vunpack.c.l.b16 %v7141
        %v8010 = vunpack.c.l.b16 %v7142
        %v8011 = vunpack.c.l.b16 %v7143
        %v8012 = vunpack.c.l.b16 %v7144
        %v8013 = vunpack.c.l.b16 %v7145
        %v8014 = vunpack.c.l.b16 %v7146
        %v8015 = vunpack.c.l.b16 %v7147
        %v8016 = vunpack.c.l.b16 %v7148
        %v8017 = vunpack.c.l.b16 %v7149
        %v8018 = vunpack.c.l.b16 %v7150
        %v8019 = vunpack.c.l.b16 %v7151
        %v8020 = vunpack.c.l.b16 %v7152
        %v8021 = vunpack.c.l.b16 %v7153
        %v8022 = vunpack.c.l.b16 %v7154
        %v8023 = vunpack.c.l.b16 %v7155
        %v8024 = vunpack.c.l.b16 %v7156
        %v8025 = vunpack.c.l.b16 %v7157
        %v8026 = vunpack.c.l.b16 %v7158
        %v8027 = vunpack.c.l.b16 %v7159
        %v8028 = vunpack.c.l.b16 %v7160
        %v8029 = vunpack.c.l.b16 %v7161
        %v8030 = vunpack.c.l.b16 %v7162
        %v8031 = vunpack.c.l.b16 %v7163
        %v8032 = vunpack.c.l.b16 %v7164
        %v8033 = vunpack.c.l.b16 %v7165
        %v8034 = vunpack.c.l.b16 %v7166
        %v8035 = vunpack.c.l.b16 %v7167
        %v8036 = vunpack.c.l.b16 %v7168
        %v8037 = vunpack.c.l.b16 %v7169
        %v8038 = vunpack.c.l.b16 %v7170
        %v8039 = vunpack.c.l.b16 %v7171
        %v8040 = vunpack.c.l.b16 %v7172
        %v8041 = vunpack.c.l.b16 %v7173
        %v8042 = vunpack.c.l.b16 %v7174
        %v8043 = vunpack.c.l.b16 %v7175
        %v8044 = vunpack.c.l.b16 %v7176
        %v8045 = vunpack.c.l.b16 %v7177
        %v8046 = vunpack.c.l.b16 %v7178
        %v8047 = vunpack.c.l.b16 %v7179
        %v8048 = vunpack.c.l.b16 %v7180
        %v8049 = vunpack.c.l.b16 %v7181
        %v8050 = vunpack.c.l.b16 %v7182
        %v8051 = vunpack.c.l.b16 %v7183
        %v8052 = vunpack.c.l.b16 %v7184
        %v8053 = vunpack.c.l.b16 %v7185
        %v8054 = vunpack.c.l.b16 %v7186
        %v8055 = vunpack.c.l.b16 %v7187
        %v8056 = vunpack.c.l.b16 %v7188
        %v8057 = vunpack.c.l.b16 %v7189
        %v8058 = vunpack.c.l.b16 %v7190
        %v8059 = vunpack.c.l.b16 %v7191
        %v8060 = vunpack.c.l.b16 %v7192
        %v8061 = vunpack.c.l.b16 %v7193
        %v8062 = vunpack.c.l.b16 %v7194
        %v8063 = vunpack.c.l.b16 %v7195
        %v8064 = vunpack.c.l.b16 %v7196
        %v8065 = vunpack.c.l.b16 %v7197
        %v8066 = vunpack.c.l.b16 %v7198
        %v8067 = vunpack.c.l.b16 %v7199
        %v8068 = vunpack.c.l.b16 %v7200
        %v8069 = vunpack.c.l.b16 %v7201
        %v8070 = vunpack.c.l.b16 %v7202
        %v8071 = vunpack.c.l.b16 %v7203
        %v8072 = vunpack.c.l.b16 %v7204
        %v8073 = vunpack.c.l.b16 %v7205
        %v8074 = vunpack.c.l.b16 %v7206
        %v8075 = vunpack.c.l.b16 %v7207
        %v8076 = vunpack.c.l.b16 %v7208
        %v8077 = vunpack.c.l.b16 %v7209
        %v8078 = vunpack.c.l.b16 %v7210
        %v8079 = vunpack.c.l.b16 %v7211
        %v8080 = vunpack.c.l.b16 %v7212
        %v8081 = vunpack.c.l.b16 %v7213
        %v8082 = vunpack.c.l.b16 %v7214
        %v8083 = vunpack.c.l.b16 %v7215
        %v8084 = vunpack.c.l.b16 %v7216
        %v8085 = vunpack.c.l.b16 %v7217
        %v8086 = vunpack.c.l.b16 %v7218
        %v8087 = vunpack.c.l.b16 %v7219
        %v8088 = vunpack.c.l.b16 %v7220
        %v8089 = vunpack.c.l.b16 %v7221
        %v8090 = vunpack.c.l.b16 %v7222
        %v8091 = vunpack.c.l.b16 %v7223
        %v8092 = vunpack.c.l.b16 %v7224
        %v8093 = vunpack.c.l.b16 %v7225
        %v8094 = vunpack.c.l.b16 %v7226
        %v8095 = vunpack.c.l.b16 %v7227
        %v8096 = vunpack.c.l.b16 %v7228
        %v8097 = vunpack.c.l.b16 %v7229
        %v8098 = vunpack.c.l.b16 %v7230
        %v8099 = vunpack.c.l.b16 %v7231
        %v8100 = vunpack.c.l.b16 %v7232
        %v8101 = vunpack.c.l.b16 %v7233
        %v8102 = vunpack.c.l.b16 %v7234
        %v8103 = vunpack.c.l.b16 %v7235
        %v8104 = vunpack.c.l.b16 %v7236
        %v8105 = vunpack.c.l.b16 %v7237
        %v8106 = vunpack.c.l.b16 %v7238
        %v8107 = vunpack.c.l.b16 %v7239
        %v8108 = vunpack.c.l.b16 %v7240
        %v8109 = vunpack.c.l.b16 %v7241
        %v8110 = vunpack.c.l.b16 %v7242
        %v8111 = vunpack.c.l.b16 %v7243
        %v8112 = vunpack.c.l.b16 %v7244
        %v8113 = vunpack.c.l.b16 %v7245
        %v8114 = vunpack.c.l.b16 %v7246
        %v8115 = vunpack.c.l.b16 %v7247
        %v8116 = vunpack.c.l.b16 %v7248
        %v8117 = vunpack.c.l.b16 %v7249
        %v8118 = vunpack.c.l.b16 %v7250
        %v8119 = vunpack.c.l.b16 %v7251
        %v8120 = vunpack.c.l.b16 %v7252
        %v8121 = vunpack.c.l.b16 %v7253
        %v8122 = vunpack.c.l.b16 %v7254
        %v8123 = vunpack.c.l.b16 %v7255
        %v8124 = vunpack.c.l.b16 %v7256
        %v8125 = vunpack.c.l.b16 %v7257
        %v8126 = vunpack.c.l.b16 %v7258
        %v8127 = vunpack.c.l.b16 %v7259
        %v8128 = vunpack.c.l.b16 %v7260
        %v8129 = vunpack.c.l.b16 %v7261
        %v8130 = vunpack.c.l.b16 %v7262
        %v8131 = vunpack.c.l.b16 %v7263
        %v8132 = vunpack.c.l.b16 %v7264
        %v8133 = vunpack.c.l.b16 %v7265
        %v8134 = vunpack.c.l.b16 %v7266
        %v8135 = vunpack.c.l.b16 %v7267
        %v8136 = vunpack.c.l.b16 %v7268
        %v8137 = vunpack.c.l.b16 %v7269
        %v8138 = vunpack.c.l.b16 %v7270
        %v8139 = vunpack.c.l.b16 %v7271
        %v8140 = vunpack.c.l.b16 %v7272
        %v8141 = vunpack.c.l.b16 %v7273
        %v8142 = vunpack.c.l.b16 %v7274
        %v8143 = vunpack.c.l.b16 %v7275
        %v8144 = vunpack.c.l.b16 %v7276
        %v8145 = vunpack.c.l.b16 %v7277
        %v8146 = vunpack.c.l.b16 %v7278
        %v8147 = vunpack.c.l.b16 %v7279
        %v8148 = vunpack.c.l.b16 %v7280
        %v8149 = vunpack.c.l.b16 %v7281
        %v8150 = vunpack.c.l.b16 %v7282
        %v8151 = vunpack.c.l.b16 %v7283
        %v8152 = vunpack.c.l.b16 %v7284
        %v8153 = vunpack.c.l.b16 %v7285
        %v8154 = vunpack.c.l.b16 %v7286
        %v8155 = vunpack.c.l.b16 %v7287
        %v8156 = vunpack.c.l.b16 %v7288
        %v8157 = vunpack.c.l.b16 %v7289
        %v8158 = vunpack.c.l.b16 %v7290
        %v8159 = vunpack.c.l.b16 %v7291
        %v8160 = vunpack.c.l.b16 %v7292
        %v8161 = vunpack.c.l.b16 %v7293
        %v8162 = vunpack.c.l.b16 %v7294
        %v8163 = vunpack.c.l.b16 %v7295
        %v8164 = vunpack.c.l.b16 %v7296
        %v8165 = vunpack.c.l.b16 %v7297
        %v8166 = vunpack.c.l.b16 %v7298
        %v8167 = vunpack.c.l.b16 %v7299
        %v8168 = vunpack.c.l.b16 %v7300
        %v8169 = vunpack.c.l.b16 %v7301
        %v8170 = vunpack.c.l.b16 %v7302
        %v8171 = vunpack.c.l.b16 %v7303
        %v8172 = vunpack.c.l.b16 %v7304
        %v8173 = vunpack.c.l.b16 %v7305
        %v8174 = vunpack.c.l.b16 %v7306
        %v8175 = vunpack.c.l.b16 %v7307
        %v8176 = vunpack.c.l.b16 %v7308
        %v8177 = vunpack.c.l.b16 %v7309
        %v8178 = vunpack.c.l.b16 %v7310
        %v8179 = vunpack.c.l.b16 %v7311
        %v8180 = vunpack.c.l.b16 %v7312
        %v8181 = vunpack.c.l.b16 %v7313
        %v8182 = vunpack.c.l.b16 %v7314
        %v8183 = vunpack.c.l.b16 %v7315
        %v8184 = vunpack.c.l.b16 %v7316
        %v8185 = vunpack.c.l.b16 %v7317
        %v8186 = vunpack.c.l.b16 %v7318
        %v8187 = vunpack.c.l.b16 %v7319
        %v8188 = vunpack.c.l.b16 %v7320
        %v8189 = vunpack.c.l.b16 %v7321
        %v8190 = vunpack.c.l.b16 %v7322
        %v8191 = vunpack.c.l.b16 %v7323
        %v8192 = vunpack.c.l.b16 %v7324
        %v8193 = vunpack.c.l.b16 %v7325
        %v8194 = vunpack.c.l.b16 %v7326
        %v8195 = vunpack.c.l.b16 %v7327
        %v8196 = vunpack.c.l.b16 %v7328
        %v8197 = vunpack.c.l.b16 %v7329
        %v8198 = vunpack.c.l.b16 %v7330
        %v8199 = vunpack.c.l.b16 %v7331
        %v8200 = vunpack.c.l.b16 %v7332
        %v8201 = vunpack.c.l.b16 %v7333
        %v8202 = vunpack.c.l.b16 %v7334
        %v8203 = vunpack.c.l.b16 %v7335
        %v8204 = vunpack.c.l.b16 %v7336
        %v8205 = vunpack.c.l.b16 %v7337
        %v8206 = vunpack.c.l.b16 %v7338
        %v8207 = vunpack.c.l.b16 %v7339
        %v8208 = vunpack.c.l.b16 %v7340
        %v8209 = vunpack.c.l.b16 %v7341
        %v8210 = vunpack.c.l.b16 %v7342
        %v8211 = vunpack.c.l.b16 %v7343
        %v8212 = vunpack.c.l.b16 %v7344
        %v8213 = vunpack.c.l.b16 %v7345
        %v8214 = vunpack.c.l.b16 %v7346
        %v8215 = vunpack.c.l.b16 %v7347
        %v8216 = vunpack.c.l.b16 %v7348
        %v8217 = vunpack.c.l.b16 %v7349
        %v8218 = vunpack.c.l.b16 %v7350
        %v8219 = vunpack.c.l.b16 %v7351
        %v8220 = vunpack.c.l.b16 %v7352
        %v8221 = vunpack.c.l.b16 %v7353
        %v8222 = vunpack.c.l.b16 %v7354
        %v8223 = vunpack.c.l.b16 %v7355
        %v8224 = vunpack.c.l.b16 %v7356
        %v8225 = vunpack.c.l.b16 %v7357
        %v8226 = vunpack.c.l.b16 %v7358
        %v8227 = vunpack.c.l.b16 %v7359
        %v8228 = vunpack.c.l.b16 %v7360
        %v8229 = vunpack.c.l.b16 %v7361
        %v8230 = vunpack.c.l.b16 %v7362
        %v8231 = vunpack.c.l.b16 %v7363
        %v8232 = vunpack.c.l.b16 %v7364
        %v8233 = vunpack.c.l.b16 %v7365
        %v8234 = vunpack.c.l.b16 %v7366
        %v8235 = vunpack.c.l.b16 %v7367
        %v8236 = vunpack.c.l.b16 %v7368
        %v8237 = vunpack.c.l.b16 %v7369
        %v8238 = vunpack.c.l.b16 %v7370
        %v8239 = vunpack.c.l.b16 %v7371
        %v8240 = vunpack.c.l.b16 %v7372
        %v8241 = vunpack.c.l.b16 %v7373
        %v8242 = vunpack.c.l.b16 %v7374
        %v8243 = vunpack.c.l.b16 %v7375
        %v8244 = vunpack.c.l.b16 %v7376
        %v8245 = vunpack.c.l.b16 %v7377
        %v8246 = vunpack.c.l.b16 %v7378
        %v8247 = vunpack.c.l.b16 %v7379
        %v8248 = vunpack.c.l.b16 %v7380
        %v8249 = vunpack.c.l.b16 %v7381
        %v8250 = vunpack.c.l.b16 %v7382
        %v8251 = vunpack.c.l.b16 %v7383
        %v8252 = vunpack.c.l.b16 %v7384
        %v8253 = vunpack.c.l.b16 %v7385
        %v8254 = vunpack.c.l.b16 %v7386
        %v8255 = vunpack.c.l.b16 %v7387
        %v8256 = vunpack.c.l.b16 %v7388
        %v8257 = vunpack.c.l.b16 %v7389
        %v8258 = vunpack.c.l.b16 %v7390
        %v8259 = vunpack.c.l.b16 %v7391
        %v8260 = vunpack.c.l.b16 %v7392
        %v8261 = vunpack.c.l.b16 %v7393
        %v8262 = vunpack.c.l.b16 %v7394
        %v8263 = vunpack.c.l.b16 %v7395
        %v8264 = vunpack.c.l.b16 %v7396
        %v8265 = vunpack.c.l.b16 %v7397
        %v8266 = vunpack.c.l.b16 %v7398
        %v8267 = vunpack.c.l.b16 %v7399
        %v8268 = vunpack.c.l.b16 %v7400
        %v8269 = vunpack.c.l.b16 %v7401
        %v8270 = vunpack.c.l.b16 %v7402
        %v8271 = vunpack.c.l.b16 %v7403
        %v8272 = vunpack.c.l.b16 %v7404
        %v8273 = vunpack.c.l.b16 %v7405
        %v8274 = vunpack.c.l.b16 %v7406
        %v8275 = vunpack.c.l.b16 %v7407
        %v8276 = vunpack.c.l.b16 %v7408
        %v8277 = vunpack.c.l.b16 %v7409
        %v8278 = vunpack.c.l.b16 %v7410
        %v8279 = vunpack.c.l.b16 %v7411
        %v8280 = vunpack.c.l.b16 %v7412
        %v8281 = vunpack.c.l.b16 %v7413
        %v8282 = vunpack.c.l.b16 %v7414
        %v8283 = vunpack.c.l.b16 %v7415
        %v8284 = vunpack.c.l.b16 %v7416
        %v8285 = vunpack.c.l.b16 %v7417
        %v8286 = vunpack.c.l.b16 %v7418
        %v8287 = vunpack.c.l.b16 %v7419
        %v8288 = vunpack.c.l.b16 %v7420
        %v8289 = vunpack.c.l.b16 %v7421
        %v8290 = vunpack.c.l.b16 %v7422
        %v8291 = vunpack.c.l.b16 %v7423
        %v8292 = vunpack.c.l.b16 %v7424
        %v8293 = vunpack.c.l.b16 %v7425
        %v8294 = vunpack.c.l.b16 %v7426
        %v8295 = vunpack.c.l.b16 %v7427
        %v8296 = vunpack.c.l.b16 %v7428
        %v8297 = vunpack.c.l.b16 %v7429
        %v8298 = vunpack.c.l.b16 %v7430
        %v8299 = vunpack.c.l.b16 %v7431
        %v8300 = vunpack.c.l.b16 %v7432
        %v8301 = vunpack.c.l.b16 %v7433
        %v8302 = vunpack.c.l.b16 %v7434
        %v8303 = vunpack.c.l.b16 %v7435
        %v8304 = vunpack.c.l.b16 %v7436
        %v8305 = vunpack.c.l.b16 %v7437
        %v8306 = vunpack.c.l.b16 %v7438
        %v8307 = vunpack.c.l.b16 %v7439
        %v8308 = vunpack.c.l.b16 %v7440
        %v8309 = vunpack.c.l.b16 %v7441
        %v8310 = vunpack.c.l.b16 %v7442
        %v8311 = vunpack.c.l.b16 %v7443
        %v8312 = vunpack.c.l.b16 %v7444
        %v8313 = vunpack.c.l.b16 %v7445
        %v8314 = vunpack.c.l.b16 %v7446
        %v8315 = vunpack.c.l.b16 %v7447
        %v8316 = vunpack.c.l.b16 %v7448
        %v8317 = vunpack.c.l.b16 %v7449
        %v8318 = vunpack.c.l.b16 %v7450
        %v8319 = vunpack.c.l.b16 %v7451
        %v8320 = vunpack.c.l.b16 %v7452
        %v8321 = vunpack.c.l.b16 %v7453
        %v8322 = vunpack.c.l.b16 %v7454
        %v8323 = vunpack.c.l.b16 %v7455
        %v8324 = vunpack.c.l.b16 %v7456
        %v8325 = vunpack.c.l.b16 %v7457
        %v8326 = vunpack.c.l.b16 %v7458
        %v8327 = vunpack.c.l.b16 %v7459
        %v8328 = vunpack.c.l.b16 %v7460
        %v8329 = vunpack.c.l.b16 %v7461
        %v8330 = vunpack.c.l.b16 %v7462
        %v8331 = vunpack.c.l.b16 %v7463
        %v8332 = vunpack.c.l.b16 %v7464
        %v8333 = vunpack.c.l.b16 %v7465
        %v8334 = vunpack.c.l.b16 %v7466
        %v8335 = vunpack.c.l.b16 %v7467
        %v8336 = vunpack.c.l.b16 %v7468
        %v8337 = vunpack.c.l.b16 %v7469
        %v8338 = vunpack.c.l.b16 %v7470
        %v8339 = vunpack.c.l.b16 %v7471
        %v8340 = vunpack.c.l.b16 %v7472
        %v8341 = vunpack.c.l.b16 %v7473
        %v8342 = vunpack.c.l.b16 %v7474
        %v8343 = vunpack.c.l.b16 %v7475
        %v8344 = vunpack.c.l.b16 %v7476
        %v8345 = vunpack.c.l.b16 %v7477
        %v8346 = vunpack.c.l.b16 %v7478
        %v8347 = vunpack.c.l.b16 %v7479
        %v8348 = vunpack.c.l.b16 %v7480
        %v8349 = vunpack.c.l.b16 %v7481
        %v8350 = vunpack.c.l.b16 %v7482
        %v8351 = vunpack.c.l.b16 %v7483
        %v8352 = vunpack.c.l.b16 %v7484
        %v8353 = vunpack.c.l.b16 %v7485
        %v8354 = vunpack.c.l.b16 %v7486
        %v8355 = vunpack.c.l.b16 %v7487
        %v8356 = vunpack.c.l.b16 %v7488
        %v8357 = vunpack.c.l.b16 %v7489
        %v8358 = vunpack.c.l.b16 %v7490
        %v8359 = vunpack.c.l.b16 %v7491
        %v8360 = vunpack.c.l.b16 %v7492
        %v8361 = vunpack.c.l.b16 %v7493
        %v8362 = vunpack.c.l.b16 %v7494
        %v8363 = vunpack.c.l.b16 %v7495
        %v8364 = vunpack.c.l.b16 %v7496
        %v8365 = vunpack.c.l.b16 %v7497
        %v8366 = vunpack.c.l.b16 %v7498
        %v8367 = vunpack.c.l.b16 %v7499
        %v8368 = vunpack.c.l.b16 %v7500
        %v8369 = vunpack.c.l.b16 %v7501
        %v8370 = vunpack.c.l.b16 %v7502
        %v8371 = vunpack.c.l.b16 %v7503
        %v8372 = vunpack.c.l.b16 %v7504
        %v8373 = vunpack.c.l.b16 %v7505
        %v8374 = vunpack.c.l.b16 %v7506
        %v8375 = vunpack.c.l.b16 %v7507
        %v8376 = vunpack.c.l.b16 %v7508
        %v8377 = vunpack.c.l.b16 %v7509
        %v8378 = vunpack.c.l.b16 %v7510
        %v8379 = vunpack.c.l.b16 %v7511
        %v8380 = vunpack.c.l.b16 %v7512
        %v8381 = vunpack.c.l.b16 %v7513
        %v8382 = vunpack.c.l.b16 %v7514
        %v8383 = vunpack.c.l.b16 %v7515
        %v8384 = vunpack.c.l.b16 %v7516
        %v8385 = vunpack.c.l.b16 %v7517
        %v8386 = vunpack.c.l.b16 %v7518
        %v8387 = vunpack.c.l.b16 %v7519
        %v8388 = vunpack.c.l.b16 %v7520
        %v8389 = vunpack.c.l.b16 %v7521
        %v8390 = vunpack.c.l.b16 %v7522
        %v8391 = vunpack.c.l.b16 %v7523
        %v8392 = vunpack.c.l.b16 %v7524
        %v8393 = vunpack.c.l.b16 %v7525
        %v8394 = vunpack.c.l.b16 %v7526
        %v8395 = vunpack.c.l.b16 %v7527
        %v8396 = vunpack.c.l.b16 %v7528
        %v8397 = vunpack.c.l.b16 %v7529
        %v8398 = vpack.c.b16 %v7967, %v7966
        %v8399 = vpack.c.b16 %v7969, %v7968
        %v8400 = vpack.c.b16 %v7971, %v7970
        %v8401 = vpack.c.b16 %v7973, %v7972
        %v8402 = vpack.c.b16 %v7975, %v7974
        %v8403 = vpack.c.b16 %v7977, %v7976
        %v8404 = vpack.c.b16 %v7979, %v7978
        %v8405 = vpack.c.b16 %v7981, %v7980
        %v8406 = vpack.c.b16 %v7983, %v7982
        %v8407 = vpack.c.b16 %v7985, %v7984
        %v8408 = vpack.c.b16 %v7987, %v7986
        %v8409 = vpack.c.b16 %v7989, %v7988
        %v8410 = vpack.c.b16 %v7991, %v7990
        %v8411 = vpack.c.b16 %v7993, %v7992
        %v8412 = vpack.c.b16 %v7995, %v7994
        %v8413 = vpack.c.b16 %v7997, %v7996
        %v8414 = vpack.c.b16 %v7999, %v7998
        %v8415 = vpack.c.b16 %v8001, %v8000
        %v8416 = vpack.c.b16 %v8003, %v8002
        %v8417 = vpack.c.b16 %v8005, %v8004
        %v8418 = vpack.c.b16 %v8007, %v8006
        %v8419 = vpack.c.b16 %v8009, %v8008
        %v8420 = vpack.c.b16 %v8011, %v8010
        %v8421 = vpack.c.b16 %v8013, %v8012
        %v8422 = vpack.c.b16 %v8015, %v8014
        %v8423 = vpack.c.b16 %v8017, %v8016
        %v8424 = vpack.c.b16 %v8019, %v8018
        %v8425 = vpack.c.b16 %v8021, %v8020
        %v8426 = vpack.c.b16 %v8023, %v8022
        %v8427 = vpack.c.b16 %v8025, %v8024
        %v8428 = vpack.c.b16 %v8027, %v8026
        %v8429 = vpack.c.b16 %v8029, %v8028
        %v8430 = vpack.c.b16 %v8031, %v8030
        %v8431 = vpack.c.b16 %v8033, %v8032
        %v8432 = vpack.c.b16 %v8035, %v8034
        %v8433 = vpack.c.b16 %v8037, %v8036
        %v8434 = vpack.c.b16 %v8039, %v8038
        %v8435 = vpack.c.b16 %v8041, %v8040
        %v8436 = vpack.c.b16 %v8043, %v8042
        %v8437 = vpack.c.b16 %v8045, %v8044
        %v8438 = vpack.c.b16 %v8047, %v8046
        %v8439 = vpack.c.b16 %v8049, %v8048
        %v8440 = vpack.c.b16 %v8051, %v8050
        %v8441 = vpack.c.b16 %v8053, %v8052
        %v8442 = vpack.c.b16 %v8055, %v8054
        %v8443 = vpack.c.b16 %v8057, %v8056
        %v8444 = vpack.c.b16 %v8059, %v8058
        %v8445 = vpack.c.b16 %v8061, %v8060
        %v8446 = vpack.c.b16 %v8063, %v8062
        %v8447 = vpack.c.b16 %v8065, %v8064
        %v8448 = vpack.c.b16 %v8067, %v8066
        %v8449 = vpack.c.b16 %v8069, %v8068
        %v8450 = vpack.c.b16 %v8071, %v8070
        %v8451 = vpack.c.b16 %v8073, %v8072
        %v8452 = vpack.c.b16 %v8075, %v8074
        %v8453 = vpack.c.b16 %v8077, %v8076
        %v8454 = vpack.c.b16 %v8079, %v8078
        %v8455 = vpack.c.b16 %v8081, %v8080
        %v8456 = vpack.c.b16 %v8083, %v8082
        %v8457 = vpack.c.b16 %v8085, %v8084
        %v8458 = vpack.c.b16 %v8087, %v8086
        %v8459 = vpack.c.b16 %v8089, %v8088
        %v8460 = vpack.c.b16 %v8091, %v8090
        %v8461 = vpack.c.b16 %v8093, %v8092
        %v8462 = vpack.c.b16 %v8095, %v8094
        %v8463 = vpack.c.b16 %v8097, %v8096
        %v8464 = vpack.c.b16 %v8099, %v8098
        %v8465 = vpack.c.b16 %v8101, %v8100
        %v8466 = vpack.c.b16 %v8103, %v8102
        %v8467 = vpack.c.b16 %v8105, %v8104
        %v8468 = vpack.c.b16 %v8107, %v8106
        %v8469 = vpack.c.b16 %v8109, %v8108
        %v8470 = vpack.c.b16 %v8111, %v8110
        %v8471 = vpack.c.b16 %v8113, %v8112
        %v8472 = vpack.c.b16 %v8115, %v8114
        %v8473 = vpack.c.b16 %v8117, %v8116
        %v8474 = vpack.c.b16 %v8119, %v8118
        %v8475 = vpack.c.b16 %v8121, %v8120
        %v8476 = vpack.c.b16 %v8123, %v8122
        %v8477 = vpack.c.b16 %v8125, %v8124
        %v8478 = vpack.c.b16 %v8127, %v8126
        %v8479 = vpack.c.b16 %v8129, %v8128
        %v8480 = vpack.c.b16 %v8131, %v8130
        %v8481 = vpack.c.b16 %v8133, %v8132
        %v8482 = vpack.c.b16 %v8135, %v8134
        %v8483 = vpack.c.b16 %v8137, %v8136
        %v8484 = vpack.c.b16 %v8139, %v8138
        %v8485 = vpack.c.b16 %v8141, %v8140
        %v8486 = vpack.c.b16 %v8143, %v8142
        %v8487 = vpack.c.b16 %v8145, %v8144
        %v8488 = vpack.c.b16 %v8147, %v8146
        %v8489 = vpack.c.b16 %v8149, %v8148
        %v8490 = vpack.c.b16 %v8151, %v8150
        %v8491 = vpack.c.b16 %v8153, %v8152
        %v8492 = vpack.c.b16 %v8155, %v8154
        %v8493 = vpack.c.b16 %v8157, %v8156
        %v8494 = vpack.c.b16 %v8159, %v8158
        %v8495 = vpack.c.b16 %v8161, %v8160
        %v8496 = vpack.c.b16 %v8163, %v8162
        %v8497 = vpack.c.b16 %v8165, %v8164
        %v8498 = vpack.c.b16 %v8167, %v8166
        %v8499 = vpack.c.b16 %v8169, %v8168
        %v8500 = vpack.c.b16 %v8171, %v8170
        %v8501 = vpack.c.b16 %v8173, %v8172
        %v8502 = vpack.c.b16 %v8175, %v8174
        %v8503 = vpack.c.b16 %v8177, %v8176
        %v8504 = vpack.c.b16 %v8179, %v8178
        %v8505 = vpack.c.b16 %v8181, %v8180
        %v8506 = vpack.c.b16 %v8183, %v8182
        %v8507 = vpack.c.b16 %v8185, %v8184
        %v8508 = vpack.c.b16 %v8187, %v8186
        %v8509 = vpack.c.b16 %v8189, %v8188
        %v8510 = vpack.c.b16 %v8191, %v8190
        %v8511 = vpack.c.b16 %v8193, %v8192
        %v8512 = vpack.c.b16 %v8195, %v8194
        %v8513 = vpack.c.b16 %v8197, %v8196
        %v8514 = vpack.c.b16 %v8199, %v8198
        %v8515 = vpack.c.b16 %v8201, %v8200
        %v8516 = vpack.c.b16 %v8203, %v8202
        %v8517 = vpack.c.b16 %v8205, %v8204
        %v8518 = vpack.c.b16 %v8207, %v8206
        %v8519 = vpack.c.b16 %v8209, %v8208
        %v8520 = vpack.c.b16 %v8211, %v8210
        %v8521 = vpack.c.b16 %v8213, %v8212
        %v8522 = vpack.c.b16 %v8215, %v8214
        %v8523 = vpack.c.b16 %v8217, %v8216
        %v8524 = vpack.c.b16 %v8219, %v8218
        %v8525 = vpack.c.b16 %v8221, %v8220
        %v8526 = vpack.c.b16 %v8223, %v8222
        %v8527 = vpack.c.b16 %v8225, %v8224
        %v8528 = vpack.c.b16 %v8227, %v8226
        %v8529 = vpack.c.b16 %v8229, %v8228
        %v8530 = vpack.c.b16 %v8231, %v8230
        %v8531 = vpack.c.b16 %v8233, %v8232
        %v8532 = vpack.c.b16 %v8235, %v8234
        %v8533 = vpack.c.b16 %v8237, %v8236
        %v8534 = vpack.c.b16 %v8239, %v8238
        %v8535 = vpack.c.b16 %v8241, %v8240
        %v8536 = vpack.c.b16 %v8243, %v8242
        %v8537 = vpack.c.b16 %v8245, %v8244
        %v8538 = vpack.c.b16 %v8247, %v8246
        %v8539 = vpack.c.b16 %v8249, %v8248
        %v8540 = vpack.c.b16 %v8251, %v8250
        %v8541 = vpack.c.b16 %v8253, %v8252
        %v8542 = vpack.c.b16 %v8255, %v8254
        %v8543 = vpack.c.b16 %v8257, %v8256
        %v8544 = vpack.c.b16 %v8259, %v8258
        %v8545 = vpack.c.b16 %v8261, %v8260
        %v8546 = vpack.c.b16 %v8263, %v8262
        %v8547 = vpack.c.b16 %v8265, %v8264
        %v8548 = vpack.c.b16 %v8267, %v8266
        %v8549 = vpack.c.b16 %v8269, %v8268
        %v8550 = vpack.c.b16 %v8271, %v8270
        %v8551 = vpack.c.b16 %v8273, %v8272
        %v8552 = vpack.c.b16 %v8275, %v8274
        %v8553 = vpack.c.b16 %v8277, %v8276
        %v8554 = vpack.c.b16 %v8279, %v8278
        %v8555 = vpack.c.b16 %v8281, %v8280
        %v8556 = vpack.c.b16 %v8283, %v8282
        %v8557 = vpack.c.b16 %v8285, %v8284
        %v8558 = vpack.c.b16 %v8287, %v8286
        %v8559 = vpack.c.b16 %v8289, %v8288
        %v8560 = vpack.c.b16 %v8291, %v8290
        %v8561 = vpack.c.b16 %v8293, %v8292
        %v8562 = vpack.c.b16 %v8295, %v8294
        %v8563 = vpack.c.b16 %v8297, %v8296
        %v8564 = vpack.c.b16 %v8299, %v8298
        %v8565 = vpack.c.b16 %v8301, %v8300
        %v8566 = vpack.c.b16 %v8303, %v8302
        %v8567 = vpack.c.b16 %v8305, %v8304
        %v8568 = vpack.c.b16 %v8307, %v8306
        %v8569 = vpack.c.b16 %v8309, %v8308
        %v8570 = vpack.c.b16 %v8311, %v8310
        %v8571 = vpack.c.b16 %v8313, %v8312
        %v8572 = vpack.c.b16 %v8315, %v8314
        %v8573 = vpack.c.b16 %v8317, %v8316
        %v8574 = vpack.c.b16 %v8319, %v8318
        %v8575 = vpack.c.b16 %v8321, %v8320
        %v8576 = vpack.c.b16 %v8323, %v8322
        %v8577 = vpack.c.b16 %v8325, %v8324
        %v8578 = vpack.c.b16 %v8327, %v8326
        %v8579 = vpack.c.b16 %v8329, %v8328
        %v8580 = vpack.c.b16 %v8331, %v8330
        %v8581 = vpack.c.b16 %v8333, %v8332
        %v8582 = vpack.c.b16 %v8335, %v8334
        %v8583 = vpack.c.b16 %v8337, %v8336
        %v8584 = vpack.c.b16 %v8339, %v8338
        %v8585 = vpack.c.b16 %v8341, %v8340
        %v8586 = vpack.c.b16 %v8343, %v8342
        %v8587 = vpack.c.b16 %v8345, %v8344
        %v8588 = vpack.c.b16 %v8347, %v8346
        %v8589 = vpack.c.b16 %v8349, %v8348
        %v8590 = vpack.c.b16 %v8351, %v8350
        %v8591 = vpack.c.b16 %v8353, %v8352
        %v8592 = vpack.c.b16 %v8355, %v8354
        %v8593 = vpack.c.b16 %v8357, %v8356
        %v8594 = vpack.c.b16 %v8359, %v8358
        %v8595 = vpack.c.b16 %v8361, %v8360
        %v8596 = vpack.c.b16 %v8363, %v8362
        %v8597 = vpack.c.b16 %v8365, %v8364
        %v8598 = vpack.c.b16 %v8367, %v8366
        %v8599 = vpack.c.b16 %v8369, %v8368
        %v8600 = vpack.c.b16 %v8371, %v8370
        %v8601 = vpack.c.b16 %v8373, %v8372
        %v8602 = vpack.c.b16 %v8375, %v8374
        %v8603 = vpack.c.b16 %v8377, %v8376
        %v8604 = vpack.c.b16 %v8379, %v8378
        %v8605 = vpack.c.b16 %v8381, %v8380
        %v8606 = vpack.c.b16 %v8383, %v8382
        %v8607 = vpack.c.b16 %v8385, %v8384
        %v8608 = vpack.c.b16 %v8387, %v8386
        %v8609 = vpack.c.b16 %v8389, %v8388
        %v8610 = vpack.c.b16 %v8391, %v8390
        %v8611 = vpack.c.b16 %v8393, %v8392
        %v8612 = vpack.c.b16 %v8395, %v8394
        %v8613 = vpack.c.b16 %v8397, %v8396
        %8830 = vmatpush.bf16.msra.mxu0 %v8405
        %8831 = vmatpush.bf16.msra.mxu0 %v8404
        %8832 = vmatpush.bf16.msra.mxu0 %v8403
        %8833 = vmatpush.bf16.msra.mxu0 %v8402
        %8834 = vmatpush.bf16.msra.mxu0 %v8401
        %8835 = vmatpush.bf16.msra.mxu0 %v8400
        %8836 = vmatpush.bf16.msra.mxu0 %v8399
        %8837 = vmatpush.bf16.msra.mxu0 %v8398
        %8838 = vmatmul.bf16.gmra.mxu0 %v7044
        %v8839 = vpop.f32.mrf.mxu0
        %v8840 = vadd.f32 %v7532, %v8839
        %v8841 = vpop.f32.mrf.mxu0
        %v8842 = vadd.f32 %v7532, %v8841
        %8843 = vmatmul.bf16.gmra.mxu0 %v7071
        %v8844 = vpop.f32.mrf.mxu0
        %v8845 = vadd.f32 %v7532, %v8844
        %v8846 = vpop.f32.mrf.mxu0
        %v8847 = vadd.f32 %v7532, %v8846
        %8848 = vdwg.mxu0
        %8849 = vmatpush.bf16.msra.mxu0 %v8413
        %8850 = vmatpush.bf16.msra.mxu0 %v8412
        %8851 = vmatpush.bf16.msra.mxu0 %v8411
        %8852 = vmatpush.bf16.msra.mxu0 %v8410
        %8853 = vmatpush.bf16.msra.mxu0 %v8409
        %8854 = vmatpush.bf16.msra.mxu0 %v8408
        %8855 = vmatpush.bf16.msra.mxu0 %v8407
        %8856 = vmatpush.bf16.msra.mxu0 %v8406
        %8857 = vmatmul.bf16.gmra.mxu0 %v7045
        %v8858 = vpop.f32.mrf.mxu0
        %v8859 = vadd.f32 %v8840, %v8858
        %v8860 = vpop.f32.mrf.mxu0
        %v8861 = vadd.f32 %v8842, %v8860
        %8862 = vmatmul.bf16.gmra.mxu0 %v7072
        %v8863 = vpop.f32.mrf.mxu0
        %v8864 = vadd.f32 %v8845, %v8863
        %v8865 = vpop.f32.mrf.mxu0
        %v8866 = vadd.f32 %v8847, %v8865
        %8867 = vdwg.mxu0
        %8868 = vmatpush.bf16.msra.mxu0 %v8421
        %8869 = vmatpush.bf16.msra.mxu0 %v8420
        %8870 = vmatpush.bf16.msra.mxu0 %v8419
        %8871 = vmatpush.bf16.msra.mxu0 %v8418
        %8872 = vmatpush.bf16.msra.mxu0 %v8417
        %8873 = vmatpush.bf16.msra.mxu0 %v8416
        %8874 = vmatpush.bf16.msra.mxu0 %v8415
        %8875 = vmatpush.bf16.msra.mxu0 %v8414
        %8876 = vmatmul.bf16.gmra.mxu0 %v7046
        %v8877 = vpop.f32.mrf.mxu0
        %v8878 = vadd.f32 %v8859, %v8877
        %v8879 = vpop.f32.mrf.mxu0
        %v8880 = vadd.f32 %v8861, %v8879
        %8881 = vmatmul.bf16.gmra.mxu0 %v7073
        %v8882 = vpop.f32.mrf.mxu0
        %v8883 = vadd.f32 %v8864, %v8882
        %v8884 = vpop.f32.mrf.mxu0
        %v8885 = vadd.f32 %v8866, %v8884
        %8886 = vdwg.mxu0
        %8887 = vmatpush.bf16.msra.mxu0 %v8429
        %8888 = vmatpush.bf16.msra.mxu0 %v8428
        %8889 = vmatpush.bf16.msra.mxu0 %v8427
        %8890 = vmatpush.bf16.msra.mxu0 %v8426
        %8891 = vmatpush.bf16.msra.mxu0 %v8425
        %8892 = vmatpush.bf16.msra.mxu0 %v8424
        %8893 = vmatpush.bf16.msra.mxu0 %v8423
        %8894 = vmatpush.bf16.msra.mxu0 %v8422
        %8895 = vmatmul.bf16.gmra.mxu0 %v7047
        %v8896 = vpop.f32.mrf.mxu0
        %v8897 = vadd.f32 %v8878, %v8896
        %v8898 = vpop.f32.mrf.mxu0
        %v8899 = vadd.f32 %v8880, %v8898
        %8900 = vmatmul.bf16.gmra.mxu0 %v7074
        %v8901 = vpop.f32.mrf.mxu0
        %v8902 = vadd.f32 %v8883, %v8901
        %v8903 = vpop.f32.mrf.mxu0
        %v8904 = vadd.f32 %v8885, %v8903
        %8905 = vdwg.mxu0
        %8906 = vmatpush.bf16.msra.mxu0 %v8437
        %8907 = vmatpush.bf16.msra.mxu0 %v8436
        %8908 = vmatpush.bf16.msra.mxu0 %v8435
        %8909 = vmatpush.bf16.msra.mxu0 %v8434
        %8910 = vmatpush.bf16.msra.mxu0 %v8433
        %8911 = vmatpush.bf16.msra.mxu0 %v8432
        %8912 = vmatpush.bf16.msra.mxu0 %v8431
        %8913 = vmatpush.bf16.msra.mxu0 %v8430
        %8914 = vmatmul.bf16.gmra.mxu0 %v7048
        %v8915 = vpop.f32.mrf.mxu0
        %v8916 = vadd.f32 %v8897, %v8915
        %v8917 = vpop.f32.mrf.mxu0
        %v8918 = vadd.f32 %v8899, %v8917
        %8919 = vmatmul.bf16.gmra.mxu0 %v7075
        %v8920 = vpop.f32.mrf.mxu0
        %v8921 = vadd.f32 %v8902, %v8920
        %v8922 = vpop.f32.mrf.mxu0
        %v8923 = vadd.f32 %v8904, %v8922
        %8924 = vdwg.mxu0
        %8925 = vmatpush.bf16.msra.mxu0 %v8445
        %8926 = vmatpush.bf16.msra.mxu0 %v8444
        %8927 = vmatpush.bf16.msra.mxu0 %v8443
        %8928 = vmatpush.bf16.msra.mxu0 %v8442
        %8929 = vmatpush.bf16.msra.mxu0 %v8441
        %8930 = vmatpush.bf16.msra.mxu0 %v8440
        %8931 = vmatpush.bf16.msra.mxu0 %v8439
        %8932 = vmatpush.bf16.msra.mxu0 %v8438
        %8933 = vmatmul.bf16.gmra.mxu0 %v7049
        %v8934 = vpop.f32.mrf.mxu0
        %v8935 = vadd.f32 %v8916, %v8934
        %v8936 = vpop.f32.mrf.mxu0
        %v8937 = vadd.f32 %v8918, %v8936
        %8938 = vmatmul.bf16.gmra.mxu0 %v7076
        %v8939 = vpop.f32.mrf.mxu0
        %v8940 = vadd.f32 %v8921, %v8939
        %v8941 = vpop.f32.mrf.mxu0
        %v8942 = vadd.f32 %v8923, %v8941
        %8943 = vdwg.mxu0
        %8944 = vmatpush.bf16.msra.mxu0 %v8453
        %8945 = vmatpush.bf16.msra.mxu0 %v8452
        %8946 = vmatpush.bf16.msra.mxu0 %v8451
        %8947 = vmatpush.bf16.msra.mxu0 %v8450
        %8948 = vmatpush.bf16.msra.mxu0 %v8449
        %8949 = vmatpush.bf16.msra.mxu0 %v8448
        %8950 = vmatpush.bf16.msra.mxu0 %v8447
        %8951 = vmatpush.bf16.msra.mxu0 %v8446
        %8952 = vmatmul.bf16.gmra.mxu0 %v7050
        %v8953 = vpop.f32.mrf.mxu0
        %v8954 = vadd.f32 %v8935, %v8953
        %v8955 = vpop.f32.mrf.mxu0
        %v8956 = vadd.f32 %v8937, %v8955
        %8957 = vmatmul.bf16.gmra.mxu0 %v7077
        %v8958 = vpop.f32.mrf.mxu0
        %v8959 = vadd.f32 %v8940, %v8958
        %v8960 = vpop.f32.mrf.mxu0
        %v8961 = vadd.f32 %v8942, %v8960
        %8962 = vdwg.mxu0
        %8963 = vmatpush.bf16.msra.mxu0 %v8461
        %8964 = vmatpush.bf16.msra.mxu0 %v8460
        %8965 = vmatpush.bf16.msra.mxu0 %v8459
        %8966 = vmatpush.bf16.msra.mxu0 %v8458
        %8967 = vmatpush.bf16.msra.mxu0 %v8457
        %8968 = vmatpush.bf16.msra.mxu0 %v8456
        %8969 = vmatpush.bf16.msra.mxu0 %v8455
        %8970 = vmatpush.bf16.msra.mxu0 %v8454
        %8971 = vmatmul.bf16.gmra.mxu0 %v7051
        %v8972 = vpop.f32.mrf.mxu0
        %v8973 = vadd.f32 %v8954, %v8972
        %v8974 = vpop.f32.mrf.mxu0
        %v8975 = vadd.f32 %v8956, %v8974
        %8976 = vmatmul.bf16.gmra.mxu0 %v7078
        %v8977 = vpop.f32.mrf.mxu0
        %v8978 = vadd.f32 %v8959, %v8977
        %v8979 = vpop.f32.mrf.mxu0
        %v8980 = vadd.f32 %v8961, %v8979
        %8981 = vdwg.mxu0
        %8982 = vmatpush.bf16.msra.mxu0 %v8469
        %8983 = vmatpush.bf16.msra.mxu0 %v8468
        %8984 = vmatpush.bf16.msra.mxu0 %v8467
        %8985 = vmatpush.bf16.msra.mxu0 %v8466
        %8986 = vmatpush.bf16.msra.mxu0 %v8465
        %8987 = vmatpush.bf16.msra.mxu0 %v8464
        %8988 = vmatpush.bf16.msra.mxu0 %v8463
        %8989 = vmatpush.bf16.msra.mxu0 %v8462
        %8990 = vmatmul.bf16.gmra.mxu0 %v7052
        %v8991 = vpop.f32.mrf.mxu0
        %v8992 = vadd.f32 %v8973, %v8991
        %v8993 = vpop.f32.mrf.mxu0
        %v8994 = vadd.f32 %v8975, %v8993
        %8995 = vmatmul.bf16.gmra.mxu0 %v7079
        %v8996 = vpop.f32.mrf.mxu0
        %v8997 = vadd.f32 %v8978, %v8996
        %v8998 = vpop.f32.mrf.mxu0
        %v8999 = vadd.f32 %v8980, %v8998
        %9000 = vdwg.mxu0
        %9001 = vmatpush.bf16.msra.mxu0 %v8477
        %9002 = vmatpush.bf16.msra.mxu0 %v8476
        %9003 = vmatpush.bf16.msra.mxu0 %v8475
        %9004 = vmatpush.bf16.msra.mxu0 %v8474
        %9005 = vmatpush.bf16.msra.mxu0 %v8473
        %9006 = vmatpush.bf16.msra.mxu0 %v8472
        %9007 = vmatpush.bf16.msra.mxu0 %v8471
        %9008 = vmatpush.bf16.msra.mxu0 %v8470
        %9009 = vmatmul.bf16.gmra.mxu0 %v7053
        %v9010 = vpop.f32.mrf.mxu0
        %v9011 = vadd.f32 %v8992, %v9010
        %v9012 = vpop.f32.mrf.mxu0
        %v9013 = vadd.f32 %v8994, %v9012
        %9014 = vmatmul.bf16.gmra.mxu0 %v7080
        %v9015 = vpop.f32.mrf.mxu0
        %v9016 = vadd.f32 %v8997, %v9015
        %v9017 = vpop.f32.mrf.mxu0
        %v9018 = vadd.f32 %v8999, %v9017
        %9019 = vdwg.mxu0
        %9020 = vmatpush.bf16.msra.mxu0 %v8485
        %9021 = vmatpush.bf16.msra.mxu0 %v8484
        %9022 = vmatpush.bf16.msra.mxu0 %v8483
        %9023 = vmatpush.bf16.msra.mxu0 %v8482
        %9024 = vmatpush.bf16.msra.mxu0 %v8481
        %9025 = vmatpush.bf16.msra.mxu0 %v8480
        %9026 = vmatpush.bf16.msra.mxu0 %v8479
        %9027 = vmatpush.bf16.msra.mxu0 %v8478
        %9028 = vmatmul.bf16.gmra.mxu0 %v7054
        %v9029 = vpop.f32.mrf.mxu0
        %v9030 = vadd.f32 %v9011, %v9029
        %v9031 = vpop.f32.mrf.mxu0
        %v9032 = vadd.f32 %v9013, %v9031
        %9033 = vmatmul.bf16.gmra.mxu0 %v7081
        %v9034 = vpop.f32.mrf.mxu0
        %v9035 = vadd.f32 %v9016, %v9034
        %v9036 = vpop.f32.mrf.mxu0
        %v9037 = vadd.f32 %v9018, %v9036
        %9038 = vdwg.mxu0
        %9039 = vmatpush.bf16.msra.mxu0 %v8493
        %9040 = vmatpush.bf16.msra.mxu0 %v8492
        %9041 = vmatpush.bf16.msra.mxu0 %v8491
        %9042 = vmatpush.bf16.msra.mxu0 %v8490
        %9043 = vmatpush.bf16.msra.mxu0 %v8489
        %9044 = vmatpush.bf16.msra.mxu0 %v8488
        %9045 = vmatpush.bf16.msra.mxu0 %v8487
        %9046 = vmatpush.bf16.msra.mxu0 %v8486
        %9047 = vmatmul.bf16.gmra.mxu0 %v7055
        %v9048 = vpop.f32.mrf.mxu0
        %v9049 = vadd.f32 %v9030, %v9048
        %v9050 = vpop.f32.mrf.mxu0
        %v9051 = vadd.f32 %v9032, %v9050
        %9052 = vmatmul.bf16.gmra.mxu0 %v7082
        %v9053 = vpop.f32.mrf.mxu0
        %v9054 = vadd.f32 %v9035, %v9053
        %v9055 = vpop.f32.mrf.mxu0
        %v9056 = vadd.f32 %v9037, %v9055
        %9057 = vdwg.mxu0
        %9058 = vmatpush.bf16.msra.mxu0 %v8501
        %9059 = vmatpush.bf16.msra.mxu0 %v8500
        %9060 = vmatpush.bf16.msra.mxu0 %v8499
        %9061 = vmatpush.bf16.msra.mxu0 %v8498
        %9062 = vmatpush.bf16.msra.mxu0 %v8497
        %9063 = vmatpush.bf16.msra.mxu0 %v8496
        %9064 = vmatpush.bf16.msra.mxu0 %v8495
        %9065 = vmatpush.bf16.msra.mxu0 %v8494
        %9066 = vmatmul.bf16.gmra.mxu0 %v7056
        %v9067 = vpop.f32.mrf.mxu0
        %v9068 = vadd.f32 %v9049, %v9067
        %v9069 = vpop.f32.mrf.mxu0
        %v9070 = vadd.f32 %v9051, %v9069
        %9071 = vmatmul.bf16.gmra.mxu0 %v7083
        %v9072 = vpop.f32.mrf.mxu0
        %v9073 = vadd.f32 %v9054, %v9072
        %v9074 = vpop.f32.mrf.mxu0
        %v9075 = vadd.f32 %v9056, %v9074
        %9076 = vdwg.mxu0
        %9077 = vmatpush.bf16.msra.mxu0 %v8509
        %9078 = vmatpush.bf16.msra.mxu0 %v8508
        %9079 = vmatpush.bf16.msra.mxu0 %v8507
        %9080 = vmatpush.bf16.msra.mxu0 %v8506
        %9081 = vmatpush.bf16.msra.mxu0 %v8505
        %9082 = vmatpush.bf16.msra.mxu0 %v8504
        %9083 = vmatpush.bf16.msra.mxu0 %v8503
        %9084 = vmatpush.bf16.msra.mxu0 %v8502
        %9085 = vmatmul.bf16.gmra.mxu0 %v7057
        %v9086 = vpop.f32.mrf.mxu0
        %v9087 = vadd.f32 %v9068, %v9086
        %v9088 = vpop.f32.mrf.mxu0
        %v9089 = vadd.f32 %v9070, %v9088
        %9090 = vmatmul.bf16.gmra.mxu0 %v7084
        %v9091 = vpop.f32.mrf.mxu0
        %v9092 = vadd.f32 %v9073, %v9091
        %v9093 = vpop.f32.mrf.mxu0
        %v9094 = vadd.f32 %v9075, %v9093
        %9095 = vdwg.mxu0
        %9096 = vmatpush.bf16.msra.mxu0 %v8517
        %9097 = vmatpush.bf16.msra.mxu0 %v8516
        %9098 = vmatpush.bf16.msra.mxu0 %v8515
        %9099 = vmatpush.bf16.msra.mxu0 %v8514
        %9100 = vmatpush.bf16.msra.mxu0 %v8513
        %9101 = vmatpush.bf16.msra.mxu0 %v8512
        %9102 = vmatpush.bf16.msra.mxu0 %v8511
        %9103 = vmatpush.bf16.msra.mxu0 %v8510
        %9104 = vmatmul.bf16.gmra.mxu0 %v7058
        %v9105 = vpop.f32.mrf.mxu0
        %v9106 = vadd.f32 %v9087, %v9105
        %v9107 = vpop.f32.mrf.mxu0
        %v9108 = vadd.f32 %v9089, %v9107
        %9109 = vmatmul.bf16.gmra.mxu0 %v7085
        %v9110 = vpop.f32.mrf.mxu0
        %v9111 = vadd.f32 %v9092, %v9110
        %v9112 = vpop.f32.mrf.mxu0
        %v9113 = vadd.f32 %v9094, %v9112
        %9114 = vdwg.mxu0
        %9115 = vmatpush.bf16.msra.mxu0 %v8525
        %9116 = vmatpush.bf16.msra.mxu0 %v8524
        %9117 = vmatpush.bf16.msra.mxu0 %v8523
        %9118 = vmatpush.bf16.msra.mxu0 %v8522
        %9119 = vmatpush.bf16.msra.mxu0 %v8521
        %9120 = vmatpush.bf16.msra.mxu0 %v8520
        %9121 = vmatpush.bf16.msra.mxu0 %v8519
        %9122 = vmatpush.bf16.msra.mxu0 %v8518
        %9123 = vmatmul.bf16.gmra.mxu0 %v7059
        %v9124 = vpop.f32.mrf.mxu0
        %v9125 = vadd.f32 %v9106, %v9124
        %v9126 = vpop.f32.mrf.mxu0
        %v9127 = vadd.f32 %v9108, %v9126
        %9128 = vmatmul.bf16.gmra.mxu0 %v7086
        %v9129 = vpop.f32.mrf.mxu0
        %v9130 = vadd.f32 %v9111, %v9129
        %v9131 = vpop.f32.mrf.mxu0
        %v9132 = vadd.f32 %v9113, %v9131
        %9133 = vdwg.mxu0
        %9134 = vmatpush.bf16.msra.mxu0 %v8533
        %9135 = vmatpush.bf16.msra.mxu0 %v8532
        %9136 = vmatpush.bf16.msra.mxu0 %v8531
        %9137 = vmatpush.bf16.msra.mxu0 %v8530
        %9138 = vmatpush.bf16.msra.mxu0 %v8529
        %9139 = vmatpush.bf16.msra.mxu0 %v8528
        %9140 = vmatpush.bf16.msra.mxu0 %v8527
        %9141 = vmatpush.bf16.msra.mxu0 %v8526
        %9142 = vmatmul.bf16.gmra.mxu0 %v7060
        %v9143 = vpop.f32.mrf.mxu0
        %v9144 = vadd.f32 %v9125, %v9143
        %v9145 = vpop.f32.mrf.mxu0
        %v9146 = vadd.f32 %v9127, %v9145
        %9147 = vmatmul.bf16.gmra.mxu0 %v7087
        %v9148 = vpop.f32.mrf.mxu0
        %v9149 = vadd.f32 %v9130, %v9148
        %v9150 = vpop.f32.mrf.mxu0
        %v9151 = vadd.f32 %v9132, %v9150
        %9152 = vdwg.mxu0
        %9153 = vmatpush.bf16.msra.mxu0 %v8541
        %9154 = vmatpush.bf16.msra.mxu0 %v8540
        %9155 = vmatpush.bf16.msra.mxu0 %v8539
        %9156 = vmatpush.bf16.msra.mxu0 %v8538
        %9157 = vmatpush.bf16.msra.mxu0 %v8537
        %9158 = vmatpush.bf16.msra.mxu0 %v8536
        %9159 = vmatpush.bf16.msra.mxu0 %v8535
        %9160 = vmatpush.bf16.msra.mxu0 %v8534
        %9161 = vmatmul.bf16.gmra.mxu0 %v7061
        %v9162 = vpop.f32.mrf.mxu0
        %v9163 = vadd.f32 %v9144, %v9162
        %v9164 = vpop.f32.mrf.mxu0
        %v9165 = vadd.f32 %v9146, %v9164
        %9166 = vmatmul.bf16.gmra.mxu0 %v7088
        %v9167 = vpop.f32.mrf.mxu0
        %v9168 = vadd.f32 %v9149, %v9167
        %v9169 = vpop.f32.mrf.mxu0
        %v9170 = vadd.f32 %v9151, %v9169
        %9171 = vdwg.mxu0
        %9172 = vmatpush.bf16.msra.mxu0 %v8549
        %9173 = vmatpush.bf16.msra.mxu0 %v8548
        %9174 = vmatpush.bf16.msra.mxu0 %v8547
        %9175 = vmatpush.bf16.msra.mxu0 %v8546
        %9176 = vmatpush.bf16.msra.mxu0 %v8545
        %9177 = vmatpush.bf16.msra.mxu0 %v8544
        %9178 = vmatpush.bf16.msra.mxu0 %v8543
        %9179 = vmatpush.bf16.msra.mxu0 %v8542
        %9180 = vmatmul.bf16.gmra.mxu0 %v7062
        %v9181 = vpop.f32.mrf.mxu0
        %v9182 = vadd.f32 %v9163, %v9181
        %v9183 = vpop.f32.mrf.mxu0
        %v9184 = vadd.f32 %v9165, %v9183
        %9185 = vmatmul.bf16.gmra.mxu0 %v7089
        %v9186 = vpop.f32.mrf.mxu0
        %v9187 = vadd.f32 %v9168, %v9186
        %v9188 = vpop.f32.mrf.mxu0
        %v9189 = vadd.f32 %v9170, %v9188
        %9190 = vdwg.mxu0
        %9191 = vmatpush.bf16.msra.mxu0 %v8557
        %9192 = vmatpush.bf16.msra.mxu0 %v8556
        %9193 = vmatpush.bf16.msra.mxu0 %v8555
        %9194 = vmatpush.bf16.msra.mxu0 %v8554
        %9195 = vmatpush.bf16.msra.mxu0 %v8553
        %9196 = vmatpush.bf16.msra.mxu0 %v8552
        %9197 = vmatpush.bf16.msra.mxu0 %v8551
        %9198 = vmatpush.bf16.msra.mxu0 %v8550
        %9199 = vmatmul.bf16.gmra.mxu0 %v7063
        %v9200 = vpop.f32.mrf.mxu0
        %v9201 = vadd.f32 %v9182, %v9200
        %v9202 = vpop.f32.mrf.mxu0
        %v9203 = vadd.f32 %v9184, %v9202
        %9204 = vmatmul.bf16.gmra.mxu0 %v7090
        %v9205 = vpop.f32.mrf.mxu0
        %v9206 = vadd.f32 %v9187, %v9205
        %v9207 = vpop.f32.mrf.mxu0
        %v9208 = vadd.f32 %v9189, %v9207
        %9209 = vdwg.mxu0
        %9210 = vmatpush.bf16.msra.mxu0 %v8565
        %9211 = vmatpush.bf16.msra.mxu0 %v8564
        %9212 = vmatpush.bf16.msra.mxu0 %v8563
        %9213 = vmatpush.bf16.msra.mxu0 %v8562
        %9214 = vmatpush.bf16.msra.mxu0 %v8561
        %9215 = vmatpush.bf16.msra.mxu0 %v8560
        %9216 = vmatpush.bf16.msra.mxu0 %v8559
        %9217 = vmatpush.bf16.msra.mxu0 %v8558
        %9218 = vmatmul.bf16.gmra.mxu0 %v7064
        %v9219 = vpop.f32.mrf.mxu0
        %v9220 = vadd.f32 %v9201, %v9219
        %v9221 = vpop.f32.mrf.mxu0
        %v9222 = vadd.f32 %v9203, %v9221
        %9223 = vmatmul.bf16.gmra.mxu0 %v7091
        %v9224 = vpop.f32.mrf.mxu0
        %v9225 = vadd.f32 %v9206, %v9224
        %v9226 = vpop.f32.mrf.mxu0
        %v9227 = vadd.f32 %v9208, %v9226
        %9228 = vdwg.mxu0
        %9229 = vmatpush.bf16.msra.mxu0 %v8573
        %9230 = vmatpush.bf16.msra.mxu0 %v8572
        %9231 = vmatpush.bf16.msra.mxu0 %v8571
        %9232 = vmatpush.bf16.msra.mxu0 %v8570
        %9233 = vmatpush.bf16.msra.mxu0 %v8569
        %9234 = vmatpush.bf16.msra.mxu0 %v8568
        %9235 = vmatpush.bf16.msra.mxu0 %v8567
        %9236 = vmatpush.bf16.msra.mxu0 %v8566
        %9237 = vmatmul.bf16.gmra.mxu0 %v7065
        %v9238 = vpop.f32.mrf.mxu0
        %v9239 = vadd.f32 %v9220, %v9238
        %v9240 = vpop.f32.mrf.mxu0
        %v9241 = vadd.f32 %v9222, %v9240
        %9242 = vmatmul.bf16.gmra.mxu0 %v7092
        %v9243 = vpop.f32.mrf.mxu0
        %v9244 = vadd.f32 %v9225, %v9243
        %v9245 = vpop.f32.mrf.mxu0
        %v9246 = vadd.f32 %v9227, %v9245
        %9247 = vdwg.mxu0
        %9248 = vmatpush.bf16.msra.mxu0 %v8581
        %9249 = vmatpush.bf16.msra.mxu0 %v8580
        %9250 = vmatpush.bf16.msra.mxu0 %v8579
        %9251 = vmatpush.bf16.msra.mxu0 %v8578
        %9252 = vmatpush.bf16.msra.mxu0 %v8577
        %9253 = vmatpush.bf16.msra.mxu0 %v8576
        %9254 = vmatpush.bf16.msra.mxu0 %v8575
        %9255 = vmatpush.bf16.msra.mxu0 %v8574
        %9256 = vmatmul.bf16.gmra.mxu0 %v7066
        %v9257 = vpop.f32.mrf.mxu0
        %v9258 = vadd.f32 %v9239, %v9257
        %v9259 = vpop.f32.mrf.mxu0
        %v9260 = vadd.f32 %v9241, %v9259
        %9261 = vmatmul.bf16.gmra.mxu0 %v7093
        %v9262 = vpop.f32.mrf.mxu0
        %v9263 = vadd.f32 %v9244, %v9262
        %v9264 = vpop.f32.mrf.mxu0
        %v9265 = vadd.f32 %v9246, %v9264
        %9266 = vdwg.mxu0
        %9267 = vmatpush.bf16.msra.mxu0 %v8589
        %9268 = vmatpush.bf16.msra.mxu0 %v8588
        %9269 = vmatpush.bf16.msra.mxu0 %v8587
        %9270 = vmatpush.bf16.msra.mxu0 %v8586
        %9271 = vmatpush.bf16.msra.mxu0 %v8585
        %9272 = vmatpush.bf16.msra.mxu0 %v8584
        %9273 = vmatpush.bf16.msra.mxu0 %v8583
        %9274 = vmatpush.bf16.msra.mxu0 %v8582
        %9275 = vmatmul.bf16.gmra.mxu0 %v7067
        %v9276 = vpop.f32.mrf.mxu0
        %v9277 = vadd.f32 %v9258, %v9276
        %v9278 = vpop.f32.mrf.mxu0
        %v9279 = vadd.f32 %v9260, %v9278
        %9280 = vmatmul.bf16.gmra.mxu0 %v7094
        %v9281 = vpop.f32.mrf.mxu0
        %v9282 = vadd.f32 %v9263, %v9281
        %v9283 = vpop.f32.mrf.mxu0
        %v9284 = vadd.f32 %v9265, %v9283
        %9285 = vdwg.mxu0
        %9286 = vmatpush.bf16.msra.mxu0 %v8597
        %9287 = vmatpush.bf16.msra.mxu0 %v8596
        %9288 = vmatpush.bf16.msra.mxu0 %v8595
        %9289 = vmatpush.bf16.msra.mxu0 %v8594
        %9290 = vmatpush.bf16.msra.mxu0 %v8593
        %9291 = vmatpush.bf16.msra.mxu0 %v8592
        %9292 = vmatpush.bf16.msra.mxu0 %v8591
        %9293 = vmatpush.bf16.msra.mxu0 %v8590
        %9294 = vmatmul.bf16.gmra.mxu0 %v7068
        %v9295 = vpop.f32.mrf.mxu0
        %v9296 = vadd.f32 %v9277, %v9295
        %v9297 = vpop.f32.mrf.mxu0
        %v9298 = vadd.f32 %v9279, %v9297
        %9299 = vmatmul.bf16.gmra.mxu0 %v7095
        %v9300 = vpop.f32.mrf.mxu0
        %v9301 = vadd.f32 %v9282, %v9300
        %v9302 = vpop.f32.mrf.mxu0
        %v9303 = vadd.f32 %v9284, %v9302
        %9304 = vdwg.mxu0
        %9305 = vmatpush.bf16.msra.mxu0 %v8605
        %9306 = vmatpush.bf16.msra.mxu0 %v8604
        %9307 = vmatpush.bf16.msra.mxu0 %v8603
        %9308 = vmatpush.bf16.msra.mxu0 %v8602
        %9309 = vmatpush.bf16.msra.mxu0 %v8601
        %9310 = vmatpush.bf16.msra.mxu0 %v8600
        %9311 = vmatpush.bf16.msra.mxu0 %v8599
        %9312 = vmatpush.bf16.msra.mxu0 %v8598
        %9313 = vmatmul.bf16.gmra.mxu0 %v7069
        %v9314 = vpop.f32.mrf.mxu0
        %v9315 = vadd.f32 %v9296, %v9314
        %v9316 = vpop.f32.mrf.mxu0
        %v9317 = vadd.f32 %v9298, %v9316
        %9318 = vmatmul.bf16.gmra.mxu0 %v7096
        %v9319 = vpop.f32.mrf.mxu0
        %v9320 = vadd.f32 %v9301, %v9319
        %v9321 = vpop.f32.mrf.mxu0
        %v9322 = vadd.f32 %v9303, %v9321
        %9323 = vdwg.mxu0
        %9324 = vmatpush.bf16.msra.mxu0 %v8613
        %9325 = vmatpush.bf16.msra.mxu0 %v8612
        %9326 = vmatpush.bf16.msra.mxu0 %v8611
        %9327 = vmatpush.bf16.msra.mxu0 %v8610
        %9328 = vmatpush.bf16.msra.mxu0 %v8609
        %9329 = vmatpush.bf16.msra.mxu0 %v8608
        %9330 = vmatpush.bf16.msra.mxu0 %v8607
        %9331 = vmatpush.bf16.msra.mxu0 %v8606
        %9332 = vmatmul.bf16.gmra.mxu0 %v7070
        %v9333 = vpop.f32.mrf.mxu0
        %v9334 = vadd.f32 %v9315, %v9333
        %v9335 = vpop.f32.mrf.mxu0
        %v9336 = vadd.f32 %v9317, %v9335
        %9337 = vmatmul.bf16.gmra.mxu0 %v7097
        %v9338 = vpop.f32.mrf.mxu0
        %v9339 = vadd.f32 %v9320, %v9338
        %v9340 = vpop.f32.mrf.mxu0
        %v9341 = vadd.f32 %v9322, %v9340
        %9342 = vdwg.mxu0
        %v9343 = vmax.f32 %v9334, 0.0
        %v9344 = vmax.f32 %v9336, 0.0
        %v9345 = vmax.f32 %v9339, 0.0
        %v9346 = vmax.f32 %v9341, 0.0
        %v9347 = vrot.slane %v9343, 4
        %v9348 = vmax.f32 %v9343, %v9347
        %v9349 = vrot.slane %v9348, 2
        %v9350 = vmax.f32 %v9348, %v9349
        %v9351 = vrot.slane %v9350, 1
        %v9352 = vmax.f32 %v9350, %v9351
        %v9353 = vrot.slane %v9344, 4
        %v9354 = vmax.f32 %v9344, %v9353
        %v9355 = vrot.slane %v9354, 2
        %v9356 = vmax.f32 %v9354, %v9355
        %v9357 = vrot.slane %v9356, 1
        %v9358 = vmax.f32 %v9356, %v9357
        %v9359 = vrot.slane %v9345, 4
        %v9360 = vmax.f32 %v9345, %v9359
        %v9361 = vrot.slane %v9360, 2
        %v9362 = vmax.f32 %v9360, %v9361
        %v9363 = vrot.slane %v9362, 1
        %v9364 = vmax.f32 %v9362, %v9363
        %v9365 = vrot.slane %v9346, 4
        %v9366 = vmax.f32 %v9346, %v9365
        %v9367 = vrot.slane %v9366, 2
        %v9368 = vmax.f32 %v9366, %v9367
        %v9369 = vrot.slane %v9368, 1
        %v9370 = vmax.f32 %v9368, %v9369
        %v9371 = vld [vmem:[%s535] sm:$0xf]
        %vm9372 = vcmp.ne.f32.partialorder %v9371, 0.0
        %v9373 = vsel %vm9372, 1.0, 0.0
        %v9374 = vlaneseq
        %v9375 = vshrl.u32 %v9374, 7
        %v9376 = vlaneseq
        %v9377 = vand.u32 %v9376, 127
        %vm9378 = vcmp.eq.s32.totalorder %v9375, %v9377
        %v9379 = vsel %vm9378, 1.0, %v9373
        %vm9380 = vcmask 27648
        %v9381 = vsel %vm9380, %v9379, 0.0
        %9382 = vadd.xlane.f32.xlu0 %v9381
        %v9383 = vpop.xlane.xlu0 %9382
        %v9384 = vrot.slane %v9381, 4
        %v9385 = vadd.f32 %v9381, %v9384
        %v9386 = vrot.slane %v9385, 2
        %v9387 = vadd.f32 %v9385, %v9386
        %v9388 = vrot.slane %v9387, 1
        %v9389 = vadd.f32 %v9387, %v9388
        %vm9390 = vcmp.gt.f32.partialorder %v9383, 0.0
        %v9391 = vrsqrt.pop %v9383
        %v9392 = vmul.f32 %v9391, %v9383
        %v9393 = vmul.f32 %v9392, %v9391
        %v9394 = vmul.f32 0.5, %v9393
        %v9395 = vsub.f32 1.5, %v9394
        %v9396 = vmul.f32 %v9391, %v9395
        %vm9397 = vweird.f32 %v9383
        %vm9398 = vweird.f32 %v9391
        %vm9399 = vmor %vm9397, %vm9398
        %v9400 = vsel %vm9399, %v9391, %v9396
        %v9401 = vsel %vm9390, %v9400, 0.0
        %vm9402 = vcmp.gt.f32.partialorder %v9389, 0.0
        %v9403 = vrsqrt.pop %v9389
        %v9404 = vmul.f32 %v9403, %v9389
        %v9405 = vmul.f32 %v9404, %v9403
        %v9406 = vmul.f32 0.5, %v9405
        %v9407 = vsub.f32 1.5, %v9406
        %v9408 = vmul.f32 %v9403, %v9407
        %vm9409 = vweird.f32 %v9389
        %vm9410 = vweird.f32 %v9403
        %vm9411 = vmor %vm9409, %vm9410
        %v9412 = vsel %vm9411, %v9403, %v9408
        %v9413 = vsel %vm9402, %v9412, 0.0
        %v9414 = vmul.f32 %v9401, %v9379
        %v9415 = vmul.f32 %v9414, %v9413
        %v9416 = vpack.c.bf16 %v9352, %v9352
        %v9417 = vpack.c.bf16 %v9358, %v9358
        %v9418 = vpack.c.bf16 %v9364, %v9364
        %v9419 = vpack.c.bf16 %v9370, %v9370
        %v9420 = vld [vmem:[%s6] sm:$0xf]
        %v9421 = vld [vmem:[%s6 + $0x4] sm:$0xf]
        %v9422 = vld [vmem:[%s6 + $0x8] sm:$0xf]
        %v9423 = vld [vmem:[%s6 + $0xc] sm:$0xf]
        %v9424 = vld [vmem:[%s6 + $0x10] sm:$0xf]
        %v9425 = vld [vmem:[%s6 + $0x14] sm:$0xf]
        %v9426 = vld [vmem:[%s6 + $0x18] sm:$0xf]
        %v9427 = vld [vmem:[%s6 + $0x1c] sm:$0xf]
        %v9428 = vld [vmem:[%s6 + $0x20] sm:$0xf]
        %v9429 = vld [vmem:[%s6 + $0x24] sm:$0xf]
        %v9430 = vld [vmem:[%s6 + $0x28] sm:$0xf]
        %v9431 = vld [vmem:[%s6 + $0x2c] sm:$0xf]
        %v9432 = vld [vmem:[%s6 + $0x30] sm:$0xf]
        %v9433 = vld [vmem:[%s6 + $0x34] sm:$0xf]
        %v9434 = vld [vmem:[%s6 + $0x38] sm:$0xf]
        %v9435 = vld [vmem:[%s6 + $0x3c] sm:$0xf]
        %v9440 = vunpack.c.l.b16 %v9416
        %v9441 = vunpack.c.l.b16 %v9417
        %v9442 = vunpack.c.l.b16 %v9418
        %v9443 = vunpack.c.l.b16 %v9419
        %vm9444 = vcmask 1041409
        %v9445 = vsel %vm9444, %v9441, %v9440
        %vm9446 = vcmask 1042434
        %v9447 = vsel %vm9446, %v9442, %v9445
        %vm9448 = vcmask 1043459
        %v9449 = vsel %vm9448, %v9443, %v9447
        %v9450 = vpack.c.b16 %v9449, %v9449
        %v9468 = vunpack.c.l.b16 %v9420
        %v9469 = vunpack.c.l.b16 %v9421
        %v9470 = vunpack.c.l.b16 %v9422
        %v9471 = vunpack.c.l.b16 %v9423
        %v9472 = vunpack.c.l.b16 %v9424
        %v9473 = vunpack.c.l.b16 %v9425
        %v9474 = vunpack.c.l.b16 %v9426
        %v9475 = vunpack.c.l.b16 %v9427
        %v9476 = vunpack.c.l.b16 %v9428
        %v9477 = vunpack.c.l.b16 %v9429
        %v9478 = vunpack.c.l.b16 %v9430
        %v9479 = vunpack.c.l.b16 %v9431
        %v9480 = vunpack.c.l.b16 %v9432
        %v9481 = vunpack.c.l.b16 %v9433
        %v9482 = vunpack.c.l.b16 %v9434
        %v9483 = vunpack.c.l.b16 %v9435
        %v9484 = vpack.c.b16 %v9469, %v9468
        %v9485 = vpack.c.b16 %v9471, %v9470
        %v9486 = vpack.c.b16 %v9473, %v9472
        %v9487 = vpack.c.b16 %v9475, %v9474
        %v9488 = vpack.c.b16 %v9477, %v9476
        %v9489 = vpack.c.b16 %v9479, %v9478
        %v9490 = vpack.c.b16 %v9481, %v9480
        %v9491 = vpack.c.b16 %v9483, %v9482
        %9500 = vmatpush.bf16.msra.mxu0 %v9491
        %9501 = vmatpush.bf16.msra.mxu0 %v9490
        %9502 = vmatpush.bf16.msra.mxu0 %v9489
        %9503 = vmatpush.bf16.msra.mxu0 %v9488
        %9504 = vmatpush.bf16.msra.mxu0 %v9487
        %9505 = vmatpush.bf16.msra.mxu0 %v9486
        %9506 = vmatpush.bf16.msra.mxu0 %v9485
        %9507 = vmatpush.bf16.msra.mxu0 %v9484
        %9508 = vmatmul.bf16.gmra.mxu0 %v9450
        %v9509 = vpop.f32.mrf.mxu0
        %v9510 = vadd.f32 0.0, %v9509
        %v9511 = vpop.f32.mrf.mxu0
        %9512 = vdwg.mxu0
        %v9513 = vld [vmem:[%s7] sm:$0x1]
        %v9515 = vperm.slane %v9513, 0
        %vm9517 = vcmask 31744
        %v9519 = vsel %vm9517, %v9415, 0
        %v9522 = vsel %vm6465, %v9510, 0
        %9524 = vmatpush.msra.mxu0 0.0
        %9525 = vmatpush.msra.mxu0 0.0
        %9526 = vmatpush.msra.mxu0 0.0
        %9527 = vmatpush.msra.mxu0 0.0
        %9528 = vmatpush.msra.mxu0 0.0
        %9529 = vmatpush.msra.mxu0 0.0
        %9530 = vmatpush.msra.mxu0 0.0
        %9531 = vmatpush.msra.mxu0 0.0
        %9532 = vmatpush.msra.mxu0 0.0
        %9533 = vmatpush.msra.mxu0 0.0
        %9534 = vmatpush.msra.mxu0 0.0
        %9535 = vmatpush.msra.mxu0 0.0
        %9536 = vmatpush.msra.mxu0 0.0
        %9537 = vmatpush.msra.mxu0 0.0
        %9538 = vmatpush.msra.mxu0 0.0
        %9539 = vmatpush.msra.mxu0 %v9522
        %9540 = vmatmul.f32.gmra.mxu0 %v9519
        %v9541 = vpop.f32.mrf.mxu0
        %v9542 = vadd.f32 %v9515, %v9541
        %9543 = vdwg.mxu0
        %v9544 = vmax.f32 %v9542, 0.0
        %v9545 = vpack.c.bf16 %v9544, %v9544
        %v9546 = vld [vmem:[%s8] sm:$0xf]
        %v9547 = vld [vmem:[%s8 + $0x4] sm:$0xf]
        %v9548 = vld [vmem:[%s8 + $0x8] sm:$0xf]
        %v9549 = vld [vmem:[%s8 + $0xc] sm:$0xf]
        %v9550 = vld [vmem:[%s8 + $0x10] sm:$0xf]
        %v9551 = vld [vmem:[%s8 + $0x14] sm:$0xf]
        %v9552 = vld [vmem:[%s8 + $0x18] sm:$0xf]
        %v9553 = vld [vmem:[%s8 + $0x1c] sm:$0xf]
        %v9554 = vld [vmem:[%s8 + $0x20] sm:$0xf]
        %v9555 = vld [vmem:[%s8 + $0x24] sm:$0xf]
        %v9556 = vld [vmem:[%s8 + $0x28] sm:$0xf]
        %v9557 = vld [vmem:[%s8 + $0x2c] sm:$0xf]
        %v9558 = vld [vmem:[%s8 + $0x30] sm:$0xf]
        %v9559 = vld [vmem:[%s8 + $0x34] sm:$0xf]
        %v9560 = vld [vmem:[%s8 + $0x38] sm:$0xf]
        %v9561 = vld [vmem:[%s8 + $0x3c] sm:$0xf]
        %v9578 = vunpack.c.l.b16 %v9546
        %v9579 = vunpack.c.l.b16 %v9547
        %v9580 = vunpack.c.l.b16 %v9548
        %v9581 = vunpack.c.l.b16 %v9549
        %v9582 = vunpack.c.l.b16 %v9550
        %v9583 = vunpack.c.l.b16 %v9551
        %v9584 = vunpack.c.l.b16 %v9552
        %v9585 = vunpack.c.l.b16 %v9553
        %v9586 = vunpack.c.l.b16 %v9554
        %v9587 = vunpack.c.l.b16 %v9555
        %v9588 = vunpack.c.l.b16 %v9556
        %v9589 = vunpack.c.l.b16 %v9557
        %v9590 = vunpack.c.l.b16 %v9558
        %v9591 = vunpack.c.l.b16 %v9559
        %v9592 = vunpack.c.l.b16 %v9560
        %v9593 = vunpack.c.l.b16 %v9561
        %v9594 = vpack.c.b16 %v9579, %v9578
        %v9595 = vpack.c.b16 %v9581, %v9580
        %v9596 = vpack.c.b16 %v9583, %v9582
        %v9597 = vpack.c.b16 %v9585, %v9584
        %v9598 = vpack.c.b16 %v9587, %v9586
        %v9599 = vpack.c.b16 %v9589, %v9588
        %v9600 = vpack.c.b16 %v9591, %v9590
        %v9601 = vpack.c.b16 %v9593, %v9592
        %9610 = vmatpush.bf16.msra.mxu0 %v9601
        %9611 = vmatpush.bf16.msra.mxu0 %v9600
        %9612 = vmatpush.bf16.msra.mxu0 %v9599
        %9613 = vmatpush.bf16.msra.mxu0 %v9598
        %9614 = vmatpush.bf16.msra.mxu0 %v9597
        %9615 = vmatpush.bf16.msra.mxu0 %v9596
        %9616 = vmatpush.bf16.msra.mxu0 %v9595
        %9617 = vmatpush.bf16.msra.mxu0 %v9594
        %9618 = vmatmul.bf16.gmra.mxu0 %v9545
        %v9619 = vpop.f32.mrf.mxu0
        %v9620 = vadd.f32 0.0, %v9619
        %v9621 = vpop.f32.mrf.mxu0
        %9622 = vdwg.mxu0
        %v9623 = vld [vmem:[%s9] sm:$0x1]
        %v9625 = vperm.slane %v9623, 0
        %v9628 = vsel %vm6465, %v9620, 0
        %9630 = vmatpush.msra.mxu0 0.0
        %9631 = vmatpush.msra.mxu0 0.0
        %9632 = vmatpush.msra.mxu0 0.0
        %9633 = vmatpush.msra.mxu0 0.0
        %9634 = vmatpush.msra.mxu0 0.0
        %9635 = vmatpush.msra.mxu0 0.0
        %9636 = vmatpush.msra.mxu0 0.0
        %9637 = vmatpush.msra.mxu0 0.0
        %9638 = vmatpush.msra.mxu0 0.0
        %9639 = vmatpush.msra.mxu0 0.0
        %9640 = vmatpush.msra.mxu0 0.0
        %9641 = vmatpush.msra.mxu0 0.0
        %9642 = vmatpush.msra.mxu0 0.0
        %9643 = vmatpush.msra.mxu0 0.0
        %9644 = vmatpush.msra.mxu0 0.0
        %9645 = vmatpush.msra.mxu0 %v9628
        %9646 = vmatmul.f32.gmra.mxu0 %v9519
        %v9647 = vpop.f32.mrf.mxu0
        %v9648 = vadd.f32 %v9625, %v9647
        %9649 = vdwg.mxu0
        %v9650 = vmax.f32 %v9648, 0.0
        %v9651 = vpack.c.bf16 %v9650, %v9650
        %v9652 = vld [vmem:[%s10] sm:$0xf]
        %v9653 = vld [vmem:[%s10 + $0x4] sm:$0xf]
        %v9654 = vld [vmem:[%s10 + $0x8] sm:$0xf]
        %v9655 = vld [vmem:[%s10 + $0xc] sm:$0xf]
        %v9656 = vld [vmem:[%s10 + $0x10] sm:$0xf]
        %v9657 = vld [vmem:[%s10 + $0x14] sm:$0xf]
        %v9658 = vld [vmem:[%s10 + $0x18] sm:$0xf]
        %v9659 = vld [vmem:[%s10 + $0x1c] sm:$0xf]
        %v9668 = vunpack.c.l.b16 %v9652
        %v9669 = vunpack.c.l.b16 %v9653
        %v9670 = vunpack.c.l.b16 %v9654
        %v9671 = vunpack.c.l.b16 %v9655
        %v9672 = vunpack.c.l.b16 %v9656
        %v9673 = vunpack.c.l.b16 %v9657
        %v9674 = vunpack.c.l.b16 %v9658
        %v9675 = vunpack.c.l.b16 %v9659
        %v9676 = vpack.c.b16 %v9669, %v9668
        %v9677 = vpack.c.b16 %v9671, %v9670
        %v9678 = vpack.c.b16 %v9673, %v9672
        %v9679 = vpack.c.b16 %v9675, %v9674
        %vm9684 = vcmask 523264
        %v9686 = vsel %vm9684, %v9651, 0
        %9688 = vmatpush.bf16.msra.mxu0 0
        %9689 = vmatpush.bf16.msra.mxu0 0
        %9690 = vmatpush.bf16.msra.mxu0 0
        %9691 = vmatpush.bf16.msra.mxu0 0
        %9692 = vmatpush.bf16.msra.mxu0 %v9679
        %9693 = vmatpush.bf16.msra.mxu0 %v9678
        %9694 = vmatpush.bf16.msra.mxu0 %v9677
        %9695 = vmatpush.bf16.msra.mxu0 %v9676
        %9696 = vmatmul.bf16.gmra.mxu0 %v9686
        %v9697 = vpop.f32.mrf.mxu0
        %v9698 = vadd.f32 0.0, %v9697
        %v9699 = vpop.f32.mrf.mxu0
        %9700 = vdwg.mxu0
        %v9701 = vld [vmem:[%s11] sm:$0x1]
        %v9703 = vperm.slane %v9701, 0
        %v9706 = vsel %vm6465, %v9698, 0
        %9708 = vmatpush.msra.mxu0 0.0
        %9709 = vmatpush.msra.mxu0 0.0
        %9710 = vmatpush.msra.mxu0 0.0
        %9711 = vmatpush.msra.mxu0 0.0
        %9712 = vmatpush.msra.mxu0 0.0
        %9713 = vmatpush.msra.mxu0 0.0
        %9714 = vmatpush.msra.mxu0 0.0
        %9715 = vmatpush.msra.mxu0 0.0
        %9716 = vmatpush.msra.mxu0 0.0
        %9717 = vmatpush.msra.mxu0 0.0
        %9718 = vmatpush.msra.mxu0 0.0
        %9719 = vmatpush.msra.mxu0 0.0
        %9720 = vmatpush.msra.mxu0 0.0
        %9721 = vmatpush.msra.mxu0 0.0
        %9722 = vmatpush.msra.mxu0 0.0
        %9723 = vmatpush.msra.mxu0 %v9706
        %9724 = vmatmul.f32.gmra.mxu0 %v9519
        %v9725 = vpop.f32.mrf.mxu0
        %v9726 = vadd.f32 %v9703, %v9725
        %9727 = vdwg.mxu0
        %vm9728 = vcmask 257024
        %v9729 = vsel %vm9728, %v9726, -inf
        %9730 = vmax.xlane.f32.xlu0 %v9729
        %v9731 = vpop.xlane.xlu0 %9730
        %v9734 = vunpack.c.l.s4 269488144
        %v9735 = vunpack.c.0.s8 %v9734
        %v9736 = vperm.slane %v9731, %v9735
        %v9738 = vunpack.c.l.s4 842150450
        %v9739 = vunpack.c.0.s8 %v9738
        %v9740 = vperm.slane %v9731, %v9739
        %9741 = vst [vmem:[#allocation1] ss:$4 sm:$0xff] %v9736
        %v9742 = vld.sshfl [vmem:[#allocation1] sm:$0xff pattern:$0x73625140]
        %s9743 = scalar_lea.vmem [#allocation1], 32
        %9744 = vst [vmem:[%s9743] ss:$4 sm:$0xff] %v9740
        %v9745 = vld.sshfl [vmem:[#allocation1 + $0x20] sm:$0xff pattern:$0x73625140]
        %9746 = vset.pattern.permute.xlu0 0
        %9747 = vperm.xlu0 %9746, %v9742
        %v9748 = vpop.permute.xlu0 %9747
        %9749 = vset.pattern.permute.xlu0 0
        %9750 = vperm.xlu0 %9749, %v9745
        %v9751 = vpop.permute.xlu0 %9750
        %v9752 = vperm.slane %v9748, %v9377
        %v9753 = vperm.slane %v9751, %v9377
        %v9754 = vsel %vm9444, %v9753, %v9752
        %vm9756 = vcmask 9216
        %v9757 = vsel %vm9756, %v9754, -inf
        %9758 = vmax.xlane.f32.xlu0 %v9757
        %v9759 = vpop.xlane.xlu0 %9758
        %v9760 = vld [vmem:[%s12] sm:$0x3]
        %v9761 = vld [vmem:[%s13] sm:$0x1]
        %v9763 = vperm.slane %v9759, %v9377
        %vm9764 = vcmask 15360
        %v9765 = vsel %vm9764, %v9763, 0
        %v9768 = vsel %vm3085, %v9760, 0
        %9770 = vmatpush.msra.mxu0 0.0
        %9771 = vmatpush.msra.mxu0 0.0
        %9772 = vmatpush.msra.mxu0 0.0
        %9773 = vmatpush.msra.mxu0 0.0
        %9774 = vmatpush.msra.mxu0 0.0
        %9775 = vmatpush.msra.mxu0 0.0
        %9776 = vmatpush.msra.mxu0 0.0
        %9777 = vmatpush.msra.mxu0 0.0
        %9778 = vmatpush.msra.mxu0 0.0
        %9779 = vmatpush.msra.mxu0 0.0
        %9780 = vmatpush.msra.mxu0 0.0
        %9781 = vmatpush.msra.mxu0 0.0
        %9782 = vmatpush.msra.mxu0 0.0
        %9783 = vmatpush.msra.mxu0 0.0
        %9784 = vmatpush.msra.mxu0 0.0
        %9785 = vmatpush.msra.mxu0 %v9768
        %9786 = vmatmul.f32.gmra.mxu0 %v9765
        %v9787 = vpop.f32.mrf.mxu0
        %v9788 = vadd.f32 %v9761, %v9787
        %9789 = vdwg.mxu0
        %v9790 = vmax.f32 %v9788, 0.0
        %v9791 = vld [vmem:[%s14] sm:$0xf]
        %v9792 = vld [vmem:[%s15] sm:$0x1]
        %v9794 = vsel %vm9517, %v9790, 0
        %v9797 = vsel %vm6465, %v9791, 0
        %9799 = vmatpush.msra.mxu0 0.0
        %9800 = vmatpush.msra.mxu0 0.0
        %9801 = vmatpush.msra.mxu0 0.0
        %9802 = vmatpush.msra.mxu0 0.0
        %9803 = vmatpush.msra.mxu0 0.0
        %9804 = vmatpush.msra.mxu0 0.0
        %9805 = vmatpush.msra.mxu0 0.0
        %9806 = vmatpush.msra.mxu0 0.0
        %9807 = vmatpush.msra.mxu0 0.0
        %9808 = vmatpush.msra.mxu0 0.0
        %9809 = vmatpush.msra.mxu0 0.0
        %9810 = vmatpush.msra.mxu0 0.0
        %9811 = vmatpush.msra.mxu0 0.0
        %9812 = vmatpush.msra.mxu0 0.0
        %9813 = vmatpush.msra.mxu0 0.0
        %9814 = vmatpush.msra.mxu0 %v9797
        %9815 = vmatmul.f32.gmra.mxu0 %v9794
        %v9816 = vpop.f32.mrf.mxu0
        %v9817 = vadd.f32 %v9792, %v9816
        %9818 = vdwg.mxu0
        %vm9819 = vcmask 16384
        %v9820 = vsel %vm9819, %v9817, -inf
        %9821 = vmax.xlane.f32.xlu0 %v9820
        %v9822 = vpop.xlane.xlu0 %9821
        %v9823 = vsub.f32 %v9817, %v9822
        %v9824 = vmul.f32 %v9823, 1.442695
        %v9825 = vpow.pop %v9824
        %v9826 = vsel %vm9819, %v9825, 0.0
        %9827 = vadd.xlane.f32.xlu0 %v9826
        %v9828 = vpop.xlane.xlu0 %9827
        %v9829 = vrcp.pop %v9828
        %v9830 = vmul.f32 %v9828, %v9829
        %v9831 = vsub.f32 1.0, %v9830
        %v9832 = vmul.f32 %v9829, %v9831
        %v9833 = vadd.f32 %v9829, %v9832
        %vm9834 = vweird.f32 %v9828
        %vm9835 = vweird.f32 %v9829
        %vm9836 = vmor %vm9834, %vm9835
        %v9837 = vsel %vm9836, %v9829, %v9833
        %v9838 = vand.u32 2147483647, %v9828
        %vm9839 = vcmp.eq.f32.partialorder %v9838, 8.507059e+37
        %v9840 = vand.u32 %v9828, 2147483648
        %v9841 = vor.u32 1.1754944e-38, %v9840
        %v9842 = vsel %vm9839, %v9841, %v9837
        %v9843 = vmul.f32 %v9825, %v9842
        %9844 = vst.msk [vmem:[%s526] sm:$0x1] %vm9819, %v9843
        %s9845 = sand.u32 %s384, 1
        %s9846 = scalar_lea.sflag [#allocation3], %s9845
        %s9847 = sand.u32 %s384, 1
        %s9848 = scalar_lea.vmem [#allocation2], %s9847
        // Predicated region
        $region85: #{gcn_forward.1} parent=83 // pred_check
          %p9849 = pneg %p394
        $region86: #{gcn_forward.1} parent=83 // pred_check_branch
          %9851 = sbr.rel (%p9849) target = $region88
        $region87: #{gcn_forward.1} parent=83 // pred_region
          %9853 = vsyncadd %s9846, 0
          %s9854 = scalar_lea.hbm %s16, %s30
          %s9856 = sshll.u32 %s9848, 4
          %s9857 = int_to_ptr.vmem [resolvable:$true] %s9856
          %s9858 = sshll.u32 %s9854, 4
          %s9859 = int_to_ptr.hbm [resolvable:$true] %s9858
          %9861 = dma.vmem_to_hbm [thread:$0]  %s9857, 16, %s9859, %s9846
        $region88: #{gcn_forward.1} parent=83 // pred_fallthru
          _
      $region84: #{gcn_forward.1} parent=5 // pred_fallthru
        _
      %p9862 = scmp.le.s32.totalorder 2, %s25
      // Predicated region
      $region89: #{gcn_forward.1} parent=5 // pred_check
        %p9863 = pneg %p9862
      $region90: #{gcn_forward.1} parent=5 // pred_check_branch
        %9865 = sbr.rel (%p9863) target = $region92
      $region91: #{gcn_forward.1} parent=5 // pred_region
        %s9866 = ssub.s32 %s25, 2
        // Predicated region
        $region93: #{gcn_forward.1} parent=91 // pred_check
          %p9867 = pneg %p400
        $region94: #{gcn_forward.1} parent=91 // pred_check_branch
          %9869 = sbr.rel (%p9867) target = $region96
        $region95: #{gcn_forward.1} parent=91 // pred_region
          %s9870 = sand.u32 %s385, 1
          %s9871 = scalar_lea.sflag [#allocation3], %s9870
          %s9872 = sand.u32 %s385, 1
          %s9873 = scalar_lea.vmem [#allocation2], %s9872
          %9875 = dma.done %s9871, 16
        $region96: #{gcn_forward.1} parent=91 // pred_fallthru
          _
      $region92: #{gcn_forward.1} parent=5 // pred_fallthru
        _
    $region6: #{gcn_forward.1} parent=1 // loop_footer
      %s29 = sadd.s32 1, %s25
    $region7: #{gcn_forward.1} parent=1 // loop_footer_branch
      %24 = sbr.rel target = $region3
    $region8: #{gcn_forward.1} parent=1 // loop_exit
      _
    %9876 = vsyncpa [#allocation3], 1
    %s9877 = scalar_lea.sflag [#allocation3], 1
    %9878 = vsyncpa %s9877, 1

</llo_original>
